<compile_context>
chip_gen: v7x
topology: tpu7x:2x2x1
jax: 0.10.0
libtpu: 0.0.40
codegen_flags: <defaults>
</compile_context>

<pallas_src>
import functools

import jax
import jax.numpy as jnp
from jax import lax
from jax.experimental import pallas as pl
from jax.experimental.pallas import tpu as pltpu

EPS = 1e-5
LANE = 128
SUBLANE = 8


def _round_up(n, m):
    return ((n + m - 1) // m) * m


def _row_tiling(total_rows, target):
    """Pick a row tile: prefer an exact divisor near `target`; else cdiv grid + zero-pad."""
    hi = min(total_rows, 2 * target)
    lo = max(SUBLANE, target // 2)
    for t in range(hi, lo - 1, -1):
        if total_rows % t == 0 and t % SUBLANE == 0:
            return t, total_rows // t, total_rows
    tm = min(target, _round_up(total_rows, SUBLANE))
    n_tiles = -(-total_rows // tm)
    return tm, n_tiles, n_tiles * tm


@functools.lru_cache(maxsize=None)
def _vmem_limit_bytes():
    """Generation-aware VMEM budget: ~half of physical (32 MB on v7x, 64 MB on v5e/v6e)."""
    try:
        cap = int(pltpu.get_tpu_info().vmem_capacity_bytes)
        return int(min(100 * 1024 * 1024, max(32 * 1024 * 1024, cap // 2)))
    except Exception:
        return 48 * 1024 * 1024


def _cparams():
    return pltpu.CompilerParams(dimension_semantics=("parallel",),
                                vmem_limit_bytes=_vmem_limit_bytes())


# -----------------------------------------------------------------------------------------
# Kernels
# -----------------------------------------------------------------------------------------
def _bn_conv1x1_stats_kernel(x_ref, scale_ref, shift_ref, w_ref, h_ref, stats_ref,
                             *, mm_dtype, rows_valid, tile_rows, mask_tail):
    """h = relu(x*scale + shift) @ w ; also emits per-tile (sum, sumsq) of h for the next BN."""
    x = x_ref[...].astype(jnp.float32)
    h0 = jnp.maximum(x * scale_ref[...] + shift_ref[...], 0.0)       # fused BN (1 FMA) + ReLU
    h1 = jnp.dot(h0.astype(mm_dtype), w_ref[...], preferred_element_type=jnp.float32)
    h_ref[...] = h1.astype(h_ref.dtype)
    if mask_tail:
        # zero-padded tail rows (cdiv grid) must not pollute the batch statistics
        row = pl.program_id(0) * tile_rows + lax.broadcasted_iota(jnp.int32, (tile_rows, 1), 0)
        h1 = jnp.where(row < rows_valid, h1, 0.0)
    stats_ref[0:1, :] = jnp.sum(h1, axis=0, keepdims=True)
    stats_ref[1:2, :] = jnp.sum(h1 * h1, axis=0, keepdims=True)


def _bn_conv3x3_stats_kernel(h1_ref, scale_ref, shift_ref, w2_ref, out_ref, stats_ref,
                             pad_ref, *, H, W, Ho, Wo, stride):
    """One image: BN2+ReLU -> 3x3/stride conv as 9 accumulating matmuls -> partial BN3 stats."""
    C = pad_ref.shape[-1]
    # Zero only the 1-pixel halo (the interior is fully overwritten below).  Re-zeroed each
    # step so correctness does not depend on how the 'parallel' grid axis is core-sharded.
    zrow = jnp.zeros((1, W + 2, C), pad_ref.dtype)
    zcol = jnp.zeros((H, 1, C), pad_ref.dtype)
    pad_ref[0:1, :, :] = zrow
    pad_ref[H + 1:H + 2, :, :] = zrow
    pad_ref[1:H + 1, 0:1, :] = zcol
    pad_ref[1:H + 1, W + 1:W + 2, :] = zcol

    h1 = h1_ref[...].astype(jnp.float32)                                     # (H, W, C)
    h2 = jnp.maximum(h1 * scale_ref[...] + shift_ref[...], 0.0)
    pad_ref[1:H + 1, 1:W + 1, :] = h2.astype(pad_ref.dtype)

    # 9 accumulating matmuls straight off the padded scratch: no im2col slab, no concatenate,
    # no full padded-buffer load.
    acc = None
    for dy in range(3):
        for dx in range(3):
            if stride == 1:
                tap = pad_ref[dy:dy + Ho, dx:dx + Wo, :]
            else:
                # TODO(synk): stride>1 tap reads are strided along the sublane axes; a one-shot
                # compaction of the used rows/cols would remove most of these relayouts.
                tap = pad_ref[pl.ds(dy, Ho, stride), pl.ds(dx, Wo, stride), :]
            part = jnp.dot(tap.reshape(Ho * Wo, C), w2_ref[dy * 3 + dx],
                           preferred_element_type=jnp.float32)
            acc = part if acc is None else acc + part
    out_ref[...] = acc.reshape(Ho, Wo, C).astype(out_ref.dtype)
    stats_ref[0:1, :] = jnp.sum(acc, axis=0, keepdims=True)
    stats_ref[1:2, :] = jnp.sum(acc * acc, axis=0, keepdims=True)


def _bn_conv1x1_residual_kernel(h_ref, scale3_ref, shift3_ref, w3_ref,
                                sc_ref, scale1_ref, shift1_ref, wsc_ref, out_ref,
                                *, has_sc, mm_dtype):
    """out = relu(h*scale3+shift3) @ w3 + shortcut; shortcut computed right before the add."""
    h = h_ref[...].astype(jnp.float32)
    h3 = jnp.maximum(h * scale3_ref[...] + shift3_ref[...], 0.0)
    out = jnp.dot(h3.astype(mm_dtype), w3_ref[...], preferred_element_type=jnp.float32)
    if has_sc:
        xs = sc_ref[...].astype(jnp.float32)
        h0s = jnp.maximum(xs * scale1_ref[...] + shift1_ref[...], 0.0)       # re-apply BN1+ReLU
        out = out + jnp.dot(h0s.astype(mm_dtype), wsc_ref[...],
                            preferred_element_type=jnp.float32)
    else:
        out = out + sc_ref[...].astype(jnp.float32)                          # identity: raw x
    out_ref[...] = out.astype(out_ref.dtype)


# -----------------------------------------------------------------------------------------
# Wrapper
# -----------------------------------------------------------------------------------------
def _bn_scale_shift(partials, count, gamma, beta):
    s = jnp.sum(partials, axis=0)                        # (2, C): [sum, sumsq]
    mean = s[0] / count
    var = jnp.maximum(s[1] / count - mean * mean, 0.0)   # biased train-mode variance, clamped
    scale = gamma * lax.rsqrt(var + EPS)
    shift = beta - mean * scale
    return scale.reshape(1, -1), shift.reshape(1, -1)


def _pad_rows(a, rows):
    return a if a.shape[0] == rows else jnp.pad(a, ((0, rows - a.shape[0]), (0, 0)))


@functools.partial(jax.jit, static_argnames=("stride", "mm_dtype", "row_tile"))
def preact_bottleneck(x_nchw, params, *, stride=1, mm_dtype=jnp.bfloat16, row_tile=512):
    """Forward pass of PreActBottleneck.  x_nchw: (N, Cin, H, W) f32 -> (N, 4P, Ho, Wo) f32."""
    N, Cin, H, W = x_nchw.shape
    P = params["w1"].shape[1]
    Cout = 4 * P
    Ho = (H + 2 - 3) // stride + 1
    Wo = (W + 2 - 3) // stride + 1
    has_sc = (stride != 1) or (Cin != Cout)
    f32 = jnp.float32
    act_dtype = jnp.bfloat16 if jnp.dtype(mm_dtype) == jnp.dtype(jnp.bfloat16) else f32
    mm_isz = jnp.dtype(mm_dtype).itemsize
    act_isz = jnp.dtype(act_dtype).itemsize

    Cin_p, P_p, Cout_p = (_round_up(c, LANE) for c in (Cin, P, Cout))

    xf = x_nchw.astype(f32)
    # BN1 batch statistics: plain jnp reductions fused (under jit) with the layout change
    # below -- no dedicated Pallas stats pass / extra HBM sweep over x.
    mean1 = jnp.mean(xf, axis=(0, 2, 3))
    var1 = jnp.var(xf, axis=(0, 2, 3))                   # biased train-mode variance
    scale1c = params["g1"].astype(f32) * lax.rsqrt(var1 + EPS)
    shift1c = params["b1"].astype(f32) - mean1 * scale1c
    scale1 = jnp.pad(scale1c, (0, Cin_p - Cin)).reshape(1, Cin_p)
    shift1 = jnp.pad(shift1c, (0, Cin_p - Cin)).reshape(1, Cin_p)

    # NCHW -> NHWC, channels zero-padded to the lane width.
    # TODO(synk): inside a full ResNet keep activations NHWC / lane-padded end-to-end and
    # drop these per-block transposes and pads.
    x = jnp.transpose(xf, (0, 2, 3, 1))
    x = jnp.pad(x, ((0, 0), (0, 0), (0, 0), (0, Cin_p - Cin)))
    x_rows = x.reshape(N * H * W, Cin_p)

    # Lane-padded weights, pre-cast to the matmul dtype (f32 accumulation inside the kernels).
    def pad2(w, r, c):
        return jnp.zeros((r, c), f32).at[:w.shape[0], :w.shape[1]].set(w.astype(f32))

    w1 = pad2(params["w1"], Cin_p, P_p).astype(mm_dtype)
    w2 = (jnp.zeros((9, P_p, P_p), f32).at[:, :P, :P]
          .set(params["w2"].astype(f32)).astype(mm_dtype))            # per-tap weight slabs
    w3 = pad2(params["w3"], P_p, Cout_p).astype(mm_dtype)
    wsc = pad2(params["wsc"], Cin_p, Cout_p).astype(mm_dtype)

    def pad_vec(v, n):
        v = v.reshape(-1).astype(f32)
        return jnp.pad(v, (0, n - v.shape[0]))

    g2, b2 = pad_vec(params["g2"], P_p), pad_vec(params["b2"], P_p)
    g3, b3 = pad_vec(params["g3"], P_p), pad_vec(params["b3"], P_p)

    R = N * H * W
    TM, T, R_pad = _row_tiling(R, row_tile)
    x_rows_p = _pad_rows(x_rows, R_pad)

    # ---- pass 1: BN1+ReLU -> conv1 (1x1) + BN2 partial stats (bf16 activation out) ---------
    h1_rows, stats_h1 = pl.pallas_call(
        functools.partial(_bn_conv1x1_stats_kernel, mm_dtype=mm_dtype,
                          rows_valid=R, tile_rows=TM, mask_tail=(R_pad != R)),
        grid=(T,),
        in_specs=[
            pl.BlockSpec((TM, Cin_p), lambda i: (i, 0)),
            pl.BlockSpec((1, Cin_p), lambda i: (0, 0)),
            pl.BlockSpec((1, Cin_p), lambda i: (0, 0)),
            pl.BlockSpec((Cin_p, P_p), lambda i: (0, 0)),
        ],
        out_specs=(
            pl.BlockSpec((TM, P_p), lambda i: (i, 0)),
            pl.BlockSpec((None, 2, P_p), lambda i: (i, 0, 0)),
        ),
        out_shape=(
            jax.ShapeDtypeStruct((R_pad, P_p), act_dtype),
            jax.ShapeDtypeStruct((T, 2, P_p), f32),
        ),
        compiler_params=_cparams(),
        cost_estimate=pl.CostEstimate(
            flops=2 * R * Cin_p * P_p + 6 * R * Cin_p,
            transcendentals=0,
            bytes_accessed=4 * R * Cin_p + act_isz * R * P_p
                           + mm_isz * Cin_p * P_p + 4 * 2 * T * P_p),
    )(x_rows_p, scale1, shift1, w1)
    scale2, shift2 = _bn_scale_shift(stats_h1, R, g2, b2)

    # ---- pass 2: BN2+ReLU -> conv2 (3x3, stride, pad 1) as 9 accumulating matmuls ----------
    # TODO(synk): for very large spatial stages on v7x, additionally tile this pass over
    # output-row blocks (with a 1-row halo) to balance the two TensorCores when N is tiny.
    h1_img = h1_rows[:R].reshape(N, H, W, P_p)
    h2c, stats_h2c = pl.pallas_call(
        functools.partial(_bn_conv3x3_stats_kernel, H=H, W=W, Ho=Ho, Wo=Wo, stride=stride),
        grid=(N,),
        in_specs=[
            pl.BlockSpec((None, H, W, P_p), lambda n: (n, 0, 0, 0)),
            pl.BlockSpec((1, P_p), lambda n: (0, 0)),
            pl.BlockSpec((1, P_p), lambda n: (0, 0)),
            pl.BlockSpec((9, P_p, P_p), lambda n: (0, 0, 0)),
        ],
        out_specs=(
            pl.BlockSpec((None, Ho, Wo, P_p), lambda n: (n, 0, 0, 0)),
            pl.BlockSpec((None, 2, P_p), lambda n: (n, 0, 0)),
        ),
        out_shape=(
            jax.ShapeDtypeStruct((N, Ho, Wo, P_p), act_dtype),
            jax.ShapeDtypeStruct((N, 2, P_p), f32),
        ),
        scratch_shapes=[pltpu.VMEM((H + 2, W + 2, P_p), mm_dtype)],
        compiler_params=_cparams(),
        cost_estimate=pl.CostEstimate(
            flops=2 * N * Ho * Wo * 9 * P_p * P_p,
            transcendentals=0,
            bytes_accessed=act_isz * N * (H * W + Ho * Wo) * P_p
                           + mm_isz * 9 * P_p * P_p + 4 * 2 * N * P_p),
    )(h1_img, scale2, shift2, w2)
    R2 = N * Ho * Wo
    scale3, shift3 = _bn_scale_shift(stats_h2c, R2, g3, b3)

    # ---- pass 3: BN3+ReLU -> conv3 (1x1) + shortcut (computed late) + residual add ---------
    TM2, T2, R2_pad = _row_tiling(R2, row_tile)
    if stride != 1:
        # TODO(synk): feed the strided shortcut rows through an element-offset index map
        # instead of materializing this strided slice in HBM.
        x_sc = x[:, ::stride, ::stride, :].reshape(R2, Cin_p)
    else:
        x_sc = x_rows            # projection: BN1+ReLU+wsc applied in-kernel; identity: raw x
    x_sc = _pad_rows(x_sc, R2_pad)
    h2c_rows = _pad_rows(h2c.reshape(R2, P_p), R2_pad)

    out_rows = pl.pallas_call(
        functools.partial(_bn_conv1x1_residual_kernel, has_sc=has_sc, mm_dtype=mm_dtype),
        grid=(T2,),
        in_specs=[
            pl.BlockSpec((TM2, P_p), lambda i: (i, 0)),
            pl.BlockSpec((1, P_p), lambda i: (0, 0)),
            pl.BlockSpec((1, P_p), lambda i: (0, 0)),
            pl.BlockSpec((P_p, Cout_p), lambda i: (0, 0)),
            pl.BlockSpec((TM2, Cin_p), lambda i: (i, 0)),
            pl.BlockSpec((1, Cin_p), lambda i: (0, 0)),
            pl.BlockSpec((1, Cin_p), lambda i: (0, 0)),
            pl.BlockSpec((Cin_p, Cout_p), lambda i: (0, 0)),
        ],
        out_specs=pl.BlockSpec((TM2, Cout_p), lambda i: (i, 0)),
        out_shape=jax.ShapeDtypeStruct((R2_pad, Cout_p), f32),
        compiler_params=_cparams(),
        cost_estimate=pl.CostEstimate(
            flops=2 * R2 * P_p * Cout_p + (2 * R2 * Cin_p * Cout_p if has_sc else 0),
            transcendentals=0,
            bytes_accessed=act_isz * R2 * P_p + 4 * R2 * Cin_p + 4 * R2 * Cout_p
                           + mm_isz * (P_p + Cin_p) * Cout_p),
    )(h2c_rows, scale3, shift3, w3, x_sc, scale1, shift1, wsc)

    out = out_rows[:R2, :Cout].reshape(N, Ho, Wo, Cout)
    return jnp.transpose(out, (0, 3, 1, 2))                    # NHWC -> NCHW


# -----------------------------------------------------------------------------------------
# Pure-JAX reference (mirrors the PyTorch forward in train-mode BN)
# -----------------------------------------------------------------------------------------
def ref_forward(x_nchw, params, *, stride=1):
    P = params["w1"].shape[1]
    Cout = 4 * P
    x = jnp.transpose(x_nchw, (0, 2, 3, 1)).astype(jnp.float32)
    Cin = x.shape[-1]

    def bn_relu(h, g, b):
        m = h.mean(axis=(0, 1, 2), keepdims=True)
        v = jnp.mean((h - m) ** 2, axis=(0, 1, 2), keepdims=True)
        hn = (h - m) / jnp.sqrt(v + EPS)
        return jnp.maximum(hn * g.reshape(1, 1, 1, -1) + b.reshape(1, 1, 1, -1), 0.0)

    h0 = bn_relu(x, params["g1"], params["b1"])
    if stride != 1 or Cin != Cout:
        sc = jnp.einsum("nhwc,cd->nhwd", h0[:, ::stride, ::stride, :], params["wsc"])
    else:
        sc = x
    h1 = jnp.einsum("nhwc,cd->nhwd", h0, params["w1"])
    h2 = bn_relu(h1, params["g2"], params["b2"])
    w2_hwio = params["w2"].reshape(3, 3, P, P)
    h2c = lax.conv_general_dilated(
        h2, w2_hwio, window_strides=(stride, stride), padding=((1, 1), (1, 1)),
        dimension_numbers=("NHWC", "HWIO", "NHWC"))
    h3 = bn_relu(h2c, params["g3"], params["b3"])
    out = jnp.einsum("nhwc,cd->nhwd", h3, params["w3"]) + sc
    return jnp.transpose(out, (0, 3, 1, 2))


def make_params(key, in_planes, planes):
    ks = jax.random.split(key, 10)
    f32 = jnp.float32
    return {
        # 1x1 convs as (Cin, Cout); 3x3 conv as (ky*3+kx, Cin, Cout)  (HWIO flattened)
        "w1": (0.2 * jax.random.normal(ks[0], (in_planes, planes))).astype(f32),
        "w2": (0.1 * jax.random.normal(ks[1], (9, planes, planes))).astype(f32),
        "w3": (0.2 * jax.random.normal(ks[2], (planes, 4 * planes))).astype(f32),
        "wsc": (0.2 * jax.random.normal(ks[3], (in_planes, 4 * planes))).astype(f32),
        "g1": (1.0 + 0.1 * jax.random.normal(ks[4], (in_planes,))).astype(f32),
        "b1": (0.1 * jax.random.normal(ks[5], (in_planes,))).astype(f32),
        "g2": (1.0 + 0.1 * jax.random.normal(ks[6], (planes,))).astype(f32),
        "b2": (0.1 * jax.random.normal(ks[7], (planes,))).astype(f32),
        "g3": (1.0 + 0.1 * jax.random.normal(ks[8], (planes,))).astype(f32),
        "b3": (0.1 * jax.random.normal(ks[9], (planes,))).astype(f32),
    }


if __name__ == "__main__":
    key = jax.random.PRNGKey(0)
    k_x, k_p, k_x2, k_p2 = jax.random.split(key, 4)

    # ---- case 1: projection shortcut (in_planes != 4*planes), stride 1 --------------------
    N, in_planes, planes, H, W, stride = 2, 4, 4, 16, 16, 1
    x = jax.random.normal(k_x, (N, in_planes, H, W), dtype=jnp.float32)
    params = make_params(k_p, in_planes, planes)
    ref = jax.block_until_ready(ref_forward(x, params, stride=stride))

    # f32 matmul path (numerical-validation mode): tight check
    out32 = jax.block_until_ready(
        preact_bottleneck(x, params, stride=stride, mm_dtype=jnp.float32))
    assert out32.shape == (N, 4 * planes, H, W), out32.shape
    assert jnp.allclose(out32, ref, atol=3e-3, rtol=3e-3), \
        float(jnp.max(jnp.abs(out32 - ref)))

    # bf16 matmul + bf16 inter-pass activations (default): bf16-level tolerance
    out16 = jax.block_until_ready(preact_bottleneck(x, params, stride=stride))
    assert jnp.allclose(out16, ref, atol=8e-2, rtol=8e-2), \
        float(jnp.max(jnp.abs(out16 - ref)))

    # ---- case 2: identity shortcut (in_planes == 4*planes), stride 1 ----------------------
    N2, in2, planes2, H2, W2 = 2, 16, 4, 8, 8
    x2 = jax.random.normal(k_x2, (N2, in2, H2, W2), dtype=jnp.float32)
    params2 = make_params(k_p2, in2, planes2)
    ref2 = jax.block_until_ready(ref_forward(x2, params2, stride=1))
    out2_32 = jax.block_until_ready(
        preact_bottleneck(x2, params2, stride=1, mm_dtype=jnp.float32))
    assert jnp.allclose(out2_32, ref2, atol=3e-3, rtol=3e-3), \
        float(jnp.max(jnp.abs(out2_32 - ref2)))
    out2 = jax.block_until_ready(preact_bottleneck(x2, params2, stride=1))
    assert jnp.allclose(out2, ref2, atol=8e-2, rtol=8e-2), \
        float(jnp.max(jnp.abs(out2 - ref2)))

    # TODO(synk): BatchNorm running-stats momentum update (a stateful buffer on the PyTorch
    # module, not part of the returned value) is not reproduced; stride>1 blocks are supported
    # by the kernels (pl.ds strided taps + strided shortcut rows) but not exercised here.
    print("KERNEL_OK")
</pallas_src>

<mosaic_0001>
module attributes {stable_mosaic.version = 11 : i64} {
  func.func @_bn_conv3x3_stats_kernel(%arg0: i32, %arg1: memref<1x16x16x128xf32, #tpu.memory_space<vmem>>, %arg2: memref<1x128xf32, #tpu.memory_space<vmem>>, %arg3: memref<1x128xf32, #tpu.memory_space<vmem>>, %arg4: memref<9x128x128xf32, #tpu.memory_space<vmem>>, %arg5: memref<1x16x16x128xf32, #tpu.memory_space<vmem>>, %arg6: memref<1x2x128xf32, #tpu.memory_space<vmem>>, %arg7: memref<18x18x128xf32, #tpu.memory_space<vmem>>) attributes {dimension_semantics = [#tpu.dimension_semantics<parallel>], iteration_bounds = array<i64: 2>, scalar_prefetch = 0 : i64, scratch_operands = 1 : i64, tpu.core_type = #tpu.core_type<tc>, window_params = [{transform_indices = @transform_0, window_bounds = array<i64: 1, 16, 16, 128>}, {pipeline_mode = #tpu.pipeline_mode<synchronous>, transform_indices = @transform_1, window_bounds = array<i64: 1, 128>}, {pipeline_mode = #tpu.pipeline_mode<synchronous>, transform_indices = @transform_2, window_bounds = array<i64: 1, 128>}, {pipeline_mode = #tpu.pipeline_mode<synchronous>, transform_indices = @transform_3, window_bounds = array<i64: 9, 128, 128>}, {transform_indices = @transform_4, window_bounds = array<i64: 1, 16, 16, 128>}, {transform_indices = @transform_5, window_bounds = array<i64: 1, 2, 128>}]} {
    %cst = arith.constant 0.000000e+00 : f32
    %0 = vector.broadcast %cst : f32 to vector<1x18x128xf32>
    %cst_0 = arith.constant 0.000000e+00 : f32
    %1 = vector.broadcast %cst_0 : f32 to vector<16x1x128xf32>
    %c0 = arith.constant 0 : index
    %c0_1 = arith.constant 0 : index
    %c0_2 = arith.constant 0 : index
    %2 = vector.load %arg7[%c0, %c0_1, %c0_2] : memref<18x18x128xf32, #tpu.memory_space<vmem>>, vector<1x18x128xf32>
    tpu.vector_store %arg7[%c0, %c0_1, %c0_2], %0 {strides = array<i32>} : memref<18x18x128xf32, #tpu.memory_space<vmem>>, vector<1x18x128xf32>,
    %c17 = arith.constant 17 : index
    %c0_3 = arith.constant 0 : index
    %c0_4 = arith.constant 0 : index
    %3 = vector.load %arg7[%c17, %c0_3, %c0_4] : memref<18x18x128xf32, #tpu.memory_space<vmem>>, vector<1x18x128xf32>
    tpu.vector_store %arg7[%c17, %c0_3, %c0_4], %0 {strides = array<i32>} : memref<18x18x128xf32, #tpu.memory_space<vmem>>, vector<1x18x128xf32>,
    %c1 = arith.constant 1 : index
    %c0_5 = arith.constant 0 : index
    %c0_6 = arith.constant 0 : index
    %4 = vector.load %arg7[%c1, %c0_5, %c0_6] : memref<18x18x128xf32, #tpu.memory_space<vmem>>, vector<16x1x128xf32>
    tpu.vector_store %arg7[%c1, %c0_5, %c0_6], %1 {strides = array<i32>} : memref<18x18x128xf32, #tpu.memory_space<vmem>>, vector<16x1x128xf32>,
    %c1_7 = arith.constant 1 : index
    %c17_8 = arith.constant 17 : index
    %c0_9 = arith.constant 0 : index
    %5 = vector.load %arg7[%c1_7, %c17_8, %c0_9] : memref<18x18x128xf32, #tpu.memory_space<vmem>>, vector<16x1x128xf32>
    tpu.vector_store %arg7[%c1_7, %c17_8, %c0_9], %1 {strides = array<i32>} : memref<18x18x128xf32, #tpu.memory_space<vmem>>, vector<16x1x128xf32>,
    %c0_10 = arith.constant 0 : index
    %c0_11 = arith.constant 0 : index
    %c0_12 = arith.constant 0 : index
    %c0_13 = arith.constant 0 : index
    %6 = vector.load %arg1[%c0_10, %c0_11, %c0_12, %c0_13] : memref<1x16x16x128xf32, #tpu.memory_space<vmem>>, vector<1x16x16x128xf32>
    %7 = vector.shape_cast %6 : vector<1x16x16x128xf32> to vector<16x16x128xf32>
    %c0_14 = arith.constant 0 : index
    %c0_15 = arith.constant 0 : index
    %8 = vector.load %arg2[%c0_14, %c0_15] : memref<1x128xf32, #tpu.memory_space<vmem>>, vector<1x128xf32>
    %9 = vector.shape_cast %8 : vector<1x128xf32> to vector<1x1x128xf32>
    %10 = vector.broadcast %9 : vector<1x1x128xf32> to vector<16x16x128xf32>
    %11 = arith.mulf %7, %10 : vector<16x16x128xf32>
    %c0_16 = arith.constant 0 : index
    %c0_17 = arith.constant 0 : index
    %12 = vector.load %arg3[%c0_16, %c0_17] : memref<1x128xf32, #tpu.memory_space<vmem>>, vector<1x128xf32>
    %13 = vector.shape_cast %12 : vector<1x128xf32> to vector<1x1x128xf32>
    %14 = vector.broadcast %13 : vector<1x1x128xf32> to vector<16x16x128xf32>
    %15 = arith.addf %11, %14 : vector<16x16x128xf32>
    %cst_18 = arith.constant 0.000000e+00 : f32
    %16 = vector.broadcast %cst_18 : f32 to vector<16x16x128xf32>
    %17 = arith.maximumf %15, %16 : vector<16x16x128xf32>
    %c1_19 = arith.constant 1 : index
    %c1_20 = arith.constant 1 : index
    %c0_21 = arith.constant 0 : index
    %18 = vector.load %arg7[%c1_19, %c1_20, %c0_21] : memref<18x18x128xf32, #tpu.memory_space<vmem>>, vector<16x16x128xf32>
    tpu.vector_store %arg7[%c1_19, %c1_20, %c0_21], %17 {strides = array<i32>} : memref<18x18x128xf32, #tpu.memory_space<vmem>>, vector<16x16x128xf32>,
    %c0_22 = arith.constant 0 : index
    %c0_23 = arith.constant 0 : index
    %c0_24 = arith.constant 0 : index
    %19 = vector.load %arg7[%c0_22, %c0_23, %c0_24] : memref<18x18x128xf32, #tpu.memory_space<vmem>>, vector<16x16x128xf32>
    %20 = vector.shape_cast %19 : vector<16x16x128xf32> to vector<256x128xf32>
    %c0_25 = arith.constant 0 : index
    %c0_26 = arith.constant 0 : index
    %c0_27 = arith.constant 0 : index
    %21 = vector.load %arg4[%c0_25, %c0_26, %c0_27] : memref<9x128x128xf32, #tpu.memory_space<vmem>>, vector<1x128x128xf32>
    %22 = vector.shape_cast %21 : vector<1x128x128xf32> to vector<128x128xf32>
    %cst_28 = arith.constant dense<0.000000e+00> : vector<256x128xf32>
    %23 = tpu.matmul %20, %22, %cst_28 {dimension_numbers = #tpu.dot_dimension_numbers<[1], [0], [0], [1], [0, 0, 1, 1], [], []>} : vector<256x128xf32>, vector<128x128xf32>, vector<256x128xf32> -> vector<256x128xf32>
    %c0_29 = arith.constant 0 : index
    %c1_30 = arith.constant 1 : index
    %c0_31 = arith.constant 0 : index
    %24 = vector.load %arg7[%c0_29, %c1_30, %c0_31] : memref<18x18x128xf32, #tpu.memory_space<vmem>>, vector<16x16x128xf32>
    %25 = vector.shape_cast %24 : vector<16x16x128xf32> to vector<256x128xf32>
    %c1_32 = arith.constant 1 : index
    %c0_33 = arith.constant 0 : index
    %c0_34 = arith.constant 0 : index
    %26 = vector.load %arg4[%c1_32, %c0_33, %c0_34] : memref<9x128x128xf32, #tpu.memory_space<vmem>>, vector<1x128x128xf32>
    %27 = vector.shape_cast %26 : vector<1x128x128xf32> to vector<128x128xf32>
    %cst_35 = arith.constant dense<0.000000e+00> : vector<256x128xf32>
    %28 = tpu.matmul %25, %27, %cst_35 {dimension_numbers = #tpu.dot_dimension_numbers<[1], [0], [0], [1], [0, 0, 1, 1], [], []>} : vector<256x128xf32>, vector<128x128xf32>, vector<256x128xf32> -> vector<256x128xf32>
    %29 = arith.addf %23, %28 : vector<256x128xf32>
    %c0_36 = arith.constant 0 : index
    %c2 = arith.constant 2 : index
    %c0_37 = arith.constant 0 : index
    %30 = vector.load %arg7[%c0_36, %c2, %c0_37] : memref<18x18x128xf32, #tpu.memory_space<vmem>>, vector<16x16x128xf32>
    %31 = vector.shape_cast %30 : vector<16x16x128xf32> to vector<256x128xf32>
    %c2_38 = arith.constant 2 : index
    %c0_39 = arith.constant 0 : index
    %c0_40 = arith.constant 0 : index
    %32 = vector.load %arg4[%c2_38, %c0_39, %c0_40] : memref<9x128x128xf32, #tpu.memory_space<vmem>>, vector<1x128x128xf32>
    %33 = vector.shape_cast %32 : vector<1x128x128xf32> to vector<128x128xf32>
    %cst_41 = arith.constant dense<0.000000e+00> : vector<256x128xf32>
    %34 = tpu.matmul %31, %33, %cst_41 {dimension_numbers = #tpu.dot_dimension_numbers<[1], [0], [0], [1], [0, 0, 1, 1], [], []>} : vector<256x128xf32>, vector<128x128xf32>, vector<256x128xf32> -> vector<256x128xf32>
    %35 = arith.addf %29, %34 : vector<256x128xf32>
    %c1_42 = arith.constant 1 : index
    %c0_43 = arith.constant 0 : index
    %c0_44 = arith.constant 0 : index
    %36 = vector.load %arg7[%c1_42, %c0_43, %c0_44] : memref<18x18x128xf32, #tpu.memory_space<vmem>>, vector<16x16x128xf32>
    %37 = vector.shape_cast %36 : vector<16x16x128xf32> to vector<256x128xf32>
    %c3 = arith.constant 3 : index
    %c0_45 = arith.constant 0 : index
    %c0_46 = arith.constant 0 : index
    %38 = vector.load %arg4[%c3, %c0_45, %c0_46] : memref<9x128x128xf32, #tpu.memory_space<vmem>>, vector<1x128x128xf32>
    %39 = vector.shape_cast %38 : vector<1x128x128xf32> to vector<128x128xf32>
    %cst_47 = arith.constant dense<0.000000e+00> : vector<256x128xf32>
    %40 = tpu.matmul %37, %39, %cst_47 {dimension_numbers = #tpu.dot_dimension_numbers<[1], [0], [0], [1], [0, 0, 1, 1], [], []>} : vector<256x128xf32>, vector<128x128xf32>, vector<256x128xf32> -> vector<256x128xf32>
    %41 = arith.addf %35, %40 : vector<256x128xf32>
    %c1_48 = arith.constant 1 : index
    %c1_49 = arith.constant 1 : index
    %c0_50 = arith.constant 0 : index
    %42 = vector.load %arg7[%c1_48, %c1_49, %c0_50] : memref<18x18x128xf32, #tpu.memory_space<vmem>>, vector<16x16x128xf32>
    %43 = vector.shape_cast %42 : vector<16x16x128xf32> to vector<256x128xf32>
    %c4 = arith.constant 4 : index
    %c0_51 = arith.constant 0 : index
    %c0_52 = arith.constant 0 : index
    %44 = vector.load %arg4[%c4, %c0_51, %c0_52] : memref<9x128x128xf32, #tpu.memory_space<vmem>>, vector<1x128x128xf32>
    %45 = vector.shape_cast %44 : vector<1x128x128xf32> to vector<128x128xf32>
    %cst_53 = arith.constant dense<0.000000e+00> : vector<256x128xf32>
    %46 = tpu.matmul %43, %45, %cst_53 {dimension_numbers = #tpu.dot_dimension_numbers<[1], [0], [0], [1], [0, 0, 1, 1], [], []>} : vector<256x128xf32>, vector<128x128xf32>, vector<256x128xf32> -> vector<256x128xf32>
    %47 = arith.addf %41, %46 : vector<256x128xf32>
    %c1_54 = arith.constant 1 : index
    %c2_55 = arith.constant 2 : index
    %c0_56 = arith.constant 0 : index
    %48 = vector.load %arg7[%c1_54, %c2_55, %c0_56] : memref<18x18x128xf32, #tpu.memory_space<vmem>>, vector<16x16x128xf32>
    %49 = vector.shape_cast %48 : vector<16x16x128xf32> to vector<256x128xf32>
    %c5 = arith.constant 5 : index
    %c0_57 = arith.constant 0 : index
    %c0_58 = arith.constant 0 : index
    %50 = vector.load %arg4[%c5, %c0_57, %c0_58] : memref<9x128x128xf32, #tpu.memory_space<vmem>>, vector<1x128x128xf32>
    %51 = vector.shape_cast %50 : vector<1x128x128xf32> to vector<128x128xf32>
    %cst_59 = arith.constant dense<0.000000e+00> : vector<256x128xf32>
    %52 = tpu.matmul %49, %51, %cst_59 {dimension_numbers = #tpu.dot_dimension_numbers<[1], [0], [0], [1], [0, 0, 1, 1], [], []>} : vector<256x128xf32>, vector<128x128xf32>, vector<256x128xf32> -> vector<256x128xf32>
    %53 = arith.addf %47, %52 : vector<256x128xf32>
    %c2_60 = arith.constant 2 : index
    %c0_61 = arith.constant 0 : index
    %c0_62 = arith.constant 0 : index
    %54 = vector.load %arg7[%c2_60, %c0_61, %c0_62] : memref<18x18x128xf32, #tpu.memory_space<vmem>>, vector<16x16x128xf32>
    %55 = vector.shape_cast %54 : vector<16x16x128xf32> to vector<256x128xf32>
    %c6 = arith.constant 6 : index
    %c0_63 = arith.constant 0 : index
    %c0_64 = arith.constant 0 : index
    %56 = vector.load %arg4[%c6, %c0_63, %c0_64] : memref<9x128x128xf32, #tpu.memory_space<vmem>>, vector<1x128x128xf32>
    %57 = vector.shape_cast %56 : vector<1x128x128xf32> to vector<128x128xf32>
    %cst_65 = arith.constant dense<0.000000e+00> : vector<256x128xf32>
    %58 = tpu.matmul %55, %57, %cst_65 {dimension_numbers = #tpu.dot_dimension_numbers<[1], [0], [0], [1], [0, 0, 1, 1], [], []>} : vector<256x128xf32>, vector<128x128xf32>, vector<256x128xf32> -> vector<256x128xf32>
    %59 = arith.addf %53, %58 : vector<256x128xf32>
    %c2_66 = arith.constant 2 : index
    %c1_67 = arith.constant 1 : index
    %c0_68 = arith.constant 0 : index
    %60 = vector.load %arg7[%c2_66, %c1_67, %c0_68] : memref<18x18x128xf32, #tpu.memory_space<vmem>>, vector<16x16x128xf32>
    %61 = vector.shape_cast %60 : vector<16x16x128xf32> to vector<256x128xf32>
    %c7 = arith.constant 7 : index
    %c0_69 = arith.constant 0 : index
    %c0_70 = arith.constant 0 : index
    %62 = vector.load %arg4[%c7, %c0_69, %c0_70] : memref<9x128x128xf32, #tpu.memory_space<vmem>>, vector<1x128x128xf32>
    %63 = vector.shape_cast %62 : vector<1x128x128xf32> to vector<128x128xf32>
    %cst_71 = arith.constant dense<0.000000e+00> : vector<256x128xf32>
    %64 = tpu.matmul %61, %63, %cst_71 {dimension_numbers = #tpu.dot_dimension_numbers<[1], [0], [0], [1], [0, 0, 1, 1], [], []>} : vector<256x128xf32>, vector<128x128xf32>, vector<256x128xf32> -> vector<256x128xf32>
    %65 = arith.addf %59, %64 : vector<256x128xf32>
    %c2_72 = arith.constant 2 : index
    %c2_73 = arith.constant 2 : index
    %c0_74 = arith.constant 0 : index
    %66 = vector.load %arg7[%c2_72, %c2_73, %c0_74] : memref<18x18x128xf32, #tpu.memory_space<vmem>>, vector<16x16x128xf32>
    %67 = vector.shape_cast %66 : vector<16x16x128xf32> to vector<256x128xf32>
    %c8 = arith.constant 8 : index
    %c0_75 = arith.constant 0 : index
    %c0_76 = arith.constant 0 : index
    %68 = vector.load %arg4[%c8, %c0_75, %c0_76] : memref<9x128x128xf32, #tpu.memory_space<vmem>>, vector<1x128x128xf32>
    %69 = vector.shape_cast %68 : vector<1x128x128xf32> to vector<128x128xf32>
    %cst_77 = arith.constant dense<0.000000e+00> : vector<256x128xf32>
    %70 = tpu.matmul %67, %69, %cst_77 {dimension_numbers = #tpu.dot_dimension_numbers<[1], [0], [0], [1], [0, 0, 1, 1], [], []>} : vector<256x128xf32>, vector<128x128xf32>, vector<256x128xf32> -> vector<256x128xf32>
    %71 = arith.addf %65, %70 : vector<256x128xf32>
    %72 = vector.shape_cast %71 : vector<256x128xf32> to vector<16x16x128xf32>
    %c0_78 = arith.constant 0 : index
    %c0_79 = arith.constant 0 : index
    %c0_80 = arith.constant 0 : index
    %c0_81 = arith.constant 0 : index
    %73 = vector.load %arg5[%c0_78, %c0_79, %c0_80, %c0_81] : memref<1x16x16x128xf32, #tpu.memory_space<vmem>>, vector<1x16x16x128xf32>
    %74 = vector.shape_cast %73 : vector<1x16x16x128xf32> to vector<16x16x128xf32>
    %75 = vector.shape_cast %72 : vector<16x16x128xf32> to vector<1x16x16x128xf32>
    tpu.vector_store %arg5[%c0_78, %c0_79, %c0_80, %c0_81], %75 {strides = array<i32>} : memref<1x16x16x128xf32, #tpu.memory_space<vmem>>, vector<1x16x16x128xf32>,
    %cst_82 = arith.constant dense<0.000000e+00> : vector<128xf32>
    %76 = vector.multi_reduction <add>, %71, %cst_82 [0] : vector<256x128xf32> to vector<128xf32>
    %77 = vector.shape_cast %76 : vector<128xf32> to vector<1x128xf32>
    %c0_83 = arith.constant 0 : index
    %c0_84 = arith.constant 0 : index
    %c0_85 = arith.constant 0 : index
    %78 = vector.load %arg6[%c0_83, %c0_84, %c0_85] : memref<1x2x128xf32, #tpu.memory_space<vmem>>, vector<1x1x128xf32>
    %79 = vector.shape_cast %78 : vector<1x1x128xf32> to vector<1x128xf32>
    %80 = vector.shape_cast %77 : vector<1x128xf32> to vector<1x1x128xf32>
    tpu.vector_store %arg6[%c0_83, %c0_84, %c0_85], %80 {strides = array<i32>} : memref<1x2x128xf32, #tpu.memory_space<vmem>>, vector<1x1x128xf32>,
    %81 = arith.mulf %71, %71 : vector<256x128xf32>
    %cst_86 = arith.constant dense<0.000000e+00> : vector<128xf32>
    %82 = vector.multi_reduction <add>, %81, %cst_86 [0] : vector<256x128xf32> to vector<128xf32>
    %83 = vector.shape_cast %82 : vector<128xf32> to vector<1x128xf32>
    %c0_87 = arith.constant 0 : index
    %c1_88 = arith.constant 1 : index
    %c0_89 = arith.constant 0 : index
    %84 = vector.load %arg6[%c0_87, %c1_88, %c0_89] : memref<1x2x128xf32, #tpu.memory_space<vmem>>, vector<1x1x128xf32>
    %85 = vector.shape_cast %84 : vector<1x1x128xf32> to vector<1x128xf32>
    %86 = vector.shape_cast %83 : vector<1x128xf32> to vector<1x1x128xf32>
    tpu.vector_store %arg6[%c0_87, %c1_88, %c0_89], %86 {strides = array<i32>} : memref<1x2x128xf32, #tpu.memory_space<vmem>>, vector<1x1x128xf32>,
    return
  }
  func.func @transform_0(%arg0: i32) -> (i32, i32, i32, i32) {
    %c0_i32 = arith.constant 0 : i32
    %c0_i32_0 = arith.constant 0 : i32
    %c0_i32_1 = arith.constant 0 : i32
    %c0_i32_2 = arith.constant 0 : i32
    return %arg0, %c0_i32, %c0_i32_0, %c0_i32_1 : i32, i32, i32, i32
  }
  func.func @transform_1(%arg0: i32) -> (i32, i32) {
    %c0_i32 = arith.constant 0 : i32
    %c0_i32_0 = arith.constant 0 : i32
    %c0_i32_1 = arith.constant 0 : i32
    return %c0_i32, %c0_i32_0 : i32, i32
  }
  func.func @transform_2(%arg0: i32) -> (i32, i32) {
    %c0_i32 = arith.constant 0 : i32
    %c0_i32_0 = arith.constant 0 : i32
    %c0_i32_1 = arith.constant 0 : i32
    return %c0_i32, %c0_i32_0 : i32, i32
  }
  func.func @transform_3(%arg0: i32) -> (i32, i32, i32) {
    %c0_i32 = arith.constant 0 : i32
    %c0_i32_0 = arith.constant 0 : i32
    %c0_i32_1 = arith.constant 0 : i32
    %c0_i32_2 = arith.constant 0 : i32
    return %c0_i32, %c0_i32_0, %c0_i32_1 : i32, i32, i32
  }
  func.func @transform_4(%arg0: i32) -> (i32, i32, i32, i32) {
    %c0_i32 = arith.constant 0 : i32
    %c0_i32_0 = arith.constant 0 : i32
    %c0_i32_1 = arith.constant 0 : i32
    %c0_i32_2 = arith.constant 0 : i32
    return %arg0, %c0_i32, %c0_i32_0, %c0_i32_1 : i32, i32, i32, i32
  }
  func.func @transform_5(%arg0: i32) -> (i32, i32, i32) {
    %c0_i32 = arith.constant 0 : i32
    %c0_i32_0 = arith.constant 0 : i32
    %c0_i32_1 = arith.constant 0 : i32
    return %arg0, %c0_i32, %c0_i32_0 : i32, i32, i32
  }
}

module attributes {stable_mosaic.version = 11 : i64} {
  func.func @_bn_conv1x1_stats_kernel(%arg0: i32, %arg1: memref<512x128xf32, #tpu.memory_space<vmem>>, %arg2: memref<1x128xf32, #tpu.memory_space<vmem>>, %arg3: memref<1x128xf32, #tpu.memory_space<vmem>>, %arg4: memref<128x128xf32, #tpu.memory_space<vmem>>, %arg5: memref<512x128xf32, #tpu.memory_space<vmem>>, %arg6: memref<1x2x128xf32, #tpu.memory_space<vmem>>) attributes {dimension_semantics = [#tpu.dimension_semantics<parallel>], iteration_bounds = array<i64: 1>, scalar_prefetch = 0 : i64, scratch_operands = 0 : i64, tpu.core_type = #tpu.core_type<tc>, window_params = [{transform_indices = @transform_0, window_bounds = array<i64: 512, 128>}, {pipeline_mode = #tpu.pipeline_mode<synchronous>, transform_indices = @transform_1, window_bounds = array<i64: 1, 128>}, {pipeline_mode = #tpu.pipeline_mode<synchronous>, transform_indices = @transform_2, window_bounds = array<i64: 1, 128>}, {pipeline_mode = #tpu.pipeline_mode<synchronous>, transform_indices = @transform_3, window_bounds = array<i64: 128, 128>}, {transform_indices = @transform_4, window_bounds = array<i64: 512, 128>}, {transform_indices = @transform_5, window_bounds = array<i64: 1, 2, 128>}]} {
    %c0 = arith.constant 0 : index
    %c0_0 = arith.constant 0 : index
    %0 = vector.load %arg1[%c0, %c0_0] : memref<512x128xf32, #tpu.memory_space<vmem>>, vector<512x128xf32>
    %c0_1 = arith.constant 0 : index
    %c0_2 = arith.constant 0 : index
    %1 = vector.load %arg2[%c0_1, %c0_2] : memref<1x128xf32, #tpu.memory_space<vmem>>, vector<1x128xf32>
    %2 = vector.broadcast %1 : vector<1x128xf32> to vector<512x128xf32>
    %3 = arith.mulf %0, %2 : vector<512x128xf32>
    %c0_3 = arith.constant 0 : index
    %c0_4 = arith.constant 0 : index
    %4 = vector.load %arg3[%c0_3, %c0_4] : memref<1x128xf32, #tpu.memory_space<vmem>>, vector<1x128xf32>
    %5 = vector.broadcast %4 : vector<1x128xf32> to vector<512x128xf32>
    %6 = arith.addf %3, %5 : vector<512x128xf32>
    %cst = arith.constant 0.000000e+00 : f32
    %7 = vector.broadcast %cst : f32 to vector<512x128xf32>
    %8 = arith.maximumf %6, %7 : vector<512x128xf32>
    %c0_5 = arith.constant 0 : index
    %c0_6 = arith.constant 0 : index
    %9 = vector.load %arg4[%c0_5, %c0_6] : memref<128x128xf32, #tpu.memory_space<vmem>>, vector<128x128xf32>
    %cst_7 = arith.constant dense<0.000000e+00> : vector<512x128xf32>
    %10 = tpu.matmul %8, %9, %cst_7 {dimension_numbers = #tpu.dot_dimension_numbers<[1], [0], [0], [1], [0, 0, 1, 1], [], []>} : vector<512x128xf32>, vector<128x128xf32>, vector<512x128xf32> -> vector<512x128xf32>
    %c0_8 = arith.constant 0 : index
    %c0_9 = arith.constant 0 : index
    %11 = vector.load %arg5[%c0_8, %c0_9] : memref<512x128xf32, #tpu.memory_space<vmem>>, vector<512x128xf32>
    tpu.vector_store %arg5[%c0_8, %c0_9], %10 {strides = array<i32>} : memref<512x128xf32, #tpu.memory_space<vmem>>, vector<512x128xf32>,
    %cst_10 = arith.constant dense<0.000000e+00> : vector<128xf32>
    %12 = vector.multi_reduction <add>, %10, %cst_10 [0] : vector<512x128xf32> to vector<128xf32>
    %13 = vector.shape_cast %12 : vector<128xf32> to vector<1x128xf32>
    %c0_11 = arith.constant 0 : index
    %c0_12 = arith.constant 0 : index
    %c0_13 = arith.constant 0 : index
    %14 = vector.load %arg6[%c0_11, %c0_12, %c0_13] : memref<1x2x128xf32, #tpu.memory_space<vmem>>, vector<1x1x128xf32>
    %15 = vector.shape_cast %14 : vector<1x1x128xf32> to vector<1x128xf32>
    %16 = vector.shape_cast %13 : vector<1x128xf32> to vector<1x1x128xf32>
    tpu.vector_store %arg6[%c0_11, %c0_12, %c0_13], %16 {strides = array<i32>} : memref<1x2x128xf32, #tpu.memory_space<vmem>>, vector<1x1x128xf32>,
    %17 = arith.mulf %10, %10 : vector<512x128xf32>
    %cst_14 = arith.constant dense<0.000000e+00> : vector<128xf32>
    %18 = vector.multi_reduction <add>, %17, %cst_14 [0] : vector<512x128xf32> to vector<128xf32>
    %19 = vector.shape_cast %18 : vector<128xf32> to vector<1x128xf32>
    %c0_15 = arith.constant 0 : index
    %c1 = arith.constant 1 : index
    %c0_16 = arith.constant 0 : index
    %20 = vector.load %arg6[%c0_15, %c1, %c0_16] : memref<1x2x128xf32, #tpu.memory_space<vmem>>, vector<1x1x128xf32>
    %21 = vector.shape_cast %20 : vector<1x1x128xf32> to vector<1x128xf32>
    %22 = vector.shape_cast %19 : vector<1x128xf32> to vector<1x1x128xf32>
    tpu.vector_store %arg6[%c0_15, %c1, %c0_16], %22 {strides = array<i32>} : memref<1x2x128xf32, #tpu.memory_space<vmem>>, vector<1x1x128xf32>,
    return
  }
  func.func @transform_0(%arg0: i32) -> (i32, i32) {
    %c0_i32 = arith.constant 0 : i32
    %c0_i32_0 = arith.constant 0 : i32
    return %arg0, %c0_i32 : i32, i32
  }
  func.func @transform_1(%arg0: i32) -> (i32, i32) {
    %c0_i32 = arith.constant 0 : i32
    %c0_i32_0 = arith.constant 0 : i32
    %c0_i32_1 = arith.constant 0 : i32
    return %c0_i32, %c0_i32_0 : i32, i32
  }
  func.func @transform_2(%arg0: i32) -> (i32, i32) {
    %c0_i32 = arith.constant 0 : i32
    %c0_i32_0 = arith.constant 0 : i32
    %c0_i32_1 = arith.constant 0 : i32
    return %c0_i32, %c0_i32_0 : i32, i32
  }
  func.func @transform_3(%arg0: i32) -> (i32, i32) {
    %c0_i32 = arith.constant 0 : i32
    %c0_i32_0 = arith.constant 0 : i32
    %c0_i32_1 = arith.constant 0 : i32
    return %c0_i32, %c0_i32_0 : i32, i32
  }
  func.func @transform_4(%arg0: i32) -> (i32, i32) {
    %c0_i32 = arith.constant 0 : i32
    %c0_i32_0 = arith.constant 0 : i32
    return %arg0, %c0_i32 : i32, i32
  }
  func.func @transform_5(%arg0: i32) -> (i32, i32, i32) {
    %c0_i32 = arith.constant 0 : i32
    %c0_i32_0 = arith.constant 0 : i32
    %c0_i32_1 = arith.constant 0 : i32
    return %arg0, %c0_i32, %c0_i32_0 : i32, i32, i32
  }
}

module attributes {stable_mosaic.version = 11 : i64} {
  func.func @_bn_conv1x1_residual_kernel(%arg0: i32, %arg1: memref<512x128xf32, #tpu.memory_space<vmem>>, %arg2: memref<1x128xf32, #tpu.memory_space<vmem>>, %arg3: memref<1x128xf32, #tpu.memory_space<vmem>>, %arg4: memref<128x128xf32, #tpu.memory_space<vmem>>, %arg5: memref<512x128xf32, #tpu.memory_space<vmem>>, %arg6: memref<1x128xf32, #tpu.memory_space<vmem>>, %arg7: memref<1x128xf32, #tpu.memory_space<vmem>>, %arg8: memref<128x128xf32, #tpu.memory_space<vmem>>, %arg9: memref<512x128xf32, #tpu.memory_space<vmem>>) attributes {dimension_semantics = [#tpu.dimension_semantics<parallel>], iteration_bounds = array<i64: 1>, scalar_prefetch = 0 : i64, scratch_operands = 0 : i64, tpu.core_type = #tpu.core_type<tc>, window_params = [{transform_indices = @transform_0, window_bounds = array<i64: 512, 128>}, {pipeline_mode = #tpu.pipeline_mode<synchronous>, transform_indices = @transform_1, window_bounds = array<i64: 1, 128>}, {pipeline_mode = #tpu.pipeline_mode<synchronous>, transform_indices = @transform_2, window_bounds = array<i64: 1, 128>}, {pipeline_mode = #tpu.pipeline_mode<synchronous>, transform_indices = @transform_3, window_bounds = array<i64: 128, 128>}, {transform_indices = @transform_4, window_bounds = array<i64: 512, 128>}, {pipeline_mode = #tpu.pipeline_mode<synchronous>, transform_indices = @transform_5, window_bounds = array<i64: 1, 128>}, {pipeline_mode = #tpu.pipeline_mode<synchronous>, transform_indices = @transform_6, window_bounds = array<i64: 1, 128>}, {pipeline_mode = #tpu.pipeline_mode<synchronous>, transform_indices = @transform_7, window_bounds = array<i64: 128, 128>}, {transform_indices = @transform_8, window_bounds = array<i64: 512, 128>}]} {
    %c0 = arith.constant 0 : index
    %c0_0 = arith.constant 0 : index
    %0 = vector.load %arg1[%c0, %c0_0] : memref<512x128xf32, #tpu.memory_space<vmem>>, vector<512x128xf32>
    %c0_1 = arith.constant 0 : index
    %c0_2 = arith.constant 0 : index
    %1 = vector.load %arg2[%c0_1, %c0_2] : memref<1x128xf32, #tpu.memory_space<vmem>>, vector<1x128xf32>
    %2 = vector.broadcast %1 : vector<1x128xf32> to vector<512x128xf32>
    %3 = arith.mulf %0, %2 : vector<512x128xf32>
    %c0_3 = arith.constant 0 : index
    %c0_4 = arith.constant 0 : index
    %4 = vector.load %arg3[%c0_3, %c0_4] : memref<1x128xf32, #tpu.memory_space<vmem>>, vector<1x128xf32>
    %5 = vector.broadcast %4 : vector<1x128xf32> to vector<512x128xf32>
    %6 = arith.addf %3, %5 : vector<512x128xf32>
    %cst = arith.constant 0.000000e+00 : f32
    %7 = vector.broadcast %cst : f32 to vector<512x128xf32>
    %8 = arith.maximumf %6, %7 : vector<512x128xf32>
    %c0_5 = arith.constant 0 : index
    %c0_6 = arith.constant 0 : index
    %9 = vector.load %arg4[%c0_5, %c0_6] : memref<128x128xf32, #tpu.memory_space<vmem>>, vector<128x128xf32>
    %cst_7 = arith.constant dense<0.000000e+00> : vector<512x128xf32>
    %10 = tpu.matmul %8, %9, %cst_7 {dimension_numbers = #tpu.dot_dimension_numbers<[1], [0], [0], [1], [0, 0, 1, 1], [], []>} : vector<512x128xf32>, vector<128x128xf32>, vector<512x128xf32> -> vector<512x128xf32>
    %c0_8 = arith.constant 0 : index
    %c0_9 = arith.constant 0 : index
    %11 = vector.load %arg5[%c0_8, %c0_9] : memref<512x128xf32, #tpu.memory_space<vmem>>, vector<512x128xf32>
    %c0_10 = arith.constant 0 : index
    %c0_11 = arith.constant 0 : index
    %12 = vector.load %arg6[%c0_10, %c0_11] : memref<1x128xf32, #tpu.memory_space<vmem>>, vector<1x128xf32>
    %13 = vector.broadcast %12 : vector<1x128xf32> to vector<512x128xf32>
    %14 = arith.mulf %11, %13 : vector<512x128xf32>
    %c0_12 = arith.constant 0 : index
    %c0_13 = arith.constant 0 : index
    %15 = vector.load %arg7[%c0_12, %c0_13] : memref<1x128xf32, #tpu.memory_space<vmem>>, vector<1x128xf32>
    %16 = vector.broadcast %15 : vector<1x128xf32> to vector<512x128xf32>
    %17 = arith.addf %14, %16 : vector<512x128xf32>
    %cst_14 = arith.constant 0.000000e+00 : f32
    %18 = vector.broadcast %cst_14 : f32 to vector<512x128xf32>
    %19 = arith.maximumf %17, %18 : vector<512x128xf32>
    %c0_15 = arith.constant 0 : index
    %c0_16 = arith.constant 0 : index
    %20 = vector.load %arg8[%c0_15, %c0_16] : memref<128x128xf32, #tpu.memory_space<vmem>>, vector<128x128xf32>
    %cst_17 = arith.constant dense<0.000000e+00> : vector<512x128xf32>
    %21 = tpu.matmul %19, %20, %cst_17 {dimension_numbers = #tpu.dot_dimension_numbers<[1], [0], [0], [1], [0, 0, 1, 1], [], []>} : vector<512x128xf32>, vector<128x128xf32>, vector<512x128xf32> -> vector<512x128xf32>
    %22 = arith.addf %10, %21 : vector<512x128xf32>
    %c0_18 = arith.constant 0 : index
    %c0_19 = arith.constant 0 : index
    %23 = vector.load %arg9[%c0_18, %c0_19] : memref<512x128xf32, #tpu.memory_space<vmem>>, vector<512x128xf32>
    tpu.vector_store %arg9[%c0_18, %c0_19], %22 {strides = array<i32>} : memref<512x128xf32, #tpu.memory_space<vmem>>, vector<512x128xf32>,
    return
  }
  func.func @transform_0(%arg0: i32) -> (i32, i32) {
    %c0_i32 = arith.constant 0 : i32
    %c0_i32_0 = arith.constant 0 : i32
    return %arg0, %c0_i32 : i32, i32
  }
  func.func @transform_1(%arg0: i32) -> (i32, i32) {
    %c0_i32 = arith.constant 0 : i32
    %c0_i32_0 = arith.constant 0 : i32
    %c0_i32_1 = arith.constant 0 : i32
    return %c0_i32, %c0_i32_0 : i32, i32
  }
  func.func @transform_2(%arg0: i32) -> (i32, i32) {
    %c0_i32 = arith.constant 0 : i32
    %c0_i32_0 = arith.constant 0 : i32
    %c0_i32_1 = arith.constant 0 : i32
    return %c0_i32, %c0_i32_0 : i32, i32
  }
  func.func @transform_3(%arg0: i32) -> (i32, i32) {
    %c0_i32 = arith.constant 0 : i32
    %c0_i32_0 = arith.constant 0 : i32
    %c0_i32_1 = arith.constant 0 : i32
    return %c0_i32, %c0_i32_0 : i32, i32
  }
  func.func @transform_4(%arg0: i32) -> (i32, i32) {
    %c0_i32 = arith.constant 0 : i32
    %c0_i32_0 = arith.constant 0 : i32
    return %arg0, %c0_i32 : i32, i32
  }
  func.func @transform_5(%arg0: i32) -> (i32, i32) {
    %c0_i32 = arith.constant 0 : i32
    %c0_i32_0 = arith.constant 0 : i32
    %c0_i32_1 = arith.constant 0 : i32
    return %c0_i32, %c0_i32_0 : i32, i32
  }
  func.func @transform_6(%arg0: i32) -> (i32, i32) {
    %c0_i32 = arith.constant 0 : i32
    %c0_i32_0 = arith.constant 0 : i32
    %c0_i32_1 = arith.constant 0 : i32
    return %c0_i32, %c0_i32_0 : i32, i32
  }
  func.func @transform_7(%arg0: i32) -> (i32, i32) {
    %c0_i32 = arith.constant 0 : i32
    %c0_i32_0 = arith.constant 0 : i32
    %c0_i32_1 = arith.constant 0 : i32
    return %c0_i32, %c0_i32_0 : i32, i32
  }
  func.func @transform_8(%arg0: i32) -> (i32, i32) {
    %c0_i32 = arith.constant 0 : i32
    %c0_i32_0 = arith.constant 0 : i32
    return %arg0, %c0_i32 : i32, i32
  }
}

</mosaic_0001>

<llo_original>
// kernel: preact_bottleneck.3
$region0: #{preact_bottleneck.3}
  #allocation0 [shape = 'u32[]', space=smem, size = 0x4, offset = 0x4, fixed_abs, tag = 'smem constant byte address 0x4 - core index']
  #allocation1 [shape = 'u32[144,128]{1,0:T(1,128)}', space=vmem, size = 0x12000, scoped, tag = 'internal scratch']
  %s0 = inlined_call_operand.vmem [shape: f32[512,128], index: 0, kind: input, shape index: {}]
  %s1 = inlined_call_operand.vmem [shape: f32[1,128], index: 1, kind: input, shape index: {}]
  %s2 = inlined_call_operand.vmem [shape: f32[1,128], index: 2, kind: input, shape index: {}]
  %s3 = inlined_call_operand.vmem [shape: f32[128,128], index: 3, kind: input, shape index: {}]
  %s4 = inlined_call_operand.vmem [shape: f32[512,128], index: 4, kind: output, shape index: {0}]
  %s5 = inlined_call_operand.vmem [shape: f32[1,2,128], index: 5, kind: output, shape index: {1}]
  %6 = xla_tuple %s4, %s5
  %s7 = sld [smem:[#allocation0]]
  $region34: #{preact_bottleneck.3} parent=0
    _
  %s9 = ssub.s32 1, %s7
  %s10 = scalar_select 0, %s9, %s7
  // Predicated region
  $region2: #{preact_bottleneck.3} parent=0 // pred_check
    _
  $region3: #{preact_bottleneck.3} parent=0 // pred_check_branch
    %12 = sbr.rel (0) target = $region5
  $region4: #{preact_bottleneck.3} parent=0 // pred_region
    _
  $region5: #{preact_bottleneck.3} parent=0 // pred_fallthru
    _
  // Predicated region
  $region6: #{preact_bottleneck.3} parent=0 // pred_check
    _
  $region7: #{preact_bottleneck.3} parent=0 // pred_check_branch
    %14 = sbr.rel (0) target = $region9
  $region8: #{preact_bottleneck.3} parent=0 // pred_region
    _
  $region9: #{preact_bottleneck.3} parent=0 // pred_fallthru
    _
  // Predicated region
  $region10: #{preact_bottleneck.3} parent=0 // pred_check
    _
  $region11: #{preact_bottleneck.3} parent=0 // pred_check_branch
    %16 = sbr.rel (0) target = $region13
  $region12: #{preact_bottleneck.3} parent=0 // pred_region
    _
  $region13: #{preact_bottleneck.3} parent=0 // pred_fallthru
    _
  // Predicated region
  $region14: #{preact_bottleneck.3} parent=0 // pred_check
    _
  $region15: #{preact_bottleneck.3} parent=0 // pred_check_branch
    %18 = sbr.rel (0) target = $region17
  $region16: #{preact_bottleneck.3} parent=0 // pred_region
    _
  $region17: #{preact_bottleneck.3} parent=0 // pred_fallthru
    _
  %v19 = vld [vmem:[%s0] sm:$0xff]
  %v20 = vld [vmem:[%s0 + $0x8] sm:$0xff]
  %v21 = vld [vmem:[%s0 + $0x10] sm:$0xff]
  %v22 = vld [vmem:[%s0 + $0x18] sm:$0xff]
  %v23 = vld [vmem:[%s0 + $0x20] sm:$0xff]
  %v24 = vld [vmem:[%s0 + $0x28] sm:$0xff]
  %v25 = vld [vmem:[%s0 + $0x30] sm:$0xff]
  %v26 = vld [vmem:[%s0 + $0x38] sm:$0xff]
  %v27 = vld [vmem:[%s0 + $0x40] sm:$0xff]
  %v28 = vld [vmem:[%s0 + $0x48] sm:$0xff]
  %v29 = vld [vmem:[%s0 + $0x50] sm:$0xff]
  %v30 = vld [vmem:[%s0 + $0x58] sm:$0xff]
  %v31 = vld [vmem:[%s0 + $0x60] sm:$0xff]
  %v32 = vld [vmem:[%s0 + $0x68] sm:$0xff]
  %v33 = vld [vmem:[%s0 + $0x70] sm:$0xff]
  %v34 = vld [vmem:[%s0 + $0x78] sm:$0xff]
  %v35 = vld [vmem:[%s0 + $0x80] sm:$0xff]
  %v36 = vld [vmem:[%s0 + $0x88] sm:$0xff]
  %v37 = vld [vmem:[%s0 + $0x90] sm:$0xff]
  %v38 = vld [vmem:[%s0 + $0x98] sm:$0xff]
  %v39 = vld [vmem:[%s0 + $0xa0] sm:$0xff]
  %v40 = vld [vmem:[%s0 + $0xa8] sm:$0xff]
  %v41 = vld [vmem:[%s0 + $0xb0] sm:$0xff]
  %v42 = vld [vmem:[%s0 + $0xb8] sm:$0xff]
  %v43 = vld [vmem:[%s0 + $0xc0] sm:$0xff]
  %v44 = vld [vmem:[%s0 + $0xc8] sm:$0xff]
  %v45 = vld [vmem:[%s0 + $0xd0] sm:$0xff]
  %v46 = vld [vmem:[%s0 + $0xd8] sm:$0xff]
  %v47 = vld [vmem:[%s0 + $0xe0] sm:$0xff]
  %v48 = vld [vmem:[%s0 + $0xe8] sm:$0xff]
  %v49 = vld [vmem:[%s0 + $0xf0] sm:$0xff]
  %v50 = vld [vmem:[%s0 + $0xf8] sm:$0xff]
  %v51 = vld [vmem:[%s0 + $0x100] sm:$0xff]
  %v52 = vld [vmem:[%s0 + $0x108] sm:$0xff]
  %v53 = vld [vmem:[%s0 + $0x110] sm:$0xff]
  %v54 = vld [vmem:[%s0 + $0x118] sm:$0xff]
  %v55 = vld [vmem:[%s0 + $0x120] sm:$0xff]
  %v56 = vld [vmem:[%s0 + $0x128] sm:$0xff]
  %v57 = vld [vmem:[%s0 + $0x130] sm:$0xff]
  %v58 = vld [vmem:[%s0 + $0x138] sm:$0xff]
  %v59 = vld [vmem:[%s0 + $0x140] sm:$0xff]
  %v60 = vld [vmem:[%s0 + $0x148] sm:$0xff]
  %v61 = vld [vmem:[%s0 + $0x150] sm:$0xff]
  %v62 = vld [vmem:[%s0 + $0x158] sm:$0xff]
  %v63 = vld [vmem:[%s0 + $0x160] sm:$0xff]
  %v64 = vld [vmem:[%s0 + $0x168] sm:$0xff]
  %v65 = vld [vmem:[%s0 + $0x170] sm:$0xff]
  %v66 = vld [vmem:[%s0 + $0x178] sm:$0xff]
  %v67 = vld [vmem:[%s0 + $0x180] sm:$0xff]
  %v68 = vld [vmem:[%s0 + $0x188] sm:$0xff]
  %v69 = vld [vmem:[%s0 + $0x190] sm:$0xff]
  %v70 = vld [vmem:[%s0 + $0x198] sm:$0xff]
  %v71 = vld [vmem:[%s0 + $0x1a0] sm:$0xff]
  %v72 = vld [vmem:[%s0 + $0x1a8] sm:$0xff]
  %v73 = vld [vmem:[%s0 + $0x1b0] sm:$0xff]
  %v74 = vld [vmem:[%s0 + $0x1b8] sm:$0xff]
  %v75 = vld [vmem:[%s0 + $0x1c0] sm:$0xff]
  %v76 = vld [vmem:[%s0 + $0x1c8] sm:$0xff]
  %v77 = vld [vmem:[%s0 + $0x1d0] sm:$0xff]
  %v78 = vld [vmem:[%s0 + $0x1d8] sm:$0xff]
  %v79 = vld [vmem:[%s0 + $0x1e0] sm:$0xff]
  %v80 = vld [vmem:[%s0 + $0x1e8] sm:$0xff]
  %v81 = vld [vmem:[%s0 + $0x1f0] sm:$0xff]
  %v82 = vld [vmem:[%s0 + $0x1f8] sm:$0xff]
  %v83 = vld [vmem:[%s1] sm:$0x1]
  %v85 = vlaneseq
  %v86 = vshrl.u32 %v85, 7
  %v87 = vsub.s32 0, %v86
  %v88 = vrot.slane %v83, %v87
  %v90 = vmul.f32 %v19, %v88
  %v91 = vmul.f32 %v20, %v88
  %v92 = vmul.f32 %v21, %v88
  %v93 = vmul.f32 %v22, %v88
  %v94 = vmul.f32 %v23, %v88
  %v95 = vmul.f32 %v24, %v88
  %v96 = vmul.f32 %v25, %v88
  %v97 = vmul.f32 %v26, %v88
  %v98 = vmul.f32 %v27, %v88
  %v99 = vmul.f32 %v28, %v88
  %v100 = vmul.f32 %v29, %v88
  %v101 = vmul.f32 %v30, %v88
  %v102 = vmul.f32 %v31, %v88
  %v103 = vmul.f32 %v32, %v88
  %v104 = vmul.f32 %v33, %v88
  %v105 = vmul.f32 %v34, %v88
  %v106 = vmul.f32 %v35, %v88
  %v107 = vmul.f32 %v36, %v88
  %v108 = vmul.f32 %v37, %v88
  %v109 = vmul.f32 %v38, %v88
  %v110 = vmul.f32 %v39, %v88
  %v111 = vmul.f32 %v40, %v88
  %v112 = vmul.f32 %v41, %v88
  %v113 = vmul.f32 %v42, %v88
  %v114 = vmul.f32 %v43, %v88
  %v115 = vmul.f32 %v44, %v88
  %v116 = vmul.f32 %v45, %v88
  %v117 = vmul.f32 %v46, %v88
  %v118 = vmul.f32 %v47, %v88
  %v119 = vmul.f32 %v48, %v88
  %v120 = vmul.f32 %v49, %v88
  %v121 = vmul.f32 %v50, %v88
  %v122 = vmul.f32 %v51, %v88
  %v123 = vmul.f32 %v52, %v88
  %v124 = vmul.f32 %v53, %v88
  %v125 = vmul.f32 %v54, %v88
  %v126 = vmul.f32 %v55, %v88
  %v127 = vmul.f32 %v56, %v88
  %v128 = vmul.f32 %v57, %v88
  %v129 = vmul.f32 %v58, %v88
  %v130 = vmul.f32 %v59, %v88
  %v131 = vmul.f32 %v60, %v88
  %v132 = vmul.f32 %v61, %v88
  %v133 = vmul.f32 %v62, %v88
  %v134 = vmul.f32 %v63, %v88
  %v135 = vmul.f32 %v64, %v88
  %v136 = vmul.f32 %v65, %v88
  %v137 = vmul.f32 %v66, %v88
  %v138 = vmul.f32 %v67, %v88
  %v139 = vmul.f32 %v68, %v88
  %v140 = vmul.f32 %v69, %v88
  %v141 = vmul.f32 %v70, %v88
  %v142 = vmul.f32 %v71, %v88
  %v143 = vmul.f32 %v72, %v88
  %v144 = vmul.f32 %v73, %v88
  %v145 = vmul.f32 %v74, %v88
  %v146 = vmul.f32 %v75, %v88
  %v147 = vmul.f32 %v76, %v88
  %v148 = vmul.f32 %v77, %v88
  %v149 = vmul.f32 %v78, %v88
  %v150 = vmul.f32 %v79, %v88
  %v151 = vmul.f32 %v80, %v88
  %v152 = vmul.f32 %v81, %v88
  %v153 = vmul.f32 %v82, %v88
  %v154 = vld [vmem:[%s2] sm:$0x1]
  %v156 = vlaneseq
  %v157 = vshrl.u32 %v156, 7
  %v158 = vsub.s32 0, %v157
  %v159 = vrot.slane %v154, %v158
  %v161 = vadd.f32 %v90, %v159
  %v162 = vadd.f32 %v91, %v159
  %v163 = vadd.f32 %v92, %v159
  %v164 = vadd.f32 %v93, %v159
  %v165 = vadd.f32 %v94, %v159
  %v166 = vadd.f32 %v95, %v159
  %v167 = vadd.f32 %v96, %v159
  %v168 = vadd.f32 %v97, %v159
  %v169 = vadd.f32 %v98, %v159
  %v170 = vadd.f32 %v99, %v159
  %v171 = vadd.f32 %v100, %v159
  %v172 = vadd.f32 %v101, %v159
  %v173 = vadd.f32 %v102, %v159
  %v174 = vadd.f32 %v103, %v159
  %v175 = vadd.f32 %v104, %v159
  %v176 = vadd.f32 %v105, %v159
  %v177 = vadd.f32 %v106, %v159
  %v178 = vadd.f32 %v107, %v159
  %v179 = vadd.f32 %v108, %v159
  %v180 = vadd.f32 %v109, %v159
  %v181 = vadd.f32 %v110, %v159
  %v182 = vadd.f32 %v111, %v159
  %v183 = vadd.f32 %v112, %v159
  %v184 = vadd.f32 %v113, %v159
  %v185 = vadd.f32 %v114, %v159
  %v186 = vadd.f32 %v115, %v159
  %v187 = vadd.f32 %v116, %v159
  %v188 = vadd.f32 %v117, %v159
  %v189 = vadd.f32 %v118, %v159
  %v190 = vadd.f32 %v119, %v159
  %v191 = vadd.f32 %v120, %v159
  %v192 = vadd.f32 %v121, %v159
  %v193 = vadd.f32 %v122, %v159
  %v194 = vadd.f32 %v123, %v159
  %v195 = vadd.f32 %v124, %v159
  %v196 = vadd.f32 %v125, %v159
  %v197 = vadd.f32 %v126, %v159
  %v198 = vadd.f32 %v127, %v159
  %v199 = vadd.f32 %v128, %v159
  %v200 = vadd.f32 %v129, %v159
  %v201 = vadd.f32 %v130, %v159
  %v202 = vadd.f32 %v131, %v159
  %v203 = vadd.f32 %v132, %v159
  %v204 = vadd.f32 %v133, %v159
  %v205 = vadd.f32 %v134, %v159
  %v206 = vadd.f32 %v135, %v159
  %v207 = vadd.f32 %v136, %v159
  %v208 = vadd.f32 %v137, %v159
  %v209 = vadd.f32 %v138, %v159
  %v210 = vadd.f32 %v139, %v159
  %v211 = vadd.f32 %v140, %v159
  %v212 = vadd.f32 %v141, %v159
  %v213 = vadd.f32 %v142, %v159
  %v214 = vadd.f32 %v143, %v159
  %v215 = vadd.f32 %v144, %v159
  %v216 = vadd.f32 %v145, %v159
  %v217 = vadd.f32 %v146, %v159
  %v218 = vadd.f32 %v147, %v159
  %v219 = vadd.f32 %v148, %v159
  %v220 = vadd.f32 %v149, %v159
  %v221 = vadd.f32 %v150, %v159
  %v222 = vadd.f32 %v151, %v159
  %v223 = vadd.f32 %v152, %v159
  %v224 = vadd.f32 %v153, %v159
  %v225 = vmax.f32 %v161, 0.0
  %v226 = vmax.f32 %v162, 0.0
  %v227 = vmax.f32 %v163, 0.0
  %v228 = vmax.f32 %v164, 0.0
  %v229 = vmax.f32 %v165, 0.0
  %v230 = vmax.f32 %v166, 0.0
  %v231 = vmax.f32 %v167, 0.0
  %v232 = vmax.f32 %v168, 0.0
  %v233 = vmax.f32 %v169, 0.0
  %v234 = vmax.f32 %v170, 0.0
  %v235 = vmax.f32 %v171, 0.0
  %v236 = vmax.f32 %v172, 0.0
  %v237 = vmax.f32 %v173, 0.0
  %v238 = vmax.f32 %v174, 0.0
  %v239 = vmax.f32 %v175, 0.0
  %v240 = vmax.f32 %v176, 0.0
  %v241 = vmax.f32 %v177, 0.0
  %v242 = vmax.f32 %v178, 0.0
  %v243 = vmax.f32 %v179, 0.0
  %v244 = vmax.f32 %v180, 0.0
  %v245 = vmax.f32 %v181, 0.0
  %v246 = vmax.f32 %v182, 0.0
  %v247 = vmax.f32 %v183, 0.0
  %v248 = vmax.f32 %v184, 0.0
  %v249 = vmax.f32 %v185, 0.0
  %v250 = vmax.f32 %v186, 0.0
  %v251 = vmax.f32 %v187, 0.0
  %v252 = vmax.f32 %v188, 0.0
  %v253 = vmax.f32 %v189, 0.0
  %v254 = vmax.f32 %v190, 0.0
  %v255 = vmax.f32 %v191, 0.0
  %v256 = vmax.f32 %v192, 0.0
  %v257 = vmax.f32 %v193, 0.0
  %v258 = vmax.f32 %v194, 0.0
  %v259 = vmax.f32 %v195, 0.0
  %v260 = vmax.f32 %v196, 0.0
  %v261 = vmax.f32 %v197, 0.0
  %v262 = vmax.f32 %v198, 0.0
  %v263 = vmax.f32 %v199, 0.0
  %v264 = vmax.f32 %v200, 0.0
  %v265 = vmax.f32 %v201, 0.0
  %v266 = vmax.f32 %v202, 0.0
  %v267 = vmax.f32 %v203, 0.0
  %v268 = vmax.f32 %v204, 0.0
  %v269 = vmax.f32 %v205, 0.0
  %v270 = vmax.f32 %v206, 0.0
  %v271 = vmax.f32 %v207, 0.0
  %v272 = vmax.f32 %v208, 0.0
  %v273 = vmax.f32 %v209, 0.0
  %v274 = vmax.f32 %v210, 0.0
  %v275 = vmax.f32 %v211, 0.0
  %v276 = vmax.f32 %v212, 0.0
  %v277 = vmax.f32 %v213, 0.0
  %v278 = vmax.f32 %v214, 0.0
  %v279 = vmax.f32 %v215, 0.0
  %v280 = vmax.f32 %v216, 0.0
  %v281 = vmax.f32 %v217, 0.0
  %v282 = vmax.f32 %v218, 0.0
  %v283 = vmax.f32 %v219, 0.0
  %v284 = vmax.f32 %v220, 0.0
  %v285 = vmax.f32 %v221, 0.0
  %v286 = vmax.f32 %v222, 0.0
  %v287 = vmax.f32 %v223, 0.0
  %v288 = vmax.f32 %v224, 0.0
  %v289 = vld [vmem:[%s3] sm:$0xff]
  %v290 = vld [vmem:[%s3 + $0x8] sm:$0xff]
  %v291 = vld [vmem:[%s3 + $0x10] sm:$0xff]
  %v292 = vld [vmem:[%s3 + $0x18] sm:$0xff]
  %v293 = vld [vmem:[%s3 + $0x20] sm:$0xff]
  %v294 = vld [vmem:[%s3 + $0x28] sm:$0xff]
  %v295 = vld [vmem:[%s3 + $0x30] sm:$0xff]
  %v296 = vld [vmem:[%s3 + $0x38] sm:$0xff]
  %v297 = vld [vmem:[%s3 + $0x40] sm:$0xff]
  %v298 = vld [vmem:[%s3 + $0x48] sm:$0xff]
  %v299 = vld [vmem:[%s3 + $0x50] sm:$0xff]
  %v300 = vld [vmem:[%s3 + $0x58] sm:$0xff]
  %v301 = vld [vmem:[%s3 + $0x60] sm:$0xff]
  %v302 = vld [vmem:[%s3 + $0x68] sm:$0xff]
  %v303 = vld [vmem:[%s3 + $0x70] sm:$0xff]
  %v304 = vld [vmem:[%s3 + $0x78] sm:$0xff]
  %305 = vmatprep.subr.mxu0 0.0
  %306 = vmatpush1.msra.mxu0 %v289
  %307 = vmatprep.subr.mxu0 0.0
  %308 = vmatpush1.msra.mxu0 %v290
  %309 = vmatprep.subr.mxu0 0.0
  %310 = vmatpush1.msra.mxu0 %v291
  %311 = vmatprep.subr.mxu0 0.0
  %312 = vmatpush1.msra.mxu0 %v292
  %313 = vmatprep.subr.mxu0 0.0
  %314 = vmatpush1.msra.mxu0 %v293
  %315 = vmatprep.subr.mxu0 0.0
  %316 = vmatpush1.msra.mxu0 %v294
  %317 = vmatprep.subr.mxu0 0.0
  %318 = vmatpush1.msra.mxu0 %v295
  %319 = vmatprep.subr.mxu0 0.0
  %320 = vmatpush1.msra.mxu0 %v296
  %321 = vmatprep.subr.mxu0 0.0
  %322 = vmatpush1.msra.mxu0 %v297
  %323 = vmatprep.subr.mxu0 0.0
  %324 = vmatpush1.msra.mxu0 %v298
  %325 = vmatprep.subr.mxu0 0.0
  %326 = vmatpush1.msra.mxu0 %v299
  %327 = vmatprep.subr.mxu0 0.0
  %328 = vmatpush1.msra.mxu0 %v300
  %329 = vmatprep.subr.mxu0 0.0
  %330 = vmatpush1.msra.mxu0 %v301
  %331 = vmatprep.subr.mxu0 0.0
  %332 = vmatpush1.msra.mxu0 %v302
  %333 = vmatprep.subr.mxu0 0.0
  %334 = vmatpush1.msra.mxu0 %v303
  %335 = vmatprep.subr.mxu0 0.0
  %336 = vmatpush1.msra.mxu0 %v304
  %337 = vmatprep.subr.mxu0 0.0
  %338 = vmatpush1.msra.mxu0 0.0
  %339 = vmatprep.subr.mxu0 0.0
  %340 = vmatpush1.msra.mxu0 0.0
  %341 = vmatprep.subr.mxu0 0.0
  %342 = vmatpush1.msra.mxu0 0.0
  %343 = vmatprep.subr.mxu0 0.0
  %344 = vmatpush1.msra.mxu0 0.0
  %345 = vmatprep.subr.mxu0 0.0
  %346 = vmatpush1.msra.mxu0 0.0
  %347 = vmatprep.subr.mxu0 0.0
  %348 = vmatpush1.msra.mxu0 0.0
  %349 = vmatprep.subr.mxu0 0.0
  %350 = vmatpush1.msra.mxu0 0.0
  %351 = vmatprep.subr.mxu0 0.0
  %352 = vmatpush1.msra.mxu0 0.0
  %353 = vmatprep.subr.mxu0 0.0
  %354 = vmatpush1.msra.mxu0 0.0
  %355 = vmatprep.subr.mxu0 0.0
  %356 = vmatpush1.msra.mxu0 0.0
  %357 = vmatprep.subr.mxu0 0.0
  %358 = vmatpush1.msra.mxu0 0.0
  %359 = vmatprep.subr.mxu0 0.0
  %360 = vmatpush1.msra.mxu0 0.0
  %361 = vmatprep.subr.mxu0 0.0
  %362 = vmatpush1.msra.mxu0 0.0
  %363 = vmatprep.subr.mxu0 0.0
  %364 = vmatpush1.msra.mxu0 0.0
  %365 = vmatprep.subr.mxu0 0.0
  %366 = vmatpush1.msra.mxu0 0.0
  %367 = vmatprep.subr.mxu0 0.0
  %368 = vmatpush1.msra.mxu0 0.0
  %369 = vmatprep.mubr.f32.mxu0 0.0
  %370 = vmatmul.mubr.f32.gmra.mrb[0].mxu0 %v225
  %v371 = vpop.f32.mrb[0].mxu0
  %v372 = vadd.f32 0.0, %v371
  %v373 = vpop.f32.mrb[0].mxu0
  %374 = vmatprep.mubr.f32.mxu0 0.0
  %375 = vmatmul.mubr.f32.gmra.mrb[0].mxu0 %v226
  %v376 = vpop.f32.mrb[0].mxu0
  %v377 = vadd.f32 0.0, %v376
  %v378 = vpop.f32.mrb[0].mxu0
  %379 = vmatprep.mubr.f32.mxu0 0.0
  %380 = vmatmul.mubr.f32.gmra.mrb[0].mxu0 %v227
  %v381 = vpop.f32.mrb[0].mxu0
  %v382 = vadd.f32 0.0, %v381
  %v383 = vpop.f32.mrb[0].mxu0
  %384 = vmatprep.mubr.f32.mxu0 0.0
  %385 = vmatmul.mubr.f32.gmra.mrb[0].mxu0 %v228
  %v386 = vpop.f32.mrb[0].mxu0
  %v387 = vadd.f32 0.0, %v386
  %v388 = vpop.f32.mrb[0].mxu0
  %389 = vmatprep.mubr.f32.mxu0 0.0
  %390 = vmatmul.mubr.f32.gmra.mrb[0].mxu0 %v229
  %v391 = vpop.f32.mrb[0].mxu0
  %v392 = vadd.f32 0.0, %v391
  %v393 = vpop.f32.mrb[0].mxu0
  %394 = vmatprep.mubr.f32.mxu0 0.0
  %395 = vmatmul.mubr.f32.gmra.mrb[0].mxu0 %v230
  %v396 = vpop.f32.mrb[0].mxu0
  %v397 = vadd.f32 0.0, %v396
  %v398 = vpop.f32.mrb[0].mxu0
  %399 = vmatprep.mubr.f32.mxu0 0.0
  %400 = vmatmul.mubr.f32.gmra.mrb[0].mxu0 %v231
  %v401 = vpop.f32.mrb[0].mxu0
  %v402 = vadd.f32 0.0, %v401
  %v403 = vpop.f32.mrb[0].mxu0
  %404 = vmatprep.mubr.f32.mxu0 0.0
  %405 = vmatmul.mubr.f32.gmra.mrb[0].mxu0 %v232
  %v406 = vpop.f32.mrb[0].mxu0
  %v407 = vadd.f32 0.0, %v406
  %v408 = vpop.f32.mrb[0].mxu0
  %409 = vmatprep.mubr.f32.mxu0 0.0
  %410 = vmatmul.mubr.f32.gmra.mrb[0].mxu0 %v233
  %v411 = vpop.f32.mrb[0].mxu0
  %v412 = vadd.f32 0.0, %v411
  %v413 = vpop.f32.mrb[0].mxu0
  %414 = vmatprep.mubr.f32.mxu0 0.0
  %415 = vmatmul.mubr.f32.gmra.mrb[0].mxu0 %v234
  %v416 = vpop.f32.mrb[0].mxu0
  %v417 = vadd.f32 0.0, %v416
  %v418 = vpop.f32.mrb[0].mxu0
  %419 = vmatprep.mubr.f32.mxu0 0.0
  %420 = vmatmul.mubr.f32.gmra.mrb[0].mxu0 %v235
  %v421 = vpop.f32.mrb[0].mxu0
  %v422 = vadd.f32 0.0, %v421
  %v423 = vpop.f32.mrb[0].mxu0
  %424 = vmatprep.mubr.f32.mxu0 0.0
  %425 = vmatmul.mubr.f32.gmra.mrb[0].mxu0 %v236
  %v426 = vpop.f32.mrb[0].mxu0
  %v427 = vadd.f32 0.0, %v426
  %v428 = vpop.f32.mrb[0].mxu0
  %429 = vmatprep.mubr.f32.mxu0 0.0
  %430 = vmatmul.mubr.f32.gmra.mrb[0].mxu0 %v237
  %v431 = vpop.f32.mrb[0].mxu0
  %v432 = vadd.f32 0.0, %v431
  %v433 = vpop.f32.mrb[0].mxu0
  %434 = vmatprep.mubr.f32.mxu0 0.0
  %435 = vmatmul.mubr.f32.gmra.mrb[0].mxu0 %v238
  %v436 = vpop.f32.mrb[0].mxu0
  %v437 = vadd.f32 0.0, %v436
  %v438 = vpop.f32.mrb[0].mxu0
  %439 = vmatprep.mubr.f32.mxu0 0.0
  %440 = vmatmul.mubr.f32.gmra.mrb[0].mxu0 %v239
  %v441 = vpop.f32.mrb[0].mxu0
  %v442 = vadd.f32 0.0, %v441
  %v443 = vpop.f32.mrb[0].mxu0
  %444 = vmatprep.mubr.f32.mxu0 0.0
  %445 = vmatmul.mubr.f32.gmra.mrb[0].mxu0 %v240
  %v446 = vpop.f32.mrb[0].mxu0
  %v447 = vadd.f32 0.0, %v446
  %v448 = vpop.f32.mrb[0].mxu0
  %449 = vmatprep.mubr.f32.mxu0 0.0
  %450 = vmatmul.mubr.f32.gmra.mrb[0].mxu0 %v241
  %v451 = vpop.f32.mrb[0].mxu0
  %v452 = vadd.f32 0.0, %v451
  %v453 = vpop.f32.mrb[0].mxu0
  %454 = vmatprep.mubr.f32.mxu0 0.0
  %455 = vmatmul.mubr.f32.gmra.mrb[0].mxu0 %v242
  %v456 = vpop.f32.mrb[0].mxu0
  %v457 = vadd.f32 0.0, %v456
  %v458 = vpop.f32.mrb[0].mxu0
  %459 = vmatprep.mubr.f32.mxu0 0.0
  %460 = vmatmul.mubr.f32.gmra.mrb[0].mxu0 %v243
  %v461 = vpop.f32.mrb[0].mxu0
  %v462 = vadd.f32 0.0, %v461
  %v463 = vpop.f32.mrb[0].mxu0
  %464 = vmatprep.mubr.f32.mxu0 0.0
  %465 = vmatmul.mubr.f32.gmra.mrb[0].mxu0 %v244
  %v466 = vpop.f32.mrb[0].mxu0
  %v467 = vadd.f32 0.0, %v466
  %v468 = vpop.f32.mrb[0].mxu0
  %469 = vmatprep.mubr.f32.mxu0 0.0
  %470 = vmatmul.mubr.f32.gmra.mrb[0].mxu0 %v245
  %v471 = vpop.f32.mrb[0].mxu0
  %v472 = vadd.f32 0.0, %v471
  %v473 = vpop.f32.mrb[0].mxu0
  %474 = vmatprep.mubr.f32.mxu0 0.0
  %475 = vmatmul.mubr.f32.gmra.mrb[0].mxu0 %v246
  %v476 = vpop.f32.mrb[0].mxu0
  %v477 = vadd.f32 0.0, %v476
  %v478 = vpop.f32.mrb[0].mxu0
  %479 = vmatprep.mubr.f32.mxu0 0.0
  %480 = vmatmul.mubr.f32.gmra.mrb[0].mxu0 %v247
  %v481 = vpop.f32.mrb[0].mxu0
  %v482 = vadd.f32 0.0, %v481
  %v483 = vpop.f32.mrb[0].mxu0
  %484 = vmatprep.mubr.f32.mxu0 0.0
  %485 = vmatmul.mubr.f32.gmra.mrb[0].mxu0 %v248
  %v486 = vpop.f32.mrb[0].mxu0
  %v487 = vadd.f32 0.0, %v486
  %v488 = vpop.f32.mrb[0].mxu0
  %489 = vmatprep.mubr.f32.mxu0 0.0
  %490 = vmatmul.mubr.f32.gmra.mrb[0].mxu0 %v249
  %v491 = vpop.f32.mrb[0].mxu0
  %v492 = vadd.f32 0.0, %v491
  %v493 = vpop.f32.mrb[0].mxu0
  %494 = vmatprep.mubr.f32.mxu0 0.0
  %495 = vmatmul.mubr.f32.gmra.mrb[0].mxu0 %v250
  %v496 = vpop.f32.mrb[0].mxu0
  %v497 = vadd.f32 0.0, %v496
  %v498 = vpop.f32.mrb[0].mxu0
  %499 = vmatprep.mubr.f32.mxu0 0.0
  %500 = vmatmul.mubr.f32.gmra.mrb[0].mxu0 %v251
  %v501 = vpop.f32.mrb[0].mxu0
  %v502 = vadd.f32 0.0, %v501
  %v503 = vpop.f32.mrb[0].mxu0
  %504 = vmatprep.mubr.f32.mxu0 0.0
  %505 = vmatmul.mubr.f32.gmra.mrb[0].mxu0 %v252
  %v506 = vpop.f32.mrb[0].mxu0
  %v507 = vadd.f32 0.0, %v506
  %v508 = vpop.f32.mrb[0].mxu0
  %509 = vmatprep.mubr.f32.mxu0 0.0
  %510 = vmatmul.mubr.f32.gmra.mrb[0].mxu0 %v253
  %v511 = vpop.f32.mrb[0].mxu0
  %v512 = vadd.f32 0.0, %v511
  %v513 = vpop.f32.mrb[0].mxu0
  %514 = vmatprep.mubr.f32.mxu0 0.0
  %515 = vmatmul.mubr.f32.gmra.mrb[0].mxu0 %v254
  %v516 = vpop.f32.mrb[0].mxu0
  %v517 = vadd.f32 0.0, %v516
  %v518 = vpop.f32.mrb[0].mxu0
  %519 = vmatprep.mubr.f32.mxu0 0.0
  %520 = vmatmul.mubr.f32.gmra.mrb[0].mxu0 %v255
  %v521 = vpop.f32.mrb[0].mxu0
  %v522 = vadd.f32 0.0, %v521
  %v523 = vpop.f32.mrb[0].mxu0
  %524 = vmatprep.mubr.f32.mxu0 0.0
  %525 = vmatmul.mubr.f32.gmra.mrb[0].mxu0 %v256
  %v526 = vpop.f32.mrb[0].mxu0
  %v527 = vadd.f32 0.0, %v526
  %v528 = vpop.f32.mrb[0].mxu0
  %529 = vmatprep.mubr.f32.mxu0 0.0
  %530 = vmatmul.mubr.f32.gmra.mrb[0].mxu0 %v257
  %v531 = vpop.f32.mrb[0].mxu0
  %v532 = vadd.f32 0.0, %v531
  %v533 = vpop.f32.mrb[0].mxu0
  %534 = vmatprep.mubr.f32.mxu0 0.0
  %535 = vmatmul.mubr.f32.gmra.mrb[0].mxu0 %v258
  %v536 = vpop.f32.mrb[0].mxu0
  %v537 = vadd.f32 0.0, %v536
  %v538 = vpop.f32.mrb[0].mxu0
  %539 = vmatprep.mubr.f32.mxu0 0.0
  %540 = vmatmul.mubr.f32.gmra.mrb[0].mxu0 %v259
  %v541 = vpop.f32.mrb[0].mxu0
  %v542 = vadd.f32 0.0, %v541
  %v543 = vpop.f32.mrb[0].mxu0
  %544 = vmatprep.mubr.f32.mxu0 0.0
  %545 = vmatmul.mubr.f32.gmra.mrb[0].mxu0 %v260
  %v546 = vpop.f32.mrb[0].mxu0
  %v547 = vadd.f32 0.0, %v546
  %v548 = vpop.f32.mrb[0].mxu0
  %549 = vmatprep.mubr.f32.mxu0 0.0
  %550 = vmatmul.mubr.f32.gmra.mrb[0].mxu0 %v261
  %v551 = vpop.f32.mrb[0].mxu0
  %v552 = vadd.f32 0.0, %v551
  %v553 = vpop.f32.mrb[0].mxu0
  %554 = vmatprep.mubr.f32.mxu0 0.0
  %555 = vmatmul.mubr.f32.gmra.mrb[0].mxu0 %v262
  %v556 = vpop.f32.mrb[0].mxu0
  %v557 = vadd.f32 0.0, %v556
  %v558 = vpop.f32.mrb[0].mxu0
  %559 = vmatprep.mubr.f32.mxu0 0.0
  %560 = vmatmul.mubr.f32.gmra.mrb[0].mxu0 %v263
  %v561 = vpop.f32.mrb[0].mxu0
  %v562 = vadd.f32 0.0, %v561
  %v563 = vpop.f32.mrb[0].mxu0
  %564 = vmatprep.mubr.f32.mxu0 0.0
  %565 = vmatmul.mubr.f32.gmra.mrb[0].mxu0 %v264
  %v566 = vpop.f32.mrb[0].mxu0
  %v567 = vadd.f32 0.0, %v566
  %v568 = vpop.f32.mrb[0].mxu0
  %569 = vmatprep.mubr.f32.mxu0 0.0
  %570 = vmatmul.mubr.f32.gmra.mrb[0].mxu0 %v265
  %v571 = vpop.f32.mrb[0].mxu0
  %v572 = vadd.f32 0.0, %v571
  %v573 = vpop.f32.mrb[0].mxu0
  %574 = vmatprep.mubr.f32.mxu0 0.0
  %575 = vmatmul.mubr.f32.gmra.mrb[0].mxu0 %v266
  %v576 = vpop.f32.mrb[0].mxu0
  %v577 = vadd.f32 0.0, %v576
  %v578 = vpop.f32.mrb[0].mxu0
  %579 = vmatprep.mubr.f32.mxu0 0.0
  %580 = vmatmul.mubr.f32.gmra.mrb[0].mxu0 %v267
  %v581 = vpop.f32.mrb[0].mxu0
  %v582 = vadd.f32 0.0, %v581
  %v583 = vpop.f32.mrb[0].mxu0
  %584 = vmatprep.mubr.f32.mxu0 0.0
  %585 = vmatmul.mubr.f32.gmra.mrb[0].mxu0 %v268
  %v586 = vpop.f32.mrb[0].mxu0
  %v587 = vadd.f32 0.0, %v586
  %v588 = vpop.f32.mrb[0].mxu0
  %589 = vmatprep.mubr.f32.mxu0 0.0
  %590 = vmatmul.mubr.f32.gmra.mrb[0].mxu0 %v269
  %v591 = vpop.f32.mrb[0].mxu0
  %v592 = vadd.f32 0.0, %v591
  %v593 = vpop.f32.mrb[0].mxu0
  %594 = vmatprep.mubr.f32.mxu0 0.0
  %595 = vmatmul.mubr.f32.gmra.mrb[0].mxu0 %v270
  %v596 = vpop.f32.mrb[0].mxu0
  %v597 = vadd.f32 0.0, %v596
  %v598 = vpop.f32.mrb[0].mxu0
  %599 = vmatprep.mubr.f32.mxu0 0.0
  %600 = vmatmul.mubr.f32.gmra.mrb[0].mxu0 %v271
  %v601 = vpop.f32.mrb[0].mxu0
  %v602 = vadd.f32 0.0, %v601
  %v603 = vpop.f32.mrb[0].mxu0
  %604 = vmatprep.mubr.f32.mxu0 0.0
  %605 = vmatmul.mubr.f32.gmra.mrb[0].mxu0 %v272
  %v606 = vpop.f32.mrb[0].mxu0
  %v607 = vadd.f32 0.0, %v606
  %v608 = vpop.f32.mrb[0].mxu0
  %609 = vmatprep.mubr.f32.mxu0 0.0
  %610 = vmatmul.mubr.f32.gmra.mrb[0].mxu0 %v273
  %v611 = vpop.f32.mrb[0].mxu0
  %v612 = vadd.f32 0.0, %v611
  %v613 = vpop.f32.mrb[0].mxu0
  %614 = vmatprep.mubr.f32.mxu0 0.0
  %615 = vmatmul.mubr.f32.gmra.mrb[0].mxu0 %v274
  %v616 = vpop.f32.mrb[0].mxu0
  %v617 = vadd.f32 0.0, %v616
  %v618 = vpop.f32.mrb[0].mxu0
  %619 = vmatprep.mubr.f32.mxu0 0.0
  %620 = vmatmul.mubr.f32.gmra.mrb[0].mxu0 %v275
  %v621 = vpop.f32.mrb[0].mxu0
  %v622 = vadd.f32 0.0, %v621
  %v623 = vpop.f32.mrb[0].mxu0
  %624 = vmatprep.mubr.f32.mxu0 0.0
  %625 = vmatmul.mubr.f32.gmra.mrb[0].mxu0 %v276
  %v626 = vpop.f32.mrb[0].mxu0
  %v627 = vadd.f32 0.0, %v626
  %v628 = vpop.f32.mrb[0].mxu0
  %629 = vmatprep.mubr.f32.mxu0 0.0
  %630 = vmatmul.mubr.f32.gmra.mrb[0].mxu0 %v277
  %v631 = vpop.f32.mrb[0].mxu0
  %v632 = vadd.f32 0.0, %v631
  %v633 = vpop.f32.mrb[0].mxu0
  %634 = vmatprep.mubr.f32.mxu0 0.0
  %635 = vmatmul.mubr.f32.gmra.mrb[0].mxu0 %v278
  %v636 = vpop.f32.mrb[0].mxu0
  %v637 = vadd.f32 0.0, %v636
  %v638 = vpop.f32.mrb[0].mxu0
  %639 = vmatprep.mubr.f32.mxu0 0.0
  %640 = vmatmul.mubr.f32.gmra.mrb[0].mxu0 %v279
  %v641 = vpop.f32.mrb[0].mxu0
  %v642 = vadd.f32 0.0, %v641
  %v643 = vpop.f32.mrb[0].mxu0
  %644 = vmatprep.mubr.f32.mxu0 0.0
  %645 = vmatmul.mubr.f32.gmra.mrb[0].mxu0 %v280
  %v646 = vpop.f32.mrb[0].mxu0
  %v647 = vadd.f32 0.0, %v646
  %v648 = vpop.f32.mrb[0].mxu0
  %649 = vmatprep.mubr.f32.mxu0 0.0
  %650 = vmatmul.mubr.f32.gmra.mrb[0].mxu0 %v281
  %v651 = vpop.f32.mrb[0].mxu0
  %v652 = vadd.f32 0.0, %v651
  %v653 = vpop.f32.mrb[0].mxu0
  %654 = vmatprep.mubr.f32.mxu0 0.0
  %655 = vmatmul.mubr.f32.gmra.mrb[0].mxu0 %v282
  %v656 = vpop.f32.mrb[0].mxu0
  %v657 = vadd.f32 0.0, %v656
  %v658 = vpop.f32.mrb[0].mxu0
  %659 = vmatprep.mubr.f32.mxu0 0.0
  %660 = vmatmul.mubr.f32.gmra.mrb[0].mxu0 %v283
  %v661 = vpop.f32.mrb[0].mxu0
  %v662 = vadd.f32 0.0, %v661
  %v663 = vpop.f32.mrb[0].mxu0
  %664 = vmatprep.mubr.f32.mxu0 0.0
  %665 = vmatmul.mubr.f32.gmra.mrb[0].mxu0 %v284
  %v666 = vpop.f32.mrb[0].mxu0
  %v667 = vadd.f32 0.0, %v666
  %v668 = vpop.f32.mrb[0].mxu0
  %669 = vmatprep.mubr.f32.mxu0 0.0
  %670 = vmatmul.mubr.f32.gmra.mrb[0].mxu0 %v285
  %v671 = vpop.f32.mrb[0].mxu0
  %v672 = vadd.f32 0.0, %v671
  %v673 = vpop.f32.mrb[0].mxu0
  %674 = vmatprep.mubr.f32.mxu0 0.0
  %675 = vmatmul.mubr.f32.gmra.mrb[0].mxu0 %v286
  %v676 = vpop.f32.mrb[0].mxu0
  %v677 = vadd.f32 0.0, %v676
  %v678 = vpop.f32.mrb[0].mxu0
  %679 = vmatprep.mubr.f32.mxu0 0.0
  %680 = vmatmul.mubr.f32.gmra.mrb[0].mxu0 %v287
  %v681 = vpop.f32.mrb[0].mxu0
  %v682 = vadd.f32 0.0, %v681
  %v683 = vpop.f32.mrb[0].mxu0
  %684 = vmatprep.mubr.f32.mxu0 0.0
  %685 = vmatmul.mubr.f32.gmra.mrb[0].mxu0 %v288
  %v686 = vpop.f32.mrb[0].mxu0
  %v687 = vadd.f32 0.0, %v686
  %v688 = vpop.f32.mrb[0].mxu0
  %689 = vdwg.mxu0
  %690 = vst [vmem:[%s4] sm:$0xff] %v372
  %691 = vst [vmem:[%s4 + $0x8] sm:$0xff] %v377
  %692 = vst [vmem:[%s4 + $0x10] sm:$0xff] %v382
  %693 = vst [vmem:[%s4 + $0x18] sm:$0xff] %v387
  %694 = vst [vmem:[%s4 + $0x20] sm:$0xff] %v392
  %695 = vst [vmem:[%s4 + $0x28] sm:$0xff] %v397
  %696 = vst [vmem:[%s4 + $0x30] sm:$0xff] %v402
  %697 = vst [vmem:[%s4 + $0x38] sm:$0xff] %v407
  %698 = vst [vmem:[%s4 + $0x40] sm:$0xff] %v412
  %699 = vst [vmem:[%s4 + $0x48] sm:$0xff] %v417
  %700 = vst [vmem:[%s4 + $0x50] sm:$0xff] %v422
  %701 = vst [vmem:[%s4 + $0x58] sm:$0xff] %v427
  %702 = vst [vmem:[%s4 + $0x60] sm:$0xff] %v432
  %703 = vst [vmem:[%s4 + $0x68] sm:$0xff] %v437
  %704 = vst [vmem:[%s4 + $0x70] sm:$0xff] %v442
  %705 = vst [vmem:[%s4 + $0x78] sm:$0xff] %v447
  %706 = vst [vmem:[%s4 + $0x80] sm:$0xff] %v452
  %707 = vst [vmem:[%s4 + $0x88] sm:$0xff] %v457
  %708 = vst [vmem:[%s4 + $0x90] sm:$0xff] %v462
  %709 = vst [vmem:[%s4 + $0x98] sm:$0xff] %v467
  %710 = vst [vmem:[%s4 + $0xa0] sm:$0xff] %v472
  %711 = vst [vmem:[%s4 + $0xa8] sm:$0xff] %v477
  %712 = vst [vmem:[%s4 + $0xb0] sm:$0xff] %v482
  %713 = vst [vmem:[%s4 + $0xb8] sm:$0xff] %v487
  %714 = vst [vmem:[%s4 + $0xc0] sm:$0xff] %v492
  %715 = vst [vmem:[%s4 + $0xc8] sm:$0xff] %v497
  %716 = vst [vmem:[%s4 + $0xd0] sm:$0xff] %v502
  %717 = vst [vmem:[%s4 + $0xd8] sm:$0xff] %v507
  %718 = vst [vmem:[%s4 + $0xe0] sm:$0xff] %v512
  %719 = vst [vmem:[%s4 + $0xe8] sm:$0xff] %v517
  %720 = vst [vmem:[%s4 + $0xf0] sm:$0xff] %v522
  %721 = vst [vmem:[%s4 + $0xf8] sm:$0xff] %v527
  %722 = vst [vmem:[%s4 + $0x100] sm:$0xff] %v532
  %723 = vst [vmem:[%s4 + $0x108] sm:$0xff] %v537
  %724 = vst [vmem:[%s4 + $0x110] sm:$0xff] %v542
  %725 = vst [vmem:[%s4 + $0x118] sm:$0xff] %v547
  %726 = vst [vmem:[%s4 + $0x120] sm:$0xff] %v552
  %727 = vst [vmem:[%s4 + $0x128] sm:$0xff] %v557
  %728 = vst [vmem:[%s4 + $0x130] sm:$0xff] %v562
  %729 = vst [vmem:[%s4 + $0x138] sm:$0xff] %v567
  %730 = vst [vmem:[%s4 + $0x140] sm:$0xff] %v572
  %731 = vst [vmem:[%s4 + $0x148] sm:$0xff] %v577
  %732 = vst [vmem:[%s4 + $0x150] sm:$0xff] %v582
  %733 = vst [vmem:[%s4 + $0x158] sm:$0xff] %v587
  %734 = vst [vmem:[%s4 + $0x160] sm:$0xff] %v592
  %735 = vst [vmem:[%s4 + $0x168] sm:$0xff] %v597
  %736 = vst [vmem:[%s4 + $0x170] sm:$0xff] %v602
  %737 = vst [vmem:[%s4 + $0x178] sm:$0xff] %v607
  %738 = vst [vmem:[%s4 + $0x180] sm:$0xff] %v612
  %739 = vst [vmem:[%s4 + $0x188] sm:$0xff] %v617
  %740 = vst [vmem:[%s4 + $0x190] sm:$0xff] %v622
  %741 = vst [vmem:[%s4 + $0x198] sm:$0xff] %v627
  %742 = vst [vmem:[%s4 + $0x1a0] sm:$0xff] %v632
  %743 = vst [vmem:[%s4 + $0x1a8] sm:$0xff] %v637
  %744 = vst [vmem:[%s4 + $0x1b0] sm:$0xff] %v642
  %745 = vst [vmem:[%s4 + $0x1b8] sm:$0xff] %v647
  %746 = vst [vmem:[%s4 + $0x1c0] sm:$0xff] %v652
  %747 = vst [vmem:[%s4 + $0x1c8] sm:$0xff] %v657
  %748 = vst [vmem:[%s4 + $0x1d0] sm:$0xff] %v662
  %749 = vst [vmem:[%s4 + $0x1d8] sm:$0xff] %v667
  %750 = vst [vmem:[%s4 + $0x1e0] sm:$0xff] %v672
  %751 = vst [vmem:[%s4 + $0x1e8] sm:$0xff] %v677
  %752 = vst [vmem:[%s4 + $0x1f0] sm:$0xff] %v682
  %753 = vst [vmem:[%s4 + $0x1f8] sm:$0xff] %v687
  %v754 = vadd.f32 %v372, %v377
  %v755 = vadd.f32 %v754, %v382
  %v756 = vadd.f32 %v755, %v387
  %v757 = vadd.f32 %v756, %v392
  %v758 = vadd.f32 %v757, %v397
  %v759 = vadd.f32 %v758, %v402
  %v760 = vadd.f32 %v759, %v407
  %v761 = vadd.f32 %v760, %v412
  %v762 = vadd.f32 %v761, %v417
  %v763 = vadd.f32 %v762, %v422
  %v764 = vadd.f32 %v763, %v427
  %v765 = vadd.f32 %v764, %v432
  %v766 = vadd.f32 %v765, %v437
  %v767 = vadd.f32 %v766, %v442
  %v768 = vadd.f32 %v767, %v447
  %v769 = vadd.f32 %v768, %v452
  %v770 = vadd.f32 %v769, %v457
  %v771 = vadd.f32 %v770, %v462
  %v772 = vadd.f32 %v771, %v467
  %v773 = vadd.f32 %v772, %v472
  %v774 = vadd.f32 %v773, %v477
  %v775 = vadd.f32 %v774, %v482
  %v776 = vadd.f32 %v775, %v487
  %v777 = vadd.f32 %v776, %v492
  %v778 = vadd.f32 %v777, %v497
  %v779 = vadd.f32 %v778, %v502
  %v780 = vadd.f32 %v779, %v507
  %v781 = vadd.f32 %v780, %v512
  %v782 = vadd.f32 %v781, %v517
  %v783 = vadd.f32 %v782, %v522
  %v784 = vadd.f32 %v783, %v527
  %v785 = vadd.f32 %v784, %v532
  %v786 = vadd.f32 %v785, %v537
  %v787 = vadd.f32 %v786, %v542
  %v788 = vadd.f32 %v787, %v547
  %v789 = vadd.f32 %v788, %v552
  %v790 = vadd.f32 %v789, %v557
  %v791 = vadd.f32 %v790, %v562
  %v792 = vadd.f32 %v791, %v567
  %v793 = vadd.f32 %v792, %v572
  %v794 = vadd.f32 %v793, %v577
  %v795 = vadd.f32 %v794, %v582
  %v796 = vadd.f32 %v795, %v587
  %v797 = vadd.f32 %v796, %v592
  %v798 = vadd.f32 %v797, %v597
  %v799 = vadd.f32 %v798, %v602
  %v800 = vadd.f32 %v799, %v607
  %v801 = vadd.f32 %v800, %v612
  %v802 = vadd.f32 %v801, %v617
  %v803 = vadd.f32 %v802, %v622
  %v804 = vadd.f32 %v803, %v627
  %v805 = vadd.f32 %v804, %v632
  %v806 = vadd.f32 %v805, %v637
  %v807 = vadd.f32 %v806, %v642
  %v808 = vadd.f32 %v807, %v647
  %v809 = vadd.f32 %v808, %v652
  %v810 = vadd.f32 %v809, %v657
  %v811 = vadd.f32 %v810, %v662
  %v812 = vadd.f32 %v811, %v667
  %v813 = vadd.f32 %v812, %v672
  %v814 = vadd.f32 %v813, %v677
  %v815 = vadd.f32 %v814, %v682
  %v816 = vadd.f32 %v815, %v687
  %v817 = vrot.slane %v816, 4
  %v818 = vadd.f32 %v816, %v817
  %v819 = vrot.slane %v818, 2
  %v820 = vadd.f32 %v818, %v819
  %v821 = vrot.slane %v820, 1
  %v822 = vadd.f32 %v820, %v821
  %823 = vst [vmem:[%s5] sm:$0x1] %v822
  %v824 = vmul.f32 %v372, %v372
  %v825 = vmul.f32 %v377, %v377
  %v826 = vmul.f32 %v382, %v382
  %v827 = vmul.f32 %v387, %v387
  %v828 = vmul.f32 %v392, %v392
  %v829 = vmul.f32 %v397, %v397
  %v830 = vmul.f32 %v402, %v402
  %v831 = vmul.f32 %v407, %v407
  %v832 = vmul.f32 %v412, %v412
  %v833 = vmul.f32 %v417, %v417
  %v834 = vmul.f32 %v422, %v422
  %v835 = vmul.f32 %v427, %v427
  %v836 = vmul.f32 %v432, %v432
  %v837 = vmul.f32 %v437, %v437
  %v838 = vmul.f32 %v442, %v442
  %v839 = vmul.f32 %v447, %v447
  %v840 = vmul.f32 %v452, %v452
  %v841 = vmul.f32 %v457, %v457
  %v842 = vmul.f32 %v462, %v462
  %v843 = vmul.f32 %v467, %v467
  %v844 = vmul.f32 %v472, %v472
  %v845 = vmul.f32 %v477, %v477
  %v846 = vmul.f32 %v482, %v482
  %v847 = vmul.f32 %v487, %v487
  %v848 = vmul.f32 %v492, %v492
  %v849 = vmul.f32 %v497, %v497
  %v850 = vmul.f32 %v502, %v502
  %v851 = vmul.f32 %v507, %v507
  %v852 = vmul.f32 %v512, %v512
  %v853 = vmul.f32 %v517, %v517
  %v854 = vmul.f32 %v522, %v522
  %v855 = vmul.f32 %v527, %v527
  %v856 = vmul.f32 %v532, %v532
  %v857 = vmul.f32 %v537, %v537
  %v858 = vmul.f32 %v542, %v542
  %v859 = vmul.f32 %v547, %v547
  %v860 = vmul.f32 %v552, %v552
  %v861 = vmul.f32 %v557, %v557
  %v862 = vmul.f32 %v562, %v562
  %v863 = vmul.f32 %v567, %v567
  %v864 = vmul.f32 %v572, %v572
  %v865 = vmul.f32 %v577, %v577
  %v866 = vmul.f32 %v582, %v582
  %v867 = vmul.f32 %v587, %v587
  %v868 = vmul.f32 %v592, %v592
  %v869 = vmul.f32 %v597, %v597
  %v870 = vmul.f32 %v602, %v602
  %v871 = vmul.f32 %v607, %v607
  %v872 = vmul.f32 %v612, %v612
  %v873 = vmul.f32 %v617, %v617
  %v874 = vmul.f32 %v622, %v622
  %v875 = vmul.f32 %v627, %v627
  %v876 = vmul.f32 %v632, %v632
  %v877 = vmul.f32 %v637, %v637
  %v878 = vmul.f32 %v642, %v642
  %v879 = vmul.f32 %v647, %v647
  %v880 = vmul.f32 %v652, %v652
  %v881 = vmul.f32 %v657, %v657
  %v882 = vmul.f32 %v662, %v662
  %v883 = vmul.f32 %v667, %v667
  %v884 = vmul.f32 %v672, %v672
  %v885 = vmul.f32 %v677, %v677
  %v886 = vmul.f32 %v682, %v682
  %v887 = vmul.f32 %v687, %v687
  %v888 = vadd.f32 %v824, %v825
  %v889 = vadd.f32 %v888, %v826
  %v890 = vadd.f32 %v889, %v827
  %v891 = vadd.f32 %v890, %v828
  %v892 = vadd.f32 %v891, %v829
  %v893 = vadd.f32 %v892, %v830
  %v894 = vadd.f32 %v893, %v831
  %v895 = vadd.f32 %v894, %v832
  %v896 = vadd.f32 %v895, %v833
  %v897 = vadd.f32 %v896, %v834
  %v898 = vadd.f32 %v897, %v835
  %v899 = vadd.f32 %v898, %v836
  %v900 = vadd.f32 %v899, %v837
  %v901 = vadd.f32 %v900, %v838
  %v902 = vadd.f32 %v901, %v839
  %v903 = vadd.f32 %v902, %v840
  %v904 = vadd.f32 %v903, %v841
  %v905 = vadd.f32 %v904, %v842
  %v906 = vadd.f32 %v905, %v843
  %v907 = vadd.f32 %v906, %v844
  %v908 = vadd.f32 %v907, %v845
  %v909 = vadd.f32 %v908, %v846
  %v910 = vadd.f32 %v909, %v847
  %v911 = vadd.f32 %v910, %v848
  %v912 = vadd.f32 %v911, %v849
  %v913 = vadd.f32 %v912, %v850
  %v914 = vadd.f32 %v913, %v851
  %v915 = vadd.f32 %v914, %v852
  %v916 = vadd.f32 %v915, %v853
  %v917 = vadd.f32 %v916, %v854
  %v918 = vadd.f32 %v917, %v855
  %v919 = vadd.f32 %v918, %v856
  %v920 = vadd.f32 %v919, %v857
  %v921 = vadd.f32 %v920, %v858
  %v922 = vadd.f32 %v921, %v859
  %v923 = vadd.f32 %v922, %v860
  %v924 = vadd.f32 %v923, %v861
  %v925 = vadd.f32 %v924, %v862
  %v926 = vadd.f32 %v925, %v863
  %v927 = vadd.f32 %v926, %v864
  %v928 = vadd.f32 %v927, %v865
  %v929 = vadd.f32 %v928, %v866
  %v930 = vadd.f32 %v929, %v867
  %v931 = vadd.f32 %v930, %v868
  %v932 = vadd.f32 %v931, %v869
  %v933 = vadd.f32 %v932, %v870
  %v934 = vadd.f32 %v933, %v871
  %v935 = vadd.f32 %v934, %v872
  %v936 = vadd.f32 %v935, %v873
  %v937 = vadd.f32 %v936, %v874
  %v938 = vadd.f32 %v937, %v875
  %v939 = vadd.f32 %v938, %v876
  %v940 = vadd.f32 %v939, %v877
  %v941 = vadd.f32 %v940, %v878
  %v942 = vadd.f32 %v941, %v879
  %v943 = vadd.f32 %v942, %v880
  %v944 = vadd.f32 %v943, %v881
  %v945 = vadd.f32 %v944, %v882
  %v946 = vadd.f32 %v945, %v883
  %v947 = vadd.f32 %v946, %v884
  %v948 = vadd.f32 %v947, %v885
  %v949 = vadd.f32 %v948, %v886
  %v950 = vadd.f32 %v949, %v887
  %v951 = vrot.slane %v950, 4
  %v952 = vadd.f32 %v950, %v951
  %v953 = vrot.slane %v952, 2
  %v954 = vadd.f32 %v952, %v953
  %v955 = vrot.slane %v954, 1
  %v956 = vadd.f32 %v954, %v955
  %957 = vst [vmem:[%s5 + $0x1] sm:$0x1] %v956
  // Predicated region
  $region18: #{preact_bottleneck.3} parent=0 // pred_check
    _
  $region19: #{preact_bottleneck.3} parent=0 // pred_check_branch
    %959 = sbr.rel (0) target = $region21
  $region20: #{preact_bottleneck.3} parent=0 // pred_region
    _
  $region21: #{preact_bottleneck.3} parent=0 // pred_fallthru
    _
  // Predicated region
  $region22: #{preact_bottleneck.3} parent=0 // pred_check
    _
  $region23: #{preact_bottleneck.3} parent=0 // pred_check_branch
    %961 = sbr.rel (0) target = $region25
  $region24: #{preact_bottleneck.3} parent=0 // pred_region
    _
  $region25: #{preact_bottleneck.3} parent=0 // pred_fallthru
    _
  // Predicated region
  $region26: #{preact_bottleneck.3} parent=0 // pred_check
    _
  $region27: #{preact_bottleneck.3} parent=0 // pred_check_branch
    %963 = sbr.rel (0) target = $region29
  $region28: #{preact_bottleneck.3} parent=0 // pred_region
    _
  $region29: #{preact_bottleneck.3} parent=0 // pred_fallthru
    _
  // Predicated region
  $region30: #{preact_bottleneck.3} parent=0 // pred_check
    _
  $region31: #{preact_bottleneck.3} parent=0 // pred_check_branch
    %965 = sbr.rel (0) target = $region33
  $region32: #{preact_bottleneck.3} parent=0 // pred_region
    _
  $region33: #{preact_bottleneck.3} parent=0 // pred_fallthru
    _

// kernel: preact_bottleneck.5
$region0: #{preact_bottleneck.5}
  #allocation0 [shape = 'u32[]', space=smem, size = 0x4, offset = 0x4, fixed_abs, tag = 'smem constant byte address 0x4 - core index']
  #allocation1 [shape = 'u32[144,128]{1,0:T(1,128)}', space=vmem, size = 0x12000, scoped, tag = 'internal scratch']
  %s0 = inlined_call_operand.vmem [shape: f32[512,128], index: 0, kind: input, shape index: {}]
  %s1 = inlined_call_operand.vmem [shape: f32[1,128], index: 1, kind: input, shape index: {}]
  %s2 = inlined_call_operand.vmem [shape: f32[1,128], index: 2, kind: input, shape index: {}]
  %s3 = inlined_call_operand.vmem [shape: f32[128,128], index: 3, kind: input, shape index: {}]
  %s4 = inlined_call_operand.vmem [shape: f32[512,128], index: 4, kind: input, shape index: {}]
  %s5 = inlined_call_operand.vmem [shape: f32[1,128], index: 5, kind: input, shape index: {}]
  %s6 = inlined_call_operand.vmem [shape: f32[1,128], index: 6, kind: input, shape index: {}]
  %s7 = inlined_call_operand.vmem [shape: f32[128,128], index: 7, kind: input, shape index: {}]
  %s8 = inlined_call_operand.vmem [shape: f32[512,128], index: 8, kind: output, shape index: {}]
  %s9 = sld [smem:[#allocation0]]
  $region42: #{preact_bottleneck.5} parent=0
    _
  %s11 = ssub.s32 1, %s9
  %s12 = scalar_select 0, %s11, %s9
  // Predicated region
  $region2: #{preact_bottleneck.5} parent=0 // pred_check
    _
  $region3: #{preact_bottleneck.5} parent=0 // pred_check_branch
    %14 = sbr.rel (0) target = $region5
  $region4: #{preact_bottleneck.5} parent=0 // pred_region
    _
  $region5: #{preact_bottleneck.5} parent=0 // pred_fallthru
    _
  // Predicated region
  $region6: #{preact_bottleneck.5} parent=0 // pred_check
    _
  $region7: #{preact_bottleneck.5} parent=0 // pred_check_branch
    %16 = sbr.rel (0) target = $region9
  $region8: #{preact_bottleneck.5} parent=0 // pred_region
    _
  $region9: #{preact_bottleneck.5} parent=0 // pred_fallthru
    _
  // Predicated region
  $region10: #{preact_bottleneck.5} parent=0 // pred_check
    _
  $region11: #{preact_bottleneck.5} parent=0 // pred_check_branch
    %18 = sbr.rel (0) target = $region13
  $region12: #{preact_bottleneck.5} parent=0 // pred_region
    _
  $region13: #{preact_bottleneck.5} parent=0 // pred_fallthru
    _
  // Predicated region
  $region14: #{preact_bottleneck.5} parent=0 // pred_check
    _
  $region15: #{preact_bottleneck.5} parent=0 // pred_check_branch
    %20 = sbr.rel (0) target = $region17
  $region16: #{preact_bottleneck.5} parent=0 // pred_region
    _
  $region17: #{preact_bottleneck.5} parent=0 // pred_fallthru
    _
  // Predicated region
  $region18: #{preact_bottleneck.5} parent=0 // pred_check
    _
  $region19: #{preact_bottleneck.5} parent=0 // pred_check_branch
    %22 = sbr.rel (0) target = $region21
  $region20: #{preact_bottleneck.5} parent=0 // pred_region
    _
  $region21: #{preact_bottleneck.5} parent=0 // pred_fallthru
    _
  // Predicated region
  $region22: #{preact_bottleneck.5} parent=0 // pred_check
    _
  $region23: #{preact_bottleneck.5} parent=0 // pred_check_branch
    %24 = sbr.rel (0) target = $region25
  $region24: #{preact_bottleneck.5} parent=0 // pred_region
    _
  $region25: #{preact_bottleneck.5} parent=0 // pred_fallthru
    _
  // Predicated region
  $region26: #{preact_bottleneck.5} parent=0 // pred_check
    _
  $region27: #{preact_bottleneck.5} parent=0 // pred_check_branch
    %26 = sbr.rel (0) target = $region29
  $region28: #{preact_bottleneck.5} parent=0 // pred_region
    _
  $region29: #{preact_bottleneck.5} parent=0 // pred_fallthru
    _
  // Predicated region
  $region30: #{preact_bottleneck.5} parent=0 // pred_check
    _
  $region31: #{preact_bottleneck.5} parent=0 // pred_check_branch
    %28 = sbr.rel (0) target = $region33
  $region32: #{preact_bottleneck.5} parent=0 // pred_region
    _
  $region33: #{preact_bottleneck.5} parent=0 // pred_fallthru
    _
  %v29 = vld [vmem:[%s0] sm:$0xff]
  %v30 = vld [vmem:[%s0 + $0x8] sm:$0xff]
  %v31 = vld [vmem:[%s0 + $0x10] sm:$0xff]
  %v32 = vld [vmem:[%s0 + $0x18] sm:$0xff]
  %v33 = vld [vmem:[%s0 + $0x20] sm:$0xff]
  %v34 = vld [vmem:[%s0 + $0x28] sm:$0xff]
  %v35 = vld [vmem:[%s0 + $0x30] sm:$0xff]
  %v36 = vld [vmem:[%s0 + $0x38] sm:$0xff]
  %v37 = vld [vmem:[%s0 + $0x40] sm:$0xff]
  %v38 = vld [vmem:[%s0 + $0x48] sm:$0xff]
  %v39 = vld [vmem:[%s0 + $0x50] sm:$0xff]
  %v40 = vld [vmem:[%s0 + $0x58] sm:$0xff]
  %v41 = vld [vmem:[%s0 + $0x60] sm:$0xff]
  %v42 = vld [vmem:[%s0 + $0x68] sm:$0xff]
  %v43 = vld [vmem:[%s0 + $0x70] sm:$0xff]
  %v44 = vld [vmem:[%s0 + $0x78] sm:$0xff]
  %v45 = vld [vmem:[%s0 + $0x80] sm:$0xff]
  %v46 = vld [vmem:[%s0 + $0x88] sm:$0xff]
  %v47 = vld [vmem:[%s0 + $0x90] sm:$0xff]
  %v48 = vld [vmem:[%s0 + $0x98] sm:$0xff]
  %v49 = vld [vmem:[%s0 + $0xa0] sm:$0xff]
  %v50 = vld [vmem:[%s0 + $0xa8] sm:$0xff]
  %v51 = vld [vmem:[%s0 + $0xb0] sm:$0xff]
  %v52 = vld [vmem:[%s0 + $0xb8] sm:$0xff]
  %v53 = vld [vmem:[%s0 + $0xc0] sm:$0xff]
  %v54 = vld [vmem:[%s0 + $0xc8] sm:$0xff]
  %v55 = vld [vmem:[%s0 + $0xd0] sm:$0xff]
  %v56 = vld [vmem:[%s0 + $0xd8] sm:$0xff]
  %v57 = vld [vmem:[%s0 + $0xe0] sm:$0xff]
  %v58 = vld [vmem:[%s0 + $0xe8] sm:$0xff]
  %v59 = vld [vmem:[%s0 + $0xf0] sm:$0xff]
  %v60 = vld [vmem:[%s0 + $0xf8] sm:$0xff]
  %v61 = vld [vmem:[%s0 + $0x100] sm:$0xff]
  %v62 = vld [vmem:[%s0 + $0x108] sm:$0xff]
  %v63 = vld [vmem:[%s0 + $0x110] sm:$0xff]
  %v64 = vld [vmem:[%s0 + $0x118] sm:$0xff]
  %v65 = vld [vmem:[%s0 + $0x120] sm:$0xff]
  %v66 = vld [vmem:[%s0 + $0x128] sm:$0xff]
  %v67 = vld [vmem:[%s0 + $0x130] sm:$0xff]
  %v68 = vld [vmem:[%s0 + $0x138] sm:$0xff]
  %v69 = vld [vmem:[%s0 + $0x140] sm:$0xff]
  %v70 = vld [vmem:[%s0 + $0x148] sm:$0xff]
  %v71 = vld [vmem:[%s0 + $0x150] sm:$0xff]
  %v72 = vld [vmem:[%s0 + $0x158] sm:$0xff]
  %v73 = vld [vmem:[%s0 + $0x160] sm:$0xff]
  %v74 = vld [vmem:[%s0 + $0x168] sm:$0xff]
  %v75 = vld [vmem:[%s0 + $0x170] sm:$0xff]
  %v76 = vld [vmem:[%s0 + $0x178] sm:$0xff]
  %v77 = vld [vmem:[%s0 + $0x180] sm:$0xff]
  %v78 = vld [vmem:[%s0 + $0x188] sm:$0xff]
  %v79 = vld [vmem:[%s0 + $0x190] sm:$0xff]
  %v80 = vld [vmem:[%s0 + $0x198] sm:$0xff]
  %v81 = vld [vmem:[%s0 + $0x1a0] sm:$0xff]
  %v82 = vld [vmem:[%s0 + $0x1a8] sm:$0xff]
  %v83 = vld [vmem:[%s0 + $0x1b0] sm:$0xff]
  %v84 = vld [vmem:[%s0 + $0x1b8] sm:$0xff]
  %v85 = vld [vmem:[%s0 + $0x1c0] sm:$0xff]
  %v86 = vld [vmem:[%s0 + $0x1c8] sm:$0xff]
  %v87 = vld [vmem:[%s0 + $0x1d0] sm:$0xff]
  %v88 = vld [vmem:[%s0 + $0x1d8] sm:$0xff]
  %v89 = vld [vmem:[%s0 + $0x1e0] sm:$0xff]
  %v90 = vld [vmem:[%s0 + $0x1e8] sm:$0xff]
  %v91 = vld [vmem:[%s0 + $0x1f0] sm:$0xff]
  %v92 = vld [vmem:[%s0 + $0x1f8] sm:$0xff]
  %v93 = vld [vmem:[%s1] sm:$0x1]
  %v95 = vlaneseq
  %v96 = vshrl.u32 %v95, 7
  %v97 = vsub.s32 0, %v96
  %v98 = vrot.slane %v93, %v97
  %v100 = vmul.f32 %v29, %v98
  %v101 = vmul.f32 %v30, %v98
  %v102 = vmul.f32 %v31, %v98
  %v103 = vmul.f32 %v32, %v98
  %v104 = vmul.f32 %v33, %v98
  %v105 = vmul.f32 %v34, %v98
  %v106 = vmul.f32 %v35, %v98
  %v107 = vmul.f32 %v36, %v98
  %v108 = vmul.f32 %v37, %v98
  %v109 = vmul.f32 %v38, %v98
  %v110 = vmul.f32 %v39, %v98
  %v111 = vmul.f32 %v40, %v98
  %v112 = vmul.f32 %v41, %v98
  %v113 = vmul.f32 %v42, %v98
  %v114 = vmul.f32 %v43, %v98
  %v115 = vmul.f32 %v44, %v98
  %v116 = vmul.f32 %v45, %v98
  %v117 = vmul.f32 %v46, %v98
  %v118 = vmul.f32 %v47, %v98
  %v119 = vmul.f32 %v48, %v98
  %v120 = vmul.f32 %v49, %v98
  %v121 = vmul.f32 %v50, %v98
  %v122 = vmul.f32 %v51, %v98
  %v123 = vmul.f32 %v52, %v98
  %v124 = vmul.f32 %v53, %v98
  %v125 = vmul.f32 %v54, %v98
  %v126 = vmul.f32 %v55, %v98
  %v127 = vmul.f32 %v56, %v98
  %v128 = vmul.f32 %v57, %v98
  %v129 = vmul.f32 %v58, %v98
  %v130 = vmul.f32 %v59, %v98
  %v131 = vmul.f32 %v60, %v98
  %v132 = vmul.f32 %v61, %v98
  %v133 = vmul.f32 %v62, %v98
  %v134 = vmul.f32 %v63, %v98
  %v135 = vmul.f32 %v64, %v98
  %v136 = vmul.f32 %v65, %v98
  %v137 = vmul.f32 %v66, %v98
  %v138 = vmul.f32 %v67, %v98
  %v139 = vmul.f32 %v68, %v98
  %v140 = vmul.f32 %v69, %v98
  %v141 = vmul.f32 %v70, %v98
  %v142 = vmul.f32 %v71, %v98
  %v143 = vmul.f32 %v72, %v98
  %v144 = vmul.f32 %v73, %v98
  %v145 = vmul.f32 %v74, %v98
  %v146 = vmul.f32 %v75, %v98
  %v147 = vmul.f32 %v76, %v98
  %v148 = vmul.f32 %v77, %v98
  %v149 = vmul.f32 %v78, %v98
  %v150 = vmul.f32 %v79, %v98
  %v151 = vmul.f32 %v80, %v98
  %v152 = vmul.f32 %v81, %v98
  %v153 = vmul.f32 %v82, %v98
  %v154 = vmul.f32 %v83, %v98
  %v155 = vmul.f32 %v84, %v98
  %v156 = vmul.f32 %v85, %v98
  %v157 = vmul.f32 %v86, %v98
  %v158 = vmul.f32 %v87, %v98
  %v159 = vmul.f32 %v88, %v98
  %v160 = vmul.f32 %v89, %v98
  %v161 = vmul.f32 %v90, %v98
  %v162 = vmul.f32 %v91, %v98
  %v163 = vmul.f32 %v92, %v98
  %v164 = vld [vmem:[%s2] sm:$0x1]
  %v166 = vlaneseq
  %v167 = vshrl.u32 %v166, 7
  %v168 = vsub.s32 0, %v167
  %v169 = vrot.slane %v164, %v168
  %v171 = vadd.f32 %v100, %v169
  %v172 = vadd.f32 %v101, %v169
  %v173 = vadd.f32 %v102, %v169
  %v174 = vadd.f32 %v103, %v169
  %v175 = vadd.f32 %v104, %v169
  %v176 = vadd.f32 %v105, %v169
  %v177 = vadd.f32 %v106, %v169
  %v178 = vadd.f32 %v107, %v169
  %v179 = vadd.f32 %v108, %v169
  %v180 = vadd.f32 %v109, %v169
  %v181 = vadd.f32 %v110, %v169
  %v182 = vadd.f32 %v111, %v169
  %v183 = vadd.f32 %v112, %v169
  %v184 = vadd.f32 %v113, %v169
  %v185 = vadd.f32 %v114, %v169
  %v186 = vadd.f32 %v115, %v169
  %v187 = vadd.f32 %v116, %v169
  %v188 = vadd.f32 %v117, %v169
  %v189 = vadd.f32 %v118, %v169
  %v190 = vadd.f32 %v119, %v169
  %v191 = vadd.f32 %v120, %v169
  %v192 = vadd.f32 %v121, %v169
  %v193 = vadd.f32 %v122, %v169
  %v194 = vadd.f32 %v123, %v169
  %v195 = vadd.f32 %v124, %v169
  %v196 = vadd.f32 %v125, %v169
  %v197 = vadd.f32 %v126, %v169
  %v198 = vadd.f32 %v127, %v169
  %v199 = vadd.f32 %v128, %v169
  %v200 = vadd.f32 %v129, %v169
  %v201 = vadd.f32 %v130, %v169
  %v202 = vadd.f32 %v131, %v169
  %v203 = vadd.f32 %v132, %v169
  %v204 = vadd.f32 %v133, %v169
  %v205 = vadd.f32 %v134, %v169
  %v206 = vadd.f32 %v135, %v169
  %v207 = vadd.f32 %v136, %v169
  %v208 = vadd.f32 %v137, %v169
  %v209 = vadd.f32 %v138, %v169
  %v210 = vadd.f32 %v139, %v169
  %v211 = vadd.f32 %v140, %v169
  %v212 = vadd.f32 %v141, %v169
  %v213 = vadd.f32 %v142, %v169
  %v214 = vadd.f32 %v143, %v169
  %v215 = vadd.f32 %v144, %v169
  %v216 = vadd.f32 %v145, %v169
  %v217 = vadd.f32 %v146, %v169
  %v218 = vadd.f32 %v147, %v169
  %v219 = vadd.f32 %v148, %v169
  %v220 = vadd.f32 %v149, %v169
  %v221 = vadd.f32 %v150, %v169
  %v222 = vadd.f32 %v151, %v169
  %v223 = vadd.f32 %v152, %v169
  %v224 = vadd.f32 %v153, %v169
  %v225 = vadd.f32 %v154, %v169
  %v226 = vadd.f32 %v155, %v169
  %v227 = vadd.f32 %v156, %v169
  %v228 = vadd.f32 %v157, %v169
  %v229 = vadd.f32 %v158, %v169
  %v230 = vadd.f32 %v159, %v169
  %v231 = vadd.f32 %v160, %v169
  %v232 = vadd.f32 %v161, %v169
  %v233 = vadd.f32 %v162, %v169
  %v234 = vadd.f32 %v163, %v169
  %v235 = vmax.f32 %v171, 0.0
  %v236 = vmax.f32 %v172, 0.0
  %v237 = vmax.f32 %v173, 0.0
  %v238 = vmax.f32 %v174, 0.0
  %v239 = vmax.f32 %v175, 0.0
  %v240 = vmax.f32 %v176, 0.0
  %v241 = vmax.f32 %v177, 0.0
  %v242 = vmax.f32 %v178, 0.0
  %v243 = vmax.f32 %v179, 0.0
  %v244 = vmax.f32 %v180, 0.0
  %v245 = vmax.f32 %v181, 0.0
  %v246 = vmax.f32 %v182, 0.0
  %v247 = vmax.f32 %v183, 0.0
  %v248 = vmax.f32 %v184, 0.0
  %v249 = vmax.f32 %v185, 0.0
  %v250 = vmax.f32 %v186, 0.0
  %v251 = vmax.f32 %v187, 0.0
  %v252 = vmax.f32 %v188, 0.0
  %v253 = vmax.f32 %v189, 0.0
  %v254 = vmax.f32 %v190, 0.0
  %v255 = vmax.f32 %v191, 0.0
  %v256 = vmax.f32 %v192, 0.0
  %v257 = vmax.f32 %v193, 0.0
  %v258 = vmax.f32 %v194, 0.0
  %v259 = vmax.f32 %v195, 0.0
  %v260 = vmax.f32 %v196, 0.0
  %v261 = vmax.f32 %v197, 0.0
  %v262 = vmax.f32 %v198, 0.0
  %v263 = vmax.f32 %v199, 0.0
  %v264 = vmax.f32 %v200, 0.0
  %v265 = vmax.f32 %v201, 0.0
  %v266 = vmax.f32 %v202, 0.0
  %v267 = vmax.f32 %v203, 0.0
  %v268 = vmax.f32 %v204, 0.0
  %v269 = vmax.f32 %v205, 0.0
  %v270 = vmax.f32 %v206, 0.0
  %v271 = vmax.f32 %v207, 0.0
  %v272 = vmax.f32 %v208, 0.0
  %v273 = vmax.f32 %v209, 0.0
  %v274 = vmax.f32 %v210, 0.0
  %v275 = vmax.f32 %v211, 0.0
  %v276 = vmax.f32 %v212, 0.0
  %v277 = vmax.f32 %v213, 0.0
  %v278 = vmax.f32 %v214, 0.0
  %v279 = vmax.f32 %v215, 0.0
  %v280 = vmax.f32 %v216, 0.0
  %v281 = vmax.f32 %v217, 0.0
  %v282 = vmax.f32 %v218, 0.0
  %v283 = vmax.f32 %v219, 0.0
  %v284 = vmax.f32 %v220, 0.0
  %v285 = vmax.f32 %v221, 0.0
  %v286 = vmax.f32 %v222, 0.0
  %v287 = vmax.f32 %v223, 0.0
  %v288 = vmax.f32 %v224, 0.0
  %v289 = vmax.f32 %v225, 0.0
  %v290 = vmax.f32 %v226, 0.0
  %v291 = vmax.f32 %v227, 0.0
  %v292 = vmax.f32 %v228, 0.0
  %v293 = vmax.f32 %v229, 0.0
  %v294 = vmax.f32 %v230, 0.0
  %v295 = vmax.f32 %v231, 0.0
  %v296 = vmax.f32 %v232, 0.0
  %v297 = vmax.f32 %v233, 0.0
  %v298 = vmax.f32 %v234, 0.0
  %v299 = vld [vmem:[%s3] sm:$0xff]
  %v300 = vld [vmem:[%s3 + $0x8] sm:$0xff]
  %v301 = vld [vmem:[%s3 + $0x10] sm:$0xff]
  %v302 = vld [vmem:[%s3 + $0x18] sm:$0xff]
  %v303 = vld [vmem:[%s3 + $0x20] sm:$0xff]
  %v304 = vld [vmem:[%s3 + $0x28] sm:$0xff]
  %v305 = vld [vmem:[%s3 + $0x30] sm:$0xff]
  %v306 = vld [vmem:[%s3 + $0x38] sm:$0xff]
  %v307 = vld [vmem:[%s3 + $0x40] sm:$0xff]
  %v308 = vld [vmem:[%s3 + $0x48] sm:$0xff]
  %v309 = vld [vmem:[%s3 + $0x50] sm:$0xff]
  %v310 = vld [vmem:[%s3 + $0x58] sm:$0xff]
  %v311 = vld [vmem:[%s3 + $0x60] sm:$0xff]
  %v312 = vld [vmem:[%s3 + $0x68] sm:$0xff]
  %v313 = vld [vmem:[%s3 + $0x70] sm:$0xff]
  %v314 = vld [vmem:[%s3 + $0x78] sm:$0xff]
  %v315 = vld [vmem:[%s4] sm:$0xff]
  %v316 = vld [vmem:[%s4 + $0x8] sm:$0xff]
  %v317 = vld [vmem:[%s4 + $0x10] sm:$0xff]
  %v318 = vld [vmem:[%s4 + $0x18] sm:$0xff]
  %v319 = vld [vmem:[%s4 + $0x20] sm:$0xff]
  %v320 = vld [vmem:[%s4 + $0x28] sm:$0xff]
  %v321 = vld [vmem:[%s4 + $0x30] sm:$0xff]
  %v322 = vld [vmem:[%s4 + $0x38] sm:$0xff]
  %v323 = vld [vmem:[%s4 + $0x40] sm:$0xff]
  %v324 = vld [vmem:[%s4 + $0x48] sm:$0xff]
  %v325 = vld [vmem:[%s4 + $0x50] sm:$0xff]
  %v326 = vld [vmem:[%s4 + $0x58] sm:$0xff]
  %v327 = vld [vmem:[%s4 + $0x60] sm:$0xff]
  %v328 = vld [vmem:[%s4 + $0x68] sm:$0xff]
  %v329 = vld [vmem:[%s4 + $0x70] sm:$0xff]
  %v330 = vld [vmem:[%s4 + $0x78] sm:$0xff]
  %v331 = vld [vmem:[%s4 + $0x80] sm:$0xff]
  %v332 = vld [vmem:[%s4 + $0x88] sm:$0xff]
  %v333 = vld [vmem:[%s4 + $0x90] sm:$0xff]
  %v334 = vld [vmem:[%s4 + $0x98] sm:$0xff]
  %v335 = vld [vmem:[%s4 + $0xa0] sm:$0xff]
  %v336 = vld [vmem:[%s4 + $0xa8] sm:$0xff]
  %v337 = vld [vmem:[%s4 + $0xb0] sm:$0xff]
  %v338 = vld [vmem:[%s4 + $0xb8] sm:$0xff]
  %v339 = vld [vmem:[%s4 + $0xc0] sm:$0xff]
  %v340 = vld [vmem:[%s4 + $0xc8] sm:$0xff]
  %v341 = vld [vmem:[%s4 + $0xd0] sm:$0xff]
  %v342 = vld [vmem:[%s4 + $0xd8] sm:$0xff]
  %v343 = vld [vmem:[%s4 + $0xe0] sm:$0xff]
  %v344 = vld [vmem:[%s4 + $0xe8] sm:$0xff]
  %v345 = vld [vmem:[%s4 + $0xf0] sm:$0xff]
  %v346 = vld [vmem:[%s4 + $0xf8] sm:$0xff]
  %v347 = vld [vmem:[%s4 + $0x100] sm:$0xff]
  %v348 = vld [vmem:[%s4 + $0x108] sm:$0xff]
  %v349 = vld [vmem:[%s4 + $0x110] sm:$0xff]
  %v350 = vld [vmem:[%s4 + $0x118] sm:$0xff]
  %v351 = vld [vmem:[%s4 + $0x120] sm:$0xff]
  %v352 = vld [vmem:[%s4 + $0x128] sm:$0xff]
  %v353 = vld [vmem:[%s4 + $0x130] sm:$0xff]
  %v354 = vld [vmem:[%s4 + $0x138] sm:$0xff]
  %v355 = vld [vmem:[%s4 + $0x140] sm:$0xff]
  %v356 = vld [vmem:[%s4 + $0x148] sm:$0xff]
  %v357 = vld [vmem:[%s4 + $0x150] sm:$0xff]
  %v358 = vld [vmem:[%s4 + $0x158] sm:$0xff]
  %v359 = vld [vmem:[%s4 + $0x160] sm:$0xff]
  %v360 = vld [vmem:[%s4 + $0x168] sm:$0xff]
  %v361 = vld [vmem:[%s4 + $0x170] sm:$0xff]
  %v362 = vld [vmem:[%s4 + $0x178] sm:$0xff]
  %v363 = vld [vmem:[%s4 + $0x180] sm:$0xff]
  %v364 = vld [vmem:[%s4 + $0x188] sm:$0xff]
  %v365 = vld [vmem:[%s4 + $0x190] sm:$0xff]
  %v366 = vld [vmem:[%s4 + $0x198] sm:$0xff]
  %v367 = vld [vmem:[%s4 + $0x1a0] sm:$0xff]
  %v368 = vld [vmem:[%s4 + $0x1a8] sm:$0xff]
  %v369 = vld [vmem:[%s4 + $0x1b0] sm:$0xff]
  %v370 = vld [vmem:[%s4 + $0x1b8] sm:$0xff]
  %v371 = vld [vmem:[%s4 + $0x1c0] sm:$0xff]
  %v372 = vld [vmem:[%s4 + $0x1c8] sm:$0xff]
  %v373 = vld [vmem:[%s4 + $0x1d0] sm:$0xff]
  %v374 = vld [vmem:[%s4 + $0x1d8] sm:$0xff]
  %v375 = vld [vmem:[%s4 + $0x1e0] sm:$0xff]
  %v376 = vld [vmem:[%s4 + $0x1e8] sm:$0xff]
  %v377 = vld [vmem:[%s4 + $0x1f0] sm:$0xff]
  %v378 = vld [vmem:[%s4 + $0x1f8] sm:$0xff]
  %v379 = vld [vmem:[%s5] sm:$0x1]
  %v381 = vlaneseq
  %v382 = vshrl.u32 %v381, 7
  %v383 = vsub.s32 0, %v382
  %v384 = vrot.slane %v379, %v383
  %v386 = vmul.f32 %v315, %v384
  %v387 = vmul.f32 %v316, %v384
  %v388 = vmul.f32 %v317, %v384
  %v389 = vmul.f32 %v318, %v384
  %v390 = vmul.f32 %v319, %v384
  %v391 = vmul.f32 %v320, %v384
  %v392 = vmul.f32 %v321, %v384
  %v393 = vmul.f32 %v322, %v384
  %v394 = vmul.f32 %v323, %v384
  %v395 = vmul.f32 %v324, %v384
  %v396 = vmul.f32 %v325, %v384
  %v397 = vmul.f32 %v326, %v384
  %v398 = vmul.f32 %v327, %v384
  %v399 = vmul.f32 %v328, %v384
  %v400 = vmul.f32 %v329, %v384
  %v401 = vmul.f32 %v330, %v384
  %v402 = vmul.f32 %v331, %v384
  %v403 = vmul.f32 %v332, %v384
  %v404 = vmul.f32 %v333, %v384
  %v405 = vmul.f32 %v334, %v384
  %v406 = vmul.f32 %v335, %v384
  %v407 = vmul.f32 %v336, %v384
  %v408 = vmul.f32 %v337, %v384
  %v409 = vmul.f32 %v338, %v384
  %v410 = vmul.f32 %v339, %v384
  %v411 = vmul.f32 %v340, %v384
  %v412 = vmul.f32 %v341, %v384
  %v413 = vmul.f32 %v342, %v384
  %v414 = vmul.f32 %v343, %v384
  %v415 = vmul.f32 %v344, %v384
  %v416 = vmul.f32 %v345, %v384
  %v417 = vmul.f32 %v346, %v384
  %v418 = vmul.f32 %v347, %v384
  %v419 = vmul.f32 %v348, %v384
  %v420 = vmul.f32 %v349, %v384
  %v421 = vmul.f32 %v350, %v384
  %v422 = vmul.f32 %v351, %v384
  %v423 = vmul.f32 %v352, %v384
  %v424 = vmul.f32 %v353, %v384
  %v425 = vmul.f32 %v354, %v384
  %v426 = vmul.f32 %v355, %v384
  %v427 = vmul.f32 %v356, %v384
  %v428 = vmul.f32 %v357, %v384
  %v429 = vmul.f32 %v358, %v384
  %v430 = vmul.f32 %v359, %v384
  %v431 = vmul.f32 %v360, %v384
  %v432 = vmul.f32 %v361, %v384
  %v433 = vmul.f32 %v362, %v384
  %v434 = vmul.f32 %v363, %v384
  %v435 = vmul.f32 %v364, %v384
  %v436 = vmul.f32 %v365, %v384
  %v437 = vmul.f32 %v366, %v384
  %v438 = vmul.f32 %v367, %v384
  %v439 = vmul.f32 %v368, %v384
  %v440 = vmul.f32 %v369, %v384
  %v441 = vmul.f32 %v370, %v384
  %v442 = vmul.f32 %v371, %v384
  %v443 = vmul.f32 %v372, %v384
  %v444 = vmul.f32 %v373, %v384
  %v445 = vmul.f32 %v374, %v384
  %v446 = vmul.f32 %v375, %v384
  %v447 = vmul.f32 %v376, %v384
  %v448 = vmul.f32 %v377, %v384
  %v449 = vmul.f32 %v378, %v384
  %v450 = vld [vmem:[%s6] sm:$0x1]
  %v452 = vlaneseq
  %v453 = vshrl.u32 %v452, 7
  %v454 = vsub.s32 0, %v453
  %v455 = vrot.slane %v450, %v454
  %v457 = vadd.f32 %v386, %v455
  %v458 = vadd.f32 %v387, %v455
  %v459 = vadd.f32 %v388, %v455
  %v460 = vadd.f32 %v389, %v455
  %v461 = vadd.f32 %v390, %v455
  %v462 = vadd.f32 %v391, %v455
  %v463 = vadd.f32 %v392, %v455
  %v464 = vadd.f32 %v393, %v455
  %v465 = vadd.f32 %v394, %v455
  %v466 = vadd.f32 %v395, %v455
  %v467 = vadd.f32 %v396, %v455
  %v468 = vadd.f32 %v397, %v455
  %v469 = vadd.f32 %v398, %v455
  %v470 = vadd.f32 %v399, %v455
  %v471 = vadd.f32 %v400, %v455
  %v472 = vadd.f32 %v401, %v455
  %v473 = vadd.f32 %v402, %v455
  %v474 = vadd.f32 %v403, %v455
  %v475 = vadd.f32 %v404, %v455
  %v476 = vadd.f32 %v405, %v455
  %v477 = vadd.f32 %v406, %v455
  %v478 = vadd.f32 %v407, %v455
  %v479 = vadd.f32 %v408, %v455
  %v480 = vadd.f32 %v409, %v455
  %v481 = vadd.f32 %v410, %v455
  %v482 = vadd.f32 %v411, %v455
  %v483 = vadd.f32 %v412, %v455
  %v484 = vadd.f32 %v413, %v455
  %v485 = vadd.f32 %v414, %v455
  %v486 = vadd.f32 %v415, %v455
  %v487 = vadd.f32 %v416, %v455
  %v488 = vadd.f32 %v417, %v455
  %v489 = vadd.f32 %v418, %v455
  %v490 = vadd.f32 %v419, %v455
  %v491 = vadd.f32 %v420, %v455
  %v492 = vadd.f32 %v421, %v455
  %v493 = vadd.f32 %v422, %v455
  %v494 = vadd.f32 %v423, %v455
  %v495 = vadd.f32 %v424, %v455
  %v496 = vadd.f32 %v425, %v455
  %v497 = vadd.f32 %v426, %v455
  %v498 = vadd.f32 %v427, %v455
  %v499 = vadd.f32 %v428, %v455
  %v500 = vadd.f32 %v429, %v455
  %v501 = vadd.f32 %v430, %v455
  %v502 = vadd.f32 %v431, %v455
  %v503 = vadd.f32 %v432, %v455
  %v504 = vadd.f32 %v433, %v455
  %v505 = vadd.f32 %v434, %v455
  %v506 = vadd.f32 %v435, %v455
  %v507 = vadd.f32 %v436, %v455
  %v508 = vadd.f32 %v437, %v455
  %v509 = vadd.f32 %v438, %v455
  %v510 = vadd.f32 %v439, %v455
  %v511 = vadd.f32 %v440, %v455
  %v512 = vadd.f32 %v441, %v455
  %v513 = vadd.f32 %v442, %v455
  %v514 = vadd.f32 %v443, %v455
  %v515 = vadd.f32 %v444, %v455
  %v516 = vadd.f32 %v445, %v455
  %v517 = vadd.f32 %v446, %v455
  %v518 = vadd.f32 %v447, %v455
  %v519 = vadd.f32 %v448, %v455
  %v520 = vadd.f32 %v449, %v455
  %v521 = vmax.f32 %v457, 0.0
  %v522 = vmax.f32 %v458, 0.0
  %v523 = vmax.f32 %v459, 0.0
  %v524 = vmax.f32 %v460, 0.0
  %v525 = vmax.f32 %v461, 0.0
  %v526 = vmax.f32 %v462, 0.0
  %v527 = vmax.f32 %v463, 0.0
  %v528 = vmax.f32 %v464, 0.0
  %v529 = vmax.f32 %v465, 0.0
  %v530 = vmax.f32 %v466, 0.0
  %v531 = vmax.f32 %v467, 0.0
  %v532 = vmax.f32 %v468, 0.0
  %v533 = vmax.f32 %v469, 0.0
  %v534 = vmax.f32 %v470, 0.0
  %v535 = vmax.f32 %v471, 0.0
  %v536 = vmax.f32 %v472, 0.0
  %v537 = vmax.f32 %v473, 0.0
  %v538 = vmax.f32 %v474, 0.0
  %v539 = vmax.f32 %v475, 0.0
  %v540 = vmax.f32 %v476, 0.0
  %v541 = vmax.f32 %v477, 0.0
  %v542 = vmax.f32 %v478, 0.0
  %v543 = vmax.f32 %v479, 0.0
  %v544 = vmax.f32 %v480, 0.0
  %v545 = vmax.f32 %v481, 0.0
  %v546 = vmax.f32 %v482, 0.0
  %v547 = vmax.f32 %v483, 0.0
  %v548 = vmax.f32 %v484, 0.0
  %v549 = vmax.f32 %v485, 0.0
  %v550 = vmax.f32 %v486, 0.0
  %v551 = vmax.f32 %v487, 0.0
  %v552 = vmax.f32 %v488, 0.0
  %v553 = vmax.f32 %v489, 0.0
  %v554 = vmax.f32 %v490, 0.0
  %v555 = vmax.f32 %v491, 0.0
  %v556 = vmax.f32 %v492, 0.0
  %v557 = vmax.f32 %v493, 0.0
  %v558 = vmax.f32 %v494, 0.0
  %v559 = vmax.f32 %v495, 0.0
  %v560 = vmax.f32 %v496, 0.0
  %v561 = vmax.f32 %v497, 0.0
  %v562 = vmax.f32 %v498, 0.0
  %v563 = vmax.f32 %v499, 0.0
  %v564 = vmax.f32 %v500, 0.0
  %v565 = vmax.f32 %v501, 0.0
  %v566 = vmax.f32 %v502, 0.0
  %v567 = vmax.f32 %v503, 0.0
  %v568 = vmax.f32 %v504, 0.0
  %v569 = vmax.f32 %v505, 0.0
  %v570 = vmax.f32 %v506, 0.0
  %v571 = vmax.f32 %v507, 0.0
  %v572 = vmax.f32 %v508, 0.0
  %v573 = vmax.f32 %v509, 0.0
  %v574 = vmax.f32 %v510, 0.0
  %v575 = vmax.f32 %v511, 0.0
  %v576 = vmax.f32 %v512, 0.0
  %v577 = vmax.f32 %v513, 0.0
  %v578 = vmax.f32 %v514, 0.0
  %v579 = vmax.f32 %v515, 0.0
  %v580 = vmax.f32 %v516, 0.0
  %v581 = vmax.f32 %v517, 0.0
  %v582 = vmax.f32 %v518, 0.0
  %v583 = vmax.f32 %v519, 0.0
  %v584 = vmax.f32 %v520, 0.0
  %v585 = vld [vmem:[%s7] sm:$0xff]
  %v586 = vld [vmem:[%s7 + $0x8] sm:$0xff]
  %v587 = vld [vmem:[%s7 + $0x10] sm:$0xff]
  %v588 = vld [vmem:[%s7 + $0x18] sm:$0xff]
  %v589 = vld [vmem:[%s7 + $0x20] sm:$0xff]
  %v590 = vld [vmem:[%s7 + $0x28] sm:$0xff]
  %v591 = vld [vmem:[%s7 + $0x30] sm:$0xff]
  %v592 = vld [vmem:[%s7 + $0x38] sm:$0xff]
  %v593 = vld [vmem:[%s7 + $0x40] sm:$0xff]
  %v594 = vld [vmem:[%s7 + $0x48] sm:$0xff]
  %v595 = vld [vmem:[%s7 + $0x50] sm:$0xff]
  %v596 = vld [vmem:[%s7 + $0x58] sm:$0xff]
  %v597 = vld [vmem:[%s7 + $0x60] sm:$0xff]
  %v598 = vld [vmem:[%s7 + $0x68] sm:$0xff]
  %v599 = vld [vmem:[%s7 + $0x70] sm:$0xff]
  %v600 = vld [vmem:[%s7 + $0x78] sm:$0xff]
  %601 = vmatprep.subr.mxu0 0.0
  %602 = vmatpush1.msra.mxu0 %v585
  %603 = vmatprep.subr.mxu0 0.0
  %604 = vmatpush1.msra.mxu0 %v586
  %605 = vmatprep.subr.mxu0 0.0
  %606 = vmatpush1.msra.mxu0 %v587
  %607 = vmatprep.subr.mxu0 0.0
  %608 = vmatpush1.msra.mxu0 %v588
  %609 = vmatprep.subr.mxu0 0.0
  %610 = vmatpush1.msra.mxu0 %v589
  %611 = vmatprep.subr.mxu0 0.0
  %612 = vmatpush1.msra.mxu0 %v590
  %613 = vmatprep.subr.mxu0 0.0
  %614 = vmatpush1.msra.mxu0 %v591
  %615 = vmatprep.subr.mxu0 0.0
  %616 = vmatpush1.msra.mxu0 %v592
  %617 = vmatprep.subr.mxu0 0.0
  %618 = vmatpush1.msra.mxu0 %v593
  %619 = vmatprep.subr.mxu0 0.0
  %620 = vmatpush1.msra.mxu0 %v594
  %621 = vmatprep.subr.mxu0 0.0
  %622 = vmatpush1.msra.mxu0 %v595
  %623 = vmatprep.subr.mxu0 0.0
  %624 = vmatpush1.msra.mxu0 %v596
  %625 = vmatprep.subr.mxu0 0.0
  %626 = vmatpush1.msra.mxu0 %v597
  %627 = vmatprep.subr.mxu0 0.0
  %628 = vmatpush1.msra.mxu0 %v598
  %629 = vmatprep.subr.mxu0 0.0
  %630 = vmatpush1.msra.mxu0 %v599
  %631 = vmatprep.subr.mxu0 0.0
  %632 = vmatpush1.msra.mxu0 %v600
  %633 = vmatprep.subr.mxu0 0.0
  %634 = vmatpush1.msra.mxu0 0.0
  %635 = vmatprep.subr.mxu0 0.0
  %636 = vmatpush1.msra.mxu0 0.0
  %637 = vmatprep.subr.mxu0 0.0
  %638 = vmatpush1.msra.mxu0 0.0
  %639 = vmatprep.subr.mxu0 0.0
  %640 = vmatpush1.msra.mxu0 0.0
  %641 = vmatprep.subr.mxu0 0.0
  %642 = vmatpush1.msra.mxu0 0.0
  %643 = vmatprep.subr.mxu0 0.0
  %644 = vmatpush1.msra.mxu0 0.0
  %645 = vmatprep.subr.mxu0 0.0
  %646 = vmatpush1.msra.mxu0 0.0
  %647 = vmatprep.subr.mxu0 0.0
  %648 = vmatpush1.msra.mxu0 0.0
  %649 = vmatprep.subr.mxu0 0.0
  %650 = vmatpush1.msra.mxu0 0.0
  %651 = vmatprep.subr.mxu0 0.0
  %652 = vmatpush1.msra.mxu0 0.0
  %653 = vmatprep.subr.mxu0 0.0
  %654 = vmatpush1.msra.mxu0 0.0
  %655 = vmatprep.subr.mxu0 0.0
  %656 = vmatpush1.msra.mxu0 0.0
  %657 = vmatprep.subr.mxu0 0.0
  %658 = vmatpush1.msra.mxu0 0.0
  %659 = vmatprep.subr.mxu0 0.0
  %660 = vmatpush1.msra.mxu0 0.0
  %661 = vmatprep.subr.mxu0 0.0
  %662 = vmatpush1.msra.mxu0 0.0
  %663 = vmatprep.subr.mxu0 0.0
  %664 = vmatpush1.msra.mxu0 0.0
  %665 = vmatprep.mubr.f32.mxu0 0.0
  %666 = vmatmul.mubr.f32.gmra.mrb[0].mxu0 %v521
  %v667 = vpop.f32.mrb[0].mxu0
  %v668 = vadd.f32 0.0, %v667
  %v669 = vpop.f32.mrb[0].mxu0
  %670 = vmatprep.mubr.f32.mxu0 0.0
  %671 = vmatmul.mubr.f32.gmra.mrb[0].mxu0 %v522
  %v672 = vpop.f32.mrb[0].mxu0
  %v673 = vadd.f32 0.0, %v672
  %v674 = vpop.f32.mrb[0].mxu0
  %675 = vmatprep.mubr.f32.mxu0 0.0
  %676 = vmatmul.mubr.f32.gmra.mrb[0].mxu0 %v523
  %v677 = vpop.f32.mrb[0].mxu0
  %v678 = vadd.f32 0.0, %v677
  %v679 = vpop.f32.mrb[0].mxu0
  %680 = vmatprep.mubr.f32.mxu0 0.0
  %681 = vmatmul.mubr.f32.gmra.mrb[0].mxu0 %v524
  %v682 = vpop.f32.mrb[0].mxu0
  %v683 = vadd.f32 0.0, %v682
  %v684 = vpop.f32.mrb[0].mxu0
  %685 = vmatprep.mubr.f32.mxu0 0.0
  %686 = vmatmul.mubr.f32.gmra.mrb[0].mxu0 %v525
  %v687 = vpop.f32.mrb[0].mxu0
  %v688 = vadd.f32 0.0, %v687
  %v689 = vpop.f32.mrb[0].mxu0
  %690 = vmatprep.mubr.f32.mxu0 0.0
  %691 = vmatmul.mubr.f32.gmra.mrb[0].mxu0 %v526
  %v692 = vpop.f32.mrb[0].mxu0
  %v693 = vadd.f32 0.0, %v692
  %v694 = vpop.f32.mrb[0].mxu0
  %695 = vmatprep.mubr.f32.mxu0 0.0
  %696 = vmatmul.mubr.f32.gmra.mrb[0].mxu0 %v527
  %v697 = vpop.f32.mrb[0].mxu0
  %v698 = vadd.f32 0.0, %v697
  %v699 = vpop.f32.mrb[0].mxu0
  %700 = vmatprep.mubr.f32.mxu0 0.0
  %701 = vmatmul.mubr.f32.gmra.mrb[0].mxu0 %v528
  %v702 = vpop.f32.mrb[0].mxu0
  %v703 = vadd.f32 0.0, %v702
  %v704 = vpop.f32.mrb[0].mxu0
  %705 = vmatprep.mubr.f32.mxu0 0.0
  %706 = vmatmul.mubr.f32.gmra.mrb[0].mxu0 %v529
  %v707 = vpop.f32.mrb[0].mxu0
  %v708 = vadd.f32 0.0, %v707
  %v709 = vpop.f32.mrb[0].mxu0
  %710 = vmatprep.mubr.f32.mxu0 0.0
  %711 = vmatmul.mubr.f32.gmra.mrb[0].mxu0 %v530
  %v712 = vpop.f32.mrb[0].mxu0
  %v713 = vadd.f32 0.0, %v712
  %v714 = vpop.f32.mrb[0].mxu0
  %715 = vmatprep.mubr.f32.mxu0 0.0
  %716 = vmatmul.mubr.f32.gmra.mrb[0].mxu0 %v531
  %v717 = vpop.f32.mrb[0].mxu0
  %v718 = vadd.f32 0.0, %v717
  %v719 = vpop.f32.mrb[0].mxu0
  %720 = vmatprep.mubr.f32.mxu0 0.0
  %721 = vmatmul.mubr.f32.gmra.mrb[0].mxu0 %v532
  %v722 = vpop.f32.mrb[0].mxu0
  %v723 = vadd.f32 0.0, %v722
  %v724 = vpop.f32.mrb[0].mxu0
  %725 = vmatprep.mubr.f32.mxu0 0.0
  %726 = vmatmul.mubr.f32.gmra.mrb[0].mxu0 %v533
  %v727 = vpop.f32.mrb[0].mxu0
  %v728 = vadd.f32 0.0, %v727
  %v729 = vpop.f32.mrb[0].mxu0
  %730 = vmatprep.mubr.f32.mxu0 0.0
  %731 = vmatmul.mubr.f32.gmra.mrb[0].mxu0 %v534
  %v732 = vpop.f32.mrb[0].mxu0
  %v733 = vadd.f32 0.0, %v732
  %v734 = vpop.f32.mrb[0].mxu0
  %735 = vmatprep.mubr.f32.mxu0 0.0
  %736 = vmatmul.mubr.f32.gmra.mrb[0].mxu0 %v535
  %v737 = vpop.f32.mrb[0].mxu0
  %v738 = vadd.f32 0.0, %v737
  %v739 = vpop.f32.mrb[0].mxu0
  %740 = vmatprep.mubr.f32.mxu0 0.0
  %741 = vmatmul.mubr.f32.gmra.mrb[0].mxu0 %v536
  %v742 = vpop.f32.mrb[0].mxu0
  %v743 = vadd.f32 0.0, %v742
  %v744 = vpop.f32.mrb[0].mxu0
  %745 = vmatprep.mubr.f32.mxu0 0.0
  %746 = vmatmul.mubr.f32.gmra.mrb[0].mxu0 %v537
  %v747 = vpop.f32.mrb[0].mxu0
  %v748 = vadd.f32 0.0, %v747
  %v749 = vpop.f32.mrb[0].mxu0
  %750 = vmatprep.mubr.f32.mxu0 0.0
  %751 = vmatmul.mubr.f32.gmra.mrb[0].mxu0 %v538
  %v752 = vpop.f32.mrb[0].mxu0
  %v753 = vadd.f32 0.0, %v752
  %v754 = vpop.f32.mrb[0].mxu0
  %755 = vmatprep.mubr.f32.mxu0 0.0
  %756 = vmatmul.mubr.f32.gmra.mrb[0].mxu0 %v539
  %v757 = vpop.f32.mrb[0].mxu0
  %v758 = vadd.f32 0.0, %v757
  %v759 = vpop.f32.mrb[0].mxu0
  %760 = vmatprep.mubr.f32.mxu0 0.0
  %761 = vmatmul.mubr.f32.gmra.mrb[0].mxu0 %v540
  %v762 = vpop.f32.mrb[0].mxu0
  %v763 = vadd.f32 0.0, %v762
  %v764 = vpop.f32.mrb[0].mxu0
  %765 = vmatprep.mubr.f32.mxu0 0.0
  %766 = vmatmul.mubr.f32.gmra.mrb[0].mxu0 %v541
  %v767 = vpop.f32.mrb[0].mxu0
  %v768 = vadd.f32 0.0, %v767
  %v769 = vpop.f32.mrb[0].mxu0
  %770 = vmatprep.mubr.f32.mxu0 0.0
  %771 = vmatmul.mubr.f32.gmra.mrb[0].mxu0 %v542
  %v772 = vpop.f32.mrb[0].mxu0
  %v773 = vadd.f32 0.0, %v772
  %v774 = vpop.f32.mrb[0].mxu0
  %775 = vmatprep.mubr.f32.mxu0 0.0
  %776 = vmatmul.mubr.f32.gmra.mrb[0].mxu0 %v543
  %v777 = vpop.f32.mrb[0].mxu0
  %v778 = vadd.f32 0.0, %v777
  %v779 = vpop.f32.mrb[0].mxu0
  %780 = vmatprep.mubr.f32.mxu0 0.0
  %781 = vmatmul.mubr.f32.gmra.mrb[0].mxu0 %v544
  %v782 = vpop.f32.mrb[0].mxu0
  %v783 = vadd.f32 0.0, %v782
  %v784 = vpop.f32.mrb[0].mxu0
  %785 = vmatprep.mubr.f32.mxu0 0.0
  %786 = vmatmul.mubr.f32.gmra.mrb[0].mxu0 %v545
  %v787 = vpop.f32.mrb[0].mxu0
  %v788 = vadd.f32 0.0, %v787
  %v789 = vpop.f32.mrb[0].mxu0
  %790 = vmatprep.mubr.f32.mxu0 0.0
  %791 = vmatmul.mubr.f32.gmra.mrb[0].mxu0 %v546
  %v792 = vpop.f32.mrb[0].mxu0
  %v793 = vadd.f32 0.0, %v792
  %v794 = vpop.f32.mrb[0].mxu0
  %795 = vmatprep.mubr.f32.mxu0 0.0
  %796 = vmatmul.mubr.f32.gmra.mrb[0].mxu0 %v547
  %v797 = vpop.f32.mrb[0].mxu0
  %v798 = vadd.f32 0.0, %v797
  %v799 = vpop.f32.mrb[0].mxu0
  %800 = vmatprep.mubr.f32.mxu0 0.0
  %801 = vmatmul.mubr.f32.gmra.mrb[0].mxu0 %v548
  %v802 = vpop.f32.mrb[0].mxu0
  %v803 = vadd.f32 0.0, %v802
  %v804 = vpop.f32.mrb[0].mxu0
  %805 = vmatprep.mubr.f32.mxu0 0.0
  %806 = vmatmul.mubr.f32.gmra.mrb[0].mxu0 %v549
  %v807 = vpop.f32.mrb[0].mxu0
  %v808 = vadd.f32 0.0, %v807
  %v809 = vpop.f32.mrb[0].mxu0
  %810 = vmatprep.mubr.f32.mxu0 0.0
  %811 = vmatmul.mubr.f32.gmra.mrb[0].mxu0 %v550
  %v812 = vpop.f32.mrb[0].mxu0
  %v813 = vadd.f32 0.0, %v812
  %v814 = vpop.f32.mrb[0].mxu0
  %815 = vmatprep.mubr.f32.mxu0 0.0
  %816 = vmatmul.mubr.f32.gmra.mrb[0].mxu0 %v551
  %v817 = vpop.f32.mrb[0].mxu0
  %v818 = vadd.f32 0.0, %v817
  %v819 = vpop.f32.mrb[0].mxu0
  %820 = vmatprep.mubr.f32.mxu0 0.0
  %821 = vmatmul.mubr.f32.gmra.mrb[0].mxu0 %v552
  %v822 = vpop.f32.mrb[0].mxu0
  %v823 = vadd.f32 0.0, %v822
  %v824 = vpop.f32.mrb[0].mxu0
  %825 = vmatprep.mubr.f32.mxu0 0.0
  %826 = vmatmul.mubr.f32.gmra.mrb[0].mxu0 %v553
  %v827 = vpop.f32.mrb[0].mxu0
  %v828 = vadd.f32 0.0, %v827
  %v829 = vpop.f32.mrb[0].mxu0
  %830 = vmatprep.mubr.f32.mxu0 0.0
  %831 = vmatmul.mubr.f32.gmra.mrb[0].mxu0 %v554
  %v832 = vpop.f32.mrb[0].mxu0
  %v833 = vadd.f32 0.0, %v832
  %v834 = vpop.f32.mrb[0].mxu0
  %835 = vmatprep.mubr.f32.mxu0 0.0
  %836 = vmatmul.mubr.f32.gmra.mrb[0].mxu0 %v555
  %v837 = vpop.f32.mrb[0].mxu0
  %v838 = vadd.f32 0.0, %v837
  %v839 = vpop.f32.mrb[0].mxu0
  %840 = vmatprep.mubr.f32.mxu0 0.0
  %841 = vmatmul.mubr.f32.gmra.mrb[0].mxu0 %v556
  %v842 = vpop.f32.mrb[0].mxu0
  %v843 = vadd.f32 0.0, %v842
  %v844 = vpop.f32.mrb[0].mxu0
  %845 = vmatprep.mubr.f32.mxu0 0.0
  %846 = vmatmul.mubr.f32.gmra.mrb[0].mxu0 %v557
  %v847 = vpop.f32.mrb[0].mxu0
  %v848 = vadd.f32 0.0, %v847
  %v849 = vpop.f32.mrb[0].mxu0
  %850 = vmatprep.mubr.f32.mxu0 0.0
  %851 = vmatmul.mubr.f32.gmra.mrb[0].mxu0 %v558
  %v852 = vpop.f32.mrb[0].mxu0
  %v853 = vadd.f32 0.0, %v852
  %v854 = vpop.f32.mrb[0].mxu0
  %855 = vmatprep.mubr.f32.mxu0 0.0
  %856 = vmatmul.mubr.f32.gmra.mrb[0].mxu0 %v559
  %v857 = vpop.f32.mrb[0].mxu0
  %v858 = vadd.f32 0.0, %v857
  %v859 = vpop.f32.mrb[0].mxu0
  %860 = vmatprep.mubr.f32.mxu0 0.0
  %861 = vmatmul.mubr.f32.gmra.mrb[0].mxu0 %v560
  %v862 = vpop.f32.mrb[0].mxu0
  %v863 = vadd.f32 0.0, %v862
  %v864 = vpop.f32.mrb[0].mxu0
  %865 = vmatprep.mubr.f32.mxu0 0.0
  %866 = vmatmul.mubr.f32.gmra.mrb[0].mxu0 %v561
  %v867 = vpop.f32.mrb[0].mxu0
  %v868 = vadd.f32 0.0, %v867
  %v869 = vpop.f32.mrb[0].mxu0
  %870 = vmatprep.mubr.f32.mxu0 0.0
  %871 = vmatmul.mubr.f32.gmra.mrb[0].mxu0 %v562
  %v872 = vpop.f32.mrb[0].mxu0
  %v873 = vadd.f32 0.0, %v872
  %v874 = vpop.f32.mrb[0].mxu0
  %875 = vmatprep.mubr.f32.mxu0 0.0
  %876 = vmatmul.mubr.f32.gmra.mrb[0].mxu0 %v563
  %v877 = vpop.f32.mrb[0].mxu0
  %v878 = vadd.f32 0.0, %v877
  %v879 = vpop.f32.mrb[0].mxu0
  %880 = vmatprep.mubr.f32.mxu0 0.0
  %881 = vmatmul.mubr.f32.gmra.mrb[0].mxu0 %v564
  %v882 = vpop.f32.mrb[0].mxu0
  %v883 = vadd.f32 0.0, %v882
  %v884 = vpop.f32.mrb[0].mxu0
  %885 = vmatprep.mubr.f32.mxu0 0.0
  %886 = vmatmul.mubr.f32.gmra.mrb[0].mxu0 %v565
  %v887 = vpop.f32.mrb[0].mxu0
  %v888 = vadd.f32 0.0, %v887
  %v889 = vpop.f32.mrb[0].mxu0
  %890 = vmatprep.mubr.f32.mxu0 0.0
  %891 = vmatmul.mubr.f32.gmra.mrb[0].mxu0 %v566
  %v892 = vpop.f32.mrb[0].mxu0
  %v893 = vadd.f32 0.0, %v892
  %v894 = vpop.f32.mrb[0].mxu0
  %895 = vmatprep.mubr.f32.mxu0 0.0
  %896 = vmatmul.mubr.f32.gmra.mrb[0].mxu0 %v567
  %v897 = vpop.f32.mrb[0].mxu0
  %v898 = vadd.f32 0.0, %v897
  %v899 = vpop.f32.mrb[0].mxu0
  %900 = vmatprep.mubr.f32.mxu0 0.0
  %901 = vmatmul.mubr.f32.gmra.mrb[0].mxu0 %v568
  %v902 = vpop.f32.mrb[0].mxu0
  %v903 = vadd.f32 0.0, %v902
  %v904 = vpop.f32.mrb[0].mxu0
  %905 = vmatprep.mubr.f32.mxu0 0.0
  %906 = vmatmul.mubr.f32.gmra.mrb[0].mxu0 %v569
  %v907 = vpop.f32.mrb[0].mxu0
  %v908 = vadd.f32 0.0, %v907
  %v909 = vpop.f32.mrb[0].mxu0
  %910 = vmatprep.mubr.f32.mxu0 0.0
  %911 = vmatmul.mubr.f32.gmra.mrb[0].mxu0 %v570
  %v912 = vpop.f32.mrb[0].mxu0
  %v913 = vadd.f32 0.0, %v912
  %v914 = vpop.f32.mrb[0].mxu0
  %915 = vmatprep.mubr.f32.mxu0 0.0
  %916 = vmatmul.mubr.f32.gmra.mrb[0].mxu0 %v571
  %v917 = vpop.f32.mrb[0].mxu0
  %v918 = vadd.f32 0.0, %v917
  %v919 = vpop.f32.mrb[0].mxu0
  %920 = vmatprep.mubr.f32.mxu0 0.0
  %921 = vmatmul.mubr.f32.gmra.mrb[0].mxu0 %v572
  %v922 = vpop.f32.mrb[0].mxu0
  %v923 = vadd.f32 0.0, %v922
  %v924 = vpop.f32.mrb[0].mxu0
  %925 = vmatprep.mubr.f32.mxu0 0.0
  %926 = vmatmul.mubr.f32.gmra.mrb[0].mxu0 %v573
  %v927 = vpop.f32.mrb[0].mxu0
  %v928 = vadd.f32 0.0, %v927
  %v929 = vpop.f32.mrb[0].mxu0
  %930 = vmatprep.mubr.f32.mxu0 0.0
  %931 = vmatmul.mubr.f32.gmra.mrb[0].mxu0 %v574
  %v932 = vpop.f32.mrb[0].mxu0
  %v933 = vadd.f32 0.0, %v932
  %v934 = vpop.f32.mrb[0].mxu0
  %935 = vmatprep.mubr.f32.mxu0 0.0
  %936 = vmatmul.mubr.f32.gmra.mrb[0].mxu0 %v575
  %v937 = vpop.f32.mrb[0].mxu0
  %v938 = vadd.f32 0.0, %v937
  %v939 = vpop.f32.mrb[0].mxu0
  %940 = vmatprep.mubr.f32.mxu0 0.0
  %941 = vmatmul.mubr.f32.gmra.mrb[0].mxu0 %v576
  %v942 = vpop.f32.mrb[0].mxu0
  %v943 = vadd.f32 0.0, %v942
  %v944 = vpop.f32.mrb[0].mxu0
  %945 = vmatprep.mubr.f32.mxu0 0.0
  %946 = vmatmul.mubr.f32.gmra.mrb[0].mxu0 %v577
  %v947 = vpop.f32.mrb[0].mxu0
  %v948 = vadd.f32 0.0, %v947
  %v949 = vpop.f32.mrb[0].mxu0
  %950 = vmatprep.mubr.f32.mxu0 0.0
  %951 = vmatmul.mubr.f32.gmra.mrb[0].mxu0 %v578
  %v952 = vpop.f32.mrb[0].mxu0
  %v953 = vadd.f32 0.0, %v952
  %v954 = vpop.f32.mrb[0].mxu0
  %955 = vmatprep.mubr.f32.mxu0 0.0
  %956 = vmatmul.mubr.f32.gmra.mrb[0].mxu0 %v579
  %v957 = vpop.f32.mrb[0].mxu0
  %v958 = vadd.f32 0.0, %v957
  %v959 = vpop.f32.mrb[0].mxu0
  %960 = vmatprep.mubr.f32.mxu0 0.0
  %961 = vmatmul.mubr.f32.gmra.mrb[0].mxu0 %v580
  %v962 = vpop.f32.mrb[0].mxu0
  %v963 = vadd.f32 0.0, %v962
  %v964 = vpop.f32.mrb[0].mxu0
  %965 = vmatprep.mubr.f32.mxu0 0.0
  %966 = vmatmul.mubr.f32.gmra.mrb[0].mxu0 %v581
  %v967 = vpop.f32.mrb[0].mxu0
  %v968 = vadd.f32 0.0, %v967
  %v969 = vpop.f32.mrb[0].mxu0
  %970 = vmatprep.mubr.f32.mxu0 0.0
  %971 = vmatmul.mubr.f32.gmra.mrb[0].mxu0 %v582
  %v972 = vpop.f32.mrb[0].mxu0
  %v973 = vadd.f32 0.0, %v972
  %v974 = vpop.f32.mrb[0].mxu0
  %975 = vmatprep.mubr.f32.mxu0 0.0
  %976 = vmatmul.mubr.f32.gmra.mrb[0].mxu0 %v583
  %v977 = vpop.f32.mrb[0].mxu0
  %v978 = vadd.f32 0.0, %v977
  %v979 = vpop.f32.mrb[0].mxu0
  %980 = vmatprep.mubr.f32.mxu0 0.0
  %981 = vmatmul.mubr.f32.gmra.mrb[0].mxu0 %v584
  %v982 = vpop.f32.mrb[0].mxu0
  %v983 = vadd.f32 0.0, %v982
  %v984 = vpop.f32.mrb[0].mxu0
  %985 = vdwg.mxu0
  %986 = vmatprep.subr.mxu0 0.0
  %987 = vmatpush1.msra.mxu0 %v299
  %988 = vmatprep.subr.mxu0 0.0
  %989 = vmatpush1.msra.mxu0 %v300
  %990 = vmatprep.subr.mxu0 0.0
  %991 = vmatpush1.msra.mxu0 %v301
  %992 = vmatprep.subr.mxu0 0.0
  %993 = vmatpush1.msra.mxu0 %v302
  %994 = vmatprep.subr.mxu0 0.0
  %995 = vmatpush1.msra.mxu0 %v303
  %996 = vmatprep.subr.mxu0 0.0
  %997 = vmatpush1.msra.mxu0 %v304
  %998 = vmatprep.subr.mxu0 0.0
  %999 = vmatpush1.msra.mxu0 %v305
  %1000 = vmatprep.subr.mxu0 0.0
  %1001 = vmatpush1.msra.mxu0 %v306
  %1002 = vmatprep.subr.mxu0 0.0
  %1003 = vmatpush1.msra.mxu0 %v307
  %1004 = vmatprep.subr.mxu0 0.0
  %1005 = vmatpush1.msra.mxu0 %v308
  %1006 = vmatprep.subr.mxu0 0.0
  %1007 = vmatpush1.msra.mxu0 %v309
  %1008 = vmatprep.subr.mxu0 0.0
  %1009 = vmatpush1.msra.mxu0 %v310
  %1010 = vmatprep.subr.mxu0 0.0
  %1011 = vmatpush1.msra.mxu0 %v311
  %1012 = vmatprep.subr.mxu0 0.0
  %1013 = vmatpush1.msra.mxu0 %v312
  %1014 = vmatprep.subr.mxu0 0.0
  %1015 = vmatpush1.msra.mxu0 %v313
  %1016 = vmatprep.subr.mxu0 0.0
  %1017 = vmatpush1.msra.mxu0 %v314
  %1018 = vmatprep.subr.mxu0 0.0
  %1019 = vmatpush1.msra.mxu0 0.0
  %1020 = vmatprep.subr.mxu0 0.0
  %1021 = vmatpush1.msra.mxu0 0.0
  %1022 = vmatprep.subr.mxu0 0.0
  %1023 = vmatpush1.msra.mxu0 0.0
  %1024 = vmatprep.subr.mxu0 0.0
  %1025 = vmatpush1.msra.mxu0 0.0
  %1026 = vmatprep.subr.mxu0 0.0
  %1027 = vmatpush1.msra.mxu0 0.0
  %1028 = vmatprep.subr.mxu0 0.0
  %1029 = vmatpush1.msra.mxu0 0.0
  %1030 = vmatprep.subr.mxu0 0.0
  %1031 = vmatpush1.msra.mxu0 0.0
  %1032 = vmatprep.subr.mxu0 0.0
  %1033 = vmatpush1.msra.mxu0 0.0
  %1034 = vmatprep.subr.mxu0 0.0
  %1035 = vmatpush1.msra.mxu0 0.0
  %1036 = vmatprep.subr.mxu0 0.0
  %1037 = vmatpush1.msra.mxu0 0.0
  %1038 = vmatprep.subr.mxu0 0.0
  %1039 = vmatpush1.msra.mxu0 0.0
  %1040 = vmatprep.subr.mxu0 0.0
  %1041 = vmatpush1.msra.mxu0 0.0
  %1042 = vmatprep.subr.mxu0 0.0
  %1043 = vmatpush1.msra.mxu0 0.0
  %1044 = vmatprep.subr.mxu0 0.0
  %1045 = vmatpush1.msra.mxu0 0.0
  %1046 = vmatprep.subr.mxu0 0.0
  %1047 = vmatpush1.msra.mxu0 0.0
  %1048 = vmatprep.subr.mxu0 0.0
  %1049 = vmatpush1.msra.mxu0 0.0
  %1050 = vmatprep.mubr.f32.mxu0 0.0
  %1051 = vmatmul.mubr.f32.gmra.mrb[0].mxu0 %v235
  %v1052 = vpop.f32.mrb[0].mxu0
  %v1053 = vadd.f32 %v668, %v1052
  %v1054 = vpop.f32.mrb[0].mxu0
  %1055 = vmatprep.mubr.f32.mxu0 0.0
  %1056 = vmatmul.mubr.f32.gmra.mrb[0].mxu0 %v236
  %v1057 = vpop.f32.mrb[0].mxu0
  %v1058 = vadd.f32 %v673, %v1057
  %v1059 = vpop.f32.mrb[0].mxu0
  %1060 = vmatprep.mubr.f32.mxu0 0.0
  %1061 = vmatmul.mubr.f32.gmra.mrb[0].mxu0 %v237
  %v1062 = vpop.f32.mrb[0].mxu0
  %v1063 = vadd.f32 %v678, %v1062
  %v1064 = vpop.f32.mrb[0].mxu0
  %1065 = vmatprep.mubr.f32.mxu0 0.0
  %1066 = vmatmul.mubr.f32.gmra.mrb[0].mxu0 %v238
  %v1067 = vpop.f32.mrb[0].mxu0
  %v1068 = vadd.f32 %v683, %v1067
  %v1069 = vpop.f32.mrb[0].mxu0
  %1070 = vmatprep.mubr.f32.mxu0 0.0
  %1071 = vmatmul.mubr.f32.gmra.mrb[0].mxu0 %v239
  %v1072 = vpop.f32.mrb[0].mxu0
  %v1073 = vadd.f32 %v688, %v1072
  %v1074 = vpop.f32.mrb[0].mxu0
  %1075 = vmatprep.mubr.f32.mxu0 0.0
  %1076 = vmatmul.mubr.f32.gmra.mrb[0].mxu0 %v240
  %v1077 = vpop.f32.mrb[0].mxu0
  %v1078 = vadd.f32 %v693, %v1077
  %v1079 = vpop.f32.mrb[0].mxu0
  %1080 = vmatprep.mubr.f32.mxu0 0.0
  %1081 = vmatmul.mubr.f32.gmra.mrb[0].mxu0 %v241
  %v1082 = vpop.f32.mrb[0].mxu0
  %v1083 = vadd.f32 %v698, %v1082
  %v1084 = vpop.f32.mrb[0].mxu0
  %1085 = vmatprep.mubr.f32.mxu0 0.0
  %1086 = vmatmul.mubr.f32.gmra.mrb[0].mxu0 %v242
  %v1087 = vpop.f32.mrb[0].mxu0
  %v1088 = vadd.f32 %v703, %v1087
  %v1089 = vpop.f32.mrb[0].mxu0
  %1090 = vmatprep.mubr.f32.mxu0 0.0
  %1091 = vmatmul.mubr.f32.gmra.mrb[0].mxu0 %v243
  %v1092 = vpop.f32.mrb[0].mxu0
  %v1093 = vadd.f32 %v708, %v1092
  %v1094 = vpop.f32.mrb[0].mxu0
  %1095 = vmatprep.mubr.f32.mxu0 0.0
  %1096 = vmatmul.mubr.f32.gmra.mrb[0].mxu0 %v244
  %v1097 = vpop.f32.mrb[0].mxu0
  %v1098 = vadd.f32 %v713, %v1097
  %v1099 = vpop.f32.mrb[0].mxu0
  %1100 = vmatprep.mubr.f32.mxu0 0.0
  %1101 = vmatmul.mubr.f32.gmra.mrb[0].mxu0 %v245
  %v1102 = vpop.f32.mrb[0].mxu0
  %v1103 = vadd.f32 %v718, %v1102
  %v1104 = vpop.f32.mrb[0].mxu0
  %1105 = vmatprep.mubr.f32.mxu0 0.0
  %1106 = vmatmul.mubr.f32.gmra.mrb[0].mxu0 %v246
  %v1107 = vpop.f32.mrb[0].mxu0
  %v1108 = vadd.f32 %v723, %v1107
  %v1109 = vpop.f32.mrb[0].mxu0
  %1110 = vmatprep.mubr.f32.mxu0 0.0
  %1111 = vmatmul.mubr.f32.gmra.mrb[0].mxu0 %v247
  %v1112 = vpop.f32.mrb[0].mxu0
  %v1113 = vadd.f32 %v728, %v1112
  %v1114 = vpop.f32.mrb[0].mxu0
  %1115 = vmatprep.mubr.f32.mxu0 0.0
  %1116 = vmatmul.mubr.f32.gmra.mrb[0].mxu0 %v248
  %v1117 = vpop.f32.mrb[0].mxu0
  %v1118 = vadd.f32 %v733, %v1117
  %v1119 = vpop.f32.mrb[0].mxu0
  %1120 = vmatprep.mubr.f32.mxu0 0.0
  %1121 = vmatmul.mubr.f32.gmra.mrb[0].mxu0 %v249
  %v1122 = vpop.f32.mrb[0].mxu0
  %v1123 = vadd.f32 %v738, %v1122
  %v1124 = vpop.f32.mrb[0].mxu0
  %1125 = vmatprep.mubr.f32.mxu0 0.0
  %1126 = vmatmul.mubr.f32.gmra.mrb[0].mxu0 %v250
  %v1127 = vpop.f32.mrb[0].mxu0
  %v1128 = vadd.f32 %v743, %v1127
  %v1129 = vpop.f32.mrb[0].mxu0
  %1130 = vmatprep.mubr.f32.mxu0 0.0
  %1131 = vmatmul.mubr.f32.gmra.mrb[0].mxu0 %v251
  %v1132 = vpop.f32.mrb[0].mxu0
  %v1133 = vadd.f32 %v748, %v1132
  %v1134 = vpop.f32.mrb[0].mxu0
  %1135 = vmatprep.mubr.f32.mxu0 0.0
  %1136 = vmatmul.mubr.f32.gmra.mrb[0].mxu0 %v252
  %v1137 = vpop.f32.mrb[0].mxu0
  %v1138 = vadd.f32 %v753, %v1137
  %v1139 = vpop.f32.mrb[0].mxu0
  %1140 = vmatprep.mubr.f32.mxu0 0.0
  %1141 = vmatmul.mubr.f32.gmra.mrb[0].mxu0 %v253
  %v1142 = vpop.f32.mrb[0].mxu0
  %v1143 = vadd.f32 %v758, %v1142
  %v1144 = vpop.f32.mrb[0].mxu0
  %1145 = vmatprep.mubr.f32.mxu0 0.0
  %1146 = vmatmul.mubr.f32.gmra.mrb[0].mxu0 %v254
  %v1147 = vpop.f32.mrb[0].mxu0
  %v1148 = vadd.f32 %v763, %v1147
  %v1149 = vpop.f32.mrb[0].mxu0
  %1150 = vmatprep.mubr.f32.mxu0 0.0
  %1151 = vmatmul.mubr.f32.gmra.mrb[0].mxu0 %v255
  %v1152 = vpop.f32.mrb[0].mxu0
  %v1153 = vadd.f32 %v768, %v1152
  %v1154 = vpop.f32.mrb[0].mxu0
  %1155 = vmatprep.mubr.f32.mxu0 0.0
  %1156 = vmatmul.mubr.f32.gmra.mrb[0].mxu0 %v256
  %v1157 = vpop.f32.mrb[0].mxu0
  %v1158 = vadd.f32 %v773, %v1157
  %v1159 = vpop.f32.mrb[0].mxu0
  %1160 = vmatprep.mubr.f32.mxu0 0.0
  %1161 = vmatmul.mubr.f32.gmra.mrb[0].mxu0 %v257
  %v1162 = vpop.f32.mrb[0].mxu0
  %v1163 = vadd.f32 %v778, %v1162
  %v1164 = vpop.f32.mrb[0].mxu0
  %1165 = vmatprep.mubr.f32.mxu0 0.0
  %1166 = vmatmul.mubr.f32.gmra.mrb[0].mxu0 %v258
  %v1167 = vpop.f32.mrb[0].mxu0
  %v1168 = vadd.f32 %v783, %v1167
  %v1169 = vpop.f32.mrb[0].mxu0
  %1170 = vmatprep.mubr.f32.mxu0 0.0
  %1171 = vmatmul.mubr.f32.gmra.mrb[0].mxu0 %v259
  %v1172 = vpop.f32.mrb[0].mxu0
  %v1173 = vadd.f32 %v788, %v1172
  %v1174 = vpop.f32.mrb[0].mxu0
  %1175 = vmatprep.mubr.f32.mxu0 0.0
  %1176 = vmatmul.mubr.f32.gmra.mrb[0].mxu0 %v260
  %v1177 = vpop.f32.mrb[0].mxu0
  %v1178 = vadd.f32 %v793, %v1177
  %v1179 = vpop.f32.mrb[0].mxu0
  %1180 = vmatprep.mubr.f32.mxu0 0.0
  %1181 = vmatmul.mubr.f32.gmra.mrb[0].mxu0 %v261
  %v1182 = vpop.f32.mrb[0].mxu0
  %v1183 = vadd.f32 %v798, %v1182
  %v1184 = vpop.f32.mrb[0].mxu0
  %1185 = vmatprep.mubr.f32.mxu0 0.0
  %1186 = vmatmul.mubr.f32.gmra.mrb[0].mxu0 %v262
  %v1187 = vpop.f32.mrb[0].mxu0
  %v1188 = vadd.f32 %v803, %v1187
  %v1189 = vpop.f32.mrb[0].mxu0
  %1190 = vmatprep.mubr.f32.mxu0 0.0
  %1191 = vmatmul.mubr.f32.gmra.mrb[0].mxu0 %v263
  %v1192 = vpop.f32.mrb[0].mxu0
  %v1193 = vadd.f32 %v808, %v1192
  %v1194 = vpop.f32.mrb[0].mxu0
  %1195 = vmatprep.mubr.f32.mxu0 0.0
  %1196 = vmatmul.mubr.f32.gmra.mrb[0].mxu0 %v264
  %v1197 = vpop.f32.mrb[0].mxu0
  %v1198 = vadd.f32 %v813, %v1197
  %v1199 = vpop.f32.mrb[0].mxu0
  %1200 = vmatprep.mubr.f32.mxu0 0.0
  %1201 = vmatmul.mubr.f32.gmra.mrb[0].mxu0 %v265
  %v1202 = vpop.f32.mrb[0].mxu0
  %v1203 = vadd.f32 %v818, %v1202
  %v1204 = vpop.f32.mrb[0].mxu0
  %1205 = vmatprep.mubr.f32.mxu0 0.0
  %1206 = vmatmul.mubr.f32.gmra.mrb[0].mxu0 %v266
  %v1207 = vpop.f32.mrb[0].mxu0
  %v1208 = vadd.f32 %v823, %v1207
  %v1209 = vpop.f32.mrb[0].mxu0
  %1210 = vmatprep.mubr.f32.mxu0 0.0
  %1211 = vmatmul.mubr.f32.gmra.mrb[0].mxu0 %v267
  %v1212 = vpop.f32.mrb[0].mxu0
  %v1213 = vadd.f32 %v828, %v1212
  %v1214 = vpop.f32.mrb[0].mxu0
  %1215 = vmatprep.mubr.f32.mxu0 0.0
  %1216 = vmatmul.mubr.f32.gmra.mrb[0].mxu0 %v268
  %v1217 = vpop.f32.mrb[0].mxu0
  %v1218 = vadd.f32 %v833, %v1217
  %v1219 = vpop.f32.mrb[0].mxu0
  %1220 = vmatprep.mubr.f32.mxu0 0.0
  %1221 = vmatmul.mubr.f32.gmra.mrb[0].mxu0 %v269
  %v1222 = vpop.f32.mrb[0].mxu0
  %v1223 = vadd.f32 %v838, %v1222
  %v1224 = vpop.f32.mrb[0].mxu0
  %1225 = vmatprep.mubr.f32.mxu0 0.0
  %1226 = vmatmul.mubr.f32.gmra.mrb[0].mxu0 %v270
  %v1227 = vpop.f32.mrb[0].mxu0
  %v1228 = vadd.f32 %v843, %v1227
  %v1229 = vpop.f32.mrb[0].mxu0
  %1230 = vmatprep.mubr.f32.mxu0 0.0
  %1231 = vmatmul.mubr.f32.gmra.mrb[0].mxu0 %v271
  %v1232 = vpop.f32.mrb[0].mxu0
  %v1233 = vadd.f32 %v848, %v1232
  %v1234 = vpop.f32.mrb[0].mxu0
  %1235 = vmatprep.mubr.f32.mxu0 0.0
  %1236 = vmatmul.mubr.f32.gmra.mrb[0].mxu0 %v272
  %v1237 = vpop.f32.mrb[0].mxu0
  %v1238 = vadd.f32 %v853, %v1237
  %v1239 = vpop.f32.mrb[0].mxu0
  %1240 = vmatprep.mubr.f32.mxu0 0.0
  %1241 = vmatmul.mubr.f32.gmra.mrb[0].mxu0 %v273
  %v1242 = vpop.f32.mrb[0].mxu0
  %v1243 = vadd.f32 %v858, %v1242
  %v1244 = vpop.f32.mrb[0].mxu0
  %1245 = vmatprep.mubr.f32.mxu0 0.0
  %1246 = vmatmul.mubr.f32.gmra.mrb[0].mxu0 %v274
  %v1247 = vpop.f32.mrb[0].mxu0
  %v1248 = vadd.f32 %v863, %v1247
  %v1249 = vpop.f32.mrb[0].mxu0
  %1250 = vmatprep.mubr.f32.mxu0 0.0
  %1251 = vmatmul.mubr.f32.gmra.mrb[0].mxu0 %v275
  %v1252 = vpop.f32.mrb[0].mxu0
  %v1253 = vadd.f32 %v868, %v1252
  %v1254 = vpop.f32.mrb[0].mxu0
  %1255 = vmatprep.mubr.f32.mxu0 0.0
  %1256 = vmatmul.mubr.f32.gmra.mrb[0].mxu0 %v276
  %v1257 = vpop.f32.mrb[0].mxu0
  %v1258 = vadd.f32 %v873, %v1257
  %v1259 = vpop.f32.mrb[0].mxu0
  %1260 = vmatprep.mubr.f32.mxu0 0.0
  %1261 = vmatmul.mubr.f32.gmra.mrb[0].mxu0 %v277
  %v1262 = vpop.f32.mrb[0].mxu0
  %v1263 = vadd.f32 %v878, %v1262
  %v1264 = vpop.f32.mrb[0].mxu0
  %1265 = vmatprep.mubr.f32.mxu0 0.0
  %1266 = vmatmul.mubr.f32.gmra.mrb[0].mxu0 %v278
  %v1267 = vpop.f32.mrb[0].mxu0
  %v1268 = vadd.f32 %v883, %v1267
  %v1269 = vpop.f32.mrb[0].mxu0
  %1270 = vmatprep.mubr.f32.mxu0 0.0
  %1271 = vmatmul.mubr.f32.gmra.mrb[0].mxu0 %v279
  %v1272 = vpop.f32.mrb[0].mxu0
  %v1273 = vadd.f32 %v888, %v1272
  %v1274 = vpop.f32.mrb[0].mxu0
  %1275 = vmatprep.mubr.f32.mxu0 0.0
  %1276 = vmatmul.mubr.f32.gmra.mrb[0].mxu0 %v280
  %v1277 = vpop.f32.mrb[0].mxu0
  %v1278 = vadd.f32 %v893, %v1277
  %v1279 = vpop.f32.mrb[0].mxu0
  %1280 = vmatprep.mubr.f32.mxu0 0.0
  %1281 = vmatmul.mubr.f32.gmra.mrb[0].mxu0 %v281
  %v1282 = vpop.f32.mrb[0].mxu0
  %v1283 = vadd.f32 %v898, %v1282
  %v1284 = vpop.f32.mrb[0].mxu0
  %1285 = vmatprep.mubr.f32.mxu0 0.0
  %1286 = vmatmul.mubr.f32.gmra.mrb[0].mxu0 %v282
  %v1287 = vpop.f32.mrb[0].mxu0
  %v1288 = vadd.f32 %v903, %v1287
  %v1289 = vpop.f32.mrb[0].mxu0
  %1290 = vmatprep.mubr.f32.mxu0 0.0
  %1291 = vmatmul.mubr.f32.gmra.mrb[0].mxu0 %v283
  %v1292 = vpop.f32.mrb[0].mxu0
  %v1293 = vadd.f32 %v908, %v1292
  %v1294 = vpop.f32.mrb[0].mxu0
  %1295 = vmatprep.mubr.f32.mxu0 0.0
  %1296 = vmatmul.mubr.f32.gmra.mrb[0].mxu0 %v284
  %v1297 = vpop.f32.mrb[0].mxu0
  %v1298 = vadd.f32 %v913, %v1297
  %v1299 = vpop.f32.mrb[0].mxu0
  %1300 = vmatprep.mubr.f32.mxu0 0.0
  %1301 = vmatmul.mubr.f32.gmra.mrb[0].mxu0 %v285
  %v1302 = vpop.f32.mrb[0].mxu0
  %v1303 = vadd.f32 %v918, %v1302
  %v1304 = vpop.f32.mrb[0].mxu0
  %1305 = vmatprep.mubr.f32.mxu0 0.0
  %1306 = vmatmul.mubr.f32.gmra.mrb[0].mxu0 %v286
  %v1307 = vpop.f32.mrb[0].mxu0
  %v1308 = vadd.f32 %v923, %v1307
  %v1309 = vpop.f32.mrb[0].mxu0
  %1310 = vmatprep.mubr.f32.mxu0 0.0
  %1311 = vmatmul.mubr.f32.gmra.mrb[0].mxu0 %v287
  %v1312 = vpop.f32.mrb[0].mxu0
  %v1313 = vadd.f32 %v928, %v1312
  %v1314 = vpop.f32.mrb[0].mxu0
  %1315 = vmatprep.mubr.f32.mxu0 0.0
  %1316 = vmatmul.mubr.f32.gmra.mrb[0].mxu0 %v288
  %v1317 = vpop.f32.mrb[0].mxu0
  %v1318 = vadd.f32 %v933, %v1317
  %v1319 = vpop.f32.mrb[0].mxu0
  %1320 = vmatprep.mubr.f32.mxu0 0.0
  %1321 = vmatmul.mubr.f32.gmra.mrb[0].mxu0 %v289
  %v1322 = vpop.f32.mrb[0].mxu0
  %v1323 = vadd.f32 %v938, %v1322
  %v1324 = vpop.f32.mrb[0].mxu0
  %1325 = vmatprep.mubr.f32.mxu0 0.0
  %1326 = vmatmul.mubr.f32.gmra.mrb[0].mxu0 %v290
  %v1327 = vpop.f32.mrb[0].mxu0
  %v1328 = vadd.f32 %v943, %v1327
  %v1329 = vpop.f32.mrb[0].mxu0
  %1330 = vmatprep.mubr.f32.mxu0 0.0
  %1331 = vmatmul.mubr.f32.gmra.mrb[0].mxu0 %v291
  %v1332 = vpop.f32.mrb[0].mxu0
  %v1333 = vadd.f32 %v948, %v1332
  %v1334 = vpop.f32.mrb[0].mxu0
  %1335 = vmatprep.mubr.f32.mxu0 0.0
  %1336 = vmatmul.mubr.f32.gmra.mrb[0].mxu0 %v292
  %v1337 = vpop.f32.mrb[0].mxu0
  %v1338 = vadd.f32 %v953, %v1337
  %v1339 = vpop.f32.mrb[0].mxu0
  %1340 = vmatprep.mubr.f32.mxu0 0.0
  %1341 = vmatmul.mubr.f32.gmra.mrb[0].mxu0 %v293
  %v1342 = vpop.f32.mrb[0].mxu0
  %v1343 = vadd.f32 %v958, %v1342
  %v1344 = vpop.f32.mrb[0].mxu0
  %1345 = vmatprep.mubr.f32.mxu0 0.0
  %1346 = vmatmul.mubr.f32.gmra.mrb[0].mxu0 %v294
  %v1347 = vpop.f32.mrb[0].mxu0
  %v1348 = vadd.f32 %v963, %v1347
  %v1349 = vpop.f32.mrb[0].mxu0
  %1350 = vmatprep.mubr.f32.mxu0 0.0
  %1351 = vmatmul.mubr.f32.gmra.mrb[0].mxu0 %v295
  %v1352 = vpop.f32.mrb[0].mxu0
  %v1353 = vadd.f32 %v968, %v1352
  %v1354 = vpop.f32.mrb[0].mxu0
  %1355 = vmatprep.mubr.f32.mxu0 0.0
  %1356 = vmatmul.mubr.f32.gmra.mrb[0].mxu0 %v296
  %v1357 = vpop.f32.mrb[0].mxu0
  %v1358 = vadd.f32 %v973, %v1357
  %v1359 = vpop.f32.mrb[0].mxu0
  %1360 = vmatprep.mubr.f32.mxu0 0.0
  %1361 = vmatmul.mubr.f32.gmra.mrb[0].mxu0 %v297
  %v1362 = vpop.f32.mrb[0].mxu0
  %v1363 = vadd.f32 %v978, %v1362
  %v1364 = vpop.f32.mrb[0].mxu0
  %1365 = vmatprep.mubr.f32.mxu0 0.0
  %1366 = vmatmul.mubr.f32.gmra.mrb[0].mxu0 %v298
  %v1367 = vpop.f32.mrb[0].mxu0
  %v1368 = vadd.f32 %v983, %v1367
  %v1369 = vpop.f32.mrb[0].mxu0
  %1370 = vdwg.mxu0
  %1371 = vst [vmem:[%s8] sm:$0xff] %v1053
  %1372 = vst [vmem:[%s8 + $0x8] sm:$0xff] %v1058
  %1373 = vst [vmem:[%s8 + $0x10] sm:$0xff] %v1063
  %1374 = vst [vmem:[%s8 + $0x18] sm:$0xff] %v1068
  %1375 = vst [vmem:[%s8 + $0x20] sm:$0xff] %v1073
  %1376 = vst [vmem:[%s8 + $0x28] sm:$0xff] %v1078
  %1377 = vst [vmem:[%s8 + $0x30] sm:$0xff] %v1083
  %1378 = vst [vmem:[%s8 + $0x38] sm:$0xff] %v1088
  %1379 = vst [vmem:[%s8 + $0x40] sm:$0xff] %v1093
  %1380 = vst [vmem:[%s8 + $0x48] sm:$0xff] %v1098
  %1381 = vst [vmem:[%s8 + $0x50] sm:$0xff] %v1103
  %1382 = vst [vmem:[%s8 + $0x58] sm:$0xff] %v1108
  %1383 = vst [vmem:[%s8 + $0x60] sm:$0xff] %v1113
  %1384 = vst [vmem:[%s8 + $0x68] sm:$0xff] %v1118
  %1385 = vst [vmem:[%s8 + $0x70] sm:$0xff] %v1123
  %1386 = vst [vmem:[%s8 + $0x78] sm:$0xff] %v1128
  %1387 = vst [vmem:[%s8 + $0x80] sm:$0xff] %v1133
  %1388 = vst [vmem:[%s8 + $0x88] sm:$0xff] %v1138
  %1389 = vst [vmem:[%s8 + $0x90] sm:$0xff] %v1143
  %1390 = vst [vmem:[%s8 + $0x98] sm:$0xff] %v1148
  %1391 = vst [vmem:[%s8 + $0xa0] sm:$0xff] %v1153
  %1392 = vst [vmem:[%s8 + $0xa8] sm:$0xff] %v1158
  %1393 = vst [vmem:[%s8 + $0xb0] sm:$0xff] %v1163
  %1394 = vst [vmem:[%s8 + $0xb8] sm:$0xff] %v1168
  %1395 = vst [vmem:[%s8 + $0xc0] sm:$0xff] %v1173
  %1396 = vst [vmem:[%s8 + $0xc8] sm:$0xff] %v1178
  %1397 = vst [vmem:[%s8 + $0xd0] sm:$0xff] %v1183
  %1398 = vst [vmem:[%s8 + $0xd8] sm:$0xff] %v1188
  %1399 = vst [vmem:[%s8 + $0xe0] sm:$0xff] %v1193
  %1400 = vst [vmem:[%s8 + $0xe8] sm:$0xff] %v1198
  %1401 = vst [vmem:[%s8 + $0xf0] sm:$0xff] %v1203
  %1402 = vst [vmem:[%s8 + $0xf8] sm:$0xff] %v1208
  %1403 = vst [vmem:[%s8 + $0x100] sm:$0xff] %v1213
  %1404 = vst [vmem:[%s8 + $0x108] sm:$0xff] %v1218
  %1405 = vst [vmem:[%s8 + $0x110] sm:$0xff] %v1223
  %1406 = vst [vmem:[%s8 + $0x118] sm:$0xff] %v1228
  %1407 = vst [vmem:[%s8 + $0x120] sm:$0xff] %v1233
  %1408 = vst [vmem:[%s8 + $0x128] sm:$0xff] %v1238
  %1409 = vst [vmem:[%s8 + $0x130] sm:$0xff] %v1243
  %1410 = vst [vmem:[%s8 + $0x138] sm:$0xff] %v1248
  %1411 = vst [vmem:[%s8 + $0x140] sm:$0xff] %v1253
  %1412 = vst [vmem:[%s8 + $0x148] sm:$0xff] %v1258
  %1413 = vst [vmem:[%s8 + $0x150] sm:$0xff] %v1263
  %1414 = vst [vmem:[%s8 + $0x158] sm:$0xff] %v1268
  %1415 = vst [vmem:[%s8 + $0x160] sm:$0xff] %v1273
  %1416 = vst [vmem:[%s8 + $0x168] sm:$0xff] %v1278
  %1417 = vst [vmem:[%s8 + $0x170] sm:$0xff] %v1283
  %1418 = vst [vmem:[%s8 + $0x178] sm:$0xff] %v1288
  %1419 = vst [vmem:[%s8 + $0x180] sm:$0xff] %v1293
  %1420 = vst [vmem:[%s8 + $0x188] sm:$0xff] %v1298
  %1421 = vst [vmem:[%s8 + $0x190] sm:$0xff] %v1303
  %1422 = vst [vmem:[%s8 + $0x198] sm:$0xff] %v1308
  %1423 = vst [vmem:[%s8 + $0x1a0] sm:$0xff] %v1313
  %1424 = vst [vmem:[%s8 + $0x1a8] sm:$0xff] %v1318
  %1425 = vst [vmem:[%s8 + $0x1b0] sm:$0xff] %v1323
  %1426 = vst [vmem:[%s8 + $0x1b8] sm:$0xff] %v1328
  %1427 = vst [vmem:[%s8 + $0x1c0] sm:$0xff] %v1333
  %1428 = vst [vmem:[%s8 + $0x1c8] sm:$0xff] %v1338
  %1429 = vst [vmem:[%s8 + $0x1d0] sm:$0xff] %v1343
  %1430 = vst [vmem:[%s8 + $0x1d8] sm:$0xff] %v1348
  %1431 = vst [vmem:[%s8 + $0x1e0] sm:$0xff] %v1353
  %1432 = vst [vmem:[%s8 + $0x1e8] sm:$0xff] %v1358
  %1433 = vst [vmem:[%s8 + $0x1f0] sm:$0xff] %v1363
  %1434 = vst [vmem:[%s8 + $0x1f8] sm:$0xff] %v1368
  // Predicated region
  $region34: #{preact_bottleneck.5} parent=0 // pred_check
    _
  $region35: #{preact_bottleneck.5} parent=0 // pred_check_branch
    %1436 = sbr.rel (0) target = $region37
  $region36: #{preact_bottleneck.5} parent=0 // pred_region
    _
  $region37: #{preact_bottleneck.5} parent=0 // pred_fallthru
    _
  // Predicated region
  $region38: #{preact_bottleneck.5} parent=0 // pred_check
    _
  $region39: #{preact_bottleneck.5} parent=0 // pred_check_branch
    %1438 = sbr.rel (0) target = $region41
  $region40: #{preact_bottleneck.5} parent=0 // pred_region
    _
  $region41: #{preact_bottleneck.5} parent=0 // pred_fallthru
    _

// kernel: preact_bottleneck.4
$region0: #{preact_bottleneck.4}
  #allocation0 [shape = 'u32[]', space=smem, size = 0x4, offset = 0x4, fixed_abs, tag = 'smem constant byte address 0x4 - core index']
  #allocation1 [shape = 'u32[144,128]{1,0:T(1,128)}', space=vmem, size = 0x12000, scoped, tag = 'internal scratch']
  #allocation2 [shape = 'f32[18,18,128]{2,1,0:T(8,128)}', space=vmem, size = 0x36000, scoped, tag = 'scratch operand']
  %s0 = inlined_call_operand.vmem [shape: f32[2,16,16,128], index: 0, kind: input, shape index: {}]
  %s1 = inlined_call_operand.vmem [shape: f32[1,128], index: 1, kind: input, shape index: {}]
  %s2 = inlined_call_operand.vmem [shape: f32[1,128], index: 2, kind: input, shape index: {}]
  %s3 = inlined_call_operand.vmem [shape: f32[9,128,128], index: 3, kind: input, shape index: {}]
  %s4 = inlined_call_operand.vmem [shape: f32[2,16,16,128], index: 4, kind: output, shape index: {0}]
  %s5 = inlined_call_operand.vmem [shape: f32[2,2,128], index: 5, kind: output, shape index: {1}]
  %6 = xla_tuple %s4, %s5
  %s7 = sld [smem:[#allocation0]]
  $region57: #{preact_bottleneck.4} parent=0
    _
  %s9 = ssub.s32 1, %s7
  %s10 = scalar_select 0, %s9, %s7
  loop: start=0, step=1, limit=4
  $region2: #{preact_bottleneck.4} parent=0 // loop_pre_header
    _
  $region3: #{preact_bottleneck.4} parent=0 // loop_header
    %s12 = sphi 0, %s16
    %p13 = scmp.ge.s32.totalorder %s12, 4
    %s22 = sphi 0, %s24
    %s25 = sphi 0, %s22
    %s26 = sphi 0, %s25
    %s42 = sphi 0, %s26
    %s46 = sphi 0, %s46
    %s48 = sphi 0, %s46
    %s49 = sphi 0, %s48
    %s63 = sphi 0, %s49
    %s67 = sphi 0, %s67
    %s69 = sphi 0, %s67
    %s70 = sphi 0, %s69
    %s84 = sphi 0, %s70
    %s88 = sphi 0, %s88
    %s90 = sphi 0, %s88
    %s91 = sphi 0, %s90
    %s105 = sphi 0, %s91
    %s111 = sphi 0, %s113
    %s114 = sphi 0, %s111
    %s115 = sphi 0, %s114
    %s131 = sphi 0, %s115
    %s137 = sphi 0, %s139
    %s140 = sphi 0, %s137
    %s141 = sphi 0, %s140
    %s157 = sphi 0, %s141
  $region4: #{preact_bottleneck.4} parent=0 // loop_header_branch
    %15 = sbr.rel (%p13) target = $region8
  $region5: #{preact_bottleneck.4} parent=0 // loop_body
    %s17 = ssub.s32 %s12, 1
    %s18 = ssub.s32 %s12, 2
    %s19 = sadd.s32 %s12, 1
    %s20 = ssub.s32 %s12, %s19
    %p21 = scmp.eq.s32.totalorder %s20, 0
    %s23 = sadd.s32 %s22, 1
    %s24 = scalar_select %p21, %s22, %s23
    %p27 = pneg %p21
    %p28 = scmp.eq.s32.totalorder %s12, 1
    %p29 = por %p27, %p28
    %p30 = scmp.ne.s32.totalorder %s22, %s25
    %p31 = scmp.eq.s32.totalorder %s12, 0
    %p32 = por %p30, %p31
    %p33 = scmp.ne.s32.totalorder %s22, %s25
    %p34 = scmp.eq.s32.totalorder %s17, 1
    %p35 = por %p33, %p34
    %p36 = scmp.ne.s32.totalorder %s25, %s26
    %p37 = scmp.eq.s32.totalorder %s17, 0
    %p38 = por %p36, %p37
    %p39 = scmp.ne.s32.totalorder %s25, %s26
    %p40 = scmp.eq.s32.totalorder %s18, 1
    %p41 = por %p39, %p40
    %p43 = scmp.ne.s32.totalorder %s26, %s42
    %p44 = scmp.eq.s32.totalorder %s18, 0
    %p45 = por %p43, %p44
    %s47 = sadd.s32 %s46, 1
    %p50 = scmp.eq.s32.totalorder %s12, 1
    %p51 = scmp.ne.s32.totalorder %s46, %s48
    %p52 = scmp.eq.s32.totalorder %s12, 0
    %p53 = por %p51, %p52
    %p54 = scmp.ne.s32.totalorder %s46, %s48
    %p55 = scmp.eq.s32.totalorder %s17, 1
    %p56 = por %p54, %p55
    %p57 = scmp.ne.s32.totalorder %s48, %s49
    %p58 = scmp.eq.s32.totalorder %s17, 0
    %p59 = por %p57, %p58
    %p60 = scmp.ne.s32.totalorder %s48, %s49
    %p61 = scmp.eq.s32.totalorder %s18, 1
    %p62 = por %p60, %p61
    %p64 = scmp.ne.s32.totalorder %s49, %s63
    %p65 = scmp.eq.s32.totalorder %s18, 0
    %p66 = por %p64, %p65
    %s68 = sadd.s32 %s67, 1
    %p71 = scmp.eq.s32.totalorder %s12, 1
    %p72 = scmp.ne.s32.totalorder %s67, %s69
    %p73 = scmp.eq.s32.totalorder %s12, 0
    %p74 = por %p72, %p73
    %p75 = scmp.ne.s32.totalorder %s67, %s69
    %p76 = scmp.eq.s32.totalorder %s17, 1
    %p77 = por %p75, %p76
    %p78 = scmp.ne.s32.totalorder %s69, %s70
    %p79 = scmp.eq.s32.totalorder %s17, 0
    %p80 = por %p78, %p79
    %p81 = scmp.ne.s32.totalorder %s69, %s70
    %p82 = scmp.eq.s32.totalorder %s18, 1
    %p83 = por %p81, %p82
    %p85 = scmp.ne.s32.totalorder %s70, %s84
    %p86 = scmp.eq.s32.totalorder %s18, 0
    %p87 = por %p85, %p86
    %s89 = sadd.s32 %s88, 1
    %p92 = scmp.eq.s32.totalorder %s12, 1
    %p93 = scmp.ne.s32.totalorder %s88, %s90
    %p94 = scmp.eq.s32.totalorder %s12, 0
    %p95 = por %p93, %p94
    %p96 = scmp.ne.s32.totalorder %s88, %s90
    %p97 = scmp.eq.s32.totalorder %s17, 1
    %p98 = por %p96, %p97
    %p99 = scmp.ne.s32.totalorder %s90, %s91
    %p100 = scmp.eq.s32.totalorder %s17, 0
    %p101 = por %p99, %p100
    %p102 = scmp.ne.s32.totalorder %s90, %s91
    %p103 = scmp.eq.s32.totalorder %s18, 1
    %p104 = por %p102, %p103
    %p106 = scmp.ne.s32.totalorder %s91, %s105
    %p107 = scmp.eq.s32.totalorder %s18, 0
    %p108 = por %p106, %p107
    %s109 = ssub.s32 %s12, %s19
    %p110 = scmp.eq.s32.totalorder %s109, 0
    %s112 = sadd.s32 %s111, 1
    %s113 = scalar_select %p110, %s111, %s112
    %p116 = pneg %p110
    %p117 = scmp.eq.s32.totalorder %s12, 1
    %p118 = por %p116, %p117
    %p119 = scmp.ne.s32.totalorder %s111, %s114
    %p120 = scmp.eq.s32.totalorder %s12, 0
    %p121 = por %p119, %p120
    %p122 = scmp.ne.s32.totalorder %s111, %s114
    %p123 = scmp.eq.s32.totalorder %s17, 1
    %p124 = por %p122, %p123
    %p125 = scmp.ne.s32.totalorder %s114, %s115
    %p126 = scmp.eq.s32.totalorder %s17, 0
    %p127 = por %p125, %p126
    %p128 = scmp.ne.s32.totalorder %s114, %s115
    %p129 = scmp.eq.s32.totalorder %s18, 1
    %p130 = por %p128, %p129
    %p132 = scmp.ne.s32.totalorder %s115, %s131
    %p133 = scmp.eq.s32.totalorder %s18, 0
    %p134 = por %p132, %p133
    %s135 = ssub.s32 %s12, %s19
    %p136 = scmp.eq.s32.totalorder %s135, 0
    %s138 = sadd.s32 %s137, 1
    %s139 = scalar_select %p136, %s137, %s138
    %p142 = pneg %p136
    %p143 = scmp.eq.s32.totalorder %s12, 1
    %p144 = por %p142, %p143
    %p145 = scmp.ne.s32.totalorder %s137, %s140
    %p146 = scmp.eq.s32.totalorder %s12, 0
    %p147 = por %p145, %p146
    %p148 = scmp.ne.s32.totalorder %s137, %s140
    %p149 = scmp.eq.s32.totalorder %s17, 1
    %p150 = por %p148, %p149
    %p151 = scmp.ne.s32.totalorder %s140, %s141
    %p152 = scmp.eq.s32.totalorder %s17, 0
    %p153 = por %p151, %p152
    %p154 = scmp.ne.s32.totalorder %s140, %s141
    %p155 = scmp.eq.s32.totalorder %s18, 1
    %p156 = por %p154, %p155
    %p158 = scmp.ne.s32.totalorder %s141, %s157
    %p159 = scmp.eq.s32.totalorder %s18, 0
    %p160 = por %p158, %p159
    %p161 = scmp.le.s32.totalorder 1, %s12
    %p162 = scmp.lt.s32.totalorder %s12, 3
    %p163 = pnand %p161, %p162
    %p164 = pneg %p163
    // Predicated region
    $region9: #{preact_bottleneck.4} parent=5 // pred_check
      _
    $region10: #{preact_bottleneck.4} parent=5 // pred_check_branch
      %166 = sbr.rel (%p163) target = $region12
    $region11: #{preact_bottleneck.4} parent=5 // pred_region
      %s167 = ssub.s32 %s12, 1
      // Predicated region
      $region13: #{preact_bottleneck.4} parent=11 // pred_check
        %p168 = pneg %p59
      $region14: #{preact_bottleneck.4} parent=11 // pred_check_branch
        %170 = sbr.rel (%p168) target = $region16
      $region15: #{preact_bottleneck.4} parent=11 // pred_region
        _
      $region16: #{preact_bottleneck.4} parent=11 // pred_fallthru
        _
      // Predicated region
      $region17: #{preact_bottleneck.4} parent=11 // pred_check
        %p171 = pneg %p80
      $region18: #{preact_bottleneck.4} parent=11 // pred_check_branch
        %173 = sbr.rel (%p171) target = $region20
      $region19: #{preact_bottleneck.4} parent=11 // pred_region
        _
      $region20: #{preact_bottleneck.4} parent=11 // pred_fallthru
        _
      // Predicated region
      $region21: #{preact_bottleneck.4} parent=11 // pred_check
        %p174 = pneg %p101
      $region22: #{preact_bottleneck.4} parent=11 // pred_check_branch
        %176 = sbr.rel (%p174) target = $region24
      $region23: #{preact_bottleneck.4} parent=11 // pred_region
        _
      $region24: #{preact_bottleneck.4} parent=11 // pred_fallthru
        _
    $region12: #{preact_bottleneck.4} parent=5 // pred_fallthru
      _
    %p177 = scmp.lt.s32.totalorder %s12, 2
    // Predicated region
    $region25: #{preact_bottleneck.4} parent=5 // pred_check
      %p178 = pneg %p177
    $region26: #{preact_bottleneck.4} parent=5 // pred_check_branch
      %180 = sbr.rel (%p178) target = $region28
    $region27: #{preact_bottleneck.4} parent=5 // pred_region
      // Predicated region
      $region29: #{preact_bottleneck.4} parent=27 // pred_check
        %p181 = pneg %p32
      $region30: #{preact_bottleneck.4} parent=27 // pred_check_branch
        %183 = sbr.rel (%p181) target = $region32
      $region31: #{preact_bottleneck.4} parent=27 // pred_region
        %p184 = scmp.lt.s32.totalorder %s12, 1
        %s185 = scalar_select %p184, %s12, 1
        %s186 = smul.addr %s185, 32
        %s187 = smul.addr %s186, 8
        %s188 = scalar_lea.vmem %s0, %s187
      $region32: #{preact_bottleneck.4} parent=27 // pred_fallthru
        _
    $region28: #{preact_bottleneck.4} parent=5 // pred_fallthru
      _
    %p189 = scmp.le.s32.totalorder 1, %s12
    %p190 = scmp.lt.s32.totalorder %s12, 3
    %p191 = pnand %p189, %p190
    %p192 = pneg %p191
    // Predicated region
    $region33: #{preact_bottleneck.4} parent=5 // pred_check
      _
    $region34: #{preact_bottleneck.4} parent=5 // pred_check_branch
      %194 = sbr.rel (%p191) target = $region36
    $region35: #{preact_bottleneck.4} parent=5 // pred_region
      %s195 = ssub.s32 %s12, 1
      %p196 = scmp.lt.s32.totalorder %s17, 1
      %s197 = scalar_select %p196, %s17, 1
      %s198 = smul.addr %s197, 32
      %s199 = smul.addr %s198, 8
      %s200 = scalar_lea.vmem %s0, %s199
      %p201 = pneg %p38
      %p202 = pneg %p35
      %p203 = pneg %p59
      %p204 = pneg %p56
      %p205 = pneg %p80
      %p206 = pneg %p77
      %p207 = pneg %p101
      %p208 = pneg %p98
      %p209 = pneg %p127
      %p210 = pneg %p124
      %p211 = scmp.lt.s32.totalorder %s17, 1
      %s212 = scalar_select %p211, %s17, 1
      %s213 = smul.addr %s212, 32
      %s214 = smul.addr %s213, 8
      %s215 = scalar_lea.vmem %s4, %s214
      %p216 = pneg %p153
      %p217 = pneg %p150
      %p218 = scmp.lt.s32.totalorder %s17, 1
      %s219 = scalar_select %p218, %s17, 1
      %s220 = smul.addr %s219, 2
      %s221 = scalar_lea.vmem %s5, %s220
      %p222 = scmp.lt.s32.totalorder %s17, 1
      %s223 = scalar_select %p222, %s17, 1
      %s224 = smul.addr %s223, 32
      %s225 = smul.addr %s224, 8
      %s226 = scalar_lea.vmem %s0, %s225
      %p227 = scmp.lt.s32.totalorder %s17, 1
      %s228 = scalar_select %p227, %s17, 1
      %s229 = smul.addr %s228, 32
      %s230 = smul.addr %s229, 8
      %s231 = scalar_lea.vmem %s4, %s230
      %p232 = scmp.lt.s32.totalorder %s17, 1
      %s233 = scalar_select %p232, %s17, 1
      %s234 = smul.addr %s233, 2
      %s235 = scalar_lea.vmem %s5, %s234
      %236 = vst [vmem:[#allocation2] sm:$0xff] 0.0
      %237 = vst [vmem:[#allocation2 + $0x8] sm:$0xff] 0.0
      %238 = vst [vmem:[#allocation2 + $0x10] sm:$0x3] 0.0
      %s239 = scalar_lea.vmem [#allocation2], 408
      %240 = vst [vmem:[%s239] sm:$0xff] 0.0
      %241 = vst [vmem:[%s239 + $0x8] sm:$0xff] 0.0
      %242 = vst [vmem:[%s239 + $0x10] sm:$0x3] 0.0
      %s243 = scalar_lea.vmem [#allocation2], 24
      %244 = vst [vmem:[%s243] sm:$0x1] 0.0
      %245 = vst [vmem:[%s243 + $0x18] sm:$0x1] 0.0
      %246 = vst [vmem:[%s243 + $0x30] sm:$0x1] 0.0
      %247 = vst [vmem:[%s243 + $0x48] sm:$0x1] 0.0
      %248 = vst [vmem:[%s243 + $0x60] sm:$0x1] 0.0
      %249 = vst [vmem:[%s243 + $0x78] sm:$0x1] 0.0
      %250 = vst [vmem:[%s243 + $0x90] sm:$0x1] 0.0
      %251 = vst [vmem:[%s243 + $0xa8] sm:$0x1] 0.0
      %252 = vst [vmem:[%s243 + $0xc0] sm:$0x1] 0.0
      %253 = vst [vmem:[%s243 + $0xd8] sm:$0x1] 0.0
      %254 = vst [vmem:[%s243 + $0xf0] sm:$0x1] 0.0
      %255 = vst [vmem:[%s243 + $0x108] sm:$0x1] 0.0
      %256 = vst [vmem:[%s243 + $0x120] sm:$0x1] 0.0
      %257 = vst [vmem:[%s243 + $0x138] sm:$0x1] 0.0
      %258 = vst [vmem:[%s243 + $0x150] sm:$0x1] 0.0
      %259 = vst [vmem:[%s243 + $0x168] sm:$0x1] 0.0
      %260 = vst [vmem:[%s243 + $0x11] sm:$0x1] 0.0
      %261 = vst [vmem:[%s243 + $0x29] sm:$0x1] 0.0
      %262 = vst [vmem:[%s243 + $0x41] sm:$0x1] 0.0
      %263 = vst [vmem:[%s243 + $0x59] sm:$0x1] 0.0
      %264 = vst [vmem:[%s243 + $0x71] sm:$0x1] 0.0
      %265 = vst [vmem:[%s243 + $0x89] sm:$0x1] 0.0
      %266 = vst [vmem:[%s243 + $0xa1] sm:$0x1] 0.0
      %267 = vst [vmem:[%s243 + $0xb9] sm:$0x1] 0.0
      %268 = vst [vmem:[%s243 + $0xd1] sm:$0x1] 0.0
      %269 = vst [vmem:[%s243 + $0xe9] sm:$0x1] 0.0
      %270 = vst [vmem:[%s243 + $0x101] sm:$0x1] 0.0
      %271 = vst [vmem:[%s243 + $0x119] sm:$0x1] 0.0
      %272 = vst [vmem:[%s243 + $0x131] sm:$0x1] 0.0
      %273 = vst [vmem:[%s243 + $0x149] sm:$0x1] 0.0
      %274 = vst [vmem:[%s243 + $0x161] sm:$0x1] 0.0
      %275 = vst [vmem:[%s243 + $0x179] sm:$0x1] 0.0
      %v276 = vld [vmem:[%s226] sm:$0xff]
      %v277 = vld [vmem:[%s226 + $0x8] sm:$0xff]
      %v278 = vld [vmem:[%s226 + $0x10] sm:$0xff]
      %v279 = vld [vmem:[%s226 + $0x18] sm:$0xff]
      %v280 = vld [vmem:[%s226 + $0x20] sm:$0xff]
      %v281 = vld [vmem:[%s226 + $0x28] sm:$0xff]
      %v282 = vld [vmem:[%s226 + $0x30] sm:$0xff]
      %v283 = vld [vmem:[%s226 + $0x38] sm:$0xff]
      %v284 = vld [vmem:[%s226 + $0x40] sm:$0xff]
      %v285 = vld [vmem:[%s226 + $0x48] sm:$0xff]
      %v286 = vld [vmem:[%s226 + $0x50] sm:$0xff]
      %v287 = vld [vmem:[%s226 + $0x58] sm:$0xff]
      %v288 = vld [vmem:[%s226 + $0x60] sm:$0xff]
      %v289 = vld [vmem:[%s226 + $0x68] sm:$0xff]
      %v290 = vld [vmem:[%s226 + $0x70] sm:$0xff]
      %v291 = vld [vmem:[%s226 + $0x78] sm:$0xff]
      %v292 = vld [vmem:[%s226 + $0x80] sm:$0xff]
      %v293 = vld [vmem:[%s226 + $0x88] sm:$0xff]
      %v294 = vld [vmem:[%s226 + $0x90] sm:$0xff]
      %v295 = vld [vmem:[%s226 + $0x98] sm:$0xff]
      %v296 = vld [vmem:[%s226 + $0xa0] sm:$0xff]
      %v297 = vld [vmem:[%s226 + $0xa8] sm:$0xff]
      %v298 = vld [vmem:[%s226 + $0xb0] sm:$0xff]
      %v299 = vld [vmem:[%s226 + $0xb8] sm:$0xff]
      %v300 = vld [vmem:[%s226 + $0xc0] sm:$0xff]
      %v301 = vld [vmem:[%s226 + $0xc8] sm:$0xff]
      %v302 = vld [vmem:[%s226 + $0xd0] sm:$0xff]
      %v303 = vld [vmem:[%s226 + $0xd8] sm:$0xff]
      %v304 = vld [vmem:[%s226 + $0xe0] sm:$0xff]
      %v305 = vld [vmem:[%s226 + $0xe8] sm:$0xff]
      %v306 = vld [vmem:[%s226 + $0xf0] sm:$0xff]
      %v307 = vld [vmem:[%s226 + $0xf8] sm:$0xff]
      %v308 = vld [vmem:[%s1] sm:$0x1]
      %v310 = vlaneseq
      %v311 = vshrl.u32 %v310, 7
      %v312 = vsub.s32 0, %v311
      %v313 = vrot.slane %v308, %v312
      %v315 = vmul.f32 %v276, %v313
      %v316 = vmul.f32 %v277, %v313
      %v317 = vmul.f32 %v278, %v313
      %v318 = vmul.f32 %v279, %v313
      %v319 = vmul.f32 %v280, %v313
      %v320 = vmul.f32 %v281, %v313
      %v321 = vmul.f32 %v282, %v313
      %v322 = vmul.f32 %v283, %v313
      %v323 = vmul.f32 %v284, %v313
      %v324 = vmul.f32 %v285, %v313
      %v325 = vmul.f32 %v286, %v313
      %v326 = vmul.f32 %v287, %v313
      %v327 = vmul.f32 %v288, %v313
      %v328 = vmul.f32 %v289, %v313
      %v329 = vmul.f32 %v290, %v313
      %v330 = vmul.f32 %v291, %v313
      %v331 = vmul.f32 %v292, %v313
      %v332 = vmul.f32 %v293, %v313
      %v333 = vmul.f32 %v294, %v313
      %v334 = vmul.f32 %v295, %v313
      %v335 = vmul.f32 %v296, %v313
      %v336 = vmul.f32 %v297, %v313
      %v337 = vmul.f32 %v298, %v313
      %v338 = vmul.f32 %v299, %v313
      %v339 = vmul.f32 %v300, %v313
      %v340 = vmul.f32 %v301, %v313
      %v341 = vmul.f32 %v302, %v313
      %v342 = vmul.f32 %v303, %v313
      %v343 = vmul.f32 %v304, %v313
      %v344 = vmul.f32 %v305, %v313
      %v345 = vmul.f32 %v306, %v313
      %v346 = vmul.f32 %v307, %v313
      %v347 = vld [vmem:[%s2] sm:$0x1]
      %v349 = vlaneseq
      %v350 = vshrl.u32 %v349, 7
      %v351 = vsub.s32 0, %v350
      %v352 = vrot.slane %v347, %v351
      %v354 = vadd.f32 %v315, %v352
      %v355 = vadd.f32 %v316, %v352
      %v356 = vadd.f32 %v317, %v352
      %v357 = vadd.f32 %v318, %v352
      %v358 = vadd.f32 %v319, %v352
      %v359 = vadd.f32 %v320, %v352
      %v360 = vadd.f32 %v321, %v352
      %v361 = vadd.f32 %v322, %v352
      %v362 = vadd.f32 %v323, %v352
      %v363 = vadd.f32 %v324, %v352
      %v364 = vadd.f32 %v325, %v352
      %v365 = vadd.f32 %v326, %v352
      %v366 = vadd.f32 %v327, %v352
      %v367 = vadd.f32 %v328, %v352
      %v368 = vadd.f32 %v329, %v352
      %v369 = vadd.f32 %v330, %v352
      %v370 = vadd.f32 %v331, %v352
      %v371 = vadd.f32 %v332, %v352
      %v372 = vadd.f32 %v333, %v352
      %v373 = vadd.f32 %v334, %v352
      %v374 = vadd.f32 %v335, %v352
      %v375 = vadd.f32 %v336, %v352
      %v376 = vadd.f32 %v337, %v352
      %v377 = vadd.f32 %v338, %v352
      %v378 = vadd.f32 %v339, %v352
      %v379 = vadd.f32 %v340, %v352
      %v380 = vadd.f32 %v341, %v352
      %v381 = vadd.f32 %v342, %v352
      %v382 = vadd.f32 %v343, %v352
      %v383 = vadd.f32 %v344, %v352
      %v384 = vadd.f32 %v345, %v352
      %v385 = vadd.f32 %v346, %v352
      %v386 = vmax.f32 %v354, 0.0
      %v387 = vmax.f32 %v355, 0.0
      %v388 = vmax.f32 %v356, 0.0
      %v389 = vmax.f32 %v357, 0.0
      %v390 = vmax.f32 %v358, 0.0
      %v391 = vmax.f32 %v359, 0.0
      %v392 = vmax.f32 %v360, 0.0
      %v393 = vmax.f32 %v361, 0.0
      %v394 = vmax.f32 %v362, 0.0
      %v395 = vmax.f32 %v363, 0.0
      %v396 = vmax.f32 %v364, 0.0
      %v397 = vmax.f32 %v365, 0.0
      %v398 = vmax.f32 %v366, 0.0
      %v399 = vmax.f32 %v367, 0.0
      %v400 = vmax.f32 %v368, 0.0
      %v401 = vmax.f32 %v369, 0.0
      %v402 = vmax.f32 %v370, 0.0
      %v403 = vmax.f32 %v371, 0.0
      %v404 = vmax.f32 %v372, 0.0
      %v405 = vmax.f32 %v373, 0.0
      %v406 = vmax.f32 %v374, 0.0
      %v407 = vmax.f32 %v375, 0.0
      %v408 = vmax.f32 %v376, 0.0
      %v409 = vmax.f32 %v377, 0.0
      %v410 = vmax.f32 %v378, 0.0
      %v411 = vmax.f32 %v379, 0.0
      %v412 = vmax.f32 %v380, 0.0
      %v413 = vmax.f32 %v381, 0.0
      %v414 = vmax.f32 %v382, 0.0
      %v415 = vmax.f32 %v383, 0.0
      %v416 = vmax.f32 %v384, 0.0
      %v417 = vmax.f32 %v385, 0.0
      %418 = vst [vmem:[%s243 + $0x1] sm:$0xff] %v386
      %419 = vst [vmem:[%s243 + $0x9] sm:$0xff] %v387
      %420 = vst [vmem:[%s243 + $0x19] sm:$0xff] %v388
      %421 = vst [vmem:[%s243 + $0x21] sm:$0xff] %v389
      %422 = vst [vmem:[%s243 + $0x31] sm:$0xff] %v390
      %423 = vst [vmem:[%s243 + $0x39] sm:$0xff] %v391
      %424 = vst [vmem:[%s243 + $0x49] sm:$0xff] %v392
      %425 = vst [vmem:[%s243 + $0x51] sm:$0xff] %v393
      %426 = vst [vmem:[%s243 + $0x61] sm:$0xff] %v394
      %427 = vst [vmem:[%s243 + $0x69] sm:$0xff] %v395
      %428 = vst [vmem:[%s243 + $0x79] sm:$0xff] %v396
      %429 = vst [vmem:[%s243 + $0x81] sm:$0xff] %v397
      %430 = vst [vmem:[%s243 + $0x91] sm:$0xff] %v398
      %431 = vst [vmem:[%s243 + $0x99] sm:$0xff] %v399
      %432 = vst [vmem:[%s243 + $0xa9] sm:$0xff] %v400
      %433 = vst [vmem:[%s243 + $0xb1] sm:$0xff] %v401
      %434 = vst [vmem:[%s243 + $0xc1] sm:$0xff] %v402
      %435 = vst [vmem:[%s243 + $0xc9] sm:$0xff] %v403
      %436 = vst [vmem:[%s243 + $0xd9] sm:$0xff] %v404
      %437 = vst [vmem:[%s243 + $0xe1] sm:$0xff] %v405
      %438 = vst [vmem:[%s243 + $0xf1] sm:$0xff] %v406
      %439 = vst [vmem:[%s243 + $0xf9] sm:$0xff] %v407
      %440 = vst [vmem:[%s243 + $0x109] sm:$0xff] %v408
      %441 = vst [vmem:[%s243 + $0x111] sm:$0xff] %v409
      %442 = vst [vmem:[%s243 + $0x121] sm:$0xff] %v410
      %443 = vst [vmem:[%s243 + $0x129] sm:$0xff] %v411
      %444 = vst [vmem:[%s243 + $0x139] sm:$0xff] %v412
      %445 = vst [vmem:[%s243 + $0x141] sm:$0xff] %v413
      %446 = vst [vmem:[%s243 + $0x151] sm:$0xff] %v414
      %447 = vst [vmem:[%s243 + $0x159] sm:$0xff] %v415
      %448 = vst [vmem:[%s243 + $0x169] sm:$0xff] %v416
      %449 = vst [vmem:[%s243 + $0x171] sm:$0xff] %v417
      %v450 = vld [vmem:[#allocation2] sm:$0xff]
      %v451 = vld [vmem:[#allocation2 + $0x8] sm:$0xff]
      %v452 = vld [vmem:[#allocation2 + $0x18] sm:$0xff]
      %v453 = vld [vmem:[#allocation2 + $0x20] sm:$0xff]
      %v454 = vld [vmem:[#allocation2 + $0x30] sm:$0xff]
      %v455 = vld [vmem:[#allocation2 + $0x38] sm:$0xff]
      %v456 = vld [vmem:[#allocation2 + $0x48] sm:$0xff]
      %v457 = vld [vmem:[#allocation2 + $0x50] sm:$0xff]
      %v458 = vld [vmem:[#allocation2 + $0x60] sm:$0xff]
      %v459 = vld [vmem:[#allocation2 + $0x68] sm:$0xff]
      %v460 = vld [vmem:[#allocation2 + $0x78] sm:$0xff]
      %v461 = vld [vmem:[#allocation2 + $0x80] sm:$0xff]
      %v462 = vld [vmem:[#allocation2 + $0x90] sm:$0xff]
      %v463 = vld [vmem:[#allocation2 + $0x98] sm:$0xff]
      %v464 = vld [vmem:[#allocation2 + $0xa8] sm:$0xff]
      %v465 = vld [vmem:[#allocation2 + $0xb0] sm:$0xff]
      %v466 = vld [vmem:[#allocation2 + $0xc0] sm:$0xff]
      %v467 = vld [vmem:[#allocation2 + $0xc8] sm:$0xff]
      %v468 = vld [vmem:[#allocation2 + $0xd8] sm:$0xff]
      %v469 = vld [vmem:[#allocation2 + $0xe0] sm:$0xff]
      %v470 = vld [vmem:[#allocation2 + $0xf0] sm:$0xff]
      %v471 = vld [vmem:[#allocation2 + $0xf8] sm:$0xff]
      %v472 = vld [vmem:[#allocation2 + $0x108] sm:$0xff]
      %v473 = vld [vmem:[#allocation2 + $0x110] sm:$0xff]
      %v474 = vld [vmem:[#allocation2 + $0x120] sm:$0xff]
      %v475 = vld [vmem:[#allocation2 + $0x128] sm:$0xff]
      %v476 = vld [vmem:[#allocation2 + $0x138] sm:$0xff]
      %v477 = vld [vmem:[#allocation2 + $0x140] sm:$0xff]
      %v478 = vld [vmem:[#allocation2 + $0x150] sm:$0xff]
      %v479 = vld [vmem:[#allocation2 + $0x158] sm:$0xff]
      %v480 = vld [vmem:[#allocation2 + $0x168] sm:$0xff]
      %v481 = vld [vmem:[#allocation2 + $0x170] sm:$0xff]
      %v482 = vld [vmem:[%s3] sm:$0xff]
      %v483 = vld [vmem:[%s3 + $0x8] sm:$0xff]
      %v484 = vld [vmem:[%s3 + $0x10] sm:$0xff]
      %v485 = vld [vmem:[%s3 + $0x18] sm:$0xff]
      %v486 = vld [vmem:[%s3 + $0x20] sm:$0xff]
      %v487 = vld [vmem:[%s3 + $0x28] sm:$0xff]
      %v488 = vld [vmem:[%s3 + $0x30] sm:$0xff]
      %v489 = vld [vmem:[%s3 + $0x38] sm:$0xff]
      %v490 = vld [vmem:[%s3 + $0x40] sm:$0xff]
      %v491 = vld [vmem:[%s3 + $0x48] sm:$0xff]
      %v492 = vld [vmem:[%s3 + $0x50] sm:$0xff]
      %v493 = vld [vmem:[%s3 + $0x58] sm:$0xff]
      %v494 = vld [vmem:[%s3 + $0x60] sm:$0xff]
      %v495 = vld [vmem:[%s3 + $0x68] sm:$0xff]
      %v496 = vld [vmem:[%s3 + $0x70] sm:$0xff]
      %v497 = vld [vmem:[%s3 + $0x78] sm:$0xff]
      %v498 = vld [vmem:[#allocation2 + $0x1] sm:$0xff]
      %v499 = vld [vmem:[#allocation2 + $0x9] sm:$0xff]
      %v500 = vld [vmem:[#allocation2 + $0x19] sm:$0xff]
      %v501 = vld [vmem:[#allocation2 + $0x21] sm:$0xff]
      %v502 = vld [vmem:[#allocation2 + $0x31] sm:$0xff]
      %v503 = vld [vmem:[#allocation2 + $0x39] sm:$0xff]
      %v504 = vld [vmem:[#allocation2 + $0x49] sm:$0xff]
      %v505 = vld [vmem:[#allocation2 + $0x51] sm:$0xff]
      %v506 = vld [vmem:[#allocation2 + $0x61] sm:$0xff]
      %v507 = vld [vmem:[#allocation2 + $0x69] sm:$0xff]
      %v508 = vld [vmem:[#allocation2 + $0x79] sm:$0xff]
      %v509 = vld [vmem:[#allocation2 + $0x81] sm:$0xff]
      %v510 = vld [vmem:[#allocation2 + $0x91] sm:$0xff]
      %v511 = vld [vmem:[#allocation2 + $0x99] sm:$0xff]
      %v512 = vld [vmem:[#allocation2 + $0xa9] sm:$0xff]
      %v513 = vld [vmem:[#allocation2 + $0xb1] sm:$0xff]
      %v514 = vld [vmem:[#allocation2 + $0xc1] sm:$0xff]
      %v515 = vld [vmem:[#allocation2 + $0xc9] sm:$0xff]
      %v516 = vld [vmem:[#allocation2 + $0xd9] sm:$0xff]
      %v517 = vld [vmem:[#allocation2 + $0xe1] sm:$0xff]
      %v518 = vld [vmem:[#allocation2 + $0xf1] sm:$0xff]
      %v519 = vld [vmem:[#allocation2 + $0xf9] sm:$0xff]
      %v520 = vld [vmem:[#allocation2 + $0x109] sm:$0xff]
      %v521 = vld [vmem:[#allocation2 + $0x111] sm:$0xff]
      %v522 = vld [vmem:[#allocation2 + $0x121] sm:$0xff]
      %v523 = vld [vmem:[#allocation2 + $0x129] sm:$0xff]
      %v524 = vld [vmem:[#allocation2 + $0x139] sm:$0xff]
      %v525 = vld [vmem:[#allocation2 + $0x141] sm:$0xff]
      %v526 = vld [vmem:[#allocation2 + $0x151] sm:$0xff]
      %v527 = vld [vmem:[#allocation2 + $0x159] sm:$0xff]
      %v528 = vld [vmem:[#allocation2 + $0x169] sm:$0xff]
      %v529 = vld [vmem:[#allocation2 + $0x171] sm:$0xff]
      %s530 = scalar_lea.vmem %s3, 128
      %v531 = vld [vmem:[%s530] sm:$0xff]
      %v532 = vld [vmem:[%s530 + $0x8] sm:$0xff]
      %v533 = vld [vmem:[%s530 + $0x10] sm:$0xff]
      %v534 = vld [vmem:[%s530 + $0x18] sm:$0xff]
      %v535 = vld [vmem:[%s530 + $0x20] sm:$0xff]
      %v536 = vld [vmem:[%s530 + $0x28] sm:$0xff]
      %v537 = vld [vmem:[%s530 + $0x30] sm:$0xff]
      %v538 = vld [vmem:[%s530 + $0x38] sm:$0xff]
      %v539 = vld [vmem:[%s530 + $0x40] sm:$0xff]
      %v540 = vld [vmem:[%s530 + $0x48] sm:$0xff]
      %v541 = vld [vmem:[%s530 + $0x50] sm:$0xff]
      %v542 = vld [vmem:[%s530 + $0x58] sm:$0xff]
      %v543 = vld [vmem:[%s530 + $0x60] sm:$0xff]
      %v544 = vld [vmem:[%s530 + $0x68] sm:$0xff]
      %v545 = vld [vmem:[%s530 + $0x70] sm:$0xff]
      %v546 = vld [vmem:[%s530 + $0x78] sm:$0xff]
      %547 = vmatprep.subr.mxu0 0.0
      %548 = vmatpush1.msra.mxu0 %v531
      %549 = vmatprep.subr.mxu0 0.0
      %550 = vmatpush1.msra.mxu0 %v532
      %551 = vmatprep.subr.mxu0 0.0
      %552 = vmatpush1.msra.mxu0 %v533
      %553 = vmatprep.subr.mxu0 0.0
      %554 = vmatpush1.msra.mxu0 %v534
      %555 = vmatprep.subr.mxu0 0.0
      %556 = vmatpush1.msra.mxu0 %v535
      %557 = vmatprep.subr.mxu0 0.0
      %558 = vmatpush1.msra.mxu0 %v536
      %559 = vmatprep.subr.mxu0 0.0
      %560 = vmatpush1.msra.mxu0 %v537
      %561 = vmatprep.subr.mxu0 0.0
      %562 = vmatpush1.msra.mxu0 %v538
      %563 = vmatprep.subr.mxu0 0.0
      %564 = vmatpush1.msra.mxu0 %v539
      %565 = vmatprep.subr.mxu0 0.0
      %566 = vmatpush1.msra.mxu0 %v540
      %567 = vmatprep.subr.mxu0 0.0
      %568 = vmatpush1.msra.mxu0 %v541
      %569 = vmatprep.subr.mxu0 0.0
      %570 = vmatpush1.msra.mxu0 %v542
      %571 = vmatprep.subr.mxu0 0.0
      %572 = vmatpush1.msra.mxu0 %v543
      %573 = vmatprep.subr.mxu0 0.0
      %574 = vmatpush1.msra.mxu0 %v544
      %575 = vmatprep.subr.mxu0 0.0
      %576 = vmatpush1.msra.mxu0 %v545
      %577 = vmatprep.subr.mxu0 0.0
      %578 = vmatpush1.msra.mxu0 %v546
      %579 = vmatprep.subr.mxu0 0.0
      %580 = vmatpush1.msra.mxu0 0.0
      %581 = vmatprep.subr.mxu0 0.0
      %582 = vmatpush1.msra.mxu0 0.0
      %583 = vmatprep.subr.mxu0 0.0
      %584 = vmatpush1.msra.mxu0 0.0
      %585 = vmatprep.subr.mxu0 0.0
      %586 = vmatpush1.msra.mxu0 0.0
      %587 = vmatprep.subr.mxu0 0.0
      %588 = vmatpush1.msra.mxu0 0.0
      %589 = vmatprep.subr.mxu0 0.0
      %590 = vmatpush1.msra.mxu0 0.0
      %591 = vmatprep.subr.mxu0 0.0
      %592 = vmatpush1.msra.mxu0 0.0
      %593 = vmatprep.subr.mxu0 0.0
      %594 = vmatpush1.msra.mxu0 0.0
      %595 = vmatprep.subr.mxu0 0.0
      %596 = vmatpush1.msra.mxu0 0.0
      %597 = vmatprep.subr.mxu0 0.0
      %598 = vmatpush1.msra.mxu0 0.0
      %599 = vmatprep.subr.mxu0 0.0
      %600 = vmatpush1.msra.mxu0 0.0
      %601 = vmatprep.subr.mxu0 0.0
      %602 = vmatpush1.msra.mxu0 0.0
      %603 = vmatprep.subr.mxu0 0.0
      %604 = vmatpush1.msra.mxu0 0.0
      %605 = vmatprep.subr.mxu0 0.0
      %606 = vmatpush1.msra.mxu0 0.0
      %607 = vmatprep.subr.mxu0 0.0
      %608 = vmatpush1.msra.mxu0 0.0
      %609 = vmatprep.subr.mxu0 0.0
      %610 = vmatpush1.msra.mxu0 0.0
      %611 = vmatprep.mubr.f32.mxu0 0.0
      %612 = vmatmul.mubr.f32.gmra.mrb[0].mxu0 %v498
      %v613 = vpop.f32.mrb[0].mxu0
      %v614 = vadd.f32 0.0, %v613
      %v615 = vpop.f32.mrb[0].mxu0
      %616 = vmatprep.mubr.f32.mxu0 0.0
      %617 = vmatmul.mubr.f32.gmra.mrb[0].mxu0 %v499
      %v618 = vpop.f32.mrb[0].mxu0
      %v619 = vadd.f32 0.0, %v618
      %v620 = vpop.f32.mrb[0].mxu0
      %621 = vmatprep.mubr.f32.mxu0 0.0
      %622 = vmatmul.mubr.f32.gmra.mrb[0].mxu0 %v500
      %v623 = vpop.f32.mrb[0].mxu0
      %v624 = vadd.f32 0.0, %v623
      %v625 = vpop.f32.mrb[0].mxu0
      %626 = vmatprep.mubr.f32.mxu0 0.0
      %627 = vmatmul.mubr.f32.gmra.mrb[0].mxu0 %v501
      %v628 = vpop.f32.mrb[0].mxu0
      %v629 = vadd.f32 0.0, %v628
      %v630 = vpop.f32.mrb[0].mxu0
      %631 = vmatprep.mubr.f32.mxu0 0.0
      %632 = vmatmul.mubr.f32.gmra.mrb[0].mxu0 %v502
      %v633 = vpop.f32.mrb[0].mxu0
      %v634 = vadd.f32 0.0, %v633
      %v635 = vpop.f32.mrb[0].mxu0
      %636 = vmatprep.mubr.f32.mxu0 0.0
      %637 = vmatmul.mubr.f32.gmra.mrb[0].mxu0 %v503
      %v638 = vpop.f32.mrb[0].mxu0
      %v639 = vadd.f32 0.0, %v638
      %v640 = vpop.f32.mrb[0].mxu0
      %641 = vmatprep.mubr.f32.mxu0 0.0
      %642 = vmatmul.mubr.f32.gmra.mrb[0].mxu0 %v504
      %v643 = vpop.f32.mrb[0].mxu0
      %v644 = vadd.f32 0.0, %v643
      %v645 = vpop.f32.mrb[0].mxu0
      %646 = vmatprep.mubr.f32.mxu0 0.0
      %647 = vmatmul.mubr.f32.gmra.mrb[0].mxu0 %v505
      %v648 = vpop.f32.mrb[0].mxu0
      %v649 = vadd.f32 0.0, %v648
      %v650 = vpop.f32.mrb[0].mxu0
      %651 = vmatprep.mubr.f32.mxu0 0.0
      %652 = vmatmul.mubr.f32.gmra.mrb[0].mxu0 %v506
      %v653 = vpop.f32.mrb[0].mxu0
      %v654 = vadd.f32 0.0, %v653
      %v655 = vpop.f32.mrb[0].mxu0
      %656 = vmatprep.mubr.f32.mxu0 0.0
      %657 = vmatmul.mubr.f32.gmra.mrb[0].mxu0 %v507
      %v658 = vpop.f32.mrb[0].mxu0
      %v659 = vadd.f32 0.0, %v658
      %v660 = vpop.f32.mrb[0].mxu0
      %661 = vmatprep.mubr.f32.mxu0 0.0
      %662 = vmatmul.mubr.f32.gmra.mrb[0].mxu0 %v508
      %v663 = vpop.f32.mrb[0].mxu0
      %v664 = vadd.f32 0.0, %v663
      %v665 = vpop.f32.mrb[0].mxu0
      %666 = vmatprep.mubr.f32.mxu0 0.0
      %667 = vmatmul.mubr.f32.gmra.mrb[0].mxu0 %v509
      %v668 = vpop.f32.mrb[0].mxu0
      %v669 = vadd.f32 0.0, %v668
      %v670 = vpop.f32.mrb[0].mxu0
      %671 = vmatprep.mubr.f32.mxu0 0.0
      %672 = vmatmul.mubr.f32.gmra.mrb[0].mxu0 %v510
      %v673 = vpop.f32.mrb[0].mxu0
      %v674 = vadd.f32 0.0, %v673
      %v675 = vpop.f32.mrb[0].mxu0
      %676 = vmatprep.mubr.f32.mxu0 0.0
      %677 = vmatmul.mubr.f32.gmra.mrb[0].mxu0 %v511
      %v678 = vpop.f32.mrb[0].mxu0
      %v679 = vadd.f32 0.0, %v678
      %v680 = vpop.f32.mrb[0].mxu0
      %681 = vmatprep.mubr.f32.mxu0 0.0
      %682 = vmatmul.mubr.f32.gmra.mrb[0].mxu0 %v512
      %v683 = vpop.f32.mrb[0].mxu0
      %v684 = vadd.f32 0.0, %v683
      %v685 = vpop.f32.mrb[0].mxu0
      %686 = vmatprep.mubr.f32.mxu0 0.0
      %687 = vmatmul.mubr.f32.gmra.mrb[0].mxu0 %v513
      %v688 = vpop.f32.mrb[0].mxu0
      %v689 = vadd.f32 0.0, %v688
      %v690 = vpop.f32.mrb[0].mxu0
      %691 = vmatprep.mubr.f32.mxu0 0.0
      %692 = vmatmul.mubr.f32.gmra.mrb[0].mxu0 %v514
      %v693 = vpop.f32.mrb[0].mxu0
      %v694 = vadd.f32 0.0, %v693
      %v695 = vpop.f32.mrb[0].mxu0
      %696 = vmatprep.mubr.f32.mxu0 0.0
      %697 = vmatmul.mubr.f32.gmra.mrb[0].mxu0 %v515
      %v698 = vpop.f32.mrb[0].mxu0
      %v699 = vadd.f32 0.0, %v698
      %v700 = vpop.f32.mrb[0].mxu0
      %701 = vmatprep.mubr.f32.mxu0 0.0
      %702 = vmatmul.mubr.f32.gmra.mrb[0].mxu0 %v516
      %v703 = vpop.f32.mrb[0].mxu0
      %v704 = vadd.f32 0.0, %v703
      %v705 = vpop.f32.mrb[0].mxu0
      %706 = vmatprep.mubr.f32.mxu0 0.0
      %707 = vmatmul.mubr.f32.gmra.mrb[0].mxu0 %v517
      %v708 = vpop.f32.mrb[0].mxu0
      %v709 = vadd.f32 0.0, %v708
      %v710 = vpop.f32.mrb[0].mxu0
      %711 = vmatprep.mubr.f32.mxu0 0.0
      %712 = vmatmul.mubr.f32.gmra.mrb[0].mxu0 %v518
      %v713 = vpop.f32.mrb[0].mxu0
      %v714 = vadd.f32 0.0, %v713
      %v715 = vpop.f32.mrb[0].mxu0
      %716 = vmatprep.mubr.f32.mxu0 0.0
      %717 = vmatmul.mubr.f32.gmra.mrb[0].mxu0 %v519
      %v718 = vpop.f32.mrb[0].mxu0
      %v719 = vadd.f32 0.0, %v718
      %v720 = vpop.f32.mrb[0].mxu0
      %721 = vmatprep.mubr.f32.mxu0 0.0
      %722 = vmatmul.mubr.f32.gmra.mrb[0].mxu0 %v520
      %v723 = vpop.f32.mrb[0].mxu0
      %v724 = vadd.f32 0.0, %v723
      %v725 = vpop.f32.mrb[0].mxu0
      %726 = vmatprep.mubr.f32.mxu0 0.0
      %727 = vmatmul.mubr.f32.gmra.mrb[0].mxu0 %v521
      %v728 = vpop.f32.mrb[0].mxu0
      %v729 = vadd.f32 0.0, %v728
      %v730 = vpop.f32.mrb[0].mxu0
      %731 = vmatprep.mubr.f32.mxu0 0.0
      %732 = vmatmul.mubr.f32.gmra.mrb[0].mxu0 %v522
      %v733 = vpop.f32.mrb[0].mxu0
      %v734 = vadd.f32 0.0, %v733
      %v735 = vpop.f32.mrb[0].mxu0
      %736 = vmatprep.mubr.f32.mxu0 0.0
      %737 = vmatmul.mubr.f32.gmra.mrb[0].mxu0 %v523
      %v738 = vpop.f32.mrb[0].mxu0
      %v739 = vadd.f32 0.0, %v738
      %v740 = vpop.f32.mrb[0].mxu0
      %741 = vmatprep.mubr.f32.mxu0 0.0
      %742 = vmatmul.mubr.f32.gmra.mrb[0].mxu0 %v524
      %v743 = vpop.f32.mrb[0].mxu0
      %v744 = vadd.f32 0.0, %v743
      %v745 = vpop.f32.mrb[0].mxu0
      %746 = vmatprep.mubr.f32.mxu0 0.0
      %747 = vmatmul.mubr.f32.gmra.mrb[0].mxu0 %v525
      %v748 = vpop.f32.mrb[0].mxu0
      %v749 = vadd.f32 0.0, %v748
      %v750 = vpop.f32.mrb[0].mxu0
      %751 = vmatprep.mubr.f32.mxu0 0.0
      %752 = vmatmul.mubr.f32.gmra.mrb[0].mxu0 %v526
      %v753 = vpop.f32.mrb[0].mxu0
      %v754 = vadd.f32 0.0, %v753
      %v755 = vpop.f32.mrb[0].mxu0
      %756 = vmatprep.mubr.f32.mxu0 0.0
      %757 = vmatmul.mubr.f32.gmra.mrb[0].mxu0 %v527
      %v758 = vpop.f32.mrb[0].mxu0
      %v759 = vadd.f32 0.0, %v758
      %v760 = vpop.f32.mrb[0].mxu0
      %761 = vmatprep.mubr.f32.mxu0 0.0
      %762 = vmatmul.mubr.f32.gmra.mrb[0].mxu0 %v528
      %v763 = vpop.f32.mrb[0].mxu0
      %v764 = vadd.f32 0.0, %v763
      %v765 = vpop.f32.mrb[0].mxu0
      %766 = vmatprep.mubr.f32.mxu0 0.0
      %767 = vmatmul.mubr.f32.gmra.mrb[0].mxu0 %v529
      %v768 = vpop.f32.mrb[0].mxu0
      %v769 = vadd.f32 0.0, %v768
      %v770 = vpop.f32.mrb[0].mxu0
      %771 = vdwg.mxu0
      %772 = vmatprep.subr.mxu0 0.0
      %773 = vmatpush1.msra.mxu0 %v482
      %774 = vmatprep.subr.mxu0 0.0
      %775 = vmatpush1.msra.mxu0 %v483
      %776 = vmatprep.subr.mxu0 0.0
      %777 = vmatpush1.msra.mxu0 %v484
      %778 = vmatprep.subr.mxu0 0.0
      %779 = vmatpush1.msra.mxu0 %v485
      %780 = vmatprep.subr.mxu0 0.0
      %781 = vmatpush1.msra.mxu0 %v486
      %782 = vmatprep.subr.mxu0 0.0
      %783 = vmatpush1.msra.mxu0 %v487
      %784 = vmatprep.subr.mxu0 0.0
      %785 = vmatpush1.msra.mxu0 %v488
      %786 = vmatprep.subr.mxu0 0.0
      %787 = vmatpush1.msra.mxu0 %v489
      %788 = vmatprep.subr.mxu0 0.0
      %789 = vmatpush1.msra.mxu0 %v490
      %790 = vmatprep.subr.mxu0 0.0
      %791 = vmatpush1.msra.mxu0 %v491
      %792 = vmatprep.subr.mxu0 0.0
      %793 = vmatpush1.msra.mxu0 %v492
      %794 = vmatprep.subr.mxu0 0.0
      %795 = vmatpush1.msra.mxu0 %v493
      %796 = vmatprep.subr.mxu0 0.0
      %797 = vmatpush1.msra.mxu0 %v494
      %798 = vmatprep.subr.mxu0 0.0
      %799 = vmatpush1.msra.mxu0 %v495
      %800 = vmatprep.subr.mxu0 0.0
      %801 = vmatpush1.msra.mxu0 %v496
      %802 = vmatprep.subr.mxu0 0.0
      %803 = vmatpush1.msra.mxu0 %v497
      %804 = vmatprep.subr.mxu0 0.0
      %805 = vmatpush1.msra.mxu0 0.0
      %806 = vmatprep.subr.mxu0 0.0
      %807 = vmatpush1.msra.mxu0 0.0
      %808 = vmatprep.subr.mxu0 0.0
      %809 = vmatpush1.msra.mxu0 0.0
      %810 = vmatprep.subr.mxu0 0.0
      %811 = vmatpush1.msra.mxu0 0.0
      %812 = vmatprep.subr.mxu0 0.0
      %813 = vmatpush1.msra.mxu0 0.0
      %814 = vmatprep.subr.mxu0 0.0
      %815 = vmatpush1.msra.mxu0 0.0
      %816 = vmatprep.subr.mxu0 0.0
      %817 = vmatpush1.msra.mxu0 0.0
      %818 = vmatprep.subr.mxu0 0.0
      %819 = vmatpush1.msra.mxu0 0.0
      %820 = vmatprep.subr.mxu0 0.0
      %821 = vmatpush1.msra.mxu0 0.0
      %822 = vmatprep.subr.mxu0 0.0
      %823 = vmatpush1.msra.mxu0 0.0
      %824 = vmatprep.subr.mxu0 0.0
      %825 = vmatpush1.msra.mxu0 0.0
      %826 = vmatprep.subr.mxu0 0.0
      %827 = vmatpush1.msra.mxu0 0.0
      %828 = vmatprep.subr.mxu0 0.0
      %829 = vmatpush1.msra.mxu0 0.0
      %830 = vmatprep.subr.mxu0 0.0
      %831 = vmatpush1.msra.mxu0 0.0
      %832 = vmatprep.subr.mxu0 0.0
      %833 = vmatpush1.msra.mxu0 0.0
      %834 = vmatprep.subr.mxu0 0.0
      %835 = vmatpush1.msra.mxu0 0.0
      %836 = vmatprep.mubr.f32.mxu0 0.0
      %837 = vmatmul.mubr.f32.gmra.mrb[0].mxu0 %v450
      %v838 = vpop.f32.mrb[0].mxu0
      %v839 = vadd.f32 %v614, %v838
      %v840 = vpop.f32.mrb[0].mxu0
      %841 = vmatprep.mubr.f32.mxu0 0.0
      %842 = vmatmul.mubr.f32.gmra.mrb[0].mxu0 %v451
      %v843 = vpop.f32.mrb[0].mxu0
      %v844 = vadd.f32 %v619, %v843
      %v845 = vpop.f32.mrb[0].mxu0
      %846 = vmatprep.mubr.f32.mxu0 0.0
      %847 = vmatmul.mubr.f32.gmra.mrb[0].mxu0 %v452
      %v848 = vpop.f32.mrb[0].mxu0
      %v849 = vadd.f32 %v624, %v848
      %v850 = vpop.f32.mrb[0].mxu0
      %851 = vmatprep.mubr.f32.mxu0 0.0
      %852 = vmatmul.mubr.f32.gmra.mrb[0].mxu0 %v453
      %v853 = vpop.f32.mrb[0].mxu0
      %v854 = vadd.f32 %v629, %v853
      %v855 = vpop.f32.mrb[0].mxu0
      %856 = vmatprep.mubr.f32.mxu0 0.0
      %857 = vmatmul.mubr.f32.gmra.mrb[0].mxu0 %v454
      %v858 = vpop.f32.mrb[0].mxu0
      %v859 = vadd.f32 %v634, %v858
      %v860 = vpop.f32.mrb[0].mxu0
      %861 = vmatprep.mubr.f32.mxu0 0.0
      %862 = vmatmul.mubr.f32.gmra.mrb[0].mxu0 %v455
      %v863 = vpop.f32.mrb[0].mxu0
      %v864 = vadd.f32 %v639, %v863
      %v865 = vpop.f32.mrb[0].mxu0
      %866 = vmatprep.mubr.f32.mxu0 0.0
      %867 = vmatmul.mubr.f32.gmra.mrb[0].mxu0 %v456
      %v868 = vpop.f32.mrb[0].mxu0
      %v869 = vadd.f32 %v644, %v868
      %v870 = vpop.f32.mrb[0].mxu0
      %871 = vmatprep.mubr.f32.mxu0 0.0
      %872 = vmatmul.mubr.f32.gmra.mrb[0].mxu0 %v457
      %v873 = vpop.f32.mrb[0].mxu0
      %v874 = vadd.f32 %v649, %v873
      %v875 = vpop.f32.mrb[0].mxu0
      %876 = vmatprep.mubr.f32.mxu0 0.0
      %877 = vmatmul.mubr.f32.gmra.mrb[0].mxu0 %v458
      %v878 = vpop.f32.mrb[0].mxu0
      %v879 = vadd.f32 %v654, %v878
      %v880 = vpop.f32.mrb[0].mxu0
      %881 = vmatprep.mubr.f32.mxu0 0.0
      %882 = vmatmul.mubr.f32.gmra.mrb[0].mxu0 %v459
      %v883 = vpop.f32.mrb[0].mxu0
      %v884 = vadd.f32 %v659, %v883
      %v885 = vpop.f32.mrb[0].mxu0
      %886 = vmatprep.mubr.f32.mxu0 0.0
      %887 = vmatmul.mubr.f32.gmra.mrb[0].mxu0 %v460
      %v888 = vpop.f32.mrb[0].mxu0
      %v889 = vadd.f32 %v664, %v888
      %v890 = vpop.f32.mrb[0].mxu0
      %891 = vmatprep.mubr.f32.mxu0 0.0
      %892 = vmatmul.mubr.f32.gmra.mrb[0].mxu0 %v461
      %v893 = vpop.f32.mrb[0].mxu0
      %v894 = vadd.f32 %v669, %v893
      %v895 = vpop.f32.mrb[0].mxu0
      %896 = vmatprep.mubr.f32.mxu0 0.0
      %897 = vmatmul.mubr.f32.gmra.mrb[0].mxu0 %v462
      %v898 = vpop.f32.mrb[0].mxu0
      %v899 = vadd.f32 %v674, %v898
      %v900 = vpop.f32.mrb[0].mxu0
      %901 = vmatprep.mubr.f32.mxu0 0.0
      %902 = vmatmul.mubr.f32.gmra.mrb[0].mxu0 %v463
      %v903 = vpop.f32.mrb[0].mxu0
      %v904 = vadd.f32 %v679, %v903
      %v905 = vpop.f32.mrb[0].mxu0
      %906 = vmatprep.mubr.f32.mxu0 0.0
      %907 = vmatmul.mubr.f32.gmra.mrb[0].mxu0 %v464
      %v908 = vpop.f32.mrb[0].mxu0
      %v909 = vadd.f32 %v684, %v908
      %v910 = vpop.f32.mrb[0].mxu0
      %911 = vmatprep.mubr.f32.mxu0 0.0
      %912 = vmatmul.mubr.f32.gmra.mrb[0].mxu0 %v465
      %v913 = vpop.f32.mrb[0].mxu0
      %v914 = vadd.f32 %v689, %v913
      %v915 = vpop.f32.mrb[0].mxu0
      %916 = vmatprep.mubr.f32.mxu0 0.0
      %917 = vmatmul.mubr.f32.gmra.mrb[0].mxu0 %v466
      %v918 = vpop.f32.mrb[0].mxu0
      %v919 = vadd.f32 %v694, %v918
      %v920 = vpop.f32.mrb[0].mxu0
      %921 = vmatprep.mubr.f32.mxu0 0.0
      %922 = vmatmul.mubr.f32.gmra.mrb[0].mxu0 %v467
      %v923 = vpop.f32.mrb[0].mxu0
      %v924 = vadd.f32 %v699, %v923
      %v925 = vpop.f32.mrb[0].mxu0
      %926 = vmatprep.mubr.f32.mxu0 0.0
      %927 = vmatmul.mubr.f32.gmra.mrb[0].mxu0 %v468
      %v928 = vpop.f32.mrb[0].mxu0
      %v929 = vadd.f32 %v704, %v928
      %v930 = vpop.f32.mrb[0].mxu0
      %931 = vmatprep.mubr.f32.mxu0 0.0
      %932 = vmatmul.mubr.f32.gmra.mrb[0].mxu0 %v469
      %v933 = vpop.f32.mrb[0].mxu0
      %v934 = vadd.f32 %v709, %v933
      %v935 = vpop.f32.mrb[0].mxu0
      %936 = vmatprep.mubr.f32.mxu0 0.0
      %937 = vmatmul.mubr.f32.gmra.mrb[0].mxu0 %v470
      %v938 = vpop.f32.mrb[0].mxu0
      %v939 = vadd.f32 %v714, %v938
      %v940 = vpop.f32.mrb[0].mxu0
      %941 = vmatprep.mubr.f32.mxu0 0.0
      %942 = vmatmul.mubr.f32.gmra.mrb[0].mxu0 %v471
      %v943 = vpop.f32.mrb[0].mxu0
      %v944 = vadd.f32 %v719, %v943
      %v945 = vpop.f32.mrb[0].mxu0
      %946 = vmatprep.mubr.f32.mxu0 0.0
      %947 = vmatmul.mubr.f32.gmra.mrb[0].mxu0 %v472
      %v948 = vpop.f32.mrb[0].mxu0
      %v949 = vadd.f32 %v724, %v948
      %v950 = vpop.f32.mrb[0].mxu0
      %951 = vmatprep.mubr.f32.mxu0 0.0
      %952 = vmatmul.mubr.f32.gmra.mrb[0].mxu0 %v473
      %v953 = vpop.f32.mrb[0].mxu0
      %v954 = vadd.f32 %v729, %v953
      %v955 = vpop.f32.mrb[0].mxu0
      %956 = vmatprep.mubr.f32.mxu0 0.0
      %957 = vmatmul.mubr.f32.gmra.mrb[0].mxu0 %v474
      %v958 = vpop.f32.mrb[0].mxu0
      %v959 = vadd.f32 %v734, %v958
      %v960 = vpop.f32.mrb[0].mxu0
      %961 = vmatprep.mubr.f32.mxu0 0.0
      %962 = vmatmul.mubr.f32.gmra.mrb[0].mxu0 %v475
      %v963 = vpop.f32.mrb[0].mxu0
      %v964 = vadd.f32 %v739, %v963
      %v965 = vpop.f32.mrb[0].mxu0
      %966 = vmatprep.mubr.f32.mxu0 0.0
      %967 = vmatmul.mubr.f32.gmra.mrb[0].mxu0 %v476
      %v968 = vpop.f32.mrb[0].mxu0
      %v969 = vadd.f32 %v744, %v968
      %v970 = vpop.f32.mrb[0].mxu0
      %971 = vmatprep.mubr.f32.mxu0 0.0
      %972 = vmatmul.mubr.f32.gmra.mrb[0].mxu0 %v477
      %v973 = vpop.f32.mrb[0].mxu0
      %v974 = vadd.f32 %v749, %v973
      %v975 = vpop.f32.mrb[0].mxu0
      %976 = vmatprep.mubr.f32.mxu0 0.0
      %977 = vmatmul.mubr.f32.gmra.mrb[0].mxu0 %v478
      %v978 = vpop.f32.mrb[0].mxu0
      %v979 = vadd.f32 %v754, %v978
      %v980 = vpop.f32.mrb[0].mxu0
      %981 = vmatprep.mubr.f32.mxu0 0.0
      %982 = vmatmul.mubr.f32.gmra.mrb[0].mxu0 %v479
      %v983 = vpop.f32.mrb[0].mxu0
      %v984 = vadd.f32 %v759, %v983
      %v985 = vpop.f32.mrb[0].mxu0
      %986 = vmatprep.mubr.f32.mxu0 0.0
      %987 = vmatmul.mubr.f32.gmra.mrb[0].mxu0 %v480
      %v988 = vpop.f32.mrb[0].mxu0
      %v989 = vadd.f32 %v764, %v988
      %v990 = vpop.f32.mrb[0].mxu0
      %991 = vmatprep.mubr.f32.mxu0 0.0
      %992 = vmatmul.mubr.f32.gmra.mrb[0].mxu0 %v481
      %v993 = vpop.f32.mrb[0].mxu0
      %v994 = vadd.f32 %v769, %v993
      %v995 = vpop.f32.mrb[0].mxu0
      %996 = vdwg.mxu0
      %v997 = vld [vmem:[#allocation2 + $0x2] sm:$0xff]
      %v998 = vld [vmem:[#allocation2 + $0xa] sm:$0xff]
      %v999 = vld [vmem:[#allocation2 + $0x1a] sm:$0xff]
      %v1000 = vld [vmem:[#allocation2 + $0x22] sm:$0xff]
      %v1001 = vld [vmem:[#allocation2 + $0x32] sm:$0xff]
      %v1002 = vld [vmem:[#allocation2 + $0x3a] sm:$0xff]
      %v1003 = vld [vmem:[#allocation2 + $0x4a] sm:$0xff]
      %v1004 = vld [vmem:[#allocation2 + $0x52] sm:$0xff]
      %v1005 = vld [vmem:[#allocation2 + $0x62] sm:$0xff]
      %v1006 = vld [vmem:[#allocation2 + $0x6a] sm:$0xff]
      %v1007 = vld [vmem:[#allocation2 + $0x7a] sm:$0xff]
      %v1008 = vld [vmem:[#allocation2 + $0x82] sm:$0xff]
      %v1009 = vld [vmem:[#allocation2 + $0x92] sm:$0xff]
      %v1010 = vld [vmem:[#allocation2 + $0x9a] sm:$0xff]
      %v1011 = vld [vmem:[#allocation2 + $0xaa] sm:$0xff]
      %v1012 = vld [vmem:[#allocation2 + $0xb2] sm:$0xff]
      %v1013 = vld [vmem:[#allocation2 + $0xc2] sm:$0xff]
      %v1014 = vld [vmem:[#allocation2 + $0xca] sm:$0xff]
      %v1015 = vld [vmem:[#allocation2 + $0xda] sm:$0xff]
      %v1016 = vld [vmem:[#allocation2 + $0xe2] sm:$0xff]
      %v1017 = vld [vmem:[#allocation2 + $0xf2] sm:$0xff]
      %v1018 = vld [vmem:[#allocation2 + $0xfa] sm:$0xff]
      %v1019 = vld [vmem:[#allocation2 + $0x10a] sm:$0xff]
      %v1020 = vld [vmem:[#allocation2 + $0x112] sm:$0xff]
      %v1021 = vld [vmem:[#allocation2 + $0x122] sm:$0xff]
      %v1022 = vld [vmem:[#allocation2 + $0x12a] sm:$0xff]
      %v1023 = vld [vmem:[#allocation2 + $0x13a] sm:$0xff]
      %v1024 = vld [vmem:[#allocation2 + $0x142] sm:$0xff]
      %v1025 = vld [vmem:[#allocation2 + $0x152] sm:$0xff]
      %v1026 = vld [vmem:[#allocation2 + $0x15a] sm:$0xff]
      %v1027 = vld [vmem:[#allocation2 + $0x16a] sm:$0xff]
      %v1028 = vld [vmem:[#allocation2 + $0x172] sm:$0xff]
      %s1029 = scalar_lea.vmem %s3, 256
      %v1030 = vld [vmem:[%s1029] sm:$0xff]
      %v1031 = vld [vmem:[%s1029 + $0x8] sm:$0xff]
      %v1032 = vld [vmem:[%s1029 + $0x10] sm:$0xff]
      %v1033 = vld [vmem:[%s1029 + $0x18] sm:$0xff]
      %v1034 = vld [vmem:[%s1029 + $0x20] sm:$0xff]
      %v1035 = vld [vmem:[%s1029 + $0x28] sm:$0xff]
      %v1036 = vld [vmem:[%s1029 + $0x30] sm:$0xff]
      %v1037 = vld [vmem:[%s1029 + $0x38] sm:$0xff]
      %v1038 = vld [vmem:[%s1029 + $0x40] sm:$0xff]
      %v1039 = vld [vmem:[%s1029 + $0x48] sm:$0xff]
      %v1040 = vld [vmem:[%s1029 + $0x50] sm:$0xff]
      %v1041 = vld [vmem:[%s1029 + $0x58] sm:$0xff]
      %v1042 = vld [vmem:[%s1029 + $0x60] sm:$0xff]
      %v1043 = vld [vmem:[%s1029 + $0x68] sm:$0xff]
      %v1044 = vld [vmem:[%s1029 + $0x70] sm:$0xff]
      %v1045 = vld [vmem:[%s1029 + $0x78] sm:$0xff]
      %1046 = vmatprep.subr.mxu0 0.0
      %1047 = vmatpush1.msra.mxu0 %v1030
      %1048 = vmatprep.subr.mxu0 0.0
      %1049 = vmatpush1.msra.mxu0 %v1031
      %1050 = vmatprep.subr.mxu0 0.0
      %1051 = vmatpush1.msra.mxu0 %v1032
      %1052 = vmatprep.subr.mxu0 0.0
      %1053 = vmatpush1.msra.mxu0 %v1033
      %1054 = vmatprep.subr.mxu0 0.0
      %1055 = vmatpush1.msra.mxu0 %v1034
      %1056 = vmatprep.subr.mxu0 0.0
      %1057 = vmatpush1.msra.mxu0 %v1035
      %1058 = vmatprep.subr.mxu0 0.0
      %1059 = vmatpush1.msra.mxu0 %v1036
      %1060 = vmatprep.subr.mxu0 0.0
      %1061 = vmatpush1.msra.mxu0 %v1037
      %1062 = vmatprep.subr.mxu0 0.0
      %1063 = vmatpush1.msra.mxu0 %v1038
      %1064 = vmatprep.subr.mxu0 0.0
      %1065 = vmatpush1.msra.mxu0 %v1039
      %1066 = vmatprep.subr.mxu0 0.0
      %1067 = vmatpush1.msra.mxu0 %v1040
      %1068 = vmatprep.subr.mxu0 0.0
      %1069 = vmatpush1.msra.mxu0 %v1041
      %1070 = vmatprep.subr.mxu0 0.0
      %1071 = vmatpush1.msra.mxu0 %v1042
      %1072 = vmatprep.subr.mxu0 0.0
      %1073 = vmatpush1.msra.mxu0 %v1043
      %1074 = vmatprep.subr.mxu0 0.0
      %1075 = vmatpush1.msra.mxu0 %v1044
      %1076 = vmatprep.subr.mxu0 0.0
      %1077 = vmatpush1.msra.mxu0 %v1045
      %1078 = vmatprep.subr.mxu0 0.0
      %1079 = vmatpush1.msra.mxu0 0.0
      %1080 = vmatprep.subr.mxu0 0.0
      %1081 = vmatpush1.msra.mxu0 0.0
      %1082 = vmatprep.subr.mxu0 0.0
      %1083 = vmatpush1.msra.mxu0 0.0
      %1084 = vmatprep.subr.mxu0 0.0
      %1085 = vmatpush1.msra.mxu0 0.0
      %1086 = vmatprep.subr.mxu0 0.0
      %1087 = vmatpush1.msra.mxu0 0.0
      %1088 = vmatprep.subr.mxu0 0.0
      %1089 = vmatpush1.msra.mxu0 0.0
      %1090 = vmatprep.subr.mxu0 0.0
      %1091 = vmatpush1.msra.mxu0 0.0
      %1092 = vmatprep.subr.mxu0 0.0
      %1093 = vmatpush1.msra.mxu0 0.0
      %1094 = vmatprep.subr.mxu0 0.0
      %1095 = vmatpush1.msra.mxu0 0.0
      %1096 = vmatprep.subr.mxu0 0.0
      %1097 = vmatpush1.msra.mxu0 0.0
      %1098 = vmatprep.subr.mxu0 0.0
      %1099 = vmatpush1.msra.mxu0 0.0
      %1100 = vmatprep.subr.mxu0 0.0
      %1101 = vmatpush1.msra.mxu0 0.0
      %1102 = vmatprep.subr.mxu0 0.0
      %1103 = vmatpush1.msra.mxu0 0.0
      %1104 = vmatprep.subr.mxu0 0.0
      %1105 = vmatpush1.msra.mxu0 0.0
      %1106 = vmatprep.subr.mxu0 0.0
      %1107 = vmatpush1.msra.mxu0 0.0
      %1108 = vmatprep.subr.mxu0 0.0
      %1109 = vmatpush1.msra.mxu0 0.0
      %1110 = vmatprep.mubr.f32.mxu0 0.0
      %1111 = vmatmul.mubr.f32.gmra.mrb[0].mxu0 %v997
      %v1112 = vpop.f32.mrb[0].mxu0
      %v1113 = vadd.f32 0.0, %v1112
      %v1114 = vpop.f32.mrb[0].mxu0
      %1115 = vmatprep.mubr.f32.mxu0 0.0
      %1116 = vmatmul.mubr.f32.gmra.mrb[0].mxu0 %v998
      %v1117 = vpop.f32.mrb[0].mxu0
      %v1118 = vadd.f32 0.0, %v1117
      %v1119 = vpop.f32.mrb[0].mxu0
      %1120 = vmatprep.mubr.f32.mxu0 0.0
      %1121 = vmatmul.mubr.f32.gmra.mrb[0].mxu0 %v999
      %v1122 = vpop.f32.mrb[0].mxu0
      %v1123 = vadd.f32 0.0, %v1122
      %v1124 = vpop.f32.mrb[0].mxu0
      %1125 = vmatprep.mubr.f32.mxu0 0.0
      %1126 = vmatmul.mubr.f32.gmra.mrb[0].mxu0 %v1000
      %v1127 = vpop.f32.mrb[0].mxu0
      %v1128 = vadd.f32 0.0, %v1127
      %v1129 = vpop.f32.mrb[0].mxu0
      %1130 = vmatprep.mubr.f32.mxu0 0.0
      %1131 = vmatmul.mubr.f32.gmra.mrb[0].mxu0 %v1001
      %v1132 = vpop.f32.mrb[0].mxu0
      %v1133 = vadd.f32 0.0, %v1132
      %v1134 = vpop.f32.mrb[0].mxu0
      %1135 = vmatprep.mubr.f32.mxu0 0.0
      %1136 = vmatmul.mubr.f32.gmra.mrb[0].mxu0 %v1002
      %v1137 = vpop.f32.mrb[0].mxu0
      %v1138 = vadd.f32 0.0, %v1137
      %v1139 = vpop.f32.mrb[0].mxu0
      %1140 = vmatprep.mubr.f32.mxu0 0.0
      %1141 = vmatmul.mubr.f32.gmra.mrb[0].mxu0 %v1003
      %v1142 = vpop.f32.mrb[0].mxu0
      %v1143 = vadd.f32 0.0, %v1142
      %v1144 = vpop.f32.mrb[0].mxu0
      %1145 = vmatprep.mubr.f32.mxu0 0.0
      %1146 = vmatmul.mubr.f32.gmra.mrb[0].mxu0 %v1004
      %v1147 = vpop.f32.mrb[0].mxu0
      %v1148 = vadd.f32 0.0, %v1147
      %v1149 = vpop.f32.mrb[0].mxu0
      %1150 = vmatprep.mubr.f32.mxu0 0.0
      %1151 = vmatmul.mubr.f32.gmra.mrb[0].mxu0 %v1005
      %v1152 = vpop.f32.mrb[0].mxu0
      %v1153 = vadd.f32 0.0, %v1152
      %v1154 = vpop.f32.mrb[0].mxu0
      %1155 = vmatprep.mubr.f32.mxu0 0.0
      %1156 = vmatmul.mubr.f32.gmra.mrb[0].mxu0 %v1006
      %v1157 = vpop.f32.mrb[0].mxu0
      %v1158 = vadd.f32 0.0, %v1157
      %v1159 = vpop.f32.mrb[0].mxu0
      %1160 = vmatprep.mubr.f32.mxu0 0.0
      %1161 = vmatmul.mubr.f32.gmra.mrb[0].mxu0 %v1007
      %v1162 = vpop.f32.mrb[0].mxu0
      %v1163 = vadd.f32 0.0, %v1162
      %v1164 = vpop.f32.mrb[0].mxu0
      %1165 = vmatprep.mubr.f32.mxu0 0.0
      %1166 = vmatmul.mubr.f32.gmra.mrb[0].mxu0 %v1008
      %v1167 = vpop.f32.mrb[0].mxu0
      %v1168 = vadd.f32 0.0, %v1167
      %v1169 = vpop.f32.mrb[0].mxu0
      %1170 = vmatprep.mubr.f32.mxu0 0.0
      %1171 = vmatmul.mubr.f32.gmra.mrb[0].mxu0 %v1009
      %v1172 = vpop.f32.mrb[0].mxu0
      %v1173 = vadd.f32 0.0, %v1172
      %v1174 = vpop.f32.mrb[0].mxu0
      %1175 = vmatprep.mubr.f32.mxu0 0.0
      %1176 = vmatmul.mubr.f32.gmra.mrb[0].mxu0 %v1010
      %v1177 = vpop.f32.mrb[0].mxu0
      %v1178 = vadd.f32 0.0, %v1177
      %v1179 = vpop.f32.mrb[0].mxu0
      %1180 = vmatprep.mubr.f32.mxu0 0.0
      %1181 = vmatmul.mubr.f32.gmra.mrb[0].mxu0 %v1011
      %v1182 = vpop.f32.mrb[0].mxu0
      %v1183 = vadd.f32 0.0, %v1182
      %v1184 = vpop.f32.mrb[0].mxu0
      %1185 = vmatprep.mubr.f32.mxu0 0.0
      %1186 = vmatmul.mubr.f32.gmra.mrb[0].mxu0 %v1012
      %v1187 = vpop.f32.mrb[0].mxu0
      %v1188 = vadd.f32 0.0, %v1187
      %v1189 = vpop.f32.mrb[0].mxu0
      %1190 = vmatprep.mubr.f32.mxu0 0.0
      %1191 = vmatmul.mubr.f32.gmra.mrb[0].mxu0 %v1013
      %v1192 = vpop.f32.mrb[0].mxu0
      %v1193 = vadd.f32 0.0, %v1192
      %v1194 = vpop.f32.mrb[0].mxu0
      %1195 = vmatprep.mubr.f32.mxu0 0.0
      %1196 = vmatmul.mubr.f32.gmra.mrb[0].mxu0 %v1014
      %v1197 = vpop.f32.mrb[0].mxu0
      %v1198 = vadd.f32 0.0, %v1197
      %v1199 = vpop.f32.mrb[0].mxu0
      %1200 = vmatprep.mubr.f32.mxu0 0.0
      %1201 = vmatmul.mubr.f32.gmra.mrb[0].mxu0 %v1015
      %v1202 = vpop.f32.mrb[0].mxu0
      %v1203 = vadd.f32 0.0, %v1202
      %v1204 = vpop.f32.mrb[0].mxu0
      %1205 = vmatprep.mubr.f32.mxu0 0.0
      %1206 = vmatmul.mubr.f32.gmra.mrb[0].mxu0 %v1016
      %v1207 = vpop.f32.mrb[0].mxu0
      %v1208 = vadd.f32 0.0, %v1207
      %v1209 = vpop.f32.mrb[0].mxu0
      %1210 = vmatprep.mubr.f32.mxu0 0.0
      %1211 = vmatmul.mubr.f32.gmra.mrb[0].mxu0 %v1017
      %v1212 = vpop.f32.mrb[0].mxu0
      %v1213 = vadd.f32 0.0, %v1212
      %v1214 = vpop.f32.mrb[0].mxu0
      %1215 = vmatprep.mubr.f32.mxu0 0.0
      %1216 = vmatmul.mubr.f32.gmra.mrb[0].mxu0 %v1018
      %v1217 = vpop.f32.mrb[0].mxu0
      %v1218 = vadd.f32 0.0, %v1217
      %v1219 = vpop.f32.mrb[0].mxu0
      %1220 = vmatprep.mubr.f32.mxu0 0.0
      %1221 = vmatmul.mubr.f32.gmra.mrb[0].mxu0 %v1019
      %v1222 = vpop.f32.mrb[0].mxu0
      %v1223 = vadd.f32 0.0, %v1222
      %v1224 = vpop.f32.mrb[0].mxu0
      %1225 = vmatprep.mubr.f32.mxu0 0.0
      %1226 = vmatmul.mubr.f32.gmra.mrb[0].mxu0 %v1020
      %v1227 = vpop.f32.mrb[0].mxu0
      %v1228 = vadd.f32 0.0, %v1227
      %v1229 = vpop.f32.mrb[0].mxu0
      %1230 = vmatprep.mubr.f32.mxu0 0.0
      %1231 = vmatmul.mubr.f32.gmra.mrb[0].mxu0 %v1021
      %v1232 = vpop.f32.mrb[0].mxu0
      %v1233 = vadd.f32 0.0, %v1232
      %v1234 = vpop.f32.mrb[0].mxu0
      %1235 = vmatprep.mubr.f32.mxu0 0.0
      %1236 = vmatmul.mubr.f32.gmra.mrb[0].mxu0 %v1022
      %v1237 = vpop.f32.mrb[0].mxu0
      %v1238 = vadd.f32 0.0, %v1237
      %v1239 = vpop.f32.mrb[0].mxu0
      %1240 = vmatprep.mubr.f32.mxu0 0.0
      %1241 = vmatmul.mubr.f32.gmra.mrb[0].mxu0 %v1023
      %v1242 = vpop.f32.mrb[0].mxu0
      %v1243 = vadd.f32 0.0, %v1242
      %v1244 = vpop.f32.mrb[0].mxu0
      %1245 = vmatprep.mubr.f32.mxu0 0.0
      %1246 = vmatmul.mubr.f32.gmra.mrb[0].mxu0 %v1024
      %v1247 = vpop.f32.mrb[0].mxu0
      %v1248 = vadd.f32 0.0, %v1247
      %v1249 = vpop.f32.mrb[0].mxu0
      %1250 = vmatprep.mubr.f32.mxu0 0.0
      %1251 = vmatmul.mubr.f32.gmra.mrb[0].mxu0 %v1025
      %v1252 = vpop.f32.mrb[0].mxu0
      %v1253 = vadd.f32 0.0, %v1252
      %v1254 = vpop.f32.mrb[0].mxu0
      %1255 = vmatprep.mubr.f32.mxu0 0.0
      %1256 = vmatmul.mubr.f32.gmra.mrb[0].mxu0 %v1026
      %v1257 = vpop.f32.mrb[0].mxu0
      %v1258 = vadd.f32 0.0, %v1257
      %v1259 = vpop.f32.mrb[0].mxu0
      %1260 = vmatprep.mubr.f32.mxu0 0.0
      %1261 = vmatmul.mubr.f32.gmra.mrb[0].mxu0 %v1027
      %v1262 = vpop.f32.mrb[0].mxu0
      %v1263 = vadd.f32 0.0, %v1262
      %v1264 = vpop.f32.mrb[0].mxu0
      %1265 = vmatprep.mubr.f32.mxu0 0.0
      %1266 = vmatmul.mubr.f32.gmra.mrb[0].mxu0 %v1028
      %v1267 = vpop.f32.mrb[0].mxu0
      %v1268 = vadd.f32 0.0, %v1267
      %v1269 = vpop.f32.mrb[0].mxu0
      %1270 = vdwg.mxu0
      %v1271 = vadd.f32 %v839, %v1113
      %v1272 = vadd.f32 %v844, %v1118
      %v1273 = vadd.f32 %v849, %v1123
      %v1274 = vadd.f32 %v854, %v1128
      %v1275 = vadd.f32 %v859, %v1133
      %v1276 = vadd.f32 %v864, %v1138
      %v1277 = vadd.f32 %v869, %v1143
      %v1278 = vadd.f32 %v874, %v1148
      %v1279 = vadd.f32 %v879, %v1153
      %v1280 = vadd.f32 %v884, %v1158
      %v1281 = vadd.f32 %v889, %v1163
      %v1282 = vadd.f32 %v894, %v1168
      %v1283 = vadd.f32 %v899, %v1173
      %v1284 = vadd.f32 %v904, %v1178
      %v1285 = vadd.f32 %v909, %v1183
      %v1286 = vadd.f32 %v914, %v1188
      %v1287 = vadd.f32 %v919, %v1193
      %v1288 = vadd.f32 %v924, %v1198
      %v1289 = vadd.f32 %v929, %v1203
      %v1290 = vadd.f32 %v934, %v1208
      %v1291 = vadd.f32 %v939, %v1213
      %v1292 = vadd.f32 %v944, %v1218
      %v1293 = vadd.f32 %v949, %v1223
      %v1294 = vadd.f32 %v954, %v1228
      %v1295 = vadd.f32 %v959, %v1233
      %v1296 = vadd.f32 %v964, %v1238
      %v1297 = vadd.f32 %v969, %v1243
      %v1298 = vadd.f32 %v974, %v1248
      %v1299 = vadd.f32 %v979, %v1253
      %v1300 = vadd.f32 %v984, %v1258
      %v1301 = vadd.f32 %v989, %v1263
      %v1302 = vadd.f32 %v994, %v1268
      %v1303 = vld [vmem:[%s243] sm:$0xff]
      %v1304 = vld [vmem:[%s243 + $0x8] sm:$0xff]
      %v1305 = vld [vmem:[%s243 + $0x18] sm:$0xff]
      %v1306 = vld [vmem:[%s243 + $0x20] sm:$0xff]
      %v1307 = vld [vmem:[%s243 + $0x30] sm:$0xff]
      %v1308 = vld [vmem:[%s243 + $0x38] sm:$0xff]
      %v1309 = vld [vmem:[%s243 + $0x48] sm:$0xff]
      %v1310 = vld [vmem:[%s243 + $0x50] sm:$0xff]
      %v1311 = vld [vmem:[%s243 + $0x60] sm:$0xff]
      %v1312 = vld [vmem:[%s243 + $0x68] sm:$0xff]
      %v1313 = vld [vmem:[%s243 + $0x78] sm:$0xff]
      %v1314 = vld [vmem:[%s243 + $0x80] sm:$0xff]
      %v1315 = vld [vmem:[%s243 + $0x90] sm:$0xff]
      %v1316 = vld [vmem:[%s243 + $0x98] sm:$0xff]
      %v1317 = vld [vmem:[%s243 + $0xa8] sm:$0xff]
      %v1318 = vld [vmem:[%s243 + $0xb0] sm:$0xff]
      %v1319 = vld [vmem:[%s243 + $0xc0] sm:$0xff]
      %v1320 = vld [vmem:[%s243 + $0xc8] sm:$0xff]
      %v1321 = vld [vmem:[%s243 + $0xd8] sm:$0xff]
      %v1322 = vld [vmem:[%s243 + $0xe0] sm:$0xff]
      %v1323 = vld [vmem:[%s243 + $0xf0] sm:$0xff]
      %v1324 = vld [vmem:[%s243 + $0xf8] sm:$0xff]
      %v1325 = vld [vmem:[%s243 + $0x108] sm:$0xff]
      %v1326 = vld [vmem:[%s243 + $0x110] sm:$0xff]
      %v1327 = vld [vmem:[%s243 + $0x120] sm:$0xff]
      %v1328 = vld [vmem:[%s243 + $0x128] sm:$0xff]
      %v1329 = vld [vmem:[%s243 + $0x138] sm:$0xff]
      %v1330 = vld [vmem:[%s243 + $0x140] sm:$0xff]
      %v1331 = vld [vmem:[%s243 + $0x150] sm:$0xff]
      %v1332 = vld [vmem:[%s243 + $0x158] sm:$0xff]
      %v1333 = vld [vmem:[%s243 + $0x168] sm:$0xff]
      %v1334 = vld [vmem:[%s243 + $0x170] sm:$0xff]
      %s1335 = scalar_lea.vmem %s3, 384
      %v1336 = vld [vmem:[%s1335] sm:$0xff]
      %v1337 = vld [vmem:[%s1335 + $0x8] sm:$0xff]
      %v1338 = vld [vmem:[%s1335 + $0x10] sm:$0xff]
      %v1339 = vld [vmem:[%s1335 + $0x18] sm:$0xff]
      %v1340 = vld [vmem:[%s1335 + $0x20] sm:$0xff]
      %v1341 = vld [vmem:[%s1335 + $0x28] sm:$0xff]
      %v1342 = vld [vmem:[%s1335 + $0x30] sm:$0xff]
      %v1343 = vld [vmem:[%s1335 + $0x38] sm:$0xff]
      %v1344 = vld [vmem:[%s1335 + $0x40] sm:$0xff]
      %v1345 = vld [vmem:[%s1335 + $0x48] sm:$0xff]
      %v1346 = vld [vmem:[%s1335 + $0x50] sm:$0xff]
      %v1347 = vld [vmem:[%s1335 + $0x58] sm:$0xff]
      %v1348 = vld [vmem:[%s1335 + $0x60] sm:$0xff]
      %v1349 = vld [vmem:[%s1335 + $0x68] sm:$0xff]
      %v1350 = vld [vmem:[%s1335 + $0x70] sm:$0xff]
      %v1351 = vld [vmem:[%s1335 + $0x78] sm:$0xff]
      %1352 = vmatprep.subr.mxu0 0.0
      %1353 = vmatpush1.msra.mxu0 %v1336
      %1354 = vmatprep.subr.mxu0 0.0
      %1355 = vmatpush1.msra.mxu0 %v1337
      %1356 = vmatprep.subr.mxu0 0.0
      %1357 = vmatpush1.msra.mxu0 %v1338
      %1358 = vmatprep.subr.mxu0 0.0
      %1359 = vmatpush1.msra.mxu0 %v1339
      %1360 = vmatprep.subr.mxu0 0.0
      %1361 = vmatpush1.msra.mxu0 %v1340
      %1362 = vmatprep.subr.mxu0 0.0
      %1363 = vmatpush1.msra.mxu0 %v1341
      %1364 = vmatprep.subr.mxu0 0.0
      %1365 = vmatpush1.msra.mxu0 %v1342
      %1366 = vmatprep.subr.mxu0 0.0
      %1367 = vmatpush1.msra.mxu0 %v1343
      %1368 = vmatprep.subr.mxu0 0.0
      %1369 = vmatpush1.msra.mxu0 %v1344
      %1370 = vmatprep.subr.mxu0 0.0
      %1371 = vmatpush1.msra.mxu0 %v1345
      %1372 = vmatprep.subr.mxu0 0.0
      %1373 = vmatpush1.msra.mxu0 %v1346
      %1374 = vmatprep.subr.mxu0 0.0
      %1375 = vmatpush1.msra.mxu0 %v1347
      %1376 = vmatprep.subr.mxu0 0.0
      %1377 = vmatpush1.msra.mxu0 %v1348
      %1378 = vmatprep.subr.mxu0 0.0
      %1379 = vmatpush1.msra.mxu0 %v1349
      %1380 = vmatprep.subr.mxu0 0.0
      %1381 = vmatpush1.msra.mxu0 %v1350
      %1382 = vmatprep.subr.mxu0 0.0
      %1383 = vmatpush1.msra.mxu0 %v1351
      %1384 = vmatprep.subr.mxu0 0.0
      %1385 = vmatpush1.msra.mxu0 0.0
      %1386 = vmatprep.subr.mxu0 0.0
      %1387 = vmatpush1.msra.mxu0 0.0
      %1388 = vmatprep.subr.mxu0 0.0
      %1389 = vmatpush1.msra.mxu0 0.0
      %1390 = vmatprep.subr.mxu0 0.0
      %1391 = vmatpush1.msra.mxu0 0.0
      %1392 = vmatprep.subr.mxu0 0.0
      %1393 = vmatpush1.msra.mxu0 0.0
      %1394 = vmatprep.subr.mxu0 0.0
      %1395 = vmatpush1.msra.mxu0 0.0
      %1396 = vmatprep.subr.mxu0 0.0
      %1397 = vmatpush1.msra.mxu0 0.0
      %1398 = vmatprep.subr.mxu0 0.0
      %1399 = vmatpush1.msra.mxu0 0.0
      %1400 = vmatprep.subr.mxu0 0.0
      %1401 = vmatpush1.msra.mxu0 0.0
      %1402 = vmatprep.subr.mxu0 0.0
      %1403 = vmatpush1.msra.mxu0 0.0
      %1404 = vmatprep.subr.mxu0 0.0
      %1405 = vmatpush1.msra.mxu0 0.0
      %1406 = vmatprep.subr.mxu0 0.0
      %1407 = vmatpush1.msra.mxu0 0.0
      %1408 = vmatprep.subr.mxu0 0.0
      %1409 = vmatpush1.msra.mxu0 0.0
      %1410 = vmatprep.subr.mxu0 0.0
      %1411 = vmatpush1.msra.mxu0 0.0
      %1412 = vmatprep.subr.mxu0 0.0
      %1413 = vmatpush1.msra.mxu0 0.0
      %1414 = vmatprep.subr.mxu0 0.0
      %1415 = vmatpush1.msra.mxu0 0.0
      %1416 = vmatprep.mubr.f32.mxu0 0.0
      %1417 = vmatmul.mubr.f32.gmra.mrb[0].mxu0 %v1303
      %v1418 = vpop.f32.mrb[0].mxu0
      %v1419 = vadd.f32 0.0, %v1418
      %v1420 = vpop.f32.mrb[0].mxu0
      %1421 = vmatprep.mubr.f32.mxu0 0.0
      %1422 = vmatmul.mubr.f32.gmra.mrb[0].mxu0 %v1304
      %v1423 = vpop.f32.mrb[0].mxu0
      %v1424 = vadd.f32 0.0, %v1423
      %v1425 = vpop.f32.mrb[0].mxu0
      %1426 = vmatprep.mubr.f32.mxu0 0.0
      %1427 = vmatmul.mubr.f32.gmra.mrb[0].mxu0 %v1305
      %v1428 = vpop.f32.mrb[0].mxu0
      %v1429 = vadd.f32 0.0, %v1428
      %v1430 = vpop.f32.mrb[0].mxu0
      %1431 = vmatprep.mubr.f32.mxu0 0.0
      %1432 = vmatmul.mubr.f32.gmra.mrb[0].mxu0 %v1306
      %v1433 = vpop.f32.mrb[0].mxu0
      %v1434 = vadd.f32 0.0, %v1433
      %v1435 = vpop.f32.mrb[0].mxu0
      %1436 = vmatprep.mubr.f32.mxu0 0.0
      %1437 = vmatmul.mubr.f32.gmra.mrb[0].mxu0 %v1307
      %v1438 = vpop.f32.mrb[0].mxu0
      %v1439 = vadd.f32 0.0, %v1438
      %v1440 = vpop.f32.mrb[0].mxu0
      %1441 = vmatprep.mubr.f32.mxu0 0.0
      %1442 = vmatmul.mubr.f32.gmra.mrb[0].mxu0 %v1308
      %v1443 = vpop.f32.mrb[0].mxu0
      %v1444 = vadd.f32 0.0, %v1443
      %v1445 = vpop.f32.mrb[0].mxu0
      %1446 = vmatprep.mubr.f32.mxu0 0.0
      %1447 = vmatmul.mubr.f32.gmra.mrb[0].mxu0 %v1309
      %v1448 = vpop.f32.mrb[0].mxu0
      %v1449 = vadd.f32 0.0, %v1448
      %v1450 = vpop.f32.mrb[0].mxu0
      %1451 = vmatprep.mubr.f32.mxu0 0.0
      %1452 = vmatmul.mubr.f32.gmra.mrb[0].mxu0 %v1310
      %v1453 = vpop.f32.mrb[0].mxu0
      %v1454 = vadd.f32 0.0, %v1453
      %v1455 = vpop.f32.mrb[0].mxu0
      %1456 = vmatprep.mubr.f32.mxu0 0.0
      %1457 = vmatmul.mubr.f32.gmra.mrb[0].mxu0 %v1311
      %v1458 = vpop.f32.mrb[0].mxu0
      %v1459 = vadd.f32 0.0, %v1458
      %v1460 = vpop.f32.mrb[0].mxu0
      %1461 = vmatprep.mubr.f32.mxu0 0.0
      %1462 = vmatmul.mubr.f32.gmra.mrb[0].mxu0 %v1312
      %v1463 = vpop.f32.mrb[0].mxu0
      %v1464 = vadd.f32 0.0, %v1463
      %v1465 = vpop.f32.mrb[0].mxu0
      %1466 = vmatprep.mubr.f32.mxu0 0.0
      %1467 = vmatmul.mubr.f32.gmra.mrb[0].mxu0 %v1313
      %v1468 = vpop.f32.mrb[0].mxu0
      %v1469 = vadd.f32 0.0, %v1468
      %v1470 = vpop.f32.mrb[0].mxu0
      %1471 = vmatprep.mubr.f32.mxu0 0.0
      %1472 = vmatmul.mubr.f32.gmra.mrb[0].mxu0 %v1314
      %v1473 = vpop.f32.mrb[0].mxu0
      %v1474 = vadd.f32 0.0, %v1473
      %v1475 = vpop.f32.mrb[0].mxu0
      %1476 = vmatprep.mubr.f32.mxu0 0.0
      %1477 = vmatmul.mubr.f32.gmra.mrb[0].mxu0 %v1315
      %v1478 = vpop.f32.mrb[0].mxu0
      %v1479 = vadd.f32 0.0, %v1478
      %v1480 = vpop.f32.mrb[0].mxu0
      %1481 = vmatprep.mubr.f32.mxu0 0.0
      %1482 = vmatmul.mubr.f32.gmra.mrb[0].mxu0 %v1316
      %v1483 = vpop.f32.mrb[0].mxu0
      %v1484 = vadd.f32 0.0, %v1483
      %v1485 = vpop.f32.mrb[0].mxu0
      %1486 = vmatprep.mubr.f32.mxu0 0.0
      %1487 = vmatmul.mubr.f32.gmra.mrb[0].mxu0 %v1317
      %v1488 = vpop.f32.mrb[0].mxu0
      %v1489 = vadd.f32 0.0, %v1488
      %v1490 = vpop.f32.mrb[0].mxu0
      %1491 = vmatprep.mubr.f32.mxu0 0.0
      %1492 = vmatmul.mubr.f32.gmra.mrb[0].mxu0 %v1318
      %v1493 = vpop.f32.mrb[0].mxu0
      %v1494 = vadd.f32 0.0, %v1493
      %v1495 = vpop.f32.mrb[0].mxu0
      %1496 = vmatprep.mubr.f32.mxu0 0.0
      %1497 = vmatmul.mubr.f32.gmra.mrb[0].mxu0 %v1319
      %v1498 = vpop.f32.mrb[0].mxu0
      %v1499 = vadd.f32 0.0, %v1498
      %v1500 = vpop.f32.mrb[0].mxu0
      %1501 = vmatprep.mubr.f32.mxu0 0.0
      %1502 = vmatmul.mubr.f32.gmra.mrb[0].mxu0 %v1320
      %v1503 = vpop.f32.mrb[0].mxu0
      %v1504 = vadd.f32 0.0, %v1503
      %v1505 = vpop.f32.mrb[0].mxu0
      %1506 = vmatprep.mubr.f32.mxu0 0.0
      %1507 = vmatmul.mubr.f32.gmra.mrb[0].mxu0 %v1321
      %v1508 = vpop.f32.mrb[0].mxu0
      %v1509 = vadd.f32 0.0, %v1508
      %v1510 = vpop.f32.mrb[0].mxu0
      %1511 = vmatprep.mubr.f32.mxu0 0.0
      %1512 = vmatmul.mubr.f32.gmra.mrb[0].mxu0 %v1322
      %v1513 = vpop.f32.mrb[0].mxu0
      %v1514 = vadd.f32 0.0, %v1513
      %v1515 = vpop.f32.mrb[0].mxu0
      %1516 = vmatprep.mubr.f32.mxu0 0.0
      %1517 = vmatmul.mubr.f32.gmra.mrb[0].mxu0 %v1323
      %v1518 = vpop.f32.mrb[0].mxu0
      %v1519 = vadd.f32 0.0, %v1518
      %v1520 = vpop.f32.mrb[0].mxu0
      %1521 = vmatprep.mubr.f32.mxu0 0.0
      %1522 = vmatmul.mubr.f32.gmra.mrb[0].mxu0 %v1324
      %v1523 = vpop.f32.mrb[0].mxu0
      %v1524 = vadd.f32 0.0, %v1523
      %v1525 = vpop.f32.mrb[0].mxu0
      %1526 = vmatprep.mubr.f32.mxu0 0.0
      %1527 = vmatmul.mubr.f32.gmra.mrb[0].mxu0 %v1325
      %v1528 = vpop.f32.mrb[0].mxu0
      %v1529 = vadd.f32 0.0, %v1528
      %v1530 = vpop.f32.mrb[0].mxu0
      %1531 = vmatprep.mubr.f32.mxu0 0.0
      %1532 = vmatmul.mubr.f32.gmra.mrb[0].mxu0 %v1326
      %v1533 = vpop.f32.mrb[0].mxu0
      %v1534 = vadd.f32 0.0, %v1533
      %v1535 = vpop.f32.mrb[0].mxu0
      %1536 = vmatprep.mubr.f32.mxu0 0.0
      %1537 = vmatmul.mubr.f32.gmra.mrb[0].mxu0 %v1327
      %v1538 = vpop.f32.mrb[0].mxu0
      %v1539 = vadd.f32 0.0, %v1538
      %v1540 = vpop.f32.mrb[0].mxu0
      %1541 = vmatprep.mubr.f32.mxu0 0.0
      %1542 = vmatmul.mubr.f32.gmra.mrb[0].mxu0 %v1328
      %v1543 = vpop.f32.mrb[0].mxu0
      %v1544 = vadd.f32 0.0, %v1543
      %v1545 = vpop.f32.mrb[0].mxu0
      %1546 = vmatprep.mubr.f32.mxu0 0.0
      %1547 = vmatmul.mubr.f32.gmra.mrb[0].mxu0 %v1329
      %v1548 = vpop.f32.mrb[0].mxu0
      %v1549 = vadd.f32 0.0, %v1548
      %v1550 = vpop.f32.mrb[0].mxu0
      %1551 = vmatprep.mubr.f32.mxu0 0.0
      %1552 = vmatmul.mubr.f32.gmra.mrb[0].mxu0 %v1330
      %v1553 = vpop.f32.mrb[0].mxu0
      %v1554 = vadd.f32 0.0, %v1553
      %v1555 = vpop.f32.mrb[0].mxu0
      %1556 = vmatprep.mubr.f32.mxu0 0.0
      %1557 = vmatmul.mubr.f32.gmra.mrb[0].mxu0 %v1331
      %v1558 = vpop.f32.mrb[0].mxu0
      %v1559 = vadd.f32 0.0, %v1558
      %v1560 = vpop.f32.mrb[0].mxu0
      %1561 = vmatprep.mubr.f32.mxu0 0.0
      %1562 = vmatmul.mubr.f32.gmra.mrb[0].mxu0 %v1332
      %v1563 = vpop.f32.mrb[0].mxu0
      %v1564 = vadd.f32 0.0, %v1563
      %v1565 = vpop.f32.mrb[0].mxu0
      %1566 = vmatprep.mubr.f32.mxu0 0.0
      %1567 = vmatmul.mubr.f32.gmra.mrb[0].mxu0 %v1333
      %v1568 = vpop.f32.mrb[0].mxu0
      %v1569 = vadd.f32 0.0, %v1568
      %v1570 = vpop.f32.mrb[0].mxu0
      %1571 = vmatprep.mubr.f32.mxu0 0.0
      %1572 = vmatmul.mubr.f32.gmra.mrb[0].mxu0 %v1334
      %v1573 = vpop.f32.mrb[0].mxu0
      %v1574 = vadd.f32 0.0, %v1573
      %v1575 = vpop.f32.mrb[0].mxu0
      %1576 = vdwg.mxu0
      %v1577 = vadd.f32 %v1271, %v1419
      %v1578 = vadd.f32 %v1272, %v1424
      %v1579 = vadd.f32 %v1273, %v1429
      %v1580 = vadd.f32 %v1274, %v1434
      %v1581 = vadd.f32 %v1275, %v1439
      %v1582 = vadd.f32 %v1276, %v1444
      %v1583 = vadd.f32 %v1277, %v1449
      %v1584 = vadd.f32 %v1278, %v1454
      %v1585 = vadd.f32 %v1279, %v1459
      %v1586 = vadd.f32 %v1280, %v1464
      %v1587 = vadd.f32 %v1281, %v1469
      %v1588 = vadd.f32 %v1282, %v1474
      %v1589 = vadd.f32 %v1283, %v1479
      %v1590 = vadd.f32 %v1284, %v1484
      %v1591 = vadd.f32 %v1285, %v1489
      %v1592 = vadd.f32 %v1286, %v1494
      %v1593 = vadd.f32 %v1287, %v1499
      %v1594 = vadd.f32 %v1288, %v1504
      %v1595 = vadd.f32 %v1289, %v1509
      %v1596 = vadd.f32 %v1290, %v1514
      %v1597 = vadd.f32 %v1291, %v1519
      %v1598 = vadd.f32 %v1292, %v1524
      %v1599 = vadd.f32 %v1293, %v1529
      %v1600 = vadd.f32 %v1294, %v1534
      %v1601 = vadd.f32 %v1295, %v1539
      %v1602 = vadd.f32 %v1296, %v1544
      %v1603 = vadd.f32 %v1297, %v1549
      %v1604 = vadd.f32 %v1298, %v1554
      %v1605 = vadd.f32 %v1299, %v1559
      %v1606 = vadd.f32 %v1300, %v1564
      %v1607 = vadd.f32 %v1301, %v1569
      %v1608 = vadd.f32 %v1302, %v1574
      %v1609 = vld [vmem:[%s243 + $0x1] sm:$0xff]
      %v1610 = vld [vmem:[%s243 + $0x9] sm:$0xff]
      %v1611 = vld [vmem:[%s243 + $0x19] sm:$0xff]
      %v1612 = vld [vmem:[%s243 + $0x21] sm:$0xff]
      %v1613 = vld [vmem:[%s243 + $0x31] sm:$0xff]
      %v1614 = vld [vmem:[%s243 + $0x39] sm:$0xff]
      %v1615 = vld [vmem:[%s243 + $0x49] sm:$0xff]
      %v1616 = vld [vmem:[%s243 + $0x51] sm:$0xff]
      %v1617 = vld [vmem:[%s243 + $0x61] sm:$0xff]
      %v1618 = vld [vmem:[%s243 + $0x69] sm:$0xff]
      %v1619 = vld [vmem:[%s243 + $0x79] sm:$0xff]
      %v1620 = vld [vmem:[%s243 + $0x81] sm:$0xff]
      %v1621 = vld [vmem:[%s243 + $0x91] sm:$0xff]
      %v1622 = vld [vmem:[%s243 + $0x99] sm:$0xff]
      %v1623 = vld [vmem:[%s243 + $0xa9] sm:$0xff]
      %v1624 = vld [vmem:[%s243 + $0xb1] sm:$0xff]
      %v1625 = vld [vmem:[%s243 + $0xc1] sm:$0xff]
      %v1626 = vld [vmem:[%s243 + $0xc9] sm:$0xff]
      %v1627 = vld [vmem:[%s243 + $0xd9] sm:$0xff]
      %v1628 = vld [vmem:[%s243 + $0xe1] sm:$0xff]
      %v1629 = vld [vmem:[%s243 + $0xf1] sm:$0xff]
      %v1630 = vld [vmem:[%s243 + $0xf9] sm:$0xff]
      %v1631 = vld [vmem:[%s243 + $0x109] sm:$0xff]
      %v1632 = vld [vmem:[%s243 + $0x111] sm:$0xff]
      %v1633 = vld [vmem:[%s243 + $0x121] sm:$0xff]
      %v1634 = vld [vmem:[%s243 + $0x129] sm:$0xff]
      %v1635 = vld [vmem:[%s243 + $0x139] sm:$0xff]
      %v1636 = vld [vmem:[%s243 + $0x141] sm:$0xff]
      %v1637 = vld [vmem:[%s243 + $0x151] sm:$0xff]
      %v1638 = vld [vmem:[%s243 + $0x159] sm:$0xff]
      %v1639 = vld [vmem:[%s243 + $0x169] sm:$0xff]
      %v1640 = vld [vmem:[%s243 + $0x171] sm:$0xff]
      %s1641 = scalar_lea.vmem %s3, 512
      %v1642 = vld [vmem:[%s1641] sm:$0xff]
      %v1643 = vld [vmem:[%s1641 + $0x8] sm:$0xff]
      %v1644 = vld [vmem:[%s1641 + $0x10] sm:$0xff]
      %v1645 = vld [vmem:[%s1641 + $0x18] sm:$0xff]
      %v1646 = vld [vmem:[%s1641 + $0x20] sm:$0xff]
      %v1647 = vld [vmem:[%s1641 + $0x28] sm:$0xff]
      %v1648 = vld [vmem:[%s1641 + $0x30] sm:$0xff]
      %v1649 = vld [vmem:[%s1641 + $0x38] sm:$0xff]
      %v1650 = vld [vmem:[%s1641 + $0x40] sm:$0xff]
      %v1651 = vld [vmem:[%s1641 + $0x48] sm:$0xff]
      %v1652 = vld [vmem:[%s1641 + $0x50] sm:$0xff]
      %v1653 = vld [vmem:[%s1641 + $0x58] sm:$0xff]
      %v1654 = vld [vmem:[%s1641 + $0x60] sm:$0xff]
      %v1655 = vld [vmem:[%s1641 + $0x68] sm:$0xff]
      %v1656 = vld [vmem:[%s1641 + $0x70] sm:$0xff]
      %v1657 = vld [vmem:[%s1641 + $0x78] sm:$0xff]
      %1658 = vmatprep.subr.mxu0 0.0
      %1659 = vmatpush1.msra.mxu0 %v1642
      %1660 = vmatprep.subr.mxu0 0.0
      %1661 = vmatpush1.msra.mxu0 %v1643
      %1662 = vmatprep.subr.mxu0 0.0
      %1663 = vmatpush1.msra.mxu0 %v1644
      %1664 = vmatprep.subr.mxu0 0.0
      %1665 = vmatpush1.msra.mxu0 %v1645
      %1666 = vmatprep.subr.mxu0 0.0
      %1667 = vmatpush1.msra.mxu0 %v1646
      %1668 = vmatprep.subr.mxu0 0.0
      %1669 = vmatpush1.msra.mxu0 %v1647
      %1670 = vmatprep.subr.mxu0 0.0
      %1671 = vmatpush1.msra.mxu0 %v1648
      %1672 = vmatprep.subr.mxu0 0.0
      %1673 = vmatpush1.msra.mxu0 %v1649
      %1674 = vmatprep.subr.mxu0 0.0
      %1675 = vmatpush1.msra.mxu0 %v1650
      %1676 = vmatprep.subr.mxu0 0.0
      %1677 = vmatpush1.msra.mxu0 %v1651
      %1678 = vmatprep.subr.mxu0 0.0
      %1679 = vmatpush1.msra.mxu0 %v1652
      %1680 = vmatprep.subr.mxu0 0.0
      %1681 = vmatpush1.msra.mxu0 %v1653
      %1682 = vmatprep.subr.mxu0 0.0
      %1683 = vmatpush1.msra.mxu0 %v1654
      %1684 = vmatprep.subr.mxu0 0.0
      %1685 = vmatpush1.msra.mxu0 %v1655
      %1686 = vmatprep.subr.mxu0 0.0
      %1687 = vmatpush1.msra.mxu0 %v1656
      %1688 = vmatprep.subr.mxu0 0.0
      %1689 = vmatpush1.msra.mxu0 %v1657
      %1690 = vmatprep.subr.mxu0 0.0
      %1691 = vmatpush1.msra.mxu0 0.0
      %1692 = vmatprep.subr.mxu0 0.0
      %1693 = vmatpush1.msra.mxu0 0.0
      %1694 = vmatprep.subr.mxu0 0.0
      %1695 = vmatpush1.msra.mxu0 0.0
      %1696 = vmatprep.subr.mxu0 0.0
      %1697 = vmatpush1.msra.mxu0 0.0
      %1698 = vmatprep.subr.mxu0 0.0
      %1699 = vmatpush1.msra.mxu0 0.0
      %1700 = vmatprep.subr.mxu0 0.0
      %1701 = vmatpush1.msra.mxu0 0.0
      %1702 = vmatprep.subr.mxu0 0.0
      %1703 = vmatpush1.msra.mxu0 0.0
      %1704 = vmatprep.subr.mxu0 0.0
      %1705 = vmatpush1.msra.mxu0 0.0
      %1706 = vmatprep.subr.mxu0 0.0
      %1707 = vmatpush1.msra.mxu0 0.0
      %1708 = vmatprep.subr.mxu0 0.0
      %1709 = vmatpush1.msra.mxu0 0.0
      %1710 = vmatprep.subr.mxu0 0.0
      %1711 = vmatpush1.msra.mxu0 0.0
      %1712 = vmatprep.subr.mxu0 0.0
      %1713 = vmatpush1.msra.mxu0 0.0
      %1714 = vmatprep.subr.mxu0 0.0
      %1715 = vmatpush1.msra.mxu0 0.0
      %1716 = vmatprep.subr.mxu0 0.0
      %1717 = vmatpush1.msra.mxu0 0.0
      %1718 = vmatprep.subr.mxu0 0.0
      %1719 = vmatpush1.msra.mxu0 0.0
      %1720 = vmatprep.subr.mxu0 0.0
      %1721 = vmatpush1.msra.mxu0 0.0
      %1722 = vmatprep.mubr.f32.mxu0 0.0
      %1723 = vmatmul.mubr.f32.gmra.mrb[0].mxu0 %v1609
      %v1724 = vpop.f32.mrb[0].mxu0
      %v1725 = vadd.f32 0.0, %v1724
      %v1726 = vpop.f32.mrb[0].mxu0
      %1727 = vmatprep.mubr.f32.mxu0 0.0
      %1728 = vmatmul.mubr.f32.gmra.mrb[0].mxu0 %v1610
      %v1729 = vpop.f32.mrb[0].mxu0
      %v1730 = vadd.f32 0.0, %v1729
      %v1731 = vpop.f32.mrb[0].mxu0
      %1732 = vmatprep.mubr.f32.mxu0 0.0
      %1733 = vmatmul.mubr.f32.gmra.mrb[0].mxu0 %v1611
      %v1734 = vpop.f32.mrb[0].mxu0
      %v1735 = vadd.f32 0.0, %v1734
      %v1736 = vpop.f32.mrb[0].mxu0
      %1737 = vmatprep.mubr.f32.mxu0 0.0
      %1738 = vmatmul.mubr.f32.gmra.mrb[0].mxu0 %v1612
      %v1739 = vpop.f32.mrb[0].mxu0
      %v1740 = vadd.f32 0.0, %v1739
      %v1741 = vpop.f32.mrb[0].mxu0
      %1742 = vmatprep.mubr.f32.mxu0 0.0
      %1743 = vmatmul.mubr.f32.gmra.mrb[0].mxu0 %v1613
      %v1744 = vpop.f32.mrb[0].mxu0
      %v1745 = vadd.f32 0.0, %v1744
      %v1746 = vpop.f32.mrb[0].mxu0
      %1747 = vmatprep.mubr.f32.mxu0 0.0
      %1748 = vmatmul.mubr.f32.gmra.mrb[0].mxu0 %v1614
      %v1749 = vpop.f32.mrb[0].mxu0
      %v1750 = vadd.f32 0.0, %v1749
      %v1751 = vpop.f32.mrb[0].mxu0
      %1752 = vmatprep.mubr.f32.mxu0 0.0
      %1753 = vmatmul.mubr.f32.gmra.mrb[0].mxu0 %v1615
      %v1754 = vpop.f32.mrb[0].mxu0
      %v1755 = vadd.f32 0.0, %v1754
      %v1756 = vpop.f32.mrb[0].mxu0
      %1757 = vmatprep.mubr.f32.mxu0 0.0
      %1758 = vmatmul.mubr.f32.gmra.mrb[0].mxu0 %v1616
      %v1759 = vpop.f32.mrb[0].mxu0
      %v1760 = vadd.f32 0.0, %v1759
      %v1761 = vpop.f32.mrb[0].mxu0
      %1762 = vmatprep.mubr.f32.mxu0 0.0
      %1763 = vmatmul.mubr.f32.gmra.mrb[0].mxu0 %v1617
      %v1764 = vpop.f32.mrb[0].mxu0
      %v1765 = vadd.f32 0.0, %v1764
      %v1766 = vpop.f32.mrb[0].mxu0
      %1767 = vmatprep.mubr.f32.mxu0 0.0
      %1768 = vmatmul.mubr.f32.gmra.mrb[0].mxu0 %v1618
      %v1769 = vpop.f32.mrb[0].mxu0
      %v1770 = vadd.f32 0.0, %v1769
      %v1771 = vpop.f32.mrb[0].mxu0
      %1772 = vmatprep.mubr.f32.mxu0 0.0
      %1773 = vmatmul.mubr.f32.gmra.mrb[0].mxu0 %v1619
      %v1774 = vpop.f32.mrb[0].mxu0
      %v1775 = vadd.f32 0.0, %v1774
      %v1776 = vpop.f32.mrb[0].mxu0
      %1777 = vmatprep.mubr.f32.mxu0 0.0
      %1778 = vmatmul.mubr.f32.gmra.mrb[0].mxu0 %v1620
      %v1779 = vpop.f32.mrb[0].mxu0
      %v1780 = vadd.f32 0.0, %v1779
      %v1781 = vpop.f32.mrb[0].mxu0
      %1782 = vmatprep.mubr.f32.mxu0 0.0
      %1783 = vmatmul.mubr.f32.gmra.mrb[0].mxu0 %v1621
      %v1784 = vpop.f32.mrb[0].mxu0
      %v1785 = vadd.f32 0.0, %v1784
      %v1786 = vpop.f32.mrb[0].mxu0
      %1787 = vmatprep.mubr.f32.mxu0 0.0
      %1788 = vmatmul.mubr.f32.gmra.mrb[0].mxu0 %v1622
      %v1789 = vpop.f32.mrb[0].mxu0
      %v1790 = vadd.f32 0.0, %v1789
      %v1791 = vpop.f32.mrb[0].mxu0
      %1792 = vmatprep.mubr.f32.mxu0 0.0
      %1793 = vmatmul.mubr.f32.gmra.mrb[0].mxu0 %v1623
      %v1794 = vpop.f32.mrb[0].mxu0
      %v1795 = vadd.f32 0.0, %v1794
      %v1796 = vpop.f32.mrb[0].mxu0
      %1797 = vmatprep.mubr.f32.mxu0 0.0
      %1798 = vmatmul.mubr.f32.gmra.mrb[0].mxu0 %v1624
      %v1799 = vpop.f32.mrb[0].mxu0
      %v1800 = vadd.f32 0.0, %v1799
      %v1801 = vpop.f32.mrb[0].mxu0
      %1802 = vmatprep.mubr.f32.mxu0 0.0
      %1803 = vmatmul.mubr.f32.gmra.mrb[0].mxu0 %v1625
      %v1804 = vpop.f32.mrb[0].mxu0
      %v1805 = vadd.f32 0.0, %v1804
      %v1806 = vpop.f32.mrb[0].mxu0
      %1807 = vmatprep.mubr.f32.mxu0 0.0
      %1808 = vmatmul.mubr.f32.gmra.mrb[0].mxu0 %v1626
      %v1809 = vpop.f32.mrb[0].mxu0
      %v1810 = vadd.f32 0.0, %v1809
      %v1811 = vpop.f32.mrb[0].mxu0
      %1812 = vmatprep.mubr.f32.mxu0 0.0
      %1813 = vmatmul.mubr.f32.gmra.mrb[0].mxu0 %v1627
      %v1814 = vpop.f32.mrb[0].mxu0
      %v1815 = vadd.f32 0.0, %v1814
      %v1816 = vpop.f32.mrb[0].mxu0
      %1817 = vmatprep.mubr.f32.mxu0 0.0
      %1818 = vmatmul.mubr.f32.gmra.mrb[0].mxu0 %v1628
      %v1819 = vpop.f32.mrb[0].mxu0
      %v1820 = vadd.f32 0.0, %v1819
      %v1821 = vpop.f32.mrb[0].mxu0
      %1822 = vmatprep.mubr.f32.mxu0 0.0
      %1823 = vmatmul.mubr.f32.gmra.mrb[0].mxu0 %v1629
      %v1824 = vpop.f32.mrb[0].mxu0
      %v1825 = vadd.f32 0.0, %v1824
      %v1826 = vpop.f32.mrb[0].mxu0
      %1827 = vmatprep.mubr.f32.mxu0 0.0
      %1828 = vmatmul.mubr.f32.gmra.mrb[0].mxu0 %v1630
      %v1829 = vpop.f32.mrb[0].mxu0
      %v1830 = vadd.f32 0.0, %v1829
      %v1831 = vpop.f32.mrb[0].mxu0
      %1832 = vmatprep.mubr.f32.mxu0 0.0
      %1833 = vmatmul.mubr.f32.gmra.mrb[0].mxu0 %v1631
      %v1834 = vpop.f32.mrb[0].mxu0
      %v1835 = vadd.f32 0.0, %v1834
      %v1836 = vpop.f32.mrb[0].mxu0
      %1837 = vmatprep.mubr.f32.mxu0 0.0
      %1838 = vmatmul.mubr.f32.gmra.mrb[0].mxu0 %v1632
      %v1839 = vpop.f32.mrb[0].mxu0
      %v1840 = vadd.f32 0.0, %v1839
      %v1841 = vpop.f32.mrb[0].mxu0
      %1842 = vmatprep.mubr.f32.mxu0 0.0
      %1843 = vmatmul.mubr.f32.gmra.mrb[0].mxu0 %v1633
      %v1844 = vpop.f32.mrb[0].mxu0
      %v1845 = vadd.f32 0.0, %v1844
      %v1846 = vpop.f32.mrb[0].mxu0
      %1847 = vmatprep.mubr.f32.mxu0 0.0
      %1848 = vmatmul.mubr.f32.gmra.mrb[0].mxu0 %v1634
      %v1849 = vpop.f32.mrb[0].mxu0
      %v1850 = vadd.f32 0.0, %v1849
      %v1851 = vpop.f32.mrb[0].mxu0
      %1852 = vmatprep.mubr.f32.mxu0 0.0
      %1853 = vmatmul.mubr.f32.gmra.mrb[0].mxu0 %v1635
      %v1854 = vpop.f32.mrb[0].mxu0
      %v1855 = vadd.f32 0.0, %v1854
      %v1856 = vpop.f32.mrb[0].mxu0
      %1857 = vmatprep.mubr.f32.mxu0 0.0
      %1858 = vmatmul.mubr.f32.gmra.mrb[0].mxu0 %v1636
      %v1859 = vpop.f32.mrb[0].mxu0
      %v1860 = vadd.f32 0.0, %v1859
      %v1861 = vpop.f32.mrb[0].mxu0
      %1862 = vmatprep.mubr.f32.mxu0 0.0
      %1863 = vmatmul.mubr.f32.gmra.mrb[0].mxu0 %v1637
      %v1864 = vpop.f32.mrb[0].mxu0
      %v1865 = vadd.f32 0.0, %v1864
      %v1866 = vpop.f32.mrb[0].mxu0
      %1867 = vmatprep.mubr.f32.mxu0 0.0
      %1868 = vmatmul.mubr.f32.gmra.mrb[0].mxu0 %v1638
      %v1869 = vpop.f32.mrb[0].mxu0
      %v1870 = vadd.f32 0.0, %v1869
      %v1871 = vpop.f32.mrb[0].mxu0
      %1872 = vmatprep.mubr.f32.mxu0 0.0
      %1873 = vmatmul.mubr.f32.gmra.mrb[0].mxu0 %v1639
      %v1874 = vpop.f32.mrb[0].mxu0
      %v1875 = vadd.f32 0.0, %v1874
      %v1876 = vpop.f32.mrb[0].mxu0
      %1877 = vmatprep.mubr.f32.mxu0 0.0
      %1878 = vmatmul.mubr.f32.gmra.mrb[0].mxu0 %v1640
      %v1879 = vpop.f32.mrb[0].mxu0
      %v1880 = vadd.f32 0.0, %v1879
      %v1881 = vpop.f32.mrb[0].mxu0
      %1882 = vdwg.mxu0
      %v1883 = vadd.f32 %v1577, %v1725
      %v1884 = vadd.f32 %v1578, %v1730
      %v1885 = vadd.f32 %v1579, %v1735
      %v1886 = vadd.f32 %v1580, %v1740
      %v1887 = vadd.f32 %v1581, %v1745
      %v1888 = vadd.f32 %v1582, %v1750
      %v1889 = vadd.f32 %v1583, %v1755
      %v1890 = vadd.f32 %v1584, %v1760
      %v1891 = vadd.f32 %v1585, %v1765
      %v1892 = vadd.f32 %v1586, %v1770
      %v1893 = vadd.f32 %v1587, %v1775
      %v1894 = vadd.f32 %v1588, %v1780
      %v1895 = vadd.f32 %v1589, %v1785
      %v1896 = vadd.f32 %v1590, %v1790
      %v1897 = vadd.f32 %v1591, %v1795
      %v1898 = vadd.f32 %v1592, %v1800
      %v1899 = vadd.f32 %v1593, %v1805
      %v1900 = vadd.f32 %v1594, %v1810
      %v1901 = vadd.f32 %v1595, %v1815
      %v1902 = vadd.f32 %v1596, %v1820
      %v1903 = vadd.f32 %v1597, %v1825
      %v1904 = vadd.f32 %v1598, %v1830
      %v1905 = vadd.f32 %v1599, %v1835
      %v1906 = vadd.f32 %v1600, %v1840
      %v1907 = vadd.f32 %v1601, %v1845
      %v1908 = vadd.f32 %v1602, %v1850
      %v1909 = vadd.f32 %v1603, %v1855
      %v1910 = vadd.f32 %v1604, %v1860
      %v1911 = vadd.f32 %v1605, %v1865
      %v1912 = vadd.f32 %v1606, %v1870
      %v1913 = vadd.f32 %v1607, %v1875
      %v1914 = vadd.f32 %v1608, %v1880
      %v1915 = vld [vmem:[%s243 + $0x2] sm:$0xff]
      %v1916 = vld [vmem:[%s243 + $0xa] sm:$0xff]
      %v1917 = vld [vmem:[%s243 + $0x1a] sm:$0xff]
      %v1918 = vld [vmem:[%s243 + $0x22] sm:$0xff]
      %v1919 = vld [vmem:[%s243 + $0x32] sm:$0xff]
      %v1920 = vld [vmem:[%s243 + $0x3a] sm:$0xff]
      %v1921 = vld [vmem:[%s243 + $0x4a] sm:$0xff]
      %v1922 = vld [vmem:[%s243 + $0x52] sm:$0xff]
      %v1923 = vld [vmem:[%s243 + $0x62] sm:$0xff]
      %v1924 = vld [vmem:[%s243 + $0x6a] sm:$0xff]
      %v1925 = vld [vmem:[%s243 + $0x7a] sm:$0xff]
      %v1926 = vld [vmem:[%s243 + $0x82] sm:$0xff]
      %v1927 = vld [vmem:[%s243 + $0x92] sm:$0xff]
      %v1928 = vld [vmem:[%s243 + $0x9a] sm:$0xff]
      %v1929 = vld [vmem:[%s243 + $0xaa] sm:$0xff]
      %v1930 = vld [vmem:[%s243 + $0xb2] sm:$0xff]
      %v1931 = vld [vmem:[%s243 + $0xc2] sm:$0xff]
      %v1932 = vld [vmem:[%s243 + $0xca] sm:$0xff]
      %v1933 = vld [vmem:[%s243 + $0xda] sm:$0xff]
      %v1934 = vld [vmem:[%s243 + $0xe2] sm:$0xff]
      %v1935 = vld [vmem:[%s243 + $0xf2] sm:$0xff]
      %v1936 = vld [vmem:[%s243 + $0xfa] sm:$0xff]
      %v1937 = vld [vmem:[%s243 + $0x10a] sm:$0xff]
      %v1938 = vld [vmem:[%s243 + $0x112] sm:$0xff]
      %v1939 = vld [vmem:[%s243 + $0x122] sm:$0xff]
      %v1940 = vld [vmem:[%s243 + $0x12a] sm:$0xff]
      %v1941 = vld [vmem:[%s243 + $0x13a] sm:$0xff]
      %v1942 = vld [vmem:[%s243 + $0x142] sm:$0xff]
      %v1943 = vld [vmem:[%s243 + $0x152] sm:$0xff]
      %v1944 = vld [vmem:[%s243 + $0x15a] sm:$0xff]
      %v1945 = vld [vmem:[%s243 + $0x16a] sm:$0xff]
      %v1946 = vld [vmem:[%s243 + $0x172] sm:$0xff]
      %s1947 = scalar_lea.vmem %s3, 640
      %v1948 = vld [vmem:[%s1947] sm:$0xff]
      %v1949 = vld [vmem:[%s1947 + $0x8] sm:$0xff]
      %v1950 = vld [vmem:[%s1947 + $0x10] sm:$0xff]
      %v1951 = vld [vmem:[%s1947 + $0x18] sm:$0xff]
      %v1952 = vld [vmem:[%s1947 + $0x20] sm:$0xff]
      %v1953 = vld [vmem:[%s1947 + $0x28] sm:$0xff]
      %v1954 = vld [vmem:[%s1947 + $0x30] sm:$0xff]
      %v1955 = vld [vmem:[%s1947 + $0x38] sm:$0xff]
      %v1956 = vld [vmem:[%s1947 + $0x40] sm:$0xff]
      %v1957 = vld [vmem:[%s1947 + $0x48] sm:$0xff]
      %v1958 = vld [vmem:[%s1947 + $0x50] sm:$0xff]
      %v1959 = vld [vmem:[%s1947 + $0x58] sm:$0xff]
      %v1960 = vld [vmem:[%s1947 + $0x60] sm:$0xff]
      %v1961 = vld [vmem:[%s1947 + $0x68] sm:$0xff]
      %v1962 = vld [vmem:[%s1947 + $0x70] sm:$0xff]
      %v1963 = vld [vmem:[%s1947 + $0x78] sm:$0xff]
      %1964 = vmatprep.subr.mxu0 0.0
      %1965 = vmatpush1.msra.mxu0 %v1948
      %1966 = vmatprep.subr.mxu0 0.0
      %1967 = vmatpush1.msra.mxu0 %v1949
      %1968 = vmatprep.subr.mxu0 0.0
      %1969 = vmatpush1.msra.mxu0 %v1950
      %1970 = vmatprep.subr.mxu0 0.0
      %1971 = vmatpush1.msra.mxu0 %v1951
      %1972 = vmatprep.subr.mxu0 0.0
      %1973 = vmatpush1.msra.mxu0 %v1952
      %1974 = vmatprep.subr.mxu0 0.0
      %1975 = vmatpush1.msra.mxu0 %v1953
      %1976 = vmatprep.subr.mxu0 0.0
      %1977 = vmatpush1.msra.mxu0 %v1954
      %1978 = vmatprep.subr.mxu0 0.0
      %1979 = vmatpush1.msra.mxu0 %v1955
      %1980 = vmatprep.subr.mxu0 0.0
      %1981 = vmatpush1.msra.mxu0 %v1956
      %1982 = vmatprep.subr.mxu0 0.0
      %1983 = vmatpush1.msra.mxu0 %v1957
      %1984 = vmatprep.subr.mxu0 0.0
      %1985 = vmatpush1.msra.mxu0 %v1958
      %1986 = vmatprep.subr.mxu0 0.0
      %1987 = vmatpush1.msra.mxu0 %v1959
      %1988 = vmatprep.subr.mxu0 0.0
      %1989 = vmatpush1.msra.mxu0 %v1960
      %1990 = vmatprep.subr.mxu0 0.0
      %1991 = vmatpush1.msra.mxu0 %v1961
      %1992 = vmatprep.subr.mxu0 0.0
      %1993 = vmatpush1.msra.mxu0 %v1962
      %1994 = vmatprep.subr.mxu0 0.0
      %1995 = vmatpush1.msra.mxu0 %v1963
      %1996 = vmatprep.subr.mxu0 0.0
      %1997 = vmatpush1.msra.mxu0 0.0
      %1998 = vmatprep.subr.mxu0 0.0
      %1999 = vmatpush1.msra.mxu0 0.0
      %2000 = vmatprep.subr.mxu0 0.0
      %2001 = vmatpush1.msra.mxu0 0.0
      %2002 = vmatprep.subr.mxu0 0.0
      %2003 = vmatpush1.msra.mxu0 0.0
      %2004 = vmatprep.subr.mxu0 0.0
      %2005 = vmatpush1.msra.mxu0 0.0
      %2006 = vmatprep.subr.mxu0 0.0
      %2007 = vmatpush1.msra.mxu0 0.0
      %2008 = vmatprep.subr.mxu0 0.0
      %2009 = vmatpush1.msra.mxu0 0.0
      %2010 = vmatprep.subr.mxu0 0.0
      %2011 = vmatpush1.msra.mxu0 0.0
      %2012 = vmatprep.subr.mxu0 0.0
      %2013 = vmatpush1.msra.mxu0 0.0
      %2014 = vmatprep.subr.mxu0 0.0
      %2015 = vmatpush1.msra.mxu0 0.0
      %2016 = vmatprep.subr.mxu0 0.0
      %2017 = vmatpush1.msra.mxu0 0.0
      %2018 = vmatprep.subr.mxu0 0.0
      %2019 = vmatpush1.msra.mxu0 0.0
      %2020 = vmatprep.subr.mxu0 0.0
      %2021 = vmatpush1.msra.mxu0 0.0
      %2022 = vmatprep.subr.mxu0 0.0
      %2023 = vmatpush1.msra.mxu0 0.0
      %2024 = vmatprep.subr.mxu0 0.0
      %2025 = vmatpush1.msra.mxu0 0.0
      %2026 = vmatprep.subr.mxu0 0.0
      %2027 = vmatpush1.msra.mxu0 0.0
      %2028 = vmatprep.mubr.f32.mxu0 0.0
      %2029 = vmatmul.mubr.f32.gmra.mrb[0].mxu0 %v1915
      %v2030 = vpop.f32.mrb[0].mxu0
      %v2031 = vadd.f32 0.0, %v2030
      %v2032 = vpop.f32.mrb[0].mxu0
      %2033 = vmatprep.mubr.f32.mxu0 0.0
      %2034 = vmatmul.mubr.f32.gmra.mrb[0].mxu0 %v1916
      %v2035 = vpop.f32.mrb[0].mxu0
      %v2036 = vadd.f32 0.0, %v2035
      %v2037 = vpop.f32.mrb[0].mxu0
      %2038 = vmatprep.mubr.f32.mxu0 0.0
      %2039 = vmatmul.mubr.f32.gmra.mrb[0].mxu0 %v1917
      %v2040 = vpop.f32.mrb[0].mxu0
      %v2041 = vadd.f32 0.0, %v2040
      %v2042 = vpop.f32.mrb[0].mxu0
      %2043 = vmatprep.mubr.f32.mxu0 0.0
      %2044 = vmatmul.mubr.f32.gmra.mrb[0].mxu0 %v1918
      %v2045 = vpop.f32.mrb[0].mxu0
      %v2046 = vadd.f32 0.0, %v2045
      %v2047 = vpop.f32.mrb[0].mxu0
      %2048 = vmatprep.mubr.f32.mxu0 0.0
      %2049 = vmatmul.mubr.f32.gmra.mrb[0].mxu0 %v1919
      %v2050 = vpop.f32.mrb[0].mxu0
      %v2051 = vadd.f32 0.0, %v2050
      %v2052 = vpop.f32.mrb[0].mxu0
      %2053 = vmatprep.mubr.f32.mxu0 0.0
      %2054 = vmatmul.mubr.f32.gmra.mrb[0].mxu0 %v1920
      %v2055 = vpop.f32.mrb[0].mxu0
      %v2056 = vadd.f32 0.0, %v2055
      %v2057 = vpop.f32.mrb[0].mxu0
      %2058 = vmatprep.mubr.f32.mxu0 0.0
      %2059 = vmatmul.mubr.f32.gmra.mrb[0].mxu0 %v1921
      %v2060 = vpop.f32.mrb[0].mxu0
      %v2061 = vadd.f32 0.0, %v2060
      %v2062 = vpop.f32.mrb[0].mxu0
      %2063 = vmatprep.mubr.f32.mxu0 0.0
      %2064 = vmatmul.mubr.f32.gmra.mrb[0].mxu0 %v1922
      %v2065 = vpop.f32.mrb[0].mxu0
      %v2066 = vadd.f32 0.0, %v2065
      %v2067 = vpop.f32.mrb[0].mxu0
      %2068 = vmatprep.mubr.f32.mxu0 0.0
      %2069 = vmatmul.mubr.f32.gmra.mrb[0].mxu0 %v1923
      %v2070 = vpop.f32.mrb[0].mxu0
      %v2071 = vadd.f32 0.0, %v2070
      %v2072 = vpop.f32.mrb[0].mxu0
      %2073 = vmatprep.mubr.f32.mxu0 0.0
      %2074 = vmatmul.mubr.f32.gmra.mrb[0].mxu0 %v1924
      %v2075 = vpop.f32.mrb[0].mxu0
      %v2076 = vadd.f32 0.0, %v2075
      %v2077 = vpop.f32.mrb[0].mxu0
      %2078 = vmatprep.mubr.f32.mxu0 0.0
      %2079 = vmatmul.mubr.f32.gmra.mrb[0].mxu0 %v1925
      %v2080 = vpop.f32.mrb[0].mxu0
      %v2081 = vadd.f32 0.0, %v2080
      %v2082 = vpop.f32.mrb[0].mxu0
      %2083 = vmatprep.mubr.f32.mxu0 0.0
      %2084 = vmatmul.mubr.f32.gmra.mrb[0].mxu0 %v1926
      %v2085 = vpop.f32.mrb[0].mxu0
      %v2086 = vadd.f32 0.0, %v2085
      %v2087 = vpop.f32.mrb[0].mxu0
      %2088 = vmatprep.mubr.f32.mxu0 0.0
      %2089 = vmatmul.mubr.f32.gmra.mrb[0].mxu0 %v1927
      %v2090 = vpop.f32.mrb[0].mxu0
      %v2091 = vadd.f32 0.0, %v2090
      %v2092 = vpop.f32.mrb[0].mxu0
      %2093 = vmatprep.mubr.f32.mxu0 0.0
      %2094 = vmatmul.mubr.f32.gmra.mrb[0].mxu0 %v1928
      %v2095 = vpop.f32.mrb[0].mxu0
      %v2096 = vadd.f32 0.0, %v2095
      %v2097 = vpop.f32.mrb[0].mxu0
      %2098 = vmatprep.mubr.f32.mxu0 0.0
      %2099 = vmatmul.mubr.f32.gmra.mrb[0].mxu0 %v1929
      %v2100 = vpop.f32.mrb[0].mxu0
      %v2101 = vadd.f32 0.0, %v2100
      %v2102 = vpop.f32.mrb[0].mxu0
      %2103 = vmatprep.mubr.f32.mxu0 0.0
      %2104 = vmatmul.mubr.f32.gmra.mrb[0].mxu0 %v1930
      %v2105 = vpop.f32.mrb[0].mxu0
      %v2106 = vadd.f32 0.0, %v2105
      %v2107 = vpop.f32.mrb[0].mxu0
      %2108 = vmatprep.mubr.f32.mxu0 0.0
      %2109 = vmatmul.mubr.f32.gmra.mrb[0].mxu0 %v1931
      %v2110 = vpop.f32.mrb[0].mxu0
      %v2111 = vadd.f32 0.0, %v2110
      %v2112 = vpop.f32.mrb[0].mxu0
      %2113 = vmatprep.mubr.f32.mxu0 0.0
      %2114 = vmatmul.mubr.f32.gmra.mrb[0].mxu0 %v1932
      %v2115 = vpop.f32.mrb[0].mxu0
      %v2116 = vadd.f32 0.0, %v2115
      %v2117 = vpop.f32.mrb[0].mxu0
      %2118 = vmatprep.mubr.f32.mxu0 0.0
      %2119 = vmatmul.mubr.f32.gmra.mrb[0].mxu0 %v1933
      %v2120 = vpop.f32.mrb[0].mxu0
      %v2121 = vadd.f32 0.0, %v2120
      %v2122 = vpop.f32.mrb[0].mxu0
      %2123 = vmatprep.mubr.f32.mxu0 0.0
      %2124 = vmatmul.mubr.f32.gmra.mrb[0].mxu0 %v1934
      %v2125 = vpop.f32.mrb[0].mxu0
      %v2126 = vadd.f32 0.0, %v2125
      %v2127 = vpop.f32.mrb[0].mxu0
      %2128 = vmatprep.mubr.f32.mxu0 0.0
      %2129 = vmatmul.mubr.f32.gmra.mrb[0].mxu0 %v1935
      %v2130 = vpop.f32.mrb[0].mxu0
      %v2131 = vadd.f32 0.0, %v2130
      %v2132 = vpop.f32.mrb[0].mxu0
      %2133 = vmatprep.mubr.f32.mxu0 0.0
      %2134 = vmatmul.mubr.f32.gmra.mrb[0].mxu0 %v1936
      %v2135 = vpop.f32.mrb[0].mxu0
      %v2136 = vadd.f32 0.0, %v2135
      %v2137 = vpop.f32.mrb[0].mxu0
      %2138 = vmatprep.mubr.f32.mxu0 0.0
      %2139 = vmatmul.mubr.f32.gmra.mrb[0].mxu0 %v1937
      %v2140 = vpop.f32.mrb[0].mxu0
      %v2141 = vadd.f32 0.0, %v2140
      %v2142 = vpop.f32.mrb[0].mxu0
      %2143 = vmatprep.mubr.f32.mxu0 0.0
      %2144 = vmatmul.mubr.f32.gmra.mrb[0].mxu0 %v1938
      %v2145 = vpop.f32.mrb[0].mxu0
      %v2146 = vadd.f32 0.0, %v2145
      %v2147 = vpop.f32.mrb[0].mxu0
      %2148 = vmatprep.mubr.f32.mxu0 0.0
      %2149 = vmatmul.mubr.f32.gmra.mrb[0].mxu0 %v1939
      %v2150 = vpop.f32.mrb[0].mxu0
      %v2151 = vadd.f32 0.0, %v2150
      %v2152 = vpop.f32.mrb[0].mxu0
      %2153 = vmatprep.mubr.f32.mxu0 0.0
      %2154 = vmatmul.mubr.f32.gmra.mrb[0].mxu0 %v1940
      %v2155 = vpop.f32.mrb[0].mxu0
      %v2156 = vadd.f32 0.0, %v2155
      %v2157 = vpop.f32.mrb[0].mxu0
      %2158 = vmatprep.mubr.f32.mxu0 0.0
      %2159 = vmatmul.mubr.f32.gmra.mrb[0].mxu0 %v1941
      %v2160 = vpop.f32.mrb[0].mxu0
      %v2161 = vadd.f32 0.0, %v2160
      %v2162 = vpop.f32.mrb[0].mxu0
      %2163 = vmatprep.mubr.f32.mxu0 0.0
      %2164 = vmatmul.mubr.f32.gmra.mrb[0].mxu0 %v1942
      %v2165 = vpop.f32.mrb[0].mxu0
      %v2166 = vadd.f32 0.0, %v2165
      %v2167 = vpop.f32.mrb[0].mxu0
      %2168 = vmatprep.mubr.f32.mxu0 0.0
      %2169 = vmatmul.mubr.f32.gmra.mrb[0].mxu0 %v1943
      %v2170 = vpop.f32.mrb[0].mxu0
      %v2171 = vadd.f32 0.0, %v2170
      %v2172 = vpop.f32.mrb[0].mxu0
      %2173 = vmatprep.mubr.f32.mxu0 0.0
      %2174 = vmatmul.mubr.f32.gmra.mrb[0].mxu0 %v1944
      %v2175 = vpop.f32.mrb[0].mxu0
      %v2176 = vadd.f32 0.0, %v2175
      %v2177 = vpop.f32.mrb[0].mxu0
      %2178 = vmatprep.mubr.f32.mxu0 0.0
      %2179 = vmatmul.mubr.f32.gmra.mrb[0].mxu0 %v1945
      %v2180 = vpop.f32.mrb[0].mxu0
      %v2181 = vadd.f32 0.0, %v2180
      %v2182 = vpop.f32.mrb[0].mxu0
      %2183 = vmatprep.mubr.f32.mxu0 0.0
      %2184 = vmatmul.mubr.f32.gmra.mrb[0].mxu0 %v1946
      %v2185 = vpop.f32.mrb[0].mxu0
      %v2186 = vadd.f32 0.0, %v2185
      %v2187 = vpop.f32.mrb[0].mxu0
      %2188 = vdwg.mxu0
      %v2189 = vadd.f32 %v1883, %v2031
      %v2190 = vadd.f32 %v1884, %v2036
      %v2191 = vadd.f32 %v1885, %v2041
      %v2192 = vadd.f32 %v1886, %v2046
      %v2193 = vadd.f32 %v1887, %v2051
      %v2194 = vadd.f32 %v1888, %v2056
      %v2195 = vadd.f32 %v1889, %v2061
      %v2196 = vadd.f32 %v1890, %v2066
      %v2197 = vadd.f32 %v1891, %v2071
      %v2198 = vadd.f32 %v1892, %v2076
      %v2199 = vadd.f32 %v1893, %v2081
      %v2200 = vadd.f32 %v1894, %v2086
      %v2201 = vadd.f32 %v1895, %v2091
      %v2202 = vadd.f32 %v1896, %v2096
      %v2203 = vadd.f32 %v1897, %v2101
      %v2204 = vadd.f32 %v1898, %v2106
      %v2205 = vadd.f32 %v1899, %v2111
      %v2206 = vadd.f32 %v1900, %v2116
      %v2207 = vadd.f32 %v1901, %v2121
      %v2208 = vadd.f32 %v1902, %v2126
      %v2209 = vadd.f32 %v1903, %v2131
      %v2210 = vadd.f32 %v1904, %v2136
      %v2211 = vadd.f32 %v1905, %v2141
      %v2212 = vadd.f32 %v1906, %v2146
      %v2213 = vadd.f32 %v1907, %v2151
      %v2214 = vadd.f32 %v1908, %v2156
      %v2215 = vadd.f32 %v1909, %v2161
      %v2216 = vadd.f32 %v1910, %v2166
      %v2217 = vadd.f32 %v1911, %v2171
      %v2218 = vadd.f32 %v1912, %v2176
      %v2219 = vadd.f32 %v1913, %v2181
      %v2220 = vadd.f32 %v1914, %v2186
      %s2221 = scalar_lea.vmem [#allocation2], 48
      %v2222 = vld [vmem:[%s2221] sm:$0xff]
      %v2223 = vld [vmem:[%s2221 + $0x8] sm:$0xff]
      %v2224 = vld [vmem:[%s2221 + $0x18] sm:$0xff]
      %v2225 = vld [vmem:[%s2221 + $0x20] sm:$0xff]
      %v2226 = vld [vmem:[%s2221 + $0x30] sm:$0xff]
      %v2227 = vld [vmem:[%s2221 + $0x38] sm:$0xff]
      %v2228 = vld [vmem:[%s2221 + $0x48] sm:$0xff]
      %v2229 = vld [vmem:[%s2221 + $0x50] sm:$0xff]
      %v2230 = vld [vmem:[%s2221 + $0x60] sm:$0xff]
      %v2231 = vld [vmem:[%s2221 + $0x68] sm:$0xff]
      %v2232 = vld [vmem:[%s2221 + $0x78] sm:$0xff]
      %v2233 = vld [vmem:[%s2221 + $0x80] sm:$0xff]
      %v2234 = vld [vmem:[%s2221 + $0x90] sm:$0xff]
      %v2235 = vld [vmem:[%s2221 + $0x98] sm:$0xff]
      %v2236 = vld [vmem:[%s2221 + $0xa8] sm:$0xff]
      %v2237 = vld [vmem:[%s2221 + $0xb0] sm:$0xff]
      %v2238 = vld [vmem:[%s2221 + $0xc0] sm:$0xff]
      %v2239 = vld [vmem:[%s2221 + $0xc8] sm:$0xff]
      %v2240 = vld [vmem:[%s2221 + $0xd8] sm:$0xff]
      %v2241 = vld [vmem:[%s2221 + $0xe0] sm:$0xff]
      %v2242 = vld [vmem:[%s2221 + $0xf0] sm:$0xff]
      %v2243 = vld [vmem:[%s2221 + $0xf8] sm:$0xff]
      %v2244 = vld [vmem:[%s2221 + $0x108] sm:$0xff]
      %v2245 = vld [vmem:[%s2221 + $0x110] sm:$0xff]
      %v2246 = vld [vmem:[%s2221 + $0x120] sm:$0xff]
      %v2247 = vld [vmem:[%s2221 + $0x128] sm:$0xff]
      %v2248 = vld [vmem:[%s2221 + $0x138] sm:$0xff]
      %v2249 = vld [vmem:[%s2221 + $0x140] sm:$0xff]
      %v2250 = vld [vmem:[%s2221 + $0x150] sm:$0xff]
      %v2251 = vld [vmem:[%s2221 + $0x158] sm:$0xff]
      %v2252 = vld [vmem:[%s2221 + $0x168] sm:$0xff]
      %v2253 = vld [vmem:[%s2221 + $0x170] sm:$0xff]
      %s2254 = scalar_lea.vmem %s3, 768
      %v2255 = vld [vmem:[%s2254] sm:$0xff]
      %v2256 = vld [vmem:[%s2254 + $0x8] sm:$0xff]
      %v2257 = vld [vmem:[%s2254 + $0x10] sm:$0xff]
      %v2258 = vld [vmem:[%s2254 + $0x18] sm:$0xff]
      %v2259 = vld [vmem:[%s2254 + $0x20] sm:$0xff]
      %v2260 = vld [vmem:[%s2254 + $0x28] sm:$0xff]
      %v2261 = vld [vmem:[%s2254 + $0x30] sm:$0xff]
      %v2262 = vld [vmem:[%s2254 + $0x38] sm:$0xff]
      %v2263 = vld [vmem:[%s2254 + $0x40] sm:$0xff]
      %v2264 = vld [vmem:[%s2254 + $0x48] sm:$0xff]
      %v2265 = vld [vmem:[%s2254 + $0x50] sm:$0xff]
      %v2266 = vld [vmem:[%s2254 + $0x58] sm:$0xff]
      %v2267 = vld [vmem:[%s2254 + $0x60] sm:$0xff]
      %v2268 = vld [vmem:[%s2254 + $0x68] sm:$0xff]
      %v2269 = vld [vmem:[%s2254 + $0x70] sm:$0xff]
      %v2270 = vld [vmem:[%s2254 + $0x78] sm:$0xff]
      %2271 = vmatprep.subr.mxu0 0.0
      %2272 = vmatpush1.msra.mxu0 %v2255
      %2273 = vmatprep.subr.mxu0 0.0
      %2274 = vmatpush1.msra.mxu0 %v2256
      %2275 = vmatprep.subr.mxu0 0.0
      %2276 = vmatpush1.msra.mxu0 %v2257
      %2277 = vmatprep.subr.mxu0 0.0
      %2278 = vmatpush1.msra.mxu0 %v2258
      %2279 = vmatprep.subr.mxu0 0.0
      %2280 = vmatpush1.msra.mxu0 %v2259
      %2281 = vmatprep.subr.mxu0 0.0
      %2282 = vmatpush1.msra.mxu0 %v2260
      %2283 = vmatprep.subr.mxu0 0.0
      %2284 = vmatpush1.msra.mxu0 %v2261
      %2285 = vmatprep.subr.mxu0 0.0
      %2286 = vmatpush1.msra.mxu0 %v2262
      %2287 = vmatprep.subr.mxu0 0.0
      %2288 = vmatpush1.msra.mxu0 %v2263
      %2289 = vmatprep.subr.mxu0 0.0
      %2290 = vmatpush1.msra.mxu0 %v2264
      %2291 = vmatprep.subr.mxu0 0.0
      %2292 = vmatpush1.msra.mxu0 %v2265
      %2293 = vmatprep.subr.mxu0 0.0
      %2294 = vmatpush1.msra.mxu0 %v2266
      %2295 = vmatprep.subr.mxu0 0.0
      %2296 = vmatpush1.msra.mxu0 %v2267
      %2297 = vmatprep.subr.mxu0 0.0
      %2298 = vmatpush1.msra.mxu0 %v2268
      %2299 = vmatprep.subr.mxu0 0.0
      %2300 = vmatpush1.msra.mxu0 %v2269
      %2301 = vmatprep.subr.mxu0 0.0
      %2302 = vmatpush1.msra.mxu0 %v2270
      %2303 = vmatprep.subr.mxu0 0.0
      %2304 = vmatpush1.msra.mxu0 0.0
      %2305 = vmatprep.subr.mxu0 0.0
      %2306 = vmatpush1.msra.mxu0 0.0
      %2307 = vmatprep.subr.mxu0 0.0
      %2308 = vmatpush1.msra.mxu0 0.0
      %2309 = vmatprep.subr.mxu0 0.0
      %2310 = vmatpush1.msra.mxu0 0.0
      %2311 = vmatprep.subr.mxu0 0.0
      %2312 = vmatpush1.msra.mxu0 0.0
      %2313 = vmatprep.subr.mxu0 0.0
      %2314 = vmatpush1.msra.mxu0 0.0
      %2315 = vmatprep.subr.mxu0 0.0
      %2316 = vmatpush1.msra.mxu0 0.0
      %2317 = vmatprep.subr.mxu0 0.0
      %2318 = vmatpush1.msra.mxu0 0.0
      %2319 = vmatprep.subr.mxu0 0.0
      %2320 = vmatpush1.msra.mxu0 0.0
      %2321 = vmatprep.subr.mxu0 0.0
      %2322 = vmatpush1.msra.mxu0 0.0
      %2323 = vmatprep.subr.mxu0 0.0
      %2324 = vmatpush1.msra.mxu0 0.0
      %2325 = vmatprep.subr.mxu0 0.0
      %2326 = vmatpush1.msra.mxu0 0.0
      %2327 = vmatprep.subr.mxu0 0.0
      %2328 = vmatpush1.msra.mxu0 0.0
      %2329 = vmatprep.subr.mxu0 0.0
      %2330 = vmatpush1.msra.mxu0 0.0
      %2331 = vmatprep.subr.mxu0 0.0
      %2332 = vmatpush1.msra.mxu0 0.0
      %2333 = vmatprep.subr.mxu0 0.0
      %2334 = vmatpush1.msra.mxu0 0.0
      %2335 = vmatprep.mubr.f32.mxu0 0.0
      %2336 = vmatmul.mubr.f32.gmra.mrb[0].mxu0 %v2222
      %v2337 = vpop.f32.mrb[0].mxu0
      %v2338 = vadd.f32 0.0, %v2337
      %v2339 = vpop.f32.mrb[0].mxu0
      %2340 = vmatprep.mubr.f32.mxu0 0.0
      %2341 = vmatmul.mubr.f32.gmra.mrb[0].mxu0 %v2223
      %v2342 = vpop.f32.mrb[0].mxu0
      %v2343 = vadd.f32 0.0, %v2342
      %v2344 = vpop.f32.mrb[0].mxu0
      %2345 = vmatprep.mubr.f32.mxu0 0.0
      %2346 = vmatmul.mubr.f32.gmra.mrb[0].mxu0 %v2224
      %v2347 = vpop.f32.mrb[0].mxu0
      %v2348 = vadd.f32 0.0, %v2347
      %v2349 = vpop.f32.mrb[0].mxu0
      %2350 = vmatprep.mubr.f32.mxu0 0.0
      %2351 = vmatmul.mubr.f32.gmra.mrb[0].mxu0 %v2225
      %v2352 = vpop.f32.mrb[0].mxu0
      %v2353 = vadd.f32 0.0, %v2352
      %v2354 = vpop.f32.mrb[0].mxu0
      %2355 = vmatprep.mubr.f32.mxu0 0.0
      %2356 = vmatmul.mubr.f32.gmra.mrb[0].mxu0 %v2226
      %v2357 = vpop.f32.mrb[0].mxu0
      %v2358 = vadd.f32 0.0, %v2357
      %v2359 = vpop.f32.mrb[0].mxu0
      %2360 = vmatprep.mubr.f32.mxu0 0.0
      %2361 = vmatmul.mubr.f32.gmra.mrb[0].mxu0 %v2227
      %v2362 = vpop.f32.mrb[0].mxu0
      %v2363 = vadd.f32 0.0, %v2362
      %v2364 = vpop.f32.mrb[0].mxu0
      %2365 = vmatprep.mubr.f32.mxu0 0.0
      %2366 = vmatmul.mubr.f32.gmra.mrb[0].mxu0 %v2228
      %v2367 = vpop.f32.mrb[0].mxu0
      %v2368 = vadd.f32 0.0, %v2367
      %v2369 = vpop.f32.mrb[0].mxu0
      %2370 = vmatprep.mubr.f32.mxu0 0.0
      %2371 = vmatmul.mubr.f32.gmra.mrb[0].mxu0 %v2229
      %v2372 = vpop.f32.mrb[0].mxu0
      %v2373 = vadd.f32 0.0, %v2372
      %v2374 = vpop.f32.mrb[0].mxu0
      %2375 = vmatprep.mubr.f32.mxu0 0.0
      %2376 = vmatmul.mubr.f32.gmra.mrb[0].mxu0 %v2230
      %v2377 = vpop.f32.mrb[0].mxu0
      %v2378 = vadd.f32 0.0, %v2377
      %v2379 = vpop.f32.mrb[0].mxu0
      %2380 = vmatprep.mubr.f32.mxu0 0.0
      %2381 = vmatmul.mubr.f32.gmra.mrb[0].mxu0 %v2231
      %v2382 = vpop.f32.mrb[0].mxu0
      %v2383 = vadd.f32 0.0, %v2382
      %v2384 = vpop.f32.mrb[0].mxu0
      %2385 = vmatprep.mubr.f32.mxu0 0.0
      %2386 = vmatmul.mubr.f32.gmra.mrb[0].mxu0 %v2232
      %v2387 = vpop.f32.mrb[0].mxu0
      %v2388 = vadd.f32 0.0, %v2387
      %v2389 = vpop.f32.mrb[0].mxu0
      %2390 = vmatprep.mubr.f32.mxu0 0.0
      %2391 = vmatmul.mubr.f32.gmra.mrb[0].mxu0 %v2233
      %v2392 = vpop.f32.mrb[0].mxu0
      %v2393 = vadd.f32 0.0, %v2392
      %v2394 = vpop.f32.mrb[0].mxu0
      %2395 = vmatprep.mubr.f32.mxu0 0.0
      %2396 = vmatmul.mubr.f32.gmra.mrb[0].mxu0 %v2234
      %v2397 = vpop.f32.mrb[0].mxu0
      %v2398 = vadd.f32 0.0, %v2397
      %v2399 = vpop.f32.mrb[0].mxu0
      %2400 = vmatprep.mubr.f32.mxu0 0.0
      %2401 = vmatmul.mubr.f32.gmra.mrb[0].mxu0 %v2235
      %v2402 = vpop.f32.mrb[0].mxu0
      %v2403 = vadd.f32 0.0, %v2402
      %v2404 = vpop.f32.mrb[0].mxu0
      %2405 = vmatprep.mubr.f32.mxu0 0.0
      %2406 = vmatmul.mubr.f32.gmra.mrb[0].mxu0 %v2236
      %v2407 = vpop.f32.mrb[0].mxu0
      %v2408 = vadd.f32 0.0, %v2407
      %v2409 = vpop.f32.mrb[0].mxu0
      %2410 = vmatprep.mubr.f32.mxu0 0.0
      %2411 = vmatmul.mubr.f32.gmra.mrb[0].mxu0 %v2237
      %v2412 = vpop.f32.mrb[0].mxu0
      %v2413 = vadd.f32 0.0, %v2412
      %v2414 = vpop.f32.mrb[0].mxu0
      %2415 = vmatprep.mubr.f32.mxu0 0.0
      %2416 = vmatmul.mubr.f32.gmra.mrb[0].mxu0 %v2238
      %v2417 = vpop.f32.mrb[0].mxu0
      %v2418 = vadd.f32 0.0, %v2417
      %v2419 = vpop.f32.mrb[0].mxu0
      %2420 = vmatprep.mubr.f32.mxu0 0.0
      %2421 = vmatmul.mubr.f32.gmra.mrb[0].mxu0 %v2239
      %v2422 = vpop.f32.mrb[0].mxu0
      %v2423 = vadd.f32 0.0, %v2422
      %v2424 = vpop.f32.mrb[0].mxu0
      %2425 = vmatprep.mubr.f32.mxu0 0.0
      %2426 = vmatmul.mubr.f32.gmra.mrb[0].mxu0 %v2240
      %v2427 = vpop.f32.mrb[0].mxu0
      %v2428 = vadd.f32 0.0, %v2427
      %v2429 = vpop.f32.mrb[0].mxu0
      %2430 = vmatprep.mubr.f32.mxu0 0.0
      %2431 = vmatmul.mubr.f32.gmra.mrb[0].mxu0 %v2241
      %v2432 = vpop.f32.mrb[0].mxu0
      %v2433 = vadd.f32 0.0, %v2432
      %v2434 = vpop.f32.mrb[0].mxu0
      %2435 = vmatprep.mubr.f32.mxu0 0.0
      %2436 = vmatmul.mubr.f32.gmra.mrb[0].mxu0 %v2242
      %v2437 = vpop.f32.mrb[0].mxu0
      %v2438 = vadd.f32 0.0, %v2437
      %v2439 = vpop.f32.mrb[0].mxu0
      %2440 = vmatprep.mubr.f32.mxu0 0.0
      %2441 = vmatmul.mubr.f32.gmra.mrb[0].mxu0 %v2243
      %v2442 = vpop.f32.mrb[0].mxu0
      %v2443 = vadd.f32 0.0, %v2442
      %v2444 = vpop.f32.mrb[0].mxu0
      %2445 = vmatprep.mubr.f32.mxu0 0.0
      %2446 = vmatmul.mubr.f32.gmra.mrb[0].mxu0 %v2244
      %v2447 = vpop.f32.mrb[0].mxu0
      %v2448 = vadd.f32 0.0, %v2447
      %v2449 = vpop.f32.mrb[0].mxu0
      %2450 = vmatprep.mubr.f32.mxu0 0.0
      %2451 = vmatmul.mubr.f32.gmra.mrb[0].mxu0 %v2245
      %v2452 = vpop.f32.mrb[0].mxu0
      %v2453 = vadd.f32 0.0, %v2452
      %v2454 = vpop.f32.mrb[0].mxu0
      %2455 = vmatprep.mubr.f32.mxu0 0.0
      %2456 = vmatmul.mubr.f32.gmra.mrb[0].mxu0 %v2246
      %v2457 = vpop.f32.mrb[0].mxu0
      %v2458 = vadd.f32 0.0, %v2457
      %v2459 = vpop.f32.mrb[0].mxu0
      %2460 = vmatprep.mubr.f32.mxu0 0.0
      %2461 = vmatmul.mubr.f32.gmra.mrb[0].mxu0 %v2247
      %v2462 = vpop.f32.mrb[0].mxu0
      %v2463 = vadd.f32 0.0, %v2462
      %v2464 = vpop.f32.mrb[0].mxu0
      %2465 = vmatprep.mubr.f32.mxu0 0.0
      %2466 = vmatmul.mubr.f32.gmra.mrb[0].mxu0 %v2248
      %v2467 = vpop.f32.mrb[0].mxu0
      %v2468 = vadd.f32 0.0, %v2467
      %v2469 = vpop.f32.mrb[0].mxu0
      %2470 = vmatprep.mubr.f32.mxu0 0.0
      %2471 = vmatmul.mubr.f32.gmra.mrb[0].mxu0 %v2249
      %v2472 = vpop.f32.mrb[0].mxu0
      %v2473 = vadd.f32 0.0, %v2472
      %v2474 = vpop.f32.mrb[0].mxu0
      %2475 = vmatprep.mubr.f32.mxu0 0.0
      %2476 = vmatmul.mubr.f32.gmra.mrb[0].mxu0 %v2250
      %v2477 = vpop.f32.mrb[0].mxu0
      %v2478 = vadd.f32 0.0, %v2477
      %v2479 = vpop.f32.mrb[0].mxu0
      %2480 = vmatprep.mubr.f32.mxu0 0.0
      %2481 = vmatmul.mubr.f32.gmra.mrb[0].mxu0 %v2251
      %v2482 = vpop.f32.mrb[0].mxu0
      %v2483 = vadd.f32 0.0, %v2482
      %v2484 = vpop.f32.mrb[0].mxu0
      %2485 = vmatprep.mubr.f32.mxu0 0.0
      %2486 = vmatmul.mubr.f32.gmra.mrb[0].mxu0 %v2252
      %v2487 = vpop.f32.mrb[0].mxu0
      %v2488 = vadd.f32 0.0, %v2487
      %v2489 = vpop.f32.mrb[0].mxu0
      %2490 = vmatprep.mubr.f32.mxu0 0.0
      %2491 = vmatmul.mubr.f32.gmra.mrb[0].mxu0 %v2253
      %v2492 = vpop.f32.mrb[0].mxu0
      %v2493 = vadd.f32 0.0, %v2492
      %v2494 = vpop.f32.mrb[0].mxu0
      %2495 = vdwg.mxu0
      %v2496 = vadd.f32 %v2189, %v2338
      %v2497 = vadd.f32 %v2190, %v2343
      %v2498 = vadd.f32 %v2191, %v2348
      %v2499 = vadd.f32 %v2192, %v2353
      %v2500 = vadd.f32 %v2193, %v2358
      %v2501 = vadd.f32 %v2194, %v2363
      %v2502 = vadd.f32 %v2195, %v2368
      %v2503 = vadd.f32 %v2196, %v2373
      %v2504 = vadd.f32 %v2197, %v2378
      %v2505 = vadd.f32 %v2198, %v2383
      %v2506 = vadd.f32 %v2199, %v2388
      %v2507 = vadd.f32 %v2200, %v2393
      %v2508 = vadd.f32 %v2201, %v2398
      %v2509 = vadd.f32 %v2202, %v2403
      %v2510 = vadd.f32 %v2203, %v2408
      %v2511 = vadd.f32 %v2204, %v2413
      %v2512 = vadd.f32 %v2205, %v2418
      %v2513 = vadd.f32 %v2206, %v2423
      %v2514 = vadd.f32 %v2207, %v2428
      %v2515 = vadd.f32 %v2208, %v2433
      %v2516 = vadd.f32 %v2209, %v2438
      %v2517 = vadd.f32 %v2210, %v2443
      %v2518 = vadd.f32 %v2211, %v2448
      %v2519 = vadd.f32 %v2212, %v2453
      %v2520 = vadd.f32 %v2213, %v2458
      %v2521 = vadd.f32 %v2214, %v2463
      %v2522 = vadd.f32 %v2215, %v2468
      %v2523 = vadd.f32 %v2216, %v2473
      %v2524 = vadd.f32 %v2217, %v2478
      %v2525 = vadd.f32 %v2218, %v2483
      %v2526 = vadd.f32 %v2219, %v2488
      %v2527 = vadd.f32 %v2220, %v2493
      %v2528 = vld [vmem:[%s2221 + $0x1] sm:$0xff]
      %v2529 = vld [vmem:[%s2221 + $0x9] sm:$0xff]
      %v2530 = vld [vmem:[%s2221 + $0x19] sm:$0xff]
      %v2531 = vld [vmem:[%s2221 + $0x21] sm:$0xff]
      %v2532 = vld [vmem:[%s2221 + $0x31] sm:$0xff]
      %v2533 = vld [vmem:[%s2221 + $0x39] sm:$0xff]
      %v2534 = vld [vmem:[%s2221 + $0x49] sm:$0xff]
      %v2535 = vld [vmem:[%s2221 + $0x51] sm:$0xff]
      %v2536 = vld [vmem:[%s2221 + $0x61] sm:$0xff]
      %v2537 = vld [vmem:[%s2221 + $0x69] sm:$0xff]
      %v2538 = vld [vmem:[%s2221 + $0x79] sm:$0xff]
      %v2539 = vld [vmem:[%s2221 + $0x81] sm:$0xff]
      %v2540 = vld [vmem:[%s2221 + $0x91] sm:$0xff]
      %v2541 = vld [vmem:[%s2221 + $0x99] sm:$0xff]
      %v2542 = vld [vmem:[%s2221 + $0xa9] sm:$0xff]
      %v2543 = vld [vmem:[%s2221 + $0xb1] sm:$0xff]
      %v2544 = vld [vmem:[%s2221 + $0xc1] sm:$0xff]
      %v2545 = vld [vmem:[%s2221 + $0xc9] sm:$0xff]
      %v2546 = vld [vmem:[%s2221 + $0xd9] sm:$0xff]
      %v2547 = vld [vmem:[%s2221 + $0xe1] sm:$0xff]
      %v2548 = vld [vmem:[%s2221 + $0xf1] sm:$0xff]
      %v2549 = vld [vmem:[%s2221 + $0xf9] sm:$0xff]
      %v2550 = vld [vmem:[%s2221 + $0x109] sm:$0xff]
      %v2551 = vld [vmem:[%s2221 + $0x111] sm:$0xff]
      %v2552 = vld [vmem:[%s2221 + $0x121] sm:$0xff]
      %v2553 = vld [vmem:[%s2221 + $0x129] sm:$0xff]
      %v2554 = vld [vmem:[%s2221 + $0x139] sm:$0xff]
      %v2555 = vld [vmem:[%s2221 + $0x141] sm:$0xff]
      %v2556 = vld [vmem:[%s2221 + $0x151] sm:$0xff]
      %v2557 = vld [vmem:[%s2221 + $0x159] sm:$0xff]
      %v2558 = vld [vmem:[%s2221 + $0x169] sm:$0xff]
      %v2559 = vld [vmem:[%s2221 + $0x171] sm:$0xff]
      %s2560 = scalar_lea.vmem %s3, 896
      %v2561 = vld [vmem:[%s2560] sm:$0xff]
      %v2562 = vld [vmem:[%s2560 + $0x8] sm:$0xff]
      %v2563 = vld [vmem:[%s2560 + $0x10] sm:$0xff]
      %v2564 = vld [vmem:[%s2560 + $0x18] sm:$0xff]
      %v2565 = vld [vmem:[%s2560 + $0x20] sm:$0xff]
      %v2566 = vld [vmem:[%s2560 + $0x28] sm:$0xff]
      %v2567 = vld [vmem:[%s2560 + $0x30] sm:$0xff]
      %v2568 = vld [vmem:[%s2560 + $0x38] sm:$0xff]
      %v2569 = vld [vmem:[%s2560 + $0x40] sm:$0xff]
      %v2570 = vld [vmem:[%s2560 + $0x48] sm:$0xff]
      %v2571 = vld [vmem:[%s2560 + $0x50] sm:$0xff]
      %v2572 = vld [vmem:[%s2560 + $0x58] sm:$0xff]
      %v2573 = vld [vmem:[%s2560 + $0x60] sm:$0xff]
      %v2574 = vld [vmem:[%s2560 + $0x68] sm:$0xff]
      %v2575 = vld [vmem:[%s2560 + $0x70] sm:$0xff]
      %v2576 = vld [vmem:[%s2560 + $0x78] sm:$0xff]
      %2577 = vmatprep.subr.mxu0 0.0
      %2578 = vmatpush1.msra.mxu0 %v2561
      %2579 = vmatprep.subr.mxu0 0.0
      %2580 = vmatpush1.msra.mxu0 %v2562
      %2581 = vmatprep.subr.mxu0 0.0
      %2582 = vmatpush1.msra.mxu0 %v2563
      %2583 = vmatprep.subr.mxu0 0.0
      %2584 = vmatpush1.msra.mxu0 %v2564
      %2585 = vmatprep.subr.mxu0 0.0
      %2586 = vmatpush1.msra.mxu0 %v2565
      %2587 = vmatprep.subr.mxu0 0.0
      %2588 = vmatpush1.msra.mxu0 %v2566
      %2589 = vmatprep.subr.mxu0 0.0
      %2590 = vmatpush1.msra.mxu0 %v2567
      %2591 = vmatprep.subr.mxu0 0.0
      %2592 = vmatpush1.msra.mxu0 %v2568
      %2593 = vmatprep.subr.mxu0 0.0
      %2594 = vmatpush1.msra.mxu0 %v2569
      %2595 = vmatprep.subr.mxu0 0.0
      %2596 = vmatpush1.msra.mxu0 %v2570
      %2597 = vmatprep.subr.mxu0 0.0
      %2598 = vmatpush1.msra.mxu0 %v2571
      %2599 = vmatprep.subr.mxu0 0.0
      %2600 = vmatpush1.msra.mxu0 %v2572
      %2601 = vmatprep.subr.mxu0 0.0
      %2602 = vmatpush1.msra.mxu0 %v2573
      %2603 = vmatprep.subr.mxu0 0.0
      %2604 = vmatpush1.msra.mxu0 %v2574
      %2605 = vmatprep.subr.mxu0 0.0
      %2606 = vmatpush1.msra.mxu0 %v2575
      %2607 = vmatprep.subr.mxu0 0.0
      %2608 = vmatpush1.msra.mxu0 %v2576
      %2609 = vmatprep.subr.mxu0 0.0
      %2610 = vmatpush1.msra.mxu0 0.0
      %2611 = vmatprep.subr.mxu0 0.0
      %2612 = vmatpush1.msra.mxu0 0.0
      %2613 = vmatprep.subr.mxu0 0.0
      %2614 = vmatpush1.msra.mxu0 0.0
      %2615 = vmatprep.subr.mxu0 0.0
      %2616 = vmatpush1.msra.mxu0 0.0
      %2617 = vmatprep.subr.mxu0 0.0
      %2618 = vmatpush1.msra.mxu0 0.0
      %2619 = vmatprep.subr.mxu0 0.0
      %2620 = vmatpush1.msra.mxu0 0.0
      %2621 = vmatprep.subr.mxu0 0.0
      %2622 = vmatpush1.msra.mxu0 0.0
      %2623 = vmatprep.subr.mxu0 0.0
      %2624 = vmatpush1.msra.mxu0 0.0
      %2625 = vmatprep.subr.mxu0 0.0
      %2626 = vmatpush1.msra.mxu0 0.0
      %2627 = vmatprep.subr.mxu0 0.0
      %2628 = vmatpush1.msra.mxu0 0.0
      %2629 = vmatprep.subr.mxu0 0.0
      %2630 = vmatpush1.msra.mxu0 0.0
      %2631 = vmatprep.subr.mxu0 0.0
      %2632 = vmatpush1.msra.mxu0 0.0
      %2633 = vmatprep.subr.mxu0 0.0
      %2634 = vmatpush1.msra.mxu0 0.0
      %2635 = vmatprep.subr.mxu0 0.0
      %2636 = vmatpush1.msra.mxu0 0.0
      %2637 = vmatprep.subr.mxu0 0.0
      %2638 = vmatpush1.msra.mxu0 0.0
      %2639 = vmatprep.subr.mxu0 0.0
      %2640 = vmatpush1.msra.mxu0 0.0
      %2641 = vmatprep.mubr.f32.mxu0 0.0
      %2642 = vmatmul.mubr.f32.gmra.mrb[0].mxu0 %v2528
      %v2643 = vpop.f32.mrb[0].mxu0
      %v2644 = vadd.f32 0.0, %v2643
      %v2645 = vpop.f32.mrb[0].mxu0
      %2646 = vmatprep.mubr.f32.mxu0 0.0
      %2647 = vmatmul.mubr.f32.gmra.mrb[0].mxu0 %v2529
      %v2648 = vpop.f32.mrb[0].mxu0
      %v2649 = vadd.f32 0.0, %v2648
      %v2650 = vpop.f32.mrb[0].mxu0
      %2651 = vmatprep.mubr.f32.mxu0 0.0
      %2652 = vmatmul.mubr.f32.gmra.mrb[0].mxu0 %v2530
      %v2653 = vpop.f32.mrb[0].mxu0
      %v2654 = vadd.f32 0.0, %v2653
      %v2655 = vpop.f32.mrb[0].mxu0
      %2656 = vmatprep.mubr.f32.mxu0 0.0
      %2657 = vmatmul.mubr.f32.gmra.mrb[0].mxu0 %v2531
      %v2658 = vpop.f32.mrb[0].mxu0
      %v2659 = vadd.f32 0.0, %v2658
      %v2660 = vpop.f32.mrb[0].mxu0
      %2661 = vmatprep.mubr.f32.mxu0 0.0
      %2662 = vmatmul.mubr.f32.gmra.mrb[0].mxu0 %v2532
      %v2663 = vpop.f32.mrb[0].mxu0
      %v2664 = vadd.f32 0.0, %v2663
      %v2665 = vpop.f32.mrb[0].mxu0
      %2666 = vmatprep.mubr.f32.mxu0 0.0
      %2667 = vmatmul.mubr.f32.gmra.mrb[0].mxu0 %v2533
      %v2668 = vpop.f32.mrb[0].mxu0
      %v2669 = vadd.f32 0.0, %v2668
      %v2670 = vpop.f32.mrb[0].mxu0
      %2671 = vmatprep.mubr.f32.mxu0 0.0
      %2672 = vmatmul.mubr.f32.gmra.mrb[0].mxu0 %v2534
      %v2673 = vpop.f32.mrb[0].mxu0
      %v2674 = vadd.f32 0.0, %v2673
      %v2675 = vpop.f32.mrb[0].mxu0
      %2676 = vmatprep.mubr.f32.mxu0 0.0
      %2677 = vmatmul.mubr.f32.gmra.mrb[0].mxu0 %v2535
      %v2678 = vpop.f32.mrb[0].mxu0
      %v2679 = vadd.f32 0.0, %v2678
      %v2680 = vpop.f32.mrb[0].mxu0
      %2681 = vmatprep.mubr.f32.mxu0 0.0
      %2682 = vmatmul.mubr.f32.gmra.mrb[0].mxu0 %v2536
      %v2683 = vpop.f32.mrb[0].mxu0
      %v2684 = vadd.f32 0.0, %v2683
      %v2685 = vpop.f32.mrb[0].mxu0
      %2686 = vmatprep.mubr.f32.mxu0 0.0
      %2687 = vmatmul.mubr.f32.gmra.mrb[0].mxu0 %v2537
      %v2688 = vpop.f32.mrb[0].mxu0
      %v2689 = vadd.f32 0.0, %v2688
      %v2690 = vpop.f32.mrb[0].mxu0
      %2691 = vmatprep.mubr.f32.mxu0 0.0
      %2692 = vmatmul.mubr.f32.gmra.mrb[0].mxu0 %v2538
      %v2693 = vpop.f32.mrb[0].mxu0
      %v2694 = vadd.f32 0.0, %v2693
      %v2695 = vpop.f32.mrb[0].mxu0
      %2696 = vmatprep.mubr.f32.mxu0 0.0
      %2697 = vmatmul.mubr.f32.gmra.mrb[0].mxu0 %v2539
      %v2698 = vpop.f32.mrb[0].mxu0
      %v2699 = vadd.f32 0.0, %v2698
      %v2700 = vpop.f32.mrb[0].mxu0
      %2701 = vmatprep.mubr.f32.mxu0 0.0
      %2702 = vmatmul.mubr.f32.gmra.mrb[0].mxu0 %v2540
      %v2703 = vpop.f32.mrb[0].mxu0
      %v2704 = vadd.f32 0.0, %v2703
      %v2705 = vpop.f32.mrb[0].mxu0
      %2706 = vmatprep.mubr.f32.mxu0 0.0
      %2707 = vmatmul.mubr.f32.gmra.mrb[0].mxu0 %v2541
      %v2708 = vpop.f32.mrb[0].mxu0
      %v2709 = vadd.f32 0.0, %v2708
      %v2710 = vpop.f32.mrb[0].mxu0
      %2711 = vmatprep.mubr.f32.mxu0 0.0
      %2712 = vmatmul.mubr.f32.gmra.mrb[0].mxu0 %v2542
      %v2713 = vpop.f32.mrb[0].mxu0
      %v2714 = vadd.f32 0.0, %v2713
      %v2715 = vpop.f32.mrb[0].mxu0
      %2716 = vmatprep.mubr.f32.mxu0 0.0
      %2717 = vmatmul.mubr.f32.gmra.mrb[0].mxu0 %v2543
      %v2718 = vpop.f32.mrb[0].mxu0
      %v2719 = vadd.f32 0.0, %v2718
      %v2720 = vpop.f32.mrb[0].mxu0
      %2721 = vmatprep.mubr.f32.mxu0 0.0
      %2722 = vmatmul.mubr.f32.gmra.mrb[0].mxu0 %v2544
      %v2723 = vpop.f32.mrb[0].mxu0
      %v2724 = vadd.f32 0.0, %v2723
      %v2725 = vpop.f32.mrb[0].mxu0
      %2726 = vmatprep.mubr.f32.mxu0 0.0
      %2727 = vmatmul.mubr.f32.gmra.mrb[0].mxu0 %v2545
      %v2728 = vpop.f32.mrb[0].mxu0
      %v2729 = vadd.f32 0.0, %v2728
      %v2730 = vpop.f32.mrb[0].mxu0
      %2731 = vmatprep.mubr.f32.mxu0 0.0
      %2732 = vmatmul.mubr.f32.gmra.mrb[0].mxu0 %v2546
      %v2733 = vpop.f32.mrb[0].mxu0
      %v2734 = vadd.f32 0.0, %v2733
      %v2735 = vpop.f32.mrb[0].mxu0
      %2736 = vmatprep.mubr.f32.mxu0 0.0
      %2737 = vmatmul.mubr.f32.gmra.mrb[0].mxu0 %v2547
      %v2738 = vpop.f32.mrb[0].mxu0
      %v2739 = vadd.f32 0.0, %v2738
      %v2740 = vpop.f32.mrb[0].mxu0
      %2741 = vmatprep.mubr.f32.mxu0 0.0
      %2742 = vmatmul.mubr.f32.gmra.mrb[0].mxu0 %v2548
      %v2743 = vpop.f32.mrb[0].mxu0
      %v2744 = vadd.f32 0.0, %v2743
      %v2745 = vpop.f32.mrb[0].mxu0
      %2746 = vmatprep.mubr.f32.mxu0 0.0
      %2747 = vmatmul.mubr.f32.gmra.mrb[0].mxu0 %v2549
      %v2748 = vpop.f32.mrb[0].mxu0
      %v2749 = vadd.f32 0.0, %v2748
      %v2750 = vpop.f32.mrb[0].mxu0
      %2751 = vmatprep.mubr.f32.mxu0 0.0
      %2752 = vmatmul.mubr.f32.gmra.mrb[0].mxu0 %v2550
      %v2753 = vpop.f32.mrb[0].mxu0
      %v2754 = vadd.f32 0.0, %v2753
      %v2755 = vpop.f32.mrb[0].mxu0
      %2756 = vmatprep.mubr.f32.mxu0 0.0
      %2757 = vmatmul.mubr.f32.gmra.mrb[0].mxu0 %v2551
      %v2758 = vpop.f32.mrb[0].mxu0
      %v2759 = vadd.f32 0.0, %v2758
      %v2760 = vpop.f32.mrb[0].mxu0
      %2761 = vmatprep.mubr.f32.mxu0 0.0
      %2762 = vmatmul.mubr.f32.gmra.mrb[0].mxu0 %v2552
      %v2763 = vpop.f32.mrb[0].mxu0
      %v2764 = vadd.f32 0.0, %v2763
      %v2765 = vpop.f32.mrb[0].mxu0
      %2766 = vmatprep.mubr.f32.mxu0 0.0
      %2767 = vmatmul.mubr.f32.gmra.mrb[0].mxu0 %v2553
      %v2768 = vpop.f32.mrb[0].mxu0
      %v2769 = vadd.f32 0.0, %v2768
      %v2770 = vpop.f32.mrb[0].mxu0
      %2771 = vmatprep.mubr.f32.mxu0 0.0
      %2772 = vmatmul.mubr.f32.gmra.mrb[0].mxu0 %v2554
      %v2773 = vpop.f32.mrb[0].mxu0
      %v2774 = vadd.f32 0.0, %v2773
      %v2775 = vpop.f32.mrb[0].mxu0
      %2776 = vmatprep.mubr.f32.mxu0 0.0
      %2777 = vmatmul.mubr.f32.gmra.mrb[0].mxu0 %v2555
      %v2778 = vpop.f32.mrb[0].mxu0
      %v2779 = vadd.f32 0.0, %v2778
      %v2780 = vpop.f32.mrb[0].mxu0
      %2781 = vmatprep.mubr.f32.mxu0 0.0
      %2782 = vmatmul.mubr.f32.gmra.mrb[0].mxu0 %v2556
      %v2783 = vpop.f32.mrb[0].mxu0
      %v2784 = vadd.f32 0.0, %v2783
      %v2785 = vpop.f32.mrb[0].mxu0
      %2786 = vmatprep.mubr.f32.mxu0 0.0
      %2787 = vmatmul.mubr.f32.gmra.mrb[0].mxu0 %v2557
      %v2788 = vpop.f32.mrb[0].mxu0
      %v2789 = vadd.f32 0.0, %v2788
      %v2790 = vpop.f32.mrb[0].mxu0
      %2791 = vmatprep.mubr.f32.mxu0 0.0
      %2792 = vmatmul.mubr.f32.gmra.mrb[0].mxu0 %v2558
      %v2793 = vpop.f32.mrb[0].mxu0
      %v2794 = vadd.f32 0.0, %v2793
      %v2795 = vpop.f32.mrb[0].mxu0
      %2796 = vmatprep.mubr.f32.mxu0 0.0
      %2797 = vmatmul.mubr.f32.gmra.mrb[0].mxu0 %v2559
      %v2798 = vpop.f32.mrb[0].mxu0
      %v2799 = vadd.f32 0.0, %v2798
      %v2800 = vpop.f32.mrb[0].mxu0
      %2801 = vdwg.mxu0
      %v2802 = vadd.f32 %v2496, %v2644
      %v2803 = vadd.f32 %v2497, %v2649
      %v2804 = vadd.f32 %v2498, %v2654
      %v2805 = vadd.f32 %v2499, %v2659
      %v2806 = vadd.f32 %v2500, %v2664
      %v2807 = vadd.f32 %v2501, %v2669
      %v2808 = vadd.f32 %v2502, %v2674
      %v2809 = vadd.f32 %v2503, %v2679
      %v2810 = vadd.f32 %v2504, %v2684
      %v2811 = vadd.f32 %v2505, %v2689
      %v2812 = vadd.f32 %v2506, %v2694
      %v2813 = vadd.f32 %v2507, %v2699
      %v2814 = vadd.f32 %v2508, %v2704
      %v2815 = vadd.f32 %v2509, %v2709
      %v2816 = vadd.f32 %v2510, %v2714
      %v2817 = vadd.f32 %v2511, %v2719
      %v2818 = vadd.f32 %v2512, %v2724
      %v2819 = vadd.f32 %v2513, %v2729
      %v2820 = vadd.f32 %v2514, %v2734
      %v2821 = vadd.f32 %v2515, %v2739
      %v2822 = vadd.f32 %v2516, %v2744
      %v2823 = vadd.f32 %v2517, %v2749
      %v2824 = vadd.f32 %v2518, %v2754
      %v2825 = vadd.f32 %v2519, %v2759
      %v2826 = vadd.f32 %v2520, %v2764
      %v2827 = vadd.f32 %v2521, %v2769
      %v2828 = vadd.f32 %v2522, %v2774
      %v2829 = vadd.f32 %v2523, %v2779
      %v2830 = vadd.f32 %v2524, %v2784
      %v2831 = vadd.f32 %v2525, %v2789
      %v2832 = vadd.f32 %v2526, %v2794
      %v2833 = vadd.f32 %v2527, %v2799
      %v2834 = vld [vmem:[%s2221 + $0x2] sm:$0xff]
      %v2835 = vld [vmem:[%s2221 + $0xa] sm:$0xff]
      %v2836 = vld [vmem:[%s2221 + $0x1a] sm:$0xff]
      %v2837 = vld [vmem:[%s2221 + $0x22] sm:$0xff]
      %v2838 = vld [vmem:[%s2221 + $0x32] sm:$0xff]
      %v2839 = vld [vmem:[%s2221 + $0x3a] sm:$0xff]
      %v2840 = vld [vmem:[%s2221 + $0x4a] sm:$0xff]
      %v2841 = vld [vmem:[%s2221 + $0x52] sm:$0xff]
      %v2842 = vld [vmem:[%s2221 + $0x62] sm:$0xff]
      %v2843 = vld [vmem:[%s2221 + $0x6a] sm:$0xff]
      %v2844 = vld [vmem:[%s2221 + $0x7a] sm:$0xff]
      %v2845 = vld [vmem:[%s2221 + $0x82] sm:$0xff]
      %v2846 = vld [vmem:[%s2221 + $0x92] sm:$0xff]
      %v2847 = vld [vmem:[%s2221 + $0x9a] sm:$0xff]
      %v2848 = vld [vmem:[%s2221 + $0xaa] sm:$0xff]
      %v2849 = vld [vmem:[%s2221 + $0xb2] sm:$0xff]
      %v2850 = vld [vmem:[%s2221 + $0xc2] sm:$0xff]
      %v2851 = vld [vmem:[%s2221 + $0xca] sm:$0xff]
      %v2852 = vld [vmem:[%s2221 + $0xda] sm:$0xff]
      %v2853 = vld [vmem:[%s2221 + $0xe2] sm:$0xff]
      %v2854 = vld [vmem:[%s2221 + $0xf2] sm:$0xff]
      %v2855 = vld [vmem:[%s2221 + $0xfa] sm:$0xff]
      %v2856 = vld [vmem:[%s2221 + $0x10a] sm:$0xff]
      %v2857 = vld [vmem:[%s2221 + $0x112] sm:$0xff]
      %v2858 = vld [vmem:[%s2221 + $0x122] sm:$0xff]
      %v2859 = vld [vmem:[%s2221 + $0x12a] sm:$0xff]
      %v2860 = vld [vmem:[%s2221 + $0x13a] sm:$0xff]
      %v2861 = vld [vmem:[%s2221 + $0x142] sm:$0xff]
      %v2862 = vld [vmem:[%s2221 + $0x152] sm:$0xff]
      %v2863 = vld [vmem:[%s2221 + $0x15a] sm:$0xff]
      %v2864 = vld [vmem:[%s2221 + $0x16a] sm:$0xff]
      %v2865 = vld [vmem:[%s2221 + $0x172] sm:$0xff]
      %s2866 = scalar_lea.vmem %s3, 1024
      %v2867 = vld [vmem:[%s2866] sm:$0xff]
      %v2868 = vld [vmem:[%s2866 + $0x8] sm:$0xff]
      %v2869 = vld [vmem:[%s2866 + $0x10] sm:$0xff]
      %v2870 = vld [vmem:[%s2866 + $0x18] sm:$0xff]
      %v2871 = vld [vmem:[%s2866 + $0x20] sm:$0xff]
      %v2872 = vld [vmem:[%s2866 + $0x28] sm:$0xff]
      %v2873 = vld [vmem:[%s2866 + $0x30] sm:$0xff]
      %v2874 = vld [vmem:[%s2866 + $0x38] sm:$0xff]
      %v2875 = vld [vmem:[%s2866 + $0x40] sm:$0xff]
      %v2876 = vld [vmem:[%s2866 + $0x48] sm:$0xff]
      %v2877 = vld [vmem:[%s2866 + $0x50] sm:$0xff]
      %v2878 = vld [vmem:[%s2866 + $0x58] sm:$0xff]
      %v2879 = vld [vmem:[%s2866 + $0x60] sm:$0xff]
      %v2880 = vld [vmem:[%s2866 + $0x68] sm:$0xff]
      %v2881 = vld [vmem:[%s2866 + $0x70] sm:$0xff]
      %v2882 = vld [vmem:[%s2866 + $0x78] sm:$0xff]
      %2883 = vmatprep.subr.mxu0 0.0
      %2884 = vmatpush1.msra.mxu0 %v2867
      %2885 = vmatprep.subr.mxu0 0.0
      %2886 = vmatpush1.msra.mxu0 %v2868
      %2887 = vmatprep.subr.mxu0 0.0
      %2888 = vmatpush1.msra.mxu0 %v2869
      %2889 = vmatprep.subr.mxu0 0.0
      %2890 = vmatpush1.msra.mxu0 %v2870
      %2891 = vmatprep.subr.mxu0 0.0
      %2892 = vmatpush1.msra.mxu0 %v2871
      %2893 = vmatprep.subr.mxu0 0.0
      %2894 = vmatpush1.msra.mxu0 %v2872
      %2895 = vmatprep.subr.mxu0 0.0
      %2896 = vmatpush1.msra.mxu0 %v2873
      %2897 = vmatprep.subr.mxu0 0.0
      %2898 = vmatpush1.msra.mxu0 %v2874
      %2899 = vmatprep.subr.mxu0 0.0
      %2900 = vmatpush1.msra.mxu0 %v2875
      %2901 = vmatprep.subr.mxu0 0.0
      %2902 = vmatpush1.msra.mxu0 %v2876
      %2903 = vmatprep.subr.mxu0 0.0
      %2904 = vmatpush1.msra.mxu0 %v2877
      %2905 = vmatprep.subr.mxu0 0.0
      %2906 = vmatpush1.msra.mxu0 %v2878
      %2907 = vmatprep.subr.mxu0 0.0
      %2908 = vmatpush1.msra.mxu0 %v2879
      %2909 = vmatprep.subr.mxu0 0.0
      %2910 = vmatpush1.msra.mxu0 %v2880
      %2911 = vmatprep.subr.mxu0 0.0
      %2912 = vmatpush1.msra.mxu0 %v2881
      %2913 = vmatprep.subr.mxu0 0.0
      %2914 = vmatpush1.msra.mxu0 %v2882
      %2915 = vmatprep.subr.mxu0 0.0
      %2916 = vmatpush1.msra.mxu0 0.0
      %2917 = vmatprep.subr.mxu0 0.0
      %2918 = vmatpush1.msra.mxu0 0.0
      %2919 = vmatprep.subr.mxu0 0.0
      %2920 = vmatpush1.msra.mxu0 0.0
      %2921 = vmatprep.subr.mxu0 0.0
      %2922 = vmatpush1.msra.mxu0 0.0
      %2923 = vmatprep.subr.mxu0 0.0
      %2924 = vmatpush1.msra.mxu0 0.0
      %2925 = vmatprep.subr.mxu0 0.0
      %2926 = vmatpush1.msra.mxu0 0.0
      %2927 = vmatprep.subr.mxu0 0.0
      %2928 = vmatpush1.msra.mxu0 0.0
      %2929 = vmatprep.subr.mxu0 0.0
      %2930 = vmatpush1.msra.mxu0 0.0
      %2931 = vmatprep.subr.mxu0 0.0
      %2932 = vmatpush1.msra.mxu0 0.0
      %2933 = vmatprep.subr.mxu0 0.0
      %2934 = vmatpush1.msra.mxu0 0.0
      %2935 = vmatprep.subr.mxu0 0.0
      %2936 = vmatpush1.msra.mxu0 0.0
      %2937 = vmatprep.subr.mxu0 0.0
      %2938 = vmatpush1.msra.mxu0 0.0
      %2939 = vmatprep.subr.mxu0 0.0
      %2940 = vmatpush1.msra.mxu0 0.0
      %2941 = vmatprep.subr.mxu0 0.0
      %2942 = vmatpush1.msra.mxu0 0.0
      %2943 = vmatprep.subr.mxu0 0.0
      %2944 = vmatpush1.msra.mxu0 0.0
      %2945 = vmatprep.subr.mxu0 0.0
      %2946 = vmatpush1.msra.mxu0 0.0
      %2947 = vmatprep.mubr.f32.mxu0 0.0
      %2948 = vmatmul.mubr.f32.gmra.mrb[0].mxu0 %v2834
      %v2949 = vpop.f32.mrb[0].mxu0
      %v2950 = vadd.f32 0.0, %v2949
      %v2951 = vpop.f32.mrb[0].mxu0
      %2952 = vmatprep.mubr.f32.mxu0 0.0
      %2953 = vmatmul.mubr.f32.gmra.mrb[0].mxu0 %v2835
      %v2954 = vpop.f32.mrb[0].mxu0
      %v2955 = vadd.f32 0.0, %v2954
      %v2956 = vpop.f32.mrb[0].mxu0
      %2957 = vmatprep.mubr.f32.mxu0 0.0
      %2958 = vmatmul.mubr.f32.gmra.mrb[0].mxu0 %v2836
      %v2959 = vpop.f32.mrb[0].mxu0
      %v2960 = vadd.f32 0.0, %v2959
      %v2961 = vpop.f32.mrb[0].mxu0
      %2962 = vmatprep.mubr.f32.mxu0 0.0
      %2963 = vmatmul.mubr.f32.gmra.mrb[0].mxu0 %v2837
      %v2964 = vpop.f32.mrb[0].mxu0
      %v2965 = vadd.f32 0.0, %v2964
      %v2966 = vpop.f32.mrb[0].mxu0
      %2967 = vmatprep.mubr.f32.mxu0 0.0
      %2968 = vmatmul.mubr.f32.gmra.mrb[0].mxu0 %v2838
      %v2969 = vpop.f32.mrb[0].mxu0
      %v2970 = vadd.f32 0.0, %v2969
      %v2971 = vpop.f32.mrb[0].mxu0
      %2972 = vmatprep.mubr.f32.mxu0 0.0
      %2973 = vmatmul.mubr.f32.gmra.mrb[0].mxu0 %v2839
      %v2974 = vpop.f32.mrb[0].mxu0
      %v2975 = vadd.f32 0.0, %v2974
      %v2976 = vpop.f32.mrb[0].mxu0
      %2977 = vmatprep.mubr.f32.mxu0 0.0
      %2978 = vmatmul.mubr.f32.gmra.mrb[0].mxu0 %v2840
      %v2979 = vpop.f32.mrb[0].mxu0
      %v2980 = vadd.f32 0.0, %v2979
      %v2981 = vpop.f32.mrb[0].mxu0
      %2982 = vmatprep.mubr.f32.mxu0 0.0
      %2983 = vmatmul.mubr.f32.gmra.mrb[0].mxu0 %v2841
      %v2984 = vpop.f32.mrb[0].mxu0
      %v2985 = vadd.f32 0.0, %v2984
      %v2986 = vpop.f32.mrb[0].mxu0
      %2987 = vmatprep.mubr.f32.mxu0 0.0
      %2988 = vmatmul.mubr.f32.gmra.mrb[0].mxu0 %v2842
      %v2989 = vpop.f32.mrb[0].mxu0
      %v2990 = vadd.f32 0.0, %v2989
      %v2991 = vpop.f32.mrb[0].mxu0
      %2992 = vmatprep.mubr.f32.mxu0 0.0
      %2993 = vmatmul.mubr.f32.gmra.mrb[0].mxu0 %v2843
      %v2994 = vpop.f32.mrb[0].mxu0
      %v2995 = vadd.f32 0.0, %v2994
      %v2996 = vpop.f32.mrb[0].mxu0
      %2997 = vmatprep.mubr.f32.mxu0 0.0
      %2998 = vmatmul.mubr.f32.gmra.mrb[0].mxu0 %v2844
      %v2999 = vpop.f32.mrb[0].mxu0
      %v3000 = vadd.f32 0.0, %v2999
      %v3001 = vpop.f32.mrb[0].mxu0
      %3002 = vmatprep.mubr.f32.mxu0 0.0
      %3003 = vmatmul.mubr.f32.gmra.mrb[0].mxu0 %v2845
      %v3004 = vpop.f32.mrb[0].mxu0
      %v3005 = vadd.f32 0.0, %v3004
      %v3006 = vpop.f32.mrb[0].mxu0
      %3007 = vmatprep.mubr.f32.mxu0 0.0
      %3008 = vmatmul.mubr.f32.gmra.mrb[0].mxu0 %v2846
      %v3009 = vpop.f32.mrb[0].mxu0
      %v3010 = vadd.f32 0.0, %v3009
      %v3011 = vpop.f32.mrb[0].mxu0
      %3012 = vmatprep.mubr.f32.mxu0 0.0
      %3013 = vmatmul.mubr.f32.gmra.mrb[0].mxu0 %v2847
      %v3014 = vpop.f32.mrb[0].mxu0
      %v3015 = vadd.f32 0.0, %v3014
      %v3016 = vpop.f32.mrb[0].mxu0
      %3017 = vmatprep.mubr.f32.mxu0 0.0
      %3018 = vmatmul.mubr.f32.gmra.mrb[0].mxu0 %v2848
      %v3019 = vpop.f32.mrb[0].mxu0
      %v3020 = vadd.f32 0.0, %v3019
      %v3021 = vpop.f32.mrb[0].mxu0
      %3022 = vmatprep.mubr.f32.mxu0 0.0
      %3023 = vmatmul.mubr.f32.gmra.mrb[0].mxu0 %v2849
      %v3024 = vpop.f32.mrb[0].mxu0
      %v3025 = vadd.f32 0.0, %v3024
      %v3026 = vpop.f32.mrb[0].mxu0
      %3027 = vmatprep.mubr.f32.mxu0 0.0
      %3028 = vmatmul.mubr.f32.gmra.mrb[0].mxu0 %v2850
      %v3029 = vpop.f32.mrb[0].mxu0
      %v3030 = vadd.f32 0.0, %v3029
      %v3031 = vpop.f32.mrb[0].mxu0
      %3032 = vmatprep.mubr.f32.mxu0 0.0
      %3033 = vmatmul.mubr.f32.gmra.mrb[0].mxu0 %v2851
      %v3034 = vpop.f32.mrb[0].mxu0
      %v3035 = vadd.f32 0.0, %v3034
      %v3036 = vpop.f32.mrb[0].mxu0
      %3037 = vmatprep.mubr.f32.mxu0 0.0
      %3038 = vmatmul.mubr.f32.gmra.mrb[0].mxu0 %v2852
      %v3039 = vpop.f32.mrb[0].mxu0
      %v3040 = vadd.f32 0.0, %v3039
      %v3041 = vpop.f32.mrb[0].mxu0
      %3042 = vmatprep.mubr.f32.mxu0 0.0
      %3043 = vmatmul.mubr.f32.gmra.mrb[0].mxu0 %v2853
      %v3044 = vpop.f32.mrb[0].mxu0
      %v3045 = vadd.f32 0.0, %v3044
      %v3046 = vpop.f32.mrb[0].mxu0
      %3047 = vmatprep.mubr.f32.mxu0 0.0
      %3048 = vmatmul.mubr.f32.gmra.mrb[0].mxu0 %v2854
      %v3049 = vpop.f32.mrb[0].mxu0
      %v3050 = vadd.f32 0.0, %v3049
      %v3051 = vpop.f32.mrb[0].mxu0
      %3052 = vmatprep.mubr.f32.mxu0 0.0
      %3053 = vmatmul.mubr.f32.gmra.mrb[0].mxu0 %v2855
      %v3054 = vpop.f32.mrb[0].mxu0
      %v3055 = vadd.f32 0.0, %v3054
      %v3056 = vpop.f32.mrb[0].mxu0
      %3057 = vmatprep.mubr.f32.mxu0 0.0
      %3058 = vmatmul.mubr.f32.gmra.mrb[0].mxu0 %v2856
      %v3059 = vpop.f32.mrb[0].mxu0
      %v3060 = vadd.f32 0.0, %v3059
      %v3061 = vpop.f32.mrb[0].mxu0
      %3062 = vmatprep.mubr.f32.mxu0 0.0
      %3063 = vmatmul.mubr.f32.gmra.mrb[0].mxu0 %v2857
      %v3064 = vpop.f32.mrb[0].mxu0
      %v3065 = vadd.f32 0.0, %v3064
      %v3066 = vpop.f32.mrb[0].mxu0
      %3067 = vmatprep.mubr.f32.mxu0 0.0
      %3068 = vmatmul.mubr.f32.gmra.mrb[0].mxu0 %v2858
      %v3069 = vpop.f32.mrb[0].mxu0
      %v3070 = vadd.f32 0.0, %v3069
      %v3071 = vpop.f32.mrb[0].mxu0
      %3072 = vmatprep.mubr.f32.mxu0 0.0
      %3073 = vmatmul.mubr.f32.gmra.mrb[0].mxu0 %v2859
      %v3074 = vpop.f32.mrb[0].mxu0
      %v3075 = vadd.f32 0.0, %v3074
      %v3076 = vpop.f32.mrb[0].mxu0
      %3077 = vmatprep.mubr.f32.mxu0 0.0
      %3078 = vmatmul.mubr.f32.gmra.mrb[0].mxu0 %v2860
      %v3079 = vpop.f32.mrb[0].mxu0
      %v3080 = vadd.f32 0.0, %v3079
      %v3081 = vpop.f32.mrb[0].mxu0
      %3082 = vmatprep.mubr.f32.mxu0 0.0
      %3083 = vmatmul.mubr.f32.gmra.mrb[0].mxu0 %v2861
      %v3084 = vpop.f32.mrb[0].mxu0
      %v3085 = vadd.f32 0.0, %v3084
      %v3086 = vpop.f32.mrb[0].mxu0
      %3087 = vmatprep.mubr.f32.mxu0 0.0
      %3088 = vmatmul.mubr.f32.gmra.mrb[0].mxu0 %v2862
      %v3089 = vpop.f32.mrb[0].mxu0
      %v3090 = vadd.f32 0.0, %v3089
      %v3091 = vpop.f32.mrb[0].mxu0
      %3092 = vmatprep.mubr.f32.mxu0 0.0
      %3093 = vmatmul.mubr.f32.gmra.mrb[0].mxu0 %v2863
      %v3094 = vpop.f32.mrb[0].mxu0
      %v3095 = vadd.f32 0.0, %v3094
      %v3096 = vpop.f32.mrb[0].mxu0
      %3097 = vmatprep.mubr.f32.mxu0 0.0
      %3098 = vmatmul.mubr.f32.gmra.mrb[0].mxu0 %v2864
      %v3099 = vpop.f32.mrb[0].mxu0
      %v3100 = vadd.f32 0.0, %v3099
      %v3101 = vpop.f32.mrb[0].mxu0
      %3102 = vmatprep.mubr.f32.mxu0 0.0
      %3103 = vmatmul.mubr.f32.gmra.mrb[0].mxu0 %v2865
      %v3104 = vpop.f32.mrb[0].mxu0
      %v3105 = vadd.f32 0.0, %v3104
      %v3106 = vpop.f32.mrb[0].mxu0
      %3107 = vdwg.mxu0
      %v3108 = vadd.f32 %v2802, %v2950
      %v3109 = vadd.f32 %v2803, %v2955
      %v3110 = vadd.f32 %v2804, %v2960
      %v3111 = vadd.f32 %v2805, %v2965
      %v3112 = vadd.f32 %v2806, %v2970
      %v3113 = vadd.f32 %v2807, %v2975
      %v3114 = vadd.f32 %v2808, %v2980
      %v3115 = vadd.f32 %v2809, %v2985
      %v3116 = vadd.f32 %v2810, %v2990
      %v3117 = vadd.f32 %v2811, %v2995
      %v3118 = vadd.f32 %v2812, %v3000
      %v3119 = vadd.f32 %v2813, %v3005
      %v3120 = vadd.f32 %v2814, %v3010
      %v3121 = vadd.f32 %v2815, %v3015
      %v3122 = vadd.f32 %v2816, %v3020
      %v3123 = vadd.f32 %v2817, %v3025
      %v3124 = vadd.f32 %v2818, %v3030
      %v3125 = vadd.f32 %v2819, %v3035
      %v3126 = vadd.f32 %v2820, %v3040
      %v3127 = vadd.f32 %v2821, %v3045
      %v3128 = vadd.f32 %v2822, %v3050
      %v3129 = vadd.f32 %v2823, %v3055
      %v3130 = vadd.f32 %v2824, %v3060
      %v3131 = vadd.f32 %v2825, %v3065
      %v3132 = vadd.f32 %v2826, %v3070
      %v3133 = vadd.f32 %v2827, %v3075
      %v3134 = vadd.f32 %v2828, %v3080
      %v3135 = vadd.f32 %v2829, %v3085
      %v3136 = vadd.f32 %v2830, %v3090
      %v3137 = vadd.f32 %v2831, %v3095
      %v3138 = vadd.f32 %v2832, %v3100
      %v3139 = vadd.f32 %v2833, %v3105
      %3140 = vst [vmem:[%s231] sm:$0xff] %v3108
      %3141 = vst [vmem:[%s231 + $0x8] sm:$0xff] %v3109
      %3142 = vst [vmem:[%s231 + $0x10] sm:$0xff] %v3110
      %3143 = vst [vmem:[%s231 + $0x18] sm:$0xff] %v3111
      %3144 = vst [vmem:[%s231 + $0x20] sm:$0xff] %v3112
      %3145 = vst [vmem:[%s231 + $0x28] sm:$0xff] %v3113
      %3146 = vst [vmem:[%s231 + $0x30] sm:$0xff] %v3114
      %3147 = vst [vmem:[%s231 + $0x38] sm:$0xff] %v3115
      %3148 = vst [vmem:[%s231 + $0x40] sm:$0xff] %v3116
      %3149 = vst [vmem:[%s231 + $0x48] sm:$0xff] %v3117
      %3150 = vst [vmem:[%s231 + $0x50] sm:$0xff] %v3118
      %3151 = vst [vmem:[%s231 + $0x58] sm:$0xff] %v3119
      %3152 = vst [vmem:[%s231 + $0x60] sm:$0xff] %v3120
      %3153 = vst [vmem:[%s231 + $0x68] sm:$0xff] %v3121
      %3154 = vst [vmem:[%s231 + $0x70] sm:$0xff] %v3122
      %3155 = vst [vmem:[%s231 + $0x78] sm:$0xff] %v3123
      %3156 = vst [vmem:[%s231 + $0x80] sm:$0xff] %v3124
      %3157 = vst [vmem:[%s231 + $0x88] sm:$0xff] %v3125
      %3158 = vst [vmem:[%s231 + $0x90] sm:$0xff] %v3126
      %3159 = vst [vmem:[%s231 + $0x98] sm:$0xff] %v3127
      %3160 = vst [vmem:[%s231 + $0xa0] sm:$0xff] %v3128
      %3161 = vst [vmem:[%s231 + $0xa8] sm:$0xff] %v3129
      %3162 = vst [vmem:[%s231 + $0xb0] sm:$0xff] %v3130
      %3163 = vst [vmem:[%s231 + $0xb8] sm:$0xff] %v3131
      %3164 = vst [vmem:[%s231 + $0xc0] sm:$0xff] %v3132
      %3165 = vst [vmem:[%s231 + $0xc8] sm:$0xff] %v3133
      %3166 = vst [vmem:[%s231 + $0xd0] sm:$0xff] %v3134
      %3167 = vst [vmem:[%s231 + $0xd8] sm:$0xff] %v3135
      %3168 = vst [vmem:[%s231 + $0xe0] sm:$0xff] %v3136
      %3169 = vst [vmem:[%s231 + $0xe8] sm:$0xff] %v3137
      %3170 = vst [vmem:[%s231 + $0xf0] sm:$0xff] %v3138
      %3171 = vst [vmem:[%s231 + $0xf8] sm:$0xff] %v3139
      %v3172 = vadd.f32 %v3108, %v3109
      %v3173 = vadd.f32 %v3172, %v3110
      %v3174 = vadd.f32 %v3173, %v3111
      %v3175 = vadd.f32 %v3174, %v3112
      %v3176 = vadd.f32 %v3175, %v3113
      %v3177 = vadd.f32 %v3176, %v3114
      %v3178 = vadd.f32 %v3177, %v3115
      %v3179 = vadd.f32 %v3178, %v3116
      %v3180 = vadd.f32 %v3179, %v3117
      %v3181 = vadd.f32 %v3180, %v3118
      %v3182 = vadd.f32 %v3181, %v3119
      %v3183 = vadd.f32 %v3182, %v3120
      %v3184 = vadd.f32 %v3183, %v3121
      %v3185 = vadd.f32 %v3184, %v3122
      %v3186 = vadd.f32 %v3185, %v3123
      %v3187 = vadd.f32 %v3186, %v3124
      %v3188 = vadd.f32 %v3187, %v3125
      %v3189 = vadd.f32 %v3188, %v3126
      %v3190 = vadd.f32 %v3189, %v3127
      %v3191 = vadd.f32 %v3190, %v3128
      %v3192 = vadd.f32 %v3191, %v3129
      %v3193 = vadd.f32 %v3192, %v3130
      %v3194 = vadd.f32 %v3193, %v3131
      %v3195 = vadd.f32 %v3194, %v3132
      %v3196 = vadd.f32 %v3195, %v3133
      %v3197 = vadd.f32 %v3196, %v3134
      %v3198 = vadd.f32 %v3197, %v3135
      %v3199 = vadd.f32 %v3198, %v3136
      %v3200 = vadd.f32 %v3199, %v3137
      %v3201 = vadd.f32 %v3200, %v3138
      %v3202 = vadd.f32 %v3201, %v3139
      %v3203 = vrot.slane %v3202, 4
      %v3204 = vadd.f32 %v3202, %v3203
      %v3205 = vrot.slane %v3204, 2
      %v3206 = vadd.f32 %v3204, %v3205
      %v3207 = vrot.slane %v3206, 1
      %v3208 = vadd.f32 %v3206, %v3207
      %3209 = vst [vmem:[%s235] sm:$0x1] %v3208
      %v3210 = vmul.f32 %v3108, %v3108
      %v3211 = vmul.f32 %v3109, %v3109
      %v3212 = vmul.f32 %v3110, %v3110
      %v3213 = vmul.f32 %v3111, %v3111
      %v3214 = vmul.f32 %v3112, %v3112
      %v3215 = vmul.f32 %v3113, %v3113
      %v3216 = vmul.f32 %v3114, %v3114
      %v3217 = vmul.f32 %v3115, %v3115
      %v3218 = vmul.f32 %v3116, %v3116
      %v3219 = vmul.f32 %v3117, %v3117
      %v3220 = vmul.f32 %v3118, %v3118
      %v3221 = vmul.f32 %v3119, %v3119
      %v3222 = vmul.f32 %v3120, %v3120
      %v3223 = vmul.f32 %v3121, %v3121
      %v3224 = vmul.f32 %v3122, %v3122
      %v3225 = vmul.f32 %v3123, %v3123
      %v3226 = vmul.f32 %v3124, %v3124
      %v3227 = vmul.f32 %v3125, %v3125
      %v3228 = vmul.f32 %v3126, %v3126
      %v3229 = vmul.f32 %v3127, %v3127
      %v3230 = vmul.f32 %v3128, %v3128
      %v3231 = vmul.f32 %v3129, %v3129
      %v3232 = vmul.f32 %v3130, %v3130
      %v3233 = vmul.f32 %v3131, %v3131
      %v3234 = vmul.f32 %v3132, %v3132
      %v3235 = vmul.f32 %v3133, %v3133
      %v3236 = vmul.f32 %v3134, %v3134
      %v3237 = vmul.f32 %v3135, %v3135
      %v3238 = vmul.f32 %v3136, %v3136
      %v3239 = vmul.f32 %v3137, %v3137
      %v3240 = vmul.f32 %v3138, %v3138
      %v3241 = vmul.f32 %v3139, %v3139
      %v3242 = vadd.f32 %v3210, %v3211
      %v3243 = vadd.f32 %v3242, %v3212
      %v3244 = vadd.f32 %v3243, %v3213
      %v3245 = vadd.f32 %v3244, %v3214
      %v3246 = vadd.f32 %v3245, %v3215
      %v3247 = vadd.f32 %v3246, %v3216
      %v3248 = vadd.f32 %v3247, %v3217
      %v3249 = vadd.f32 %v3248, %v3218
      %v3250 = vadd.f32 %v3249, %v3219
      %v3251 = vadd.f32 %v3250, %v3220
      %v3252 = vadd.f32 %v3251, %v3221
      %v3253 = vadd.f32 %v3252, %v3222
      %v3254 = vadd.f32 %v3253, %v3223
      %v3255 = vadd.f32 %v3254, %v3224
      %v3256 = vadd.f32 %v3255, %v3225
      %v3257 = vadd.f32 %v3256, %v3226
      %v3258 = vadd.f32 %v3257, %v3227
      %v3259 = vadd.f32 %v3258, %v3228
      %v3260 = vadd.f32 %v3259, %v3229
      %v3261 = vadd.f32 %v3260, %v3230
      %v3262 = vadd.f32 %v3261, %v3231
      %v3263 = vadd.f32 %v3262, %v3232
      %v3264 = vadd.f32 %v3263, %v3233
      %v3265 = vadd.f32 %v3264, %v3234
      %v3266 = vadd.f32 %v3265, %v3235
      %v3267 = vadd.f32 %v3266, %v3236
      %v3268 = vadd.f32 %v3267, %v3237
      %v3269 = vadd.f32 %v3268, %v3238
      %v3270 = vadd.f32 %v3269, %v3239
      %v3271 = vadd.f32 %v3270, %v3240
      %v3272 = vadd.f32 %v3271, %v3241
      %v3273 = vrot.slane %v3272, 4
      %v3274 = vadd.f32 %v3272, %v3273
      %v3275 = vrot.slane %v3274, 2
      %v3276 = vadd.f32 %v3274, %v3275
      %v3277 = vrot.slane %v3276, 1
      %v3278 = vadd.f32 %v3276, %v3277
      %3279 = vst [vmem:[%s235 + $0x1] sm:$0x1] %v3278
      %p3280 = scmp.lt.s32.totalorder %s17, 1
      %s3281 = scalar_select %p3280, %s17, 1
      %s3282 = smul.addr %s3281, 32
      %s3283 = smul.addr %s3282, 8
      %s3284 = scalar_lea.vmem %s4, %s3283
      %p3285 = scmp.lt.s32.totalorder %s17, 1
      %s3286 = scalar_select %p3285, %s17, 1
      %s3287 = smul.addr %s3286, 2
      %s3288 = scalar_lea.vmem %s5, %s3287
      // Predicated region
      $region37: #{preact_bottleneck.4} parent=35 // pred_check
        %p3289 = pneg %p124
      $region38: #{preact_bottleneck.4} parent=35 // pred_check_branch
        %3291 = sbr.rel (%p3289) target = $region40
      $region39: #{preact_bottleneck.4} parent=35 // pred_region
        _
      $region40: #{preact_bottleneck.4} parent=35 // pred_fallthru
        _
      // Predicated region
      $region41: #{preact_bottleneck.4} parent=35 // pred_check
        %p3292 = pneg %p150
      $region42: #{preact_bottleneck.4} parent=35 // pred_check_branch
        %3294 = sbr.rel (%p3292) target = $region44
      $region43: #{preact_bottleneck.4} parent=35 // pred_region
        _
      $region44: #{preact_bottleneck.4} parent=35 // pred_fallthru
        _
    $region36: #{preact_bottleneck.4} parent=5 // pred_fallthru
      _
    %p3295 = scmp.le.s32.totalorder 2, %s12
    // Predicated region
    $region45: #{preact_bottleneck.4} parent=5 // pred_check
      %p3296 = pneg %p3295
    $region46: #{preact_bottleneck.4} parent=5 // pred_check_branch
      %3298 = sbr.rel (%p3296) target = $region48
    $region47: #{preact_bottleneck.4} parent=5 // pred_region
      %s3299 = ssub.s32 %s12, 2
      // Predicated region
      $region49: #{preact_bottleneck.4} parent=47 // pred_check
        %p3300 = pneg %p130
      $region50: #{preact_bottleneck.4} parent=47 // pred_check_branch
        %3302 = sbr.rel (%p3300) target = $region52
      $region51: #{preact_bottleneck.4} parent=47 // pred_region
        %p3303 = scmp.lt.s32.totalorder %s18, 1
        %s3304 = scalar_select %p3303, %s18, 1
        %s3305 = smul.addr %s3304, 32
        %s3306 = smul.addr %s3305, 8
        %s3307 = scalar_lea.vmem %s4, %s3306
      $region52: #{preact_bottleneck.4} parent=47 // pred_fallthru
        _
      // Predicated region
      $region53: #{preact_bottleneck.4} parent=47 // pred_check
        %p3308 = pneg %p156
      $region54: #{preact_bottleneck.4} parent=47 // pred_check_branch
        %3310 = sbr.rel (%p3308) target = $region56
      $region55: #{preact_bottleneck.4} parent=47 // pred_region
        %p3311 = scmp.lt.s32.totalorder %s18, 1
        %s3312 = scalar_select %p3311, %s18, 1
        %s3313 = smul.addr %s3312, 2
        %s3314 = scalar_lea.vmem %s5, %s3313
      $region56: #{preact_bottleneck.4} parent=47 // pred_fallthru
        _
    $region48: #{preact_bottleneck.4} parent=5 // pred_fallthru
      _
  $region6: #{preact_bottleneck.4} parent=0 // loop_footer
    %s16 = sadd.s32 1, %s12
  $region7: #{preact_bottleneck.4} parent=0 // loop_footer_branch
    %11 = sbr.rel target = $region3
  $region8: #{preact_bottleneck.4} parent=0 // loop_exit
    _

</llo_original>
